<compile_context>
chip_gen: v6e
topology: v6e:2x2x1
jax: 0.10.0
libtpu: 0.0.40
codegen_flags: <defaults>
</compile_context>

<pallas_src>
import numpy as np
import jax
import jax.numpy as jnp
from jax.experimental import pallas as pl
from jax.experimental.pallas import tpu as pltpu

EPS = 1e-6


def _mish_ref(x):
    # reference mish: x * tanh(softplus(x)), numerically stable softplus
    sp = jnp.maximum(x, 0.0) + jnp.log(1.0 + jnp.exp(-jnp.abs(x)))
    return x * jnp.tanh(sp)


def _inception_taps():
    """Non-zero tap positions of the folded 11x11 per-channel kernel (25 taps)."""
    taps = []
    for r in range(11):
        for c in range(11):
            if r == 5 or c == 5 or (4 <= r <= 6 and 4 <= c <= 6):
                taps.append((r, c))
    return taps


def make_gated_cnn_kernel(H, W, dim, hidden, taps):
    HWF = H * W
    bf16 = jnp.bfloat16

    def _mish(x):
        # x * tanh(softplus(x));  tanh(softplus(x)) == n/(n+2) with n = e*(e+2), e = exp(x).
        # Clamp keeps exp finite; for x > 20 the factor is 1 to f32 precision anyway.
        e = jnp.exp(jnp.minimum(x, 20.0))
        n = e * (e + 2.0)
        return x * n * pl.reciprocal(n + 2.0, approx=True)

    def _zero_halo(ref, p):
        # Zero only the p-wide border of a (Hp, Wp, C) padded scratch.
        Hp, Wp, C = ref.shape
        zr = jnp.zeros((p, Wp, C), ref.dtype)
        zc = jnp.zeros((Hp, p, C), ref.dtype)
        ref[0:p, :, :] = zr
        ref[Hp - p:Hp, :, :] = zr
        ref[:, 0:p, :] = zc
        ref[:, Wp - p:Wp, :] = zc

    def kernel(x_ref, scale_ref, offset_ref, gamma_ref,
               w1_ref, b1_ref, kinc_ref, binc_ref, w2_ref, b2_ref,
               out_ref, pad1, pad_inc, pad2):
        # Conv zero-padding: halos must be zero; interiors are fully rewritten below.
        _zero_halo(pad1, 1)
        _zero_halo(pad_inc, 5)
        _zero_halo(pad2, 1)

        x = x_ref[0]  # (H, W, dim) f32

        # ---- RMSNorm over the channel (lane) axis ----
        rms = jnp.sqrt(jnp.sum(x * x, axis=-1, keepdims=True) * (1.0 / dim))
        inv = pl.reciprocal(rms + EPS, approx=True)
        xn = (x * inv) * scale_ref[...].reshape(1, 1, dim) + offset_ref[...].reshape(1, 1, dim)

        # ---- fc1: 3x3 conv = 9 shifted-window bf16 matmuls into one 128-wide f32 acc ----
        pad1[1:1 + H, 1:1 + W, :] = xn
        acc1 = jnp.zeros((HWF, 2 * hidden), jnp.float32)
        for t in range(9):
            dy, dx = divmod(t, 3)
            win = pad1[dy:dy + H, dx:dx + W, :].astype(bf16).reshape(HWF, dim)
            acc1 += jnp.dot(win, w1_ref[t], preferred_element_type=jnp.float32)
        y1 = (acc1 + b1_ref[...]).reshape(H, W, 2 * hidden)
        g = y1[:, :, 0:hidden]       # gate channels (aligned lane slice)
        tail = y1[:, :, hidden:]     # [i | c] value channels (aligned lane slice)

        # ---- InceptionDWConv2d folded over the whole tail (identity taps on i / c_id,
        #      dw3x3 / dw1x11 / dw11x1 taps on the grouped channels) ----
        pad_inc[5:5 + H, 5:5 + W, :] = tail
        t_out = jnp.zeros((H, W, hidden), jnp.float32)
        for t, (r, c) in enumerate(taps):
            t_out = t_out + pad_inc[r:r + H, c:c + W, :] * kinc_ref[t].reshape(1, 1, hidden)
        t_out = t_out + binc_ref[...].reshape(1, 1, hidden)

        # ---- gating: mish(g) * [i | conv(c)]  -> merged 64-channel fc2 input ----
        pad2[1:1 + H, 1:1 + W, :] = _mish(g) * t_out

        # ---- fc2: 3x3 conv = 9 shifted-window K=hidden bf16 matmuls ----
        acc2 = jnp.zeros((HWF, dim), jnp.float32)
        for t in range(9):
            dy, dx = divmod(t, 3)
            win = pad2[dy:dy + H, dx:dx + W, :].astype(bf16).reshape(HWF, hidden)
            acc2 += jnp.dot(win, w2_ref[t], preferred_element_type=jnp.float32)
        y2 = _mish(acc2 + b2_ref[...]).reshape(H, W, dim)

        out_ref[0] = y2 * gamma_ref[...].reshape(1, 1, dim) + x_ref[0]

    return kernel


def _const_spec(shape):
    n = len(shape)
    return pl.BlockSpec(shape, lambda b, _n=n: (0,) * _n)


def init_params(key, dim):
    hidden = int((8.0 / 3.0) * dim)
    gc = int(dim * 0.125)
    std = 0.02
    ks = jax.random.split(key, 13)
    f32 = jnp.float32
    return {
        'scale': 1.0 + 0.1 * jax.random.normal(ks[0], (dim,), f32),
        'offset': 0.05 * jax.random.normal(ks[1], (dim,), f32),
        'gamma': 1.0 + 0.1 * jax.random.normal(ks[2], (dim,), f32),
        'w1': std * jax.random.normal(ks[3], (3, 3, dim, 2 * hidden), f32),
        'b1': std * jax.random.normal(ks[4], (2 * hidden,), f32),
        'w2': std * jax.random.normal(ks[5], (3, 3, hidden, dim), f32),
        'b2': std * jax.random.normal(ks[6], (dim,), f32),
        'whw': std * jax.random.normal(ks[7], (3, 3, gc), f32),
        'bhw': std * jax.random.normal(ks[8], (gc,), f32),
        'ww': std * jax.random.normal(ks[9], (11, gc), f32),
        'bw': std * jax.random.normal(ks[10], (gc,), f32),
        'wh': std * jax.random.normal(ks[11], (11, gc), f32),
        'bh': std * jax.random.normal(ks[12], (gc,), f32),
        'hidden': hidden,
        'gc': gc,
    }


def gated_cnn_block_pallas(x, p):
    B, H, W, dim = x.shape
    hidden, gc = p['hidden'], p['gc']
    hd = hidden - dim
    nid = dim - 3 * gc
    f32, bf16 = jnp.float32, jnp.bfloat16

    # Stacked per-tap conv weights, cast to bf16 for the MXU (f32 accumulation in-kernel).
    w1 = p['w1'].reshape(9, dim, 2 * hidden).astype(bf16)
    b1 = p['b1'].reshape(1, 2 * hidden)
    w2 = p['w2'].reshape(9, hidden, dim).astype(bf16)
    b2 = p['b2'].reshape(1, dim)

    # Fold InceptionDWConv2d (plus the pass-through of the i / c_id channels) into one
    # sparse per-channel tap table over the full [i | c] tail of the fc1 output.
    taps = _inception_taps()
    tap_idx = {rc: t for t, rc in enumerate(taps)}
    ident = hd + nid  # channels that pass through unchanged (i + c_id)
    K = np.zeros((len(taps), hidden), np.float32)
    whw = np.asarray(p['whw']); ww = np.asarray(p['ww']); wh = np.asarray(p['wh'])
    K[tap_idx[(5, 5)], :ident] = 1.0                                  # identity channels
    for dy in range(3):
        for dx in range(3):
            K[tap_idx[(4 + dy, 4 + dx)], ident:ident + gc] += whw[dy, dx]   # dw 3x3
    for k in range(11):
        K[tap_idx[(5, k)], ident + gc:ident + 2 * gc] += ww[k]              # dw 1x11
        K[tap_idx[(k, 5)], ident + 2 * gc:] += wh[k]                        # dw 11x1
    kinc = jnp.asarray(K)
    binc = jnp.concatenate(
        [jnp.zeros((ident,), f32), p['bhw'], p['bw'], p['bh']]).reshape(1, hidden)

    scale = p['scale'].reshape(1, dim)
    offset = p['offset'].reshape(1, dim)
    gamma = p['gamma'].reshape(1, dim)

    inputs = (x, scale, offset, gamma, w1, b1, kinc, binc, w2, b2)
    in_specs = [pl.BlockSpec((1, H, W, dim), lambda b: (b, 0, 0, 0))]
    in_specs += [_const_spec(tuple(a.shape)) for a in inputs[1:]]

    kernel = make_gated_cnn_kernel(H, W, dim, hidden, taps)

    grid_spec = pltpu.PrefetchScalarGridSpec(
        num_scalar_prefetch=0,
        grid=(B,),
        in_specs=in_specs,
        out_specs=pl.BlockSpec((1, H, W, dim), lambda b: (b, 0, 0, 0)),
        scratch_shapes=[
            pltpu.VMEM((H + 2, W + 2, dim), f32),       # fc1 padded input
            pltpu.VMEM((H + 10, W + 10, hidden), f32),  # inception padded tail [i|c]
            pltpu.VMEM((H + 2, W + 2, hidden), f32),    # fc2 padded merged input
        ],
    )

    return pl.pallas_call(
        kernel,
        out_shape=jax.ShapeDtypeStruct((B, H, W, dim), f32),
        grid_spec=grid_spec,
        compiler_params=pltpu.CompilerParams(dimension_semantics=("parallel",)),
    )(*inputs)


# ---------------- pure-JAX reference (correctness check) ----------------
def ref_forward(x, p):
    B, H, W, dim = x.shape
    hidden, gc = p['hidden'], p['gc']
    hd = hidden - dim
    nid = dim - 3 * gc

    def conv(inp, w, b, pad, fgc=1):
        y = jax.lax.conv_general_dilated(
            inp, w, (1, 1), pad,
            dimension_numbers=('NHWC', 'HWIO', 'NHWC'),
            feature_group_count=fgc,
            precision=jax.lax.Precision.HIGHEST)
        return y + b.reshape(1, 1, 1, -1)

    nrm = jnp.sqrt(jnp.sum(x * x, axis=-1, keepdims=True))
    rms = nrm * (float(dim) ** -0.5)
    xn = x / (rms + EPS)
    xn = xn * p['scale'].reshape(1, 1, 1, dim) + p['offset'].reshape(1, 1, 1, dim)

    y1 = conv(xn, p['w1'], p['b1'], ((1, 1), (1, 1)))
    g = y1[..., :hidden]
    i = y1[..., hidden:hidden + hd]
    c = y1[..., hidden + hd:]

    c_id = c[..., :nid]
    c_hw = c[..., nid:nid + gc]
    c_w = c[..., nid + gc:nid + 2 * gc]
    c_h = c[..., nid + 2 * gc:]
    o_hw = conv(c_hw, p['whw'].reshape(3, 3, 1, gc), p['bhw'], ((1, 1), (1, 1)), fgc=gc)
    o_w = conv(c_w, p['ww'].reshape(1, 11, 1, gc), p['bw'], ((0, 0), (5, 5)), fgc=gc)
    o_h = conv(c_h, p['wh'].reshape(11, 1, 1, gc), p['bh'], ((5, 5), (0, 0)), fgc=gc)
    c_out = jnp.concatenate([c_id, o_hw, o_w, o_h], axis=-1)

    val = _mish_ref(g) * jnp.concatenate([i, c_out], axis=-1)
    y2 = _mish_ref(conv(val, p['w2'], p['b2'], ((1, 1), (1, 1))))
    return y2 * p['gamma'].reshape(1, 1, 1, dim) + x


if __name__ == "__main__":
    B, H, W, dim = 2, 16, 16, 24   # PyTorch-equivalent NCHW input: (2, 24, 16, 16)
    key = jax.random.PRNGKey(0)
    kx, kp = jax.random.split(key)
    x = jax.random.normal(kx, (B, H, W, dim), jnp.float32)
    params = init_params(kp, dim)

    out = gated_cnn_block_pallas(x, params)
    out = jax.block_until_ready(out)

    ref = ref_forward(x, params)
    err = float(jnp.max(jnp.abs(out - ref)))
    # bf16 MXU operands (f32 accumulation) + EUP approx reciprocals -> slightly looser
    # bound than a pure-f32 kernel; outputs are O(1) due to the residual path.
    assert err < 1e-2, f"max abs error too large: {err}"
    print("KERNEL_OK")
</pallas_src>

<mosaic_0001>
module attributes {stable_mosaic.version = 11 : i64} {
  func.func @kernel(%arg0: i32, %arg1: memref<1x16x16x24xf32, #tpu.memory_space<vmem>>, %arg2: memref<1x24xf32, #tpu.memory_space<vmem>>, %arg3: memref<1x24xf32, #tpu.memory_space<vmem>>, %arg4: memref<1x24xf32, #tpu.memory_space<vmem>>, %arg5: memref<9x24x128xbf16, #tpu.memory_space<vmem>>, %arg6: memref<1x128xf32, #tpu.memory_space<vmem>>, %arg7: memref<25x64xf32, #tpu.memory_space<vmem>>, %arg8: memref<1x64xf32, #tpu.memory_space<vmem>>, %arg9: memref<9x64x24xbf16, #tpu.memory_space<vmem>>, %arg10: memref<1x24xf32, #tpu.memory_space<vmem>>, %arg11: memref<1x16x16x24xf32, #tpu.memory_space<vmem>>, %arg12: memref<18x18x24xf32, #tpu.memory_space<vmem>>, %arg13: memref<26x26x64xf32, #tpu.memory_space<vmem>>, %arg14: memref<18x18x64xf32, #tpu.memory_space<vmem>>) attributes {dimension_semantics = [#tpu.dimension_semantics<parallel>], iteration_bounds = array<i64: 2>, scalar_prefetch = 0 : i64, scratch_operands = 3 : i64, tpu.core_type = #tpu.core_type<tc>, window_params = [{transform_indices = @transform_0, window_bounds = array<i64: 1, 16, 16, 24>}, {pipeline_mode = #tpu.pipeline_mode<synchronous>, transform_indices = @transform_1, window_bounds = array<i64: 1, 24>}, {pipeline_mode = #tpu.pipeline_mode<synchronous>, transform_indices = @transform_2, window_bounds = array<i64: 1, 24>}, {pipeline_mode = #tpu.pipeline_mode<synchronous>, transform_indices = @transform_3, window_bounds = array<i64: 1, 24>}, {pipeline_mode = #tpu.pipeline_mode<synchronous>, transform_indices = @transform_4, window_bounds = array<i64: 9, 24, 128>}, {pipeline_mode = #tpu.pipeline_mode<synchronous>, transform_indices = @transform_5, window_bounds = array<i64: 1, 128>}, {pipeline_mode = #tpu.pipeline_mode<synchronous>, transform_indices = @transform_6, window_bounds = array<i64: 25, 64>}, {pipeline_mode = #tpu.pipeline_mode<synchronous>, transform_indices = @transform_7, window_bounds = array<i64: 1, 64>}, {pipeline_mode = #tpu.pipeline_mode<synchronous>, transform_indices = @transform_8, window_bounds = array<i64: 9, 64, 24>}, {pipeline_mode = #tpu.pipeline_mode<synchronous>, transform_indices = @transform_9, window_bounds = array<i64: 1, 24>}, {transform_indices = @transform_10, window_bounds = array<i64: 1, 16, 16, 24>}]} {
    %cst = arith.constant 0.000000e+00 : f32
    %0 = vector.broadcast %cst : f32 to vector<1x18x24xf32>
    %cst_0 = arith.constant 0.000000e+00 : f32
    %1 = vector.broadcast %cst_0 : f32 to vector<18x1x24xf32>
    %c0 = arith.constant 0 : index
    %c0_1 = arith.constant 0 : index
    %c0_2 = arith.constant 0 : index
    %2 = vector.load %arg12[%c0, %c0_1, %c0_2] : memref<18x18x24xf32, #tpu.memory_space<vmem>>, vector<1x18x24xf32>
    tpu.vector_store %arg12[%c0, %c0_1, %c0_2], %0 {strides = array<i32>} : memref<18x18x24xf32, #tpu.memory_space<vmem>>, vector<1x18x24xf32>,
    %c17 = arith.constant 17 : index
    %c0_3 = arith.constant 0 : index
    %c0_4 = arith.constant 0 : index
    %3 = vector.load %arg12[%c17, %c0_3, %c0_4] : memref<18x18x24xf32, #tpu.memory_space<vmem>>, vector<1x18x24xf32>
    tpu.vector_store %arg12[%c17, %c0_3, %c0_4], %0 {strides = array<i32>} : memref<18x18x24xf32, #tpu.memory_space<vmem>>, vector<1x18x24xf32>,
    %c0_5 = arith.constant 0 : index
    %c0_6 = arith.constant 0 : index
    %c0_7 = arith.constant 0 : index
    %4 = vector.load %arg12[%c0_5, %c0_6, %c0_7] : memref<18x18x24xf32, #tpu.memory_space<vmem>>, vector<18x1x24xf32>
    tpu.vector_store %arg12[%c0_5, %c0_6, %c0_7], %1 {strides = array<i32>} : memref<18x18x24xf32, #tpu.memory_space<vmem>>, vector<18x1x24xf32>,
    %c0_8 = arith.constant 0 : index
    %c17_9 = arith.constant 17 : index
    %c0_10 = arith.constant 0 : index
    %5 = vector.load %arg12[%c0_8, %c17_9, %c0_10] : memref<18x18x24xf32, #tpu.memory_space<vmem>>, vector<18x1x24xf32>
    tpu.vector_store %arg12[%c0_8, %c17_9, %c0_10], %1 {strides = array<i32>} : memref<18x18x24xf32, #tpu.memory_space<vmem>>, vector<18x1x24xf32>,
    %cst_11 = arith.constant 0.000000e+00 : f32
    %6 = vector.broadcast %cst_11 : f32 to vector<5x26x64xf32>
    %cst_12 = arith.constant 0.000000e+00 : f32
    %7 = vector.broadcast %cst_12 : f32 to vector<26x5x64xf32>
    %c0_13 = arith.constant 0 : index
    %c0_14 = arith.constant 0 : index
    %c0_15 = arith.constant 0 : index
    %8 = vector.load %arg13[%c0_13, %c0_14, %c0_15] : memref<26x26x64xf32, #tpu.memory_space<vmem>>, vector<5x26x64xf32>
    tpu.vector_store %arg13[%c0_13, %c0_14, %c0_15], %6 {strides = array<i32>} : memref<26x26x64xf32, #tpu.memory_space<vmem>>, vector<5x26x64xf32>,
    %c21 = arith.constant 21 : index
    %c0_16 = arith.constant 0 : index
    %c0_17 = arith.constant 0 : index
    %9 = vector.load %arg13[%c21, %c0_16, %c0_17] : memref<26x26x64xf32, #tpu.memory_space<vmem>>, vector<5x26x64xf32>
    tpu.vector_store %arg13[%c21, %c0_16, %c0_17], %6 {strides = array<i32>} : memref<26x26x64xf32, #tpu.memory_space<vmem>>, vector<5x26x64xf32>,
    %c0_18 = arith.constant 0 : index
    %c0_19 = arith.constant 0 : index
    %c0_20 = arith.constant 0 : index
    %10 = vector.load %arg13[%c0_18, %c0_19, %c0_20] : memref<26x26x64xf32, #tpu.memory_space<vmem>>, vector<26x5x64xf32>
    tpu.vector_store %arg13[%c0_18, %c0_19, %c0_20], %7 {strides = array<i32>} : memref<26x26x64xf32, #tpu.memory_space<vmem>>, vector<26x5x64xf32>,
    %c0_21 = arith.constant 0 : index
    %c21_22 = arith.constant 21 : index
    %c0_23 = arith.constant 0 : index
    %11 = vector.load %arg13[%c0_21, %c21_22, %c0_23] : memref<26x26x64xf32, #tpu.memory_space<vmem>>, vector<26x5x64xf32>
    tpu.vector_store %arg13[%c0_21, %c21_22, %c0_23], %7 {strides = array<i32>} : memref<26x26x64xf32, #tpu.memory_space<vmem>>, vector<26x5x64xf32>,
    %cst_24 = arith.constant 0.000000e+00 : f32
    %12 = vector.broadcast %cst_24 : f32 to vector<1x18x64xf32>
    %cst_25 = arith.constant 0.000000e+00 : f32
    %13 = vector.broadcast %cst_25 : f32 to vector<18x1x64xf32>
    %c0_26 = arith.constant 0 : index
    %c0_27 = arith.constant 0 : index
    %c0_28 = arith.constant 0 : index
    %14 = vector.load %arg14[%c0_26, %c0_27, %c0_28] : memref<18x18x64xf32, #tpu.memory_space<vmem>>, vector<1x18x64xf32>
    tpu.vector_store %arg14[%c0_26, %c0_27, %c0_28], %12 {strides = array<i32>} : memref<18x18x64xf32, #tpu.memory_space<vmem>>, vector<1x18x64xf32>,
    %c17_29 = arith.constant 17 : index
    %c0_30 = arith.constant 0 : index
    %c0_31 = arith.constant 0 : index
    %15 = vector.load %arg14[%c17_29, %c0_30, %c0_31] : memref<18x18x64xf32, #tpu.memory_space<vmem>>, vector<1x18x64xf32>
    tpu.vector_store %arg14[%c17_29, %c0_30, %c0_31], %12 {strides = array<i32>} : memref<18x18x64xf32, #tpu.memory_space<vmem>>, vector<1x18x64xf32>,
    %c0_32 = arith.constant 0 : index
    %c0_33 = arith.constant 0 : index
    %c0_34 = arith.constant 0 : index
    %16 = vector.load %arg14[%c0_32, %c0_33, %c0_34] : memref<18x18x64xf32, #tpu.memory_space<vmem>>, vector<18x1x64xf32>
    tpu.vector_store %arg14[%c0_32, %c0_33, %c0_34], %13 {strides = array<i32>} : memref<18x18x64xf32, #tpu.memory_space<vmem>>, vector<18x1x64xf32>,
    %c0_35 = arith.constant 0 : index
    %c17_36 = arith.constant 17 : index
    %c0_37 = arith.constant 0 : index
    %17 = vector.load %arg14[%c0_35, %c17_36, %c0_37] : memref<18x18x64xf32, #tpu.memory_space<vmem>>, vector<18x1x64xf32>
    tpu.vector_store %arg14[%c0_35, %c17_36, %c0_37], %13 {strides = array<i32>} : memref<18x18x64xf32, #tpu.memory_space<vmem>>, vector<18x1x64xf32>,
    %c0_38 = arith.constant 0 : index
    %c0_39 = arith.constant 0 : index
    %c0_40 = arith.constant 0 : index
    %c0_41 = arith.constant 0 : index
    %18 = vector.load %arg1[%c0_38, %c0_39, %c0_40, %c0_41] : memref<1x16x16x24xf32, #tpu.memory_space<vmem>>, vector<1x16x16x24xf32>
    %19 = vector.shape_cast %18 : vector<1x16x16x24xf32> to vector<16x16x24xf32>
    %20 = arith.mulf %19, %19 : vector<16x16x24xf32>
    %cst_42 = arith.constant dense<0.000000e+00> : vector<16x16xf32>
    %21 = vector.multi_reduction <add>, %20, %cst_42 [2] : vector<16x16x24xf32> to vector<16x16xf32>
    %22 = vector.shape_cast %21 : vector<16x16xf32> to vector<16x16x1xf32>
    %cst_43 = arith.constant 0.0416666679 : f32
    %23 = vector.broadcast %cst_43 : f32 to vector<16x16x1xf32>
    %24 = arith.mulf %22, %23 : vector<16x16x1xf32>
    %25 = math.sqrt %24 : vector<16x16x1xf32>
    %cst_44 = arith.constant 9.99999997E-7 : f32
    %26 = vector.broadcast %cst_44 : f32 to vector<16x16x1xf32>
    %27 = arith.addf %25, %26 : vector<16x16x1xf32>
    %28 = tpu.reciprocal %27 {approx = true} : vector<16x16x1xf32> -> vector<16x16x1xf32>
    %29 = vector.broadcast %28 : vector<16x16x1xf32> to vector<16x16x24xf32>
    %30 = arith.mulf %19, %29 : vector<16x16x24xf32>
    %c0_45 = arith.constant 0 : index
    %c0_46 = arith.constant 0 : index
    %31 = vector.load %arg2[%c0_45, %c0_46] : memref<1x24xf32, #tpu.memory_space<vmem>>, vector<1x24xf32>
    %32 = vector.shape_cast %31 : vector<1x24xf32> to vector<1x1x24xf32>
    %33 = vector.broadcast %32 : vector<1x1x24xf32> to vector<16x16x24xf32>
    %34 = arith.mulf %30, %33 : vector<16x16x24xf32>
    %c0_47 = arith.constant 0 : index
    %c0_48 = arith.constant 0 : index
    %35 = vector.load %arg3[%c0_47, %c0_48] : memref<1x24xf32, #tpu.memory_space<vmem>>, vector<1x24xf32>
    %36 = vector.shape_cast %35 : vector<1x24xf32> to vector<1x1x24xf32>
    %37 = vector.broadcast %36 : vector<1x1x24xf32> to vector<16x16x24xf32>
    %38 = arith.addf %34, %37 : vector<16x16x24xf32>
    %c1 = arith.constant 1 : index
    %c1_49 = arith.constant 1 : index
    %c0_50 = arith.constant 0 : index
    %39 = vector.load %arg12[%c1, %c1_49, %c0_50] : memref<18x18x24xf32, #tpu.memory_space<vmem>>, vector<16x16x24xf32>
    tpu.vector_store %arg12[%c1, %c1_49, %c0_50], %38 {strides = array<i32>} : memref<18x18x24xf32, #tpu.memory_space<vmem>>, vector<16x16x24xf32>,
    %cst_51 = arith.constant 0.000000e+00 : f32
    %40 = vector.broadcast %cst_51 : f32 to vector<256x128xf32>
    %c0_52 = arith.constant 0 : index
    %c0_53 = arith.constant 0 : index
    %c0_54 = arith.constant 0 : index
    %41 = vector.load %arg12[%c0_52, %c0_53, %c0_54] : memref<18x18x24xf32, #tpu.memory_space<vmem>>, vector<16x16x24xf32>
    %42 = arith.truncf %41 : vector<16x16x24xf32> to vector<16x16x24xbf16>
    %43 = vector.shape_cast %42 : vector<16x16x24xbf16> to vector<256x24xbf16>
    %c0_55 = arith.constant 0 : index
    %c0_56 = arith.constant 0 : index
    %c0_57 = arith.constant 0 : index
    %44 = vector.load %arg5[%c0_55, %c0_56, %c0_57] : memref<9x24x128xbf16, #tpu.memory_space<vmem>>, vector<1x24x128xbf16>
    %45 = vector.shape_cast %44 : vector<1x24x128xbf16> to vector<24x128xbf16>
    %cst_58 = arith.constant dense<0.000000e+00> : vector<256x128xf32>
    %46 = tpu.matmul %43, %45, %cst_58 {dimension_numbers = #tpu.dot_dimension_numbers<[1], [0], [0], [1], [0, 0, 1, 1], [], []>} : vector<256x24xbf16>, vector<24x128xbf16>, vector<256x128xf32> -> vector<256x128xf32>
    %47 = arith.addf %40, %46 : vector<256x128xf32>
    %c0_59 = arith.constant 0 : index
    %c1_60 = arith.constant 1 : index
    %c0_61 = arith.constant 0 : index
    %48 = vector.load %arg12[%c0_59, %c1_60, %c0_61] : memref<18x18x24xf32, #tpu.memory_space<vmem>>, vector<16x16x24xf32>
    %49 = arith.truncf %48 : vector<16x16x24xf32> to vector<16x16x24xbf16>
    %50 = vector.shape_cast %49 : vector<16x16x24xbf16> to vector<256x24xbf16>
    %c1_62 = arith.constant 1 : index
    %c0_63 = arith.constant 0 : index
    %c0_64 = arith.constant 0 : index
    %51 = vector.load %arg5[%c1_62, %c0_63, %c0_64] : memref<9x24x128xbf16, #tpu.memory_space<vmem>>, vector<1x24x128xbf16>
    %52 = vector.shape_cast %51 : vector<1x24x128xbf16> to vector<24x128xbf16>
    %cst_65 = arith.constant dense<0.000000e+00> : vector<256x128xf32>
    %53 = tpu.matmul %50, %52, %cst_65 {dimension_numbers = #tpu.dot_dimension_numbers<[1], [0], [0], [1], [0, 0, 1, 1], [], []>} : vector<256x24xbf16>, vector<24x128xbf16>, vector<256x128xf32> -> vector<256x128xf32>
    %54 = arith.addf %47, %53 : vector<256x128xf32>
    %c0_66 = arith.constant 0 : index
    %c2 = arith.constant 2 : index
    %c0_67 = arith.constant 0 : index
    %55 = vector.load %arg12[%c0_66, %c2, %c0_67] : memref<18x18x24xf32, #tpu.memory_space<vmem>>, vector<16x16x24xf32>
    %56 = arith.truncf %55 : vector<16x16x24xf32> to vector<16x16x24xbf16>
    %57 = vector.shape_cast %56 : vector<16x16x24xbf16> to vector<256x24xbf16>
    %c2_68 = arith.constant 2 : index
    %c0_69 = arith.constant 0 : index
    %c0_70 = arith.constant 0 : index
    %58 = vector.load %arg5[%c2_68, %c0_69, %c0_70] : memref<9x24x128xbf16, #tpu.memory_space<vmem>>, vector<1x24x128xbf16>
    %59 = vector.shape_cast %58 : vector<1x24x128xbf16> to vector<24x128xbf16>
    %cst_71 = arith.constant dense<0.000000e+00> : vector<256x128xf32>
    %60 = tpu.matmul %57, %59, %cst_71 {dimension_numbers = #tpu.dot_dimension_numbers<[1], [0], [0], [1], [0, 0, 1, 1], [], []>} : vector<256x24xbf16>, vector<24x128xbf16>, vector<256x128xf32> -> vector<256x128xf32>
    %61 = arith.addf %54, %60 : vector<256x128xf32>
    %c1_72 = arith.constant 1 : index
    %c0_73 = arith.constant 0 : index
    %c0_74 = arith.constant 0 : index
    %62 = vector.load %arg12[%c1_72, %c0_73, %c0_74] : memref<18x18x24xf32, #tpu.memory_space<vmem>>, vector<16x16x24xf32>
    %63 = arith.truncf %62 : vector<16x16x24xf32> to vector<16x16x24xbf16>
    %64 = vector.shape_cast %63 : vector<16x16x24xbf16> to vector<256x24xbf16>
    %c3 = arith.constant 3 : index
    %c0_75 = arith.constant 0 : index
    %c0_76 = arith.constant 0 : index
    %65 = vector.load %arg5[%c3, %c0_75, %c0_76] : memref<9x24x128xbf16, #tpu.memory_space<vmem>>, vector<1x24x128xbf16>
    %66 = vector.shape_cast %65 : vector<1x24x128xbf16> to vector<24x128xbf16>
    %cst_77 = arith.constant dense<0.000000e+00> : vector<256x128xf32>
    %67 = tpu.matmul %64, %66, %cst_77 {dimension_numbers = #tpu.dot_dimension_numbers<[1], [0], [0], [1], [0, 0, 1, 1], [], []>} : vector<256x24xbf16>, vector<24x128xbf16>, vector<256x128xf32> -> vector<256x128xf32>
    %68 = arith.addf %61, %67 : vector<256x128xf32>
    %c1_78 = arith.constant 1 : index
    %c1_79 = arith.constant 1 : index
    %c0_80 = arith.constant 0 : index
    %69 = vector.load %arg12[%c1_78, %c1_79, %c0_80] : memref<18x18x24xf32, #tpu.memory_space<vmem>>, vector<16x16x24xf32>
    %70 = arith.truncf %69 : vector<16x16x24xf32> to vector<16x16x24xbf16>
    %71 = vector.shape_cast %70 : vector<16x16x24xbf16> to vector<256x24xbf16>
    %c4 = arith.constant 4 : index
    %c0_81 = arith.constant 0 : index
    %c0_82 = arith.constant 0 : index
    %72 = vector.load %arg5[%c4, %c0_81, %c0_82] : memref<9x24x128xbf16, #tpu.memory_space<vmem>>, vector<1x24x128xbf16>
    %73 = vector.shape_cast %72 : vector<1x24x128xbf16> to vector<24x128xbf16>
    %cst_83 = arith.constant dense<0.000000e+00> : vector<256x128xf32>
    %74 = tpu.matmul %71, %73, %cst_83 {dimension_numbers = #tpu.dot_dimension_numbers<[1], [0], [0], [1], [0, 0, 1, 1], [], []>} : vector<256x24xbf16>, vector<24x128xbf16>, vector<256x128xf32> -> vector<256x128xf32>
    %75 = arith.addf %68, %74 : vector<256x128xf32>
    %c1_84 = arith.constant 1 : index
    %c2_85 = arith.constant 2 : index
    %c0_86 = arith.constant 0 : index
    %76 = vector.load %arg12[%c1_84, %c2_85, %c0_86] : memref<18x18x24xf32, #tpu.memory_space<vmem>>, vector<16x16x24xf32>
    %77 = arith.truncf %76 : vector<16x16x24xf32> to vector<16x16x24xbf16>
    %78 = vector.shape_cast %77 : vector<16x16x24xbf16> to vector<256x24xbf16>
    %c5 = arith.constant 5 : index
    %c0_87 = arith.constant 0 : index
    %c0_88 = arith.constant 0 : index
    %79 = vector.load %arg5[%c5, %c0_87, %c0_88] : memref<9x24x128xbf16, #tpu.memory_space<vmem>>, vector<1x24x128xbf16>
    %80 = vector.shape_cast %79 : vector<1x24x128xbf16> to vector<24x128xbf16>
    %cst_89 = arith.constant dense<0.000000e+00> : vector<256x128xf32>
    %81 = tpu.matmul %78, %80, %cst_89 {dimension_numbers = #tpu.dot_dimension_numbers<[1], [0], [0], [1], [0, 0, 1, 1], [], []>} : vector<256x24xbf16>, vector<24x128xbf16>, vector<256x128xf32> -> vector<256x128xf32>
    %82 = arith.addf %75, %81 : vector<256x128xf32>
    %c2_90 = arith.constant 2 : index
    %c0_91 = arith.constant 0 : index
    %c0_92 = arith.constant 0 : index
    %83 = vector.load %arg12[%c2_90, %c0_91, %c0_92] : memref<18x18x24xf32, #tpu.memory_space<vmem>>, vector<16x16x24xf32>
    %84 = arith.truncf %83 : vector<16x16x24xf32> to vector<16x16x24xbf16>
    %85 = vector.shape_cast %84 : vector<16x16x24xbf16> to vector<256x24xbf16>
    %c6 = arith.constant 6 : index
    %c0_93 = arith.constant 0 : index
    %c0_94 = arith.constant 0 : index
    %86 = vector.load %arg5[%c6, %c0_93, %c0_94] : memref<9x24x128xbf16, #tpu.memory_space<vmem>>, vector<1x24x128xbf16>
    %87 = vector.shape_cast %86 : vector<1x24x128xbf16> to vector<24x128xbf16>
    %cst_95 = arith.constant dense<0.000000e+00> : vector<256x128xf32>
    %88 = tpu.matmul %85, %87, %cst_95 {dimension_numbers = #tpu.dot_dimension_numbers<[1], [0], [0], [1], [0, 0, 1, 1], [], []>} : vector<256x24xbf16>, vector<24x128xbf16>, vector<256x128xf32> -> vector<256x128xf32>
    %89 = arith.addf %82, %88 : vector<256x128xf32>
    %c2_96 = arith.constant 2 : index
    %c1_97 = arith.constant 1 : index
    %c0_98 = arith.constant 0 : index
    %90 = vector.load %arg12[%c2_96, %c1_97, %c0_98] : memref<18x18x24xf32, #tpu.memory_space<vmem>>, vector<16x16x24xf32>
    %91 = arith.truncf %90 : vector<16x16x24xf32> to vector<16x16x24xbf16>
    %92 = vector.shape_cast %91 : vector<16x16x24xbf16> to vector<256x24xbf16>
    %c7 = arith.constant 7 : index
    %c0_99 = arith.constant 0 : index
    %c0_100 = arith.constant 0 : index
    %93 = vector.load %arg5[%c7, %c0_99, %c0_100] : memref<9x24x128xbf16, #tpu.memory_space<vmem>>, vector<1x24x128xbf16>
    %94 = vector.shape_cast %93 : vector<1x24x128xbf16> to vector<24x128xbf16>
    %cst_101 = arith.constant dense<0.000000e+00> : vector<256x128xf32>
    %95 = tpu.matmul %92, %94, %cst_101 {dimension_numbers = #tpu.dot_dimension_numbers<[1], [0], [0], [1], [0, 0, 1, 1], [], []>} : vector<256x24xbf16>, vector<24x128xbf16>, vector<256x128xf32> -> vector<256x128xf32>
    %96 = arith.addf %89, %95 : vector<256x128xf32>
    %c2_102 = arith.constant 2 : index
    %c2_103 = arith.constant 2 : index
    %c0_104 = arith.constant 0 : index
    %97 = vector.load %arg12[%c2_102, %c2_103, %c0_104] : memref<18x18x24xf32, #tpu.memory_space<vmem>>, vector<16x16x24xf32>
    %98 = arith.truncf %97 : vector<16x16x24xf32> to vector<16x16x24xbf16>
    %99 = vector.shape_cast %98 : vector<16x16x24xbf16> to vector<256x24xbf16>
    %c8 = arith.constant 8 : index
    %c0_105 = arith.constant 0 : index
    %c0_106 = arith.constant 0 : index
    %100 = vector.load %arg5[%c8, %c0_105, %c0_106] : memref<9x24x128xbf16, #tpu.memory_space<vmem>>, vector<1x24x128xbf16>
    %101 = vector.shape_cast %100 : vector<1x24x128xbf16> to vector<24x128xbf16>
    %cst_107 = arith.constant dense<0.000000e+00> : vector<256x128xf32>
    %102 = tpu.matmul %99, %101, %cst_107 {dimension_numbers = #tpu.dot_dimension_numbers<[1], [0], [0], [1], [0, 0, 1, 1], [], []>} : vector<256x24xbf16>, vector<24x128xbf16>, vector<256x128xf32> -> vector<256x128xf32>
    %103 = arith.addf %96, %102 : vector<256x128xf32>
    %c0_108 = arith.constant 0 : index
    %c0_109 = arith.constant 0 : index
    %104 = vector.load %arg6[%c0_108, %c0_109] : memref<1x128xf32, #tpu.memory_space<vmem>>, vector<1x128xf32>
    %105 = vector.broadcast %104 : vector<1x128xf32> to vector<256x128xf32>
    %106 = arith.addf %103, %105 : vector<256x128xf32>
    %107 = vector.shape_cast %106 : vector<256x128xf32> to vector<16x16x128xf32>
    %108 = vector.extract_strided_slice %107 {offsets = [0, 0, 0], sizes = [16, 16, 64], strides = [1, 1, 1]} : vector<16x16x128xf32> to vector<16x16x64xf32>
    %109 = vector.extract_strided_slice %107 {offsets = [0, 0, 64], sizes = [16, 16, 64], strides = [1, 1, 1]} : vector<16x16x128xf32> to vector<16x16x64xf32>
    %c5_110 = arith.constant 5 : index
    %c5_111 = arith.constant 5 : index
    %c0_112 = arith.constant 0 : index
    %110 = vector.load %arg13[%c5_110, %c5_111, %c0_112] : memref<26x26x64xf32, #tpu.memory_space<vmem>>, vector<16x16x64xf32>
    tpu.vector_store %arg13[%c5_110, %c5_111, %c0_112], %109 {strides = array<i32>} : memref<26x26x64xf32, #tpu.memory_space<vmem>>, vector<16x16x64xf32>,
    %cst_113 = arith.constant 0.000000e+00 : f32
    %111 = vector.broadcast %cst_113 : f32 to vector<16x16x64xf32>
    %c0_114 = arith.constant 0 : index
    %c5_115 = arith.constant 5 : index
    %c0_116 = arith.constant 0 : index
    %112 = vector.load %arg13[%c0_114, %c5_115, %c0_116] : memref<26x26x64xf32, #tpu.memory_space<vmem>>, vector<16x16x64xf32>
    %c0_117 = arith.constant 0 : index
    %c0_118 = arith.constant 0 : index
    %113 = vector.load %arg7[%c0_117, %c0_118] : memref<25x64xf32, #tpu.memory_space<vmem>>, vector<1x64xf32>
    %114 = vector.shape_cast %113 : vector<1x64xf32> to vector<64xf32>
    %115 = vector.shape_cast %114 : vector<64xf32> to vector<1x1x64xf32>
    %116 = vector.broadcast %115 : vector<1x1x64xf32> to vector<16x16x64xf32>
    %117 = arith.mulf %112, %116 : vector<16x16x64xf32>
    %118 = arith.addf %111, %117 : vector<16x16x64xf32>
    %c1_119 = arith.constant 1 : index
    %c5_120 = arith.constant 5 : index
    %c0_121 = arith.constant 0 : index
    %119 = vector.load %arg13[%c1_119, %c5_120, %c0_121] : memref<26x26x64xf32, #tpu.memory_space<vmem>>, vector<16x16x64xf32>
    %c1_122 = arith.constant 1 : index
    %c0_123 = arith.constant 0 : index
    %120 = vector.load %arg7[%c1_122, %c0_123] : memref<25x64xf32, #tpu.memory_space<vmem>>, vector<1x64xf32>
    %121 = vector.shape_cast %120 : vector<1x64xf32> to vector<64xf32>
    %122 = vector.shape_cast %121 : vector<64xf32> to vector<1x1x64xf32>
    %123 = vector.broadcast %122 : vector<1x1x64xf32> to vector<16x16x64xf32>
    %124 = arith.mulf %119, %123 : vector<16x16x64xf32>
    %125 = arith.addf %118, %124 : vector<16x16x64xf32>
    %c2_124 = arith.constant 2 : index
    %c5_125 = arith.constant 5 : index
    %c0_126 = arith.constant 0 : index
    %126 = vector.load %arg13[%c2_124, %c5_125, %c0_126] : memref<26x26x64xf32, #tpu.memory_space<vmem>>, vector<16x16x64xf32>
    %c2_127 = arith.constant 2 : index
    %c0_128 = arith.constant 0 : index
    %127 = vector.load %arg7[%c2_127, %c0_128] : memref<25x64xf32, #tpu.memory_space<vmem>>, vector<1x64xf32>
    %128 = vector.shape_cast %127 : vector<1x64xf32> to vector<64xf32>
    %129 = vector.shape_cast %128 : vector<64xf32> to vector<1x1x64xf32>
    %130 = vector.broadcast %129 : vector<1x1x64xf32> to vector<16x16x64xf32>
    %131 = arith.mulf %126, %130 : vector<16x16x64xf32>
    %132 = arith.addf %125, %131 : vector<16x16x64xf32>
    %c3_129 = arith.constant 3 : index
    %c5_130 = arith.constant 5 : index
    %c0_131 = arith.constant 0 : index
    %133 = vector.load %arg13[%c3_129, %c5_130, %c0_131] : memref<26x26x64xf32, #tpu.memory_space<vmem>>, vector<16x16x64xf32>
    %c3_132 = arith.constant 3 : index
    %c0_133 = arith.constant 0 : index
    %134 = vector.load %arg7[%c3_132, %c0_133] : memref<25x64xf32, #tpu.memory_space<vmem>>, vector<1x64xf32>
    %135 = vector.shape_cast %134 : vector<1x64xf32> to vector<64xf32>
    %136 = vector.shape_cast %135 : vector<64xf32> to vector<1x1x64xf32>
    %137 = vector.broadcast %136 : vector<1x1x64xf32> to vector<16x16x64xf32>
    %138 = arith.mulf %133, %137 : vector<16x16x64xf32>
    %139 = arith.addf %132, %138 : vector<16x16x64xf32>
    %c4_134 = arith.constant 4 : index
    %c4_135 = arith.constant 4 : index
    %c0_136 = arith.constant 0 : index
    %140 = vector.load %arg13[%c4_134, %c4_135, %c0_136] : memref<26x26x64xf32, #tpu.memory_space<vmem>>, vector<16x16x64xf32>
    %c4_137 = arith.constant 4 : index
    %c0_138 = arith.constant 0 : index
    %141 = vector.load %arg7[%c4_137, %c0_138] : memref<25x64xf32, #tpu.memory_space<vmem>>, vector<1x64xf32>
    %142 = vector.shape_cast %141 : vector<1x64xf32> to vector<64xf32>
    %143 = vector.shape_cast %142 : vector<64xf32> to vector<1x1x64xf32>
    %144 = vector.broadcast %143 : vector<1x1x64xf32> to vector<16x16x64xf32>
    %145 = arith.mulf %140, %144 : vector<16x16x64xf32>
    %146 = arith.addf %139, %145 : vector<16x16x64xf32>
    %c4_139 = arith.constant 4 : index
    %c5_140 = arith.constant 5 : index
    %c0_141 = arith.constant 0 : index
    %147 = vector.load %arg13[%c4_139, %c5_140, %c0_141] : memref<26x26x64xf32, #tpu.memory_space<vmem>>, vector<16x16x64xf32>
    %c5_142 = arith.constant 5 : index
    %c0_143 = arith.constant 0 : index
    %148 = vector.load %arg7[%c5_142, %c0_143] : memref<25x64xf32, #tpu.memory_space<vmem>>, vector<1x64xf32>
    %149 = vector.shape_cast %148 : vector<1x64xf32> to vector<64xf32>
    %150 = vector.shape_cast %149 : vector<64xf32> to vector<1x1x64xf32>
    %151 = vector.broadcast %150 : vector<1x1x64xf32> to vector<16x16x64xf32>
    %152 = arith.mulf %147, %151 : vector<16x16x64xf32>
    %153 = arith.addf %146, %152 : vector<16x16x64xf32>
    %c4_144 = arith.constant 4 : index
    %c6_145 = arith.constant 6 : index
    %c0_146 = arith.constant 0 : index
    %154 = vector.load %arg13[%c4_144, %c6_145, %c0_146] : memref<26x26x64xf32, #tpu.memory_space<vmem>>, vector<16x16x64xf32>
    %c6_147 = arith.constant 6 : index
    %c0_148 = arith.constant 0 : index
    %155 = vector.load %arg7[%c6_147, %c0_148] : memref<25x64xf32, #tpu.memory_space<vmem>>, vector<1x64xf32>
    %156 = vector.shape_cast %155 : vector<1x64xf32> to vector<64xf32>
    %157 = vector.shape_cast %156 : vector<64xf32> to vector<1x1x64xf32>
    %158 = vector.broadcast %157 : vector<1x1x64xf32> to vector<16x16x64xf32>
    %159 = arith.mulf %154, %158 : vector<16x16x64xf32>
    %160 = arith.addf %153, %159 : vector<16x16x64xf32>
    %c5_149 = arith.constant 5 : index
    %c0_150 = arith.constant 0 : index
    %c0_151 = arith.constant 0 : index
    %161 = vector.load %arg13[%c5_149, %c0_150, %c0_151] : memref<26x26x64xf32, #tpu.memory_space<vmem>>, vector<16x16x64xf32>
    %c7_152 = arith.constant 7 : index
    %c0_153 = arith.constant 0 : index
    %162 = vector.load %arg7[%c7_152, %c0_153] : memref<25x64xf32, #tpu.memory_space<vmem>>, vector<1x64xf32>
    %163 = vector.shape_cast %162 : vector<1x64xf32> to vector<64xf32>
    %164 = vector.shape_cast %163 : vector<64xf32> to vector<1x1x64xf32>
    %165 = vector.broadcast %164 : vector<1x1x64xf32> to vector<16x16x64xf32>
    %166 = arith.mulf %161, %165 : vector<16x16x64xf32>
    %167 = arith.addf %160, %166 : vector<16x16x64xf32>
    %c5_154 = arith.constant 5 : index
    %c1_155 = arith.constant 1 : index
    %c0_156 = arith.constant 0 : index
    %168 = vector.load %arg13[%c5_154, %c1_155, %c0_156] : memref<26x26x64xf32, #tpu.memory_space<vmem>>, vector<16x16x64xf32>
    %c8_157 = arith.constant 8 : index
    %c0_158 = arith.constant 0 : index
    %169 = vector.load %arg7[%c8_157, %c0_158] : memref<25x64xf32, #tpu.memory_space<vmem>>, vector<1x64xf32>
    %170 = vector.shape_cast %169 : vector<1x64xf32> to vector<64xf32>
    %171 = vector.shape_cast %170 : vector<64xf32> to vector<1x1x64xf32>
    %172 = vector.broadcast %171 : vector<1x1x64xf32> to vector<16x16x64xf32>
    %173 = arith.mulf %168, %172 : vector<16x16x64xf32>
    %174 = arith.addf %167, %173 : vector<16x16x64xf32>
    %c5_159 = arith.constant 5 : index
    %c2_160 = arith.constant 2 : index
    %c0_161 = arith.constant 0 : index
    %175 = vector.load %arg13[%c5_159, %c2_160, %c0_161] : memref<26x26x64xf32, #tpu.memory_space<vmem>>, vector<16x16x64xf32>
    %c9 = arith.constant 9 : index
    %c0_162 = arith.constant 0 : index
    %176 = vector.load %arg7[%c9, %c0_162] : memref<25x64xf32, #tpu.memory_space<vmem>>, vector<1x64xf32>
    %177 = vector.shape_cast %176 : vector<1x64xf32> to vector<64xf32>
    %178 = vector.shape_cast %177 : vector<64xf32> to vector<1x1x64xf32>
    %179 = vector.broadcast %178 : vector<1x1x64xf32> to vector<16x16x64xf32>
    %180 = arith.mulf %175, %179 : vector<16x16x64xf32>
    %181 = arith.addf %174, %180 : vector<16x16x64xf32>
    %c5_163 = arith.constant 5 : index
    %c3_164 = arith.constant 3 : index
    %c0_165 = arith.constant 0 : index
    %182 = vector.load %arg13[%c5_163, %c3_164, %c0_165] : memref<26x26x64xf32, #tpu.memory_space<vmem>>, vector<16x16x64xf32>
    %c10 = arith.constant 10 : index
    %c0_166 = arith.constant 0 : index
    %183 = vector.load %arg7[%c10, %c0_166] : memref<25x64xf32, #tpu.memory_space<vmem>>, vector<1x64xf32>
    %184 = vector.shape_cast %183 : vector<1x64xf32> to vector<64xf32>
    %185 = vector.shape_cast %184 : vector<64xf32> to vector<1x1x64xf32>
    %186 = vector.broadcast %185 : vector<1x1x64xf32> to vector<16x16x64xf32>
    %187 = arith.mulf %182, %186 : vector<16x16x64xf32>
    %188 = arith.addf %181, %187 : vector<16x16x64xf32>
    %c5_167 = arith.constant 5 : index
    %c4_168 = arith.constant 4 : index
    %c0_169 = arith.constant 0 : index
    %189 = vector.load %arg13[%c5_167, %c4_168, %c0_169] : memref<26x26x64xf32, #tpu.memory_space<vmem>>, vector<16x16x64xf32>
    %c11 = arith.constant 11 : index
    %c0_170 = arith.constant 0 : index
    %190 = vector.load %arg7[%c11, %c0_170] : memref<25x64xf32, #tpu.memory_space<vmem>>, vector<1x64xf32>
    %191 = vector.shape_cast %190 : vector<1x64xf32> to vector<64xf32>
    %192 = vector.shape_cast %191 : vector<64xf32> to vector<1x1x64xf32>
    %193 = vector.broadcast %192 : vector<1x1x64xf32> to vector<16x16x64xf32>
    %194 = arith.mulf %189, %193 : vector<16x16x64xf32>
    %195 = arith.addf %188, %194 : vector<16x16x64xf32>
    %c5_171 = arith.constant 5 : index
    %c5_172 = arith.constant 5 : index
    %c0_173 = arith.constant 0 : index
    %196 = vector.load %arg13[%c5_171, %c5_172, %c0_173] : memref<26x26x64xf32, #tpu.memory_space<vmem>>, vector<16x16x64xf32>
    %c12 = arith.constant 12 : index
    %c0_174 = arith.constant 0 : index
    %197 = vector.load %arg7[%c12, %c0_174] : memref<25x64xf32, #tpu.memory_space<vmem>>, vector<1x64xf32>
    %198 = vector.shape_cast %197 : vector<1x64xf32> to vector<64xf32>
    %199 = vector.shape_cast %198 : vector<64xf32> to vector<1x1x64xf32>
    %200 = vector.broadcast %199 : vector<1x1x64xf32> to vector<16x16x64xf32>
    %201 = arith.mulf %196, %200 : vector<16x16x64xf32>
    %202 = arith.addf %195, %201 : vector<16x16x64xf32>
    %c5_175 = arith.constant 5 : index
    %c6_176 = arith.constant 6 : index
    %c0_177 = arith.constant 0 : index
    %203 = vector.load %arg13[%c5_175, %c6_176, %c0_177] : memref<26x26x64xf32, #tpu.memory_space<vmem>>, vector<16x16x64xf32>
    %c13 = arith.constant 13 : index
    %c0_178 = arith.constant 0 : index
    %204 = vector.load %arg7[%c13, %c0_178] : memref<25x64xf32, #tpu.memory_space<vmem>>, vector<1x64xf32>
    %205 = vector.shape_cast %204 : vector<1x64xf32> to vector<64xf32>
    %206 = vector.shape_cast %205 : vector<64xf32> to vector<1x1x64xf32>
    %207 = vector.broadcast %206 : vector<1x1x64xf32> to vector<16x16x64xf32>
    %208 = arith.mulf %203, %207 : vector<16x16x64xf32>
    %209 = arith.addf %202, %208 : vector<16x16x64xf32>
    %c5_179 = arith.constant 5 : index
    %c7_180 = arith.constant 7 : index
    %c0_181 = arith.constant 0 : index
    %210 = vector.load %arg13[%c5_179, %c7_180, %c0_181] : memref<26x26x64xf32, #tpu.memory_space<vmem>>, vector<16x16x64xf32>
    %c14 = arith.constant 14 : index
    %c0_182 = arith.constant 0 : index
    %211 = vector.load %arg7[%c14, %c0_182] : memref<25x64xf32, #tpu.memory_space<vmem>>, vector<1x64xf32>
    %212 = vector.shape_cast %211 : vector<1x64xf32> to vector<64xf32>
    %213 = vector.shape_cast %212 : vector<64xf32> to vector<1x1x64xf32>
    %214 = vector.broadcast %213 : vector<1x1x64xf32> to vector<16x16x64xf32>
    %215 = arith.mulf %210, %214 : vector<16x16x64xf32>
    %216 = arith.addf %209, %215 : vector<16x16x64xf32>
    %c5_183 = arith.constant 5 : index
    %c8_184 = arith.constant 8 : index
    %c0_185 = arith.constant 0 : index
    %217 = vector.load %arg13[%c5_183, %c8_184, %c0_185] : memref<26x26x64xf32, #tpu.memory_space<vmem>>, vector<16x16x64xf32>
    %c15 = arith.constant 15 : index
    %c0_186 = arith.constant 0 : index
    %218 = vector.load %arg7[%c15, %c0_186] : memref<25x64xf32, #tpu.memory_space<vmem>>, vector<1x64xf32>
    %219 = vector.shape_cast %218 : vector<1x64xf32> to vector<64xf32>
    %220 = vector.shape_cast %219 : vector<64xf32> to vector<1x1x64xf32>
    %221 = vector.broadcast %220 : vector<1x1x64xf32> to vector<16x16x64xf32>
    %222 = arith.mulf %217, %221 : vector<16x16x64xf32>
    %223 = arith.addf %216, %222 : vector<16x16x64xf32>
    %c5_187 = arith.constant 5 : index
    %c9_188 = arith.constant 9 : index
    %c0_189 = arith.constant 0 : index
    %224 = vector.load %arg13[%c5_187, %c9_188, %c0_189] : memref<26x26x64xf32, #tpu.memory_space<vmem>>, vector<16x16x64xf32>
    %c16 = arith.constant 16 : index
    %c0_190 = arith.constant 0 : index
    %225 = vector.load %arg7[%c16, %c0_190] : memref<25x64xf32, #tpu.memory_space<vmem>>, vector<1x64xf32>
    %226 = vector.shape_cast %225 : vector<1x64xf32> to vector<64xf32>
    %227 = vector.shape_cast %226 : vector<64xf32> to vector<1x1x64xf32>
    %228 = vector.broadcast %227 : vector<1x1x64xf32> to vector<16x16x64xf32>
    %229 = arith.mulf %224, %228 : vector<16x16x64xf32>
    %230 = arith.addf %223, %229 : vector<16x16x64xf32>
    %c5_191 = arith.constant 5 : index
    %c10_192 = arith.constant 10 : index
    %c0_193 = arith.constant 0 : index
    %231 = vector.load %arg13[%c5_191, %c10_192, %c0_193] : memref<26x26x64xf32, #tpu.memory_space<vmem>>, vector<16x16x64xf32>
    %c17_194 = arith.constant 17 : index
    %c0_195 = arith.constant 0 : index
    %232 = vector.load %arg7[%c17_194, %c0_195] : memref<25x64xf32, #tpu.memory_space<vmem>>, vector<1x64xf32>
    %233 = vector.shape_cast %232 : vector<1x64xf32> to vector<64xf32>
    %234 = vector.shape_cast %233 : vector<64xf32> to vector<1x1x64xf32>
    %235 = vector.broadcast %234 : vector<1x1x64xf32> to vector<16x16x64xf32>
    %236 = arith.mulf %231, %235 : vector<16x16x64xf32>
    %237 = arith.addf %230, %236 : vector<16x16x64xf32>
    %c6_196 = arith.constant 6 : index
    %c4_197 = arith.constant 4 : index
    %c0_198 = arith.constant 0 : index
    %238 = vector.load %arg13[%c6_196, %c4_197, %c0_198] : memref<26x26x64xf32, #tpu.memory_space<vmem>>, vector<16x16x64xf32>
    %c18 = arith.constant 18 : index
    %c0_199 = arith.constant 0 : index
    %239 = vector.load %arg7[%c18, %c0_199] : memref<25x64xf32, #tpu.memory_space<vmem>>, vector<1x64xf32>
    %240 = vector.shape_cast %239 : vector<1x64xf32> to vector<64xf32>
    %241 = vector.shape_cast %240 : vector<64xf32> to vector<1x1x64xf32>
    %242 = vector.broadcast %241 : vector<1x1x64xf32> to vector<16x16x64xf32>
    %243 = arith.mulf %238, %242 : vector<16x16x64xf32>
    %244 = arith.addf %237, %243 : vector<16x16x64xf32>
    %c6_200 = arith.constant 6 : index
    %c5_201 = arith.constant 5 : index
    %c0_202 = arith.constant 0 : index
    %245 = vector.load %arg13[%c6_200, %c5_201, %c0_202] : memref<26x26x64xf32, #tpu.memory_space<vmem>>, vector<16x16x64xf32>
    %c19 = arith.constant 19 : index
    %c0_203 = arith.constant 0 : index
    %246 = vector.load %arg7[%c19, %c0_203] : memref<25x64xf32, #tpu.memory_space<vmem>>, vector<1x64xf32>
    %247 = vector.shape_cast %246 : vector<1x64xf32> to vector<64xf32>
    %248 = vector.shape_cast %247 : vector<64xf32> to vector<1x1x64xf32>
    %249 = vector.broadcast %248 : vector<1x1x64xf32> to vector<16x16x64xf32>
    %250 = arith.mulf %245, %249 : vector<16x16x64xf32>
    %251 = arith.addf %244, %250 : vector<16x16x64xf32>
    %c6_204 = arith.constant 6 : index
    %c6_205 = arith.constant 6 : index
    %c0_206 = arith.constant 0 : index
    %252 = vector.load %arg13[%c6_204, %c6_205, %c0_206] : memref<26x26x64xf32, #tpu.memory_space<vmem>>, vector<16x16x64xf32>
    %c20 = arith.constant 20 : index
    %c0_207 = arith.constant 0 : index
    %253 = vector.load %arg7[%c20, %c0_207] : memref<25x64xf32, #tpu.memory_space<vmem>>, vector<1x64xf32>
    %254 = vector.shape_cast %253 : vector<1x64xf32> to vector<64xf32>
    %255 = vector.shape_cast %254 : vector<64xf32> to vector<1x1x64xf32>
    %256 = vector.broadcast %255 : vector<1x1x64xf32> to vector<16x16x64xf32>
    %257 = arith.mulf %252, %256 : vector<16x16x64xf32>
    %258 = arith.addf %251, %257 : vector<16x16x64xf32>
    %c7_208 = arith.constant 7 : index
    %c5_209 = arith.constant 5 : index
    %c0_210 = arith.constant 0 : index
    %259 = vector.load %arg13[%c7_208, %c5_209, %c0_210] : memref<26x26x64xf32, #tpu.memory_space<vmem>>, vector<16x16x64xf32>
    %c21_211 = arith.constant 21 : index
    %c0_212 = arith.constant 0 : index
    %260 = vector.load %arg7[%c21_211, %c0_212] : memref<25x64xf32, #tpu.memory_space<vmem>>, vector<1x64xf32>
    %261 = vector.shape_cast %260 : vector<1x64xf32> to vector<64xf32>
    %262 = vector.shape_cast %261 : vector<64xf32> to vector<1x1x64xf32>
    %263 = vector.broadcast %262 : vector<1x1x64xf32> to vector<16x16x64xf32>
    %264 = arith.mulf %259, %263 : vector<16x16x64xf32>
    %265 = arith.addf %258, %264 : vector<16x16x64xf32>
    %c8_213 = arith.constant 8 : index
    %c5_214 = arith.constant 5 : index
    %c0_215 = arith.constant 0 : index
    %266 = vector.load %arg13[%c8_213, %c5_214, %c0_215] : memref<26x26x64xf32, #tpu.memory_space<vmem>>, vector<16x16x64xf32>
    %c22 = arith.constant 22 : index
    %c0_216 = arith.constant 0 : index
    %267 = vector.load %arg7[%c22, %c0_216] : memref<25x64xf32, #tpu.memory_space<vmem>>, vector<1x64xf32>
    %268 = vector.shape_cast %267 : vector<1x64xf32> to vector<64xf32>
    %269 = vector.shape_cast %268 : vector<64xf32> to vector<1x1x64xf32>
    %270 = vector.broadcast %269 : vector<1x1x64xf32> to vector<16x16x64xf32>
    %271 = arith.mulf %266, %270 : vector<16x16x64xf32>
    %272 = arith.addf %265, %271 : vector<16x16x64xf32>
    %c9_217 = arith.constant 9 : index
    %c5_218 = arith.constant 5 : index
    %c0_219 = arith.constant 0 : index
    %273 = vector.load %arg13[%c9_217, %c5_218, %c0_219] : memref<26x26x64xf32, #tpu.memory_space<vmem>>, vector<16x16x64xf32>
    %c23 = arith.constant 23 : index
    %c0_220 = arith.constant 0 : index
    %274 = vector.load %arg7[%c23, %c0_220] : memref<25x64xf32, #tpu.memory_space<vmem>>, vector<1x64xf32>
    %275 = vector.shape_cast %274 : vector<1x64xf32> to vector<64xf32>
    %276 = vector.shape_cast %275 : vector<64xf32> to vector<1x1x64xf32>
    %277 = vector.broadcast %276 : vector<1x1x64xf32> to vector<16x16x64xf32>
    %278 = arith.mulf %273, %277 : vector<16x16x64xf32>
    %279 = arith.addf %272, %278 : vector<16x16x64xf32>
    %c10_221 = arith.constant 10 : index
    %c5_222 = arith.constant 5 : index
    %c0_223 = arith.constant 0 : index
    %280 = vector.load %arg13[%c10_221, %c5_222, %c0_223] : memref<26x26x64xf32, #tpu.memory_space<vmem>>, vector<16x16x64xf32>
    %c24 = arith.constant 24 : index
    %c0_224 = arith.constant 0 : index
    %281 = vector.load %arg7[%c24, %c0_224] : memref<25x64xf32, #tpu.memory_space<vmem>>, vector<1x64xf32>
    %282 = vector.shape_cast %281 : vector<1x64xf32> to vector<64xf32>
    %283 = vector.shape_cast %282 : vector<64xf32> to vector<1x1x64xf32>
    %284 = vector.broadcast %283 : vector<1x1x64xf32> to vector<16x16x64xf32>
    %285 = arith.mulf %280, %284 : vector<16x16x64xf32>
    %286 = arith.addf %279, %285 : vector<16x16x64xf32>
    %c0_225 = arith.constant 0 : index
    %c0_226 = arith.constant 0 : index
    %287 = vector.load %arg8[%c0_225, %c0_226] : memref<1x64xf32, #tpu.memory_space<vmem>>, vector<1x64xf32>
    %288 = vector.shape_cast %287 : vector<1x64xf32> to vector<1x1x64xf32>
    %289 = vector.broadcast %288 : vector<1x1x64xf32> to vector<16x16x64xf32>
    %290 = arith.addf %286, %289 : vector<16x16x64xf32>
    %cst_227 = arith.constant 2.000000e+01 : f32
    %291 = vector.broadcast %cst_227 : f32 to vector<16x16x64xf32>
    %292 = arith.minimumf %108, %291 : vector<16x16x64xf32>
    %293 = math.exp %292 : vector<16x16x64xf32>
    %cst_228 = arith.constant 2.000000e+00 : f32
    %294 = vector.broadcast %cst_228 : f32 to vector<16x16x64xf32>
    %295 = arith.addf %293, %294 : vector<16x16x64xf32>
    %296 = arith.mulf %293, %295 : vector<16x16x64xf32>
    %297 = arith.mulf %108, %296 : vector<16x16x64xf32>
    %cst_229 = arith.constant 2.000000e+00 : f32
    %298 = vector.broadcast %cst_229 : f32 to vector<16x16x64xf32>
    %299 = arith.addf %296, %298 : vector<16x16x64xf32>
    %300 = tpu.reciprocal %299 {approx = true} : vector<16x16x64xf32> -> vector<16x16x64xf32>
    %301 = arith.mulf %297, %300 : vector<16x16x64xf32>
    %302 = arith.mulf %301, %290 : vector<16x16x64xf32>
    %c1_230 = arith.constant 1 : index
    %c1_231 = arith.constant 1 : index
    %c0_232 = arith.constant 0 : index
    %303 = vector.load %arg14[%c1_230, %c1_231, %c0_232] : memref<18x18x64xf32, #tpu.memory_space<vmem>>, vector<16x16x64xf32>
    tpu.vector_store %arg14[%c1_230, %c1_231, %c0_232], %302 {strides = array<i32>} : memref<18x18x64xf32, #tpu.memory_space<vmem>>, vector<16x16x64xf32>,
    %cst_233 = arith.constant 0.000000e+00 : f32
    %304 = vector.broadcast %cst_233 : f32 to vector<256x24xf32>
    %c0_234 = arith.constant 0 : index
    %c0_235 = arith.constant 0 : index
    %c0_236 = arith.constant 0 : index
    %305 = vector.load %arg14[%c0_234, %c0_235, %c0_236] : memref<18x18x64xf32, #tpu.memory_space<vmem>>, vector<16x16x64xf32>
    %306 = arith.truncf %305 : vector<16x16x64xf32> to vector<16x16x64xbf16>
    %307 = vector.shape_cast %306 : vector<16x16x64xbf16> to vector<256x64xbf16>
    %c0_237 = arith.constant 0 : index
    %c0_238 = arith.constant 0 : index
    %c0_239 = arith.constant 0 : index
    %308 = vector.load %arg9[%c0_237, %c0_238, %c0_239] : memref<9x64x24xbf16, #tpu.memory_space<vmem>>, vector<1x64x24xbf16>
    %309 = vector.shape_cast %308 : vector<1x64x24xbf16> to vector<64x24xbf16>
    %cst_240 = arith.constant dense<0.000000e+00> : vector<256x24xf32>
    %310 = tpu.matmul %307, %309, %cst_240 {dimension_numbers = #tpu.dot_dimension_numbers<[1], [0], [0], [1], [0, 0, 1, 1], [], []>} : vector<256x64xbf16>, vector<64x24xbf16>, vector<256x24xf32> -> vector<256x24xf32>
    %311 = arith.addf %304, %310 : vector<256x24xf32>
    %c0_241 = arith.constant 0 : index
    %c1_242 = arith.constant 1 : index
    %c0_243 = arith.constant 0 : index
    %312 = vector.load %arg14[%c0_241, %c1_242, %c0_243] : memref<18x18x64xf32, #tpu.memory_space<vmem>>, vector<16x16x64xf32>
    %313 = arith.truncf %312 : vector<16x16x64xf32> to vector<16x16x64xbf16>
    %314 = vector.shape_cast %313 : vector<16x16x64xbf16> to vector<256x64xbf16>
    %c1_244 = arith.constant 1 : index
    %c0_245 = arith.constant 0 : index
    %c0_246 = arith.constant 0 : index
    %315 = vector.load %arg9[%c1_244, %c0_245, %c0_246] : memref<9x64x24xbf16, #tpu.memory_space<vmem>>, vector<1x64x24xbf16>
    %316 = vector.shape_cast %315 : vector<1x64x24xbf16> to vector<64x24xbf16>
    %cst_247 = arith.constant dense<0.000000e+00> : vector<256x24xf32>
    %317 = tpu.matmul %314, %316, %cst_247 {dimension_numbers = #tpu.dot_dimension_numbers<[1], [0], [0], [1], [0, 0, 1, 1], [], []>} : vector<256x64xbf16>, vector<64x24xbf16>, vector<256x24xf32> -> vector<256x24xf32>
    %318 = arith.addf %311, %317 : vector<256x24xf32>
    %c0_248 = arith.constant 0 : index
    %c2_249 = arith.constant 2 : index
    %c0_250 = arith.constant 0 : index
    %319 = vector.load %arg14[%c0_248, %c2_249, %c0_250] : memref<18x18x64xf32, #tpu.memory_space<vmem>>, vector<16x16x64xf32>
    %320 = arith.truncf %319 : vector<16x16x64xf32> to vector<16x16x64xbf16>
    %321 = vector.shape_cast %320 : vector<16x16x64xbf16> to vector<256x64xbf16>
    %c2_251 = arith.constant 2 : index
    %c0_252 = arith.constant 0 : index
    %c0_253 = arith.constant 0 : index
    %322 = vector.load %arg9[%c2_251, %c0_252, %c0_253] : memref<9x64x24xbf16, #tpu.memory_space<vmem>>, vector<1x64x24xbf16>
    %323 = vector.shape_cast %322 : vector<1x64x24xbf16> to vector<64x24xbf16>
    %cst_254 = arith.constant dense<0.000000e+00> : vector<256x24xf32>
    %324 = tpu.matmul %321, %323, %cst_254 {dimension_numbers = #tpu.dot_dimension_numbers<[1], [0], [0], [1], [0, 0, 1, 1], [], []>} : vector<256x64xbf16>, vector<64x24xbf16>, vector<256x24xf32> -> vector<256x24xf32>
    %325 = arith.addf %318, %324 : vector<256x24xf32>
    %c1_255 = arith.constant 1 : index
    %c0_256 = arith.constant 0 : index
    %c0_257 = arith.constant 0 : index
    %326 = vector.load %arg14[%c1_255, %c0_256, %c0_257] : memref<18x18x64xf32, #tpu.memory_space<vmem>>, vector<16x16x64xf32>
    %327 = arith.truncf %326 : vector<16x16x64xf32> to vector<16x16x64xbf16>
    %328 = vector.shape_cast %327 : vector<16x16x64xbf16> to vector<256x64xbf16>
    %c3_258 = arith.constant 3 : index
    %c0_259 = arith.constant 0 : index
    %c0_260 = arith.constant 0 : index
    %329 = vector.load %arg9[%c3_258, %c0_259, %c0_260] : memref<9x64x24xbf16, #tpu.memory_space<vmem>>, vector<1x64x24xbf16>
    %330 = vector.shape_cast %329 : vector<1x64x24xbf16> to vector<64x24xbf16>
    %cst_261 = arith.constant dense<0.000000e+00> : vector<256x24xf32>
    %331 = tpu.matmul %328, %330, %cst_261 {dimension_numbers = #tpu.dot_dimension_numbers<[1], [0], [0], [1], [0, 0, 1, 1], [], []>} : vector<256x64xbf16>, vector<64x24xbf16>, vector<256x24xf32> -> vector<256x24xf32>
    %332 = arith.addf %325, %331 : vector<256x24xf32>
    %c1_262 = arith.constant 1 : index
    %c1_263 = arith.constant 1 : index
    %c0_264 = arith.constant 0 : index
    %333 = vector.load %arg14[%c1_262, %c1_263, %c0_264] : memref<18x18x64xf32, #tpu.memory_space<vmem>>, vector<16x16x64xf32>
    %334 = arith.truncf %333 : vector<16x16x64xf32> to vector<16x16x64xbf16>
    %335 = vector.shape_cast %334 : vector<16x16x64xbf16> to vector<256x64xbf16>
    %c4_265 = arith.constant 4 : index
    %c0_266 = arith.constant 0 : index
    %c0_267 = arith.constant 0 : index
    %336 = vector.load %arg9[%c4_265, %c0_266, %c0_267] : memref<9x64x24xbf16, #tpu.memory_space<vmem>>, vector<1x64x24xbf16>
    %337 = vector.shape_cast %336 : vector<1x64x24xbf16> to vector<64x24xbf16>
    %cst_268 = arith.constant dense<0.000000e+00> : vector<256x24xf32>
    %338 = tpu.matmul %335, %337, %cst_268 {dimension_numbers = #tpu.dot_dimension_numbers<[1], [0], [0], [1], [0, 0, 1, 1], [], []>} : vector<256x64xbf16>, vector<64x24xbf16>, vector<256x24xf32> -> vector<256x24xf32>
    %339 = arith.addf %332, %338 : vector<256x24xf32>
    %c1_269 = arith.constant 1 : index
    %c2_270 = arith.constant 2 : index
    %c0_271 = arith.constant 0 : index
    %340 = vector.load %arg14[%c1_269, %c2_270, %c0_271] : memref<18x18x64xf32, #tpu.memory_space<vmem>>, vector<16x16x64xf32>
    %341 = arith.truncf %340 : vector<16x16x64xf32> to vector<16x16x64xbf16>
    %342 = vector.shape_cast %341 : vector<16x16x64xbf16> to vector<256x64xbf16>
    %c5_272 = arith.constant 5 : index
    %c0_273 = arith.constant 0 : index
    %c0_274 = arith.constant 0 : index
    %343 = vector.load %arg9[%c5_272, %c0_273, %c0_274] : memref<9x64x24xbf16, #tpu.memory_space<vmem>>, vector<1x64x24xbf16>
    %344 = vector.shape_cast %343 : vector<1x64x24xbf16> to vector<64x24xbf16>
    %cst_275 = arith.constant dense<0.000000e+00> : vector<256x24xf32>
    %345 = tpu.matmul %342, %344, %cst_275 {dimension_numbers = #tpu.dot_dimension_numbers<[1], [0], [0], [1], [0, 0, 1, 1], [], []>} : vector<256x64xbf16>, vector<64x24xbf16>, vector<256x24xf32> -> vector<256x24xf32>
    %346 = arith.addf %339, %345 : vector<256x24xf32>
    %c2_276 = arith.constant 2 : index
    %c0_277 = arith.constant 0 : index
    %c0_278 = arith.constant 0 : index
    %347 = vector.load %arg14[%c2_276, %c0_277, %c0_278] : memref<18x18x64xf32, #tpu.memory_space<vmem>>, vector<16x16x64xf32>
    %348 = arith.truncf %347 : vector<16x16x64xf32> to vector<16x16x64xbf16>
    %349 = vector.shape_cast %348 : vector<16x16x64xbf16> to vector<256x64xbf16>
    %c6_279 = arith.constant 6 : index
    %c0_280 = arith.constant 0 : index
    %c0_281 = arith.constant 0 : index
    %350 = vector.load %arg9[%c6_279, %c0_280, %c0_281] : memref<9x64x24xbf16, #tpu.memory_space<vmem>>, vector<1x64x24xbf16>
    %351 = vector.shape_cast %350 : vector<1x64x24xbf16> to vector<64x24xbf16>
    %cst_282 = arith.constant dense<0.000000e+00> : vector<256x24xf32>
    %352 = tpu.matmul %349, %351, %cst_282 {dimension_numbers = #tpu.dot_dimension_numbers<[1], [0], [0], [1], [0, 0, 1, 1], [], []>} : vector<256x64xbf16>, vector<64x24xbf16>, vector<256x24xf32> -> vector<256x24xf32>
    %353 = arith.addf %346, %352 : vector<256x24xf32>
    %c2_283 = arith.constant 2 : index
    %c1_284 = arith.constant 1 : index
    %c0_285 = arith.constant 0 : index
    %354 = vector.load %arg14[%c2_283, %c1_284, %c0_285] : memref<18x18x64xf32, #tpu.memory_space<vmem>>, vector<16x16x64xf32>
    %355 = arith.truncf %354 : vector<16x16x64xf32> to vector<16x16x64xbf16>
    %356 = vector.shape_cast %355 : vector<16x16x64xbf16> to vector<256x64xbf16>
    %c7_286 = arith.constant 7 : index
    %c0_287 = arith.constant 0 : index
    %c0_288 = arith.constant 0 : index
    %357 = vector.load %arg9[%c7_286, %c0_287, %c0_288] : memref<9x64x24xbf16, #tpu.memory_space<vmem>>, vector<1x64x24xbf16>
    %358 = vector.shape_cast %357 : vector<1x64x24xbf16> to vector<64x24xbf16>
    %cst_289 = arith.constant dense<0.000000e+00> : vector<256x24xf32>
    %359 = tpu.matmul %356, %358, %cst_289 {dimension_numbers = #tpu.dot_dimension_numbers<[1], [0], [0], [1], [0, 0, 1, 1], [], []>} : vector<256x64xbf16>, vector<64x24xbf16>, vector<256x24xf32> -> vector<256x24xf32>
    %360 = arith.addf %353, %359 : vector<256x24xf32>
    %c2_290 = arith.constant 2 : index
    %c2_291 = arith.constant 2 : index
    %c0_292 = arith.constant 0 : index
    %361 = vector.load %arg14[%c2_290, %c2_291, %c0_292] : memref<18x18x64xf32, #tpu.memory_space<vmem>>, vector<16x16x64xf32>
    %362 = arith.truncf %361 : vector<16x16x64xf32> to vector<16x16x64xbf16>
    %363 = vector.shape_cast %362 : vector<16x16x64xbf16> to vector<256x64xbf16>
    %c8_293 = arith.constant 8 : index
    %c0_294 = arith.constant 0 : index
    %c0_295 = arith.constant 0 : index
    %364 = vector.load %arg9[%c8_293, %c0_294, %c0_295] : memref<9x64x24xbf16, #tpu.memory_space<vmem>>, vector<1x64x24xbf16>
    %365 = vector.shape_cast %364 : vector<1x64x24xbf16> to vector<64x24xbf16>
    %cst_296 = arith.constant dense<0.000000e+00> : vector<256x24xf32>
    %366 = tpu.matmul %363, %365, %cst_296 {dimension_numbers = #tpu.dot_dimension_numbers<[1], [0], [0], [1], [0, 0, 1, 1], [], []>} : vector<256x64xbf16>, vector<64x24xbf16>, vector<256x24xf32> -> vector<256x24xf32>
    %367 = arith.addf %360, %366 : vector<256x24xf32>
    %c0_297 = arith.constant 0 : index
    %c0_298 = arith.constant 0 : index
    %368 = vector.load %arg10[%c0_297, %c0_298] : memref<1x24xf32, #tpu.memory_space<vmem>>, vector<1x24xf32>
    %369 = vector.broadcast %368 : vector<1x24xf32> to vector<256x24xf32>
    %370 = arith.addf %367, %369 : vector<256x24xf32>
    %cst_299 = arith.constant 2.000000e+01 : f32
    %371 = vector.broadcast %cst_299 : f32 to vector<256x24xf32>
    %372 = arith.minimumf %370, %371 : vector<256x24xf32>
    %373 = math.exp %372 : vector<256x24xf32>
    %cst_300 = arith.constant 2.000000e+00 : f32
    %374 = vector.broadcast %cst_300 : f32 to vector<256x24xf32>
    %375 = arith.addf %373, %374 : vector<256x24xf32>
    %376 = arith.mulf %373, %375 : vector<256x24xf32>
    %377 = arith.mulf %370, %376 : vector<256x24xf32>
    %cst_301 = arith.constant 2.000000e+00 : f32
    %378 = vector.broadcast %cst_301 : f32 to vector<256x24xf32>
    %379 = arith.addf %376, %378 : vector<256x24xf32>
    %380 = tpu.reciprocal %379 {approx = true} : vector<256x24xf32> -> vector<256x24xf32>
    %381 = arith.mulf %377, %380 : vector<256x24xf32>
    %382 = vector.shape_cast %381 : vector<256x24xf32> to vector<16x16x24xf32>
    %c0_302 = arith.constant 0 : index
    %c0_303 = arith.constant 0 : index
    %383 = vector.load %arg4[%c0_302, %c0_303] : memref<1x24xf32, #tpu.memory_space<vmem>>, vector<1x24xf32>
    %384 = vector.shape_cast %383 : vector<1x24xf32> to vector<1x1x24xf32>
    %385 = vector.broadcast %384 : vector<1x1x24xf32> to vector<16x16x24xf32>
    %386 = arith.mulf %382, %385 : vector<16x16x24xf32>
    %c0_304 = arith.constant 0 : index
    %c0_305 = arith.constant 0 : index
    %c0_306 = arith.constant 0 : index
    %c0_307 = arith.constant 0 : index
    %387 = vector.load %arg1[%c0_304, %c0_305, %c0_306, %c0_307] : memref<1x16x16x24xf32, #tpu.memory_space<vmem>>, vector<1x16x16x24xf32>
    %388 = vector.shape_cast %387 : vector<1x16x16x24xf32> to vector<16x16x24xf32>
    %389 = arith.addf %386, %388 : vector<16x16x24xf32>
    %c0_308 = arith.constant 0 : index
    %c0_309 = arith.constant 0 : index
    %c0_310 = arith.constant 0 : index
    %c0_311 = arith.constant 0 : index
    %390 = vector.load %arg11[%c0_308, %c0_309, %c0_310, %c0_311] : memref<1x16x16x24xf32, #tpu.memory_space<vmem>>, vector<1x16x16x24xf32>
    %391 = vector.shape_cast %390 : vector<1x16x16x24xf32> to vector<16x16x24xf32>
    %392 = vector.shape_cast %389 : vector<16x16x24xf32> to vector<1x16x16x24xf32>
    tpu.vector_store %arg11[%c0_308, %c0_309, %c0_310, %c0_311], %392 {strides = array<i32>} : memref<1x16x16x24xf32, #tpu.memory_space<vmem>>, vector<1x16x16x24xf32>,
    return
  }
  func.func @transform_0(%arg0: i32) -> (i32, i32, i32, i32) {
    %c0_i32 = arith.constant 0 : i32
    %c0_i32_0 = arith.constant 0 : i32
    %c0_i32_1 = arith.constant 0 : i32
    %c0_i32_2 = arith.constant 0 : i32
    return %arg0, %c0_i32, %c0_i32_0, %c0_i32_1 : i32, i32, i32, i32
  }
  func.func @transform_1(%arg0: i32) -> (i32, i32) {
    %c0_i32 = arith.constant 0 : i32
    %c0_i32_0 = arith.constant 0 : i32
    %c0_i32_1 = arith.constant 0 : i32
    return %c0_i32, %c0_i32_0 : i32, i32
  }
  func.func @transform_2(%arg0: i32) -> (i32, i32) {
    %c0_i32 = arith.constant 0 : i32
    %c0_i32_0 = arith.constant 0 : i32
    %c0_i32_1 = arith.constant 0 : i32
    return %c0_i32, %c0_i32_0 : i32, i32
  }
  func.func @transform_3(%arg0: i32) -> (i32, i32) {
    %c0_i32 = arith.constant 0 : i32
    %c0_i32_0 = arith.constant 0 : i32
    %c0_i32_1 = arith.constant 0 : i32
    return %c0_i32, %c0_i32_0 : i32, i32
  }
  func.func @transform_4(%arg0: i32) -> (i32, i32, i32) {
    %c0_i32 = arith.constant 0 : i32
    %c0_i32_0 = arith.constant 0 : i32
    %c0_i32_1 = arith.constant 0 : i32
    %c0_i32_2 = arith.constant 0 : i32
    return %c0_i32, %c0_i32_0, %c0_i32_1 : i32, i32, i32
  }
  func.func @transform_5(%arg0: i32) -> (i32, i32) {
    %c0_i32 = arith.constant 0 : i32
    %c0_i32_0 = arith.constant 0 : i32
    %c0_i32_1 = arith.constant 0 : i32
    return %c0_i32, %c0_i32_0 : i32, i32
  }
  func.func @transform_6(%arg0: i32) -> (i32, i32) {
    %c0_i32 = arith.constant 0 : i32
    %c0_i32_0 = arith.constant 0 : i32
    %c0_i32_1 = arith.constant 0 : i32
    return %c0_i32, %c0_i32_0 : i32, i32
  }
  func.func @transform_7(%arg0: i32) -> (i32, i32) {
    %c0_i32 = arith.constant 0 : i32
    %c0_i32_0 = arith.constant 0 : i32
    %c0_i32_1 = arith.constant 0 : i32
    return %c0_i32, %c0_i32_0 : i32, i32
  }
  func.func @transform_8(%arg0: i32) -> (i32, i32, i32) {
    %c0_i32 = arith.constant 0 : i32
    %c0_i32_0 = arith.constant 0 : i32
    %c0_i32_1 = arith.constant 0 : i32
    %c0_i32_2 = arith.constant 0 : i32
    return %c0_i32, %c0_i32_0, %c0_i32_1 : i32, i32, i32
  }
  func.func @transform_9(%arg0: i32) -> (i32, i32) {
    %c0_i32 = arith.constant 0 : i32
    %c0_i32_0 = arith.constant 0 : i32
    %c0_i32_1 = arith.constant 0 : i32
    return %c0_i32, %c0_i32_0 : i32, i32
  }
  func.func @transform_10(%arg0: i32) -> (i32, i32, i32, i32) {
    %c0_i32 = arith.constant 0 : i32
    %c0_i32_0 = arith.constant 0 : i32
    %c0_i32_1 = arith.constant 0 : i32
    %c0_i32_2 = arith.constant 0 : i32
    return %arg0, %c0_i32, %c0_i32_0, %c0_i32_1 : i32, i32, i32, i32
  }
}

</mosaic_0001>

<llo_original>
// kernel: tpu_custom_call.1
$region0: #{tpu_custom_call.1}
  #allocation0 [shape = 'u32[]', space=smem, size = 0x4, offset = 0x4, fixed_abs, tag = 'smem constant byte address 0x4 - core index']
  #allocation1 [shape = 'u32[144,128]{1,0:T(1,128)}', space=vmem, size = 0x12000, scoped, tag = 'internal scratch']
  #allocation2 [shape = 'f32[18,18,24]{2,1,0:T(8,128)}', space=vmem, size = 0x36000, scoped, tag = 'scratch operand']
  #allocation3 [shape = 'f32[26,26,64]{2,1,0:T(8,128)}', space=vmem, size = 0x68000, scoped, tag = 'scratch operand']
  #allocation4 [shape = 'f32[18,18,64]{2,1,0:T(8,128)}', space=vmem, size = 0x36000, scoped, tag = 'scratch operand']
  %s0 = inlined_call_operand.hbm [shape: f32[2,16,16,24], index: 0, kind: input, shape index: {}]
  %s1 = inlined_call_operand.vmem [shape: f32[1,24], index: 1, kind: input, shape index: {}]
  %s2 = inlined_call_operand.vmem [shape: f32[1,24], index: 2, kind: input, shape index: {}]
  %s3 = inlined_call_operand.vmem [shape: f32[1,24], index: 3, kind: input, shape index: {}]
  %s4 = inlined_call_operand.vmem [shape: bf16[9,24,128], index: 4, kind: input, shape index: {}]
  %s5 = inlined_call_operand.vmem [shape: f32[1,128], index: 5, kind: input, shape index: {}]
  %s6 = inlined_call_operand.vmem [shape: f32[25,64], index: 6, kind: input, shape index: {}]
  %s7 = inlined_call_operand.vmem [shape: f32[1,64], index: 7, kind: input, shape index: {}]
  %s8 = inlined_call_operand.vmem [shape: bf16[9,64,24], index: 8, kind: input, shape index: {}]
  %s9 = inlined_call_operand.vmem [shape: f32[1,24], index: 9, kind: input, shape index: {}]
  %s10 = inlined_call_operand.hbm [shape: f32[2,16,16,24], index: 10, kind: output, shape index: {}]
  %s11 = sld [smem:[#allocation0]]
  $region77: #{tpu_custom_call.1} parent=0
    _
  %s13 = ssub.s32 1, %s11
  %s14 = scalar_select 0, %s13, %s11
  $region1: #{tpu_custom_call.1} parent=0
    #allocation5 [shape = 'u8[262144]{0}', space=vmem, size = 0x40000, scoped, tag = 'input window, operand 0']
    #allocation6 [shape = 's32[2]{0}', space=sflag, size = 0x8, scoped, tag = 'scoped memory for tpu_custom_call.1']
    #allocation7 [shape = 's32[2]{0}', space=sflag, size = 0x8, scoped, tag = 'scoped memory for tpu_custom_call.1']
    #allocation8 [shape = 'u8[262144]{0}', space=vmem, size = 0x40000, scoped, tag = 'output window, operand 0']
    %15 = vsyncpa [#allocation6], 0
    %s16 = scalar_lea.sflag [#allocation6], 1
    %17 = vsyncpa %s16, 0
    %18 = vsyncpa [#allocation7], 0
    %s19 = scalar_lea.sflag [#allocation7], 1
    %20 = vsyncpa %s19, 0
    loop: start=0, step=1, limit=4
    $region2: #{tpu_custom_call.1} parent=1 // loop_pre_header
      _
    $region3: #{tpu_custom_call.1} parent=1 // loop_header
      %s22 = sphi 0, %s26
      %p23 = scmp.ge.s32.totalorder %s22, 4
      %s32 = sphi 0, %s34
      %s35 = sphi 0, %s32
      %s36 = sphi 0, %s35
      %s52 = sphi 0, %s36
      %s56 = sphi 0, %s56
      %s58 = sphi 0, %s56
      %s59 = sphi 0, %s58
      %s73 = sphi 0, %s59
      %s77 = sphi 0, %s77
      %s79 = sphi 0, %s77
      %s80 = sphi 0, %s79
      %s94 = sphi 0, %s80
      %s98 = sphi 0, %s98
      %s100 = sphi 0, %s98
      %s101 = sphi 0, %s100
      %s115 = sphi 0, %s101
      %s119 = sphi 0, %s119
      %s121 = sphi 0, %s119
      %s122 = sphi 0, %s121
      %s136 = sphi 0, %s122
      %s140 = sphi 0, %s140
      %s142 = sphi 0, %s140
      %s143 = sphi 0, %s142
      %s157 = sphi 0, %s143
      %s161 = sphi 0, %s161
      %s163 = sphi 0, %s161
      %s164 = sphi 0, %s163
      %s178 = sphi 0, %s164
      %s182 = sphi 0, %s182
      %s184 = sphi 0, %s182
      %s185 = sphi 0, %s184
      %s199 = sphi 0, %s185
      %s203 = sphi 0, %s203
      %s205 = sphi 0, %s203
      %s206 = sphi 0, %s205
      %s220 = sphi 0, %s206
      %s224 = sphi 0, %s224
      %s226 = sphi 0, %s224
      %s227 = sphi 0, %s226
      %s241 = sphi 0, %s227
      %s247 = sphi 0, %s249
      %s250 = sphi 0, %s247
      %s251 = sphi 0, %s250
      %s267 = sphi 0, %s251
    $region4: #{tpu_custom_call.1} parent=1 // loop_header_branch
      %25 = sbr.rel (%p23) target = $region8
    $region5: #{tpu_custom_call.1} parent=1 // loop_body
      %s27 = ssub.s32 %s22, 1
      %s28 = ssub.s32 %s22, 2
      %s29 = sadd.s32 %s22, 1
      %s30 = ssub.s32 %s22, %s29
      %p31 = scmp.eq.s32.totalorder %s30, 0
      %s33 = sadd.s32 %s32, 1
      %s34 = scalar_select %p31, %s32, %s33
      %p37 = pneg %p31
      %p38 = scmp.eq.s32.totalorder %s22, 1
      %p39 = por %p37, %p38
      %p40 = scmp.ne.s32.totalorder %s32, %s35
      %p41 = scmp.eq.s32.totalorder %s22, 0
      %p42 = por %p40, %p41
      %p43 = scmp.ne.s32.totalorder %s32, %s35
      %p44 = scmp.eq.s32.totalorder %s27, 1
      %p45 = por %p43, %p44
      %p46 = scmp.ne.s32.totalorder %s35, %s36
      %p47 = scmp.eq.s32.totalorder %s27, 0
      %p48 = por %p46, %p47
      %p49 = scmp.ne.s32.totalorder %s35, %s36
      %p50 = scmp.eq.s32.totalorder %s28, 1
      %p51 = por %p49, %p50
      %p53 = scmp.ne.s32.totalorder %s36, %s52
      %p54 = scmp.eq.s32.totalorder %s28, 0
      %p55 = por %p53, %p54
      %s57 = sadd.s32 %s56, 1
      %p60 = scmp.eq.s32.totalorder %s22, 1
      %p61 = scmp.ne.s32.totalorder %s56, %s58
      %p62 = scmp.eq.s32.totalorder %s22, 0
      %p63 = por %p61, %p62
      %p64 = scmp.ne.s32.totalorder %s56, %s58
      %p65 = scmp.eq.s32.totalorder %s27, 1
      %p66 = por %p64, %p65
      %p67 = scmp.ne.s32.totalorder %s58, %s59
      %p68 = scmp.eq.s32.totalorder %s27, 0
      %p69 = por %p67, %p68
      %p70 = scmp.ne.s32.totalorder %s58, %s59
      %p71 = scmp.eq.s32.totalorder %s28, 1
      %p72 = por %p70, %p71
      %p74 = scmp.ne.s32.totalorder %s59, %s73
      %p75 = scmp.eq.s32.totalorder %s28, 0
      %p76 = por %p74, %p75
      %s78 = sadd.s32 %s77, 1
      %p81 = scmp.eq.s32.totalorder %s22, 1
      %p82 = scmp.ne.s32.totalorder %s77, %s79
      %p83 = scmp.eq.s32.totalorder %s22, 0
      %p84 = por %p82, %p83
      %p85 = scmp.ne.s32.totalorder %s77, %s79
      %p86 = scmp.eq.s32.totalorder %s27, 1
      %p87 = por %p85, %p86
      %p88 = scmp.ne.s32.totalorder %s79, %s80
      %p89 = scmp.eq.s32.totalorder %s27, 0
      %p90 = por %p88, %p89
      %p91 = scmp.ne.s32.totalorder %s79, %s80
      %p92 = scmp.eq.s32.totalorder %s28, 1
      %p93 = por %p91, %p92
      %p95 = scmp.ne.s32.totalorder %s80, %s94
      %p96 = scmp.eq.s32.totalorder %s28, 0
      %p97 = por %p95, %p96
      %s99 = sadd.s32 %s98, 1
      %p102 = scmp.eq.s32.totalorder %s22, 1
      %p103 = scmp.ne.s32.totalorder %s98, %s100
      %p104 = scmp.eq.s32.totalorder %s22, 0
      %p105 = por %p103, %p104
      %p106 = scmp.ne.s32.totalorder %s98, %s100
      %p107 = scmp.eq.s32.totalorder %s27, 1
      %p108 = por %p106, %p107
      %p109 = scmp.ne.s32.totalorder %s100, %s101
      %p110 = scmp.eq.s32.totalorder %s27, 0
      %p111 = por %p109, %p110
      %p112 = scmp.ne.s32.totalorder %s100, %s101
      %p113 = scmp.eq.s32.totalorder %s28, 1
      %p114 = por %p112, %p113
      %p116 = scmp.ne.s32.totalorder %s101, %s115
      %p117 = scmp.eq.s32.totalorder %s28, 0
      %p118 = por %p116, %p117
      %s120 = sadd.s32 %s119, 1
      %p123 = scmp.eq.s32.totalorder %s22, 1
      %p124 = scmp.ne.s32.totalorder %s119, %s121
      %p125 = scmp.eq.s32.totalorder %s22, 0
      %p126 = por %p124, %p125
      %p127 = scmp.ne.s32.totalorder %s119, %s121
      %p128 = scmp.eq.s32.totalorder %s27, 1
      %p129 = por %p127, %p128
      %p130 = scmp.ne.s32.totalorder %s121, %s122
      %p131 = scmp.eq.s32.totalorder %s27, 0
      %p132 = por %p130, %p131
      %p133 = scmp.ne.s32.totalorder %s121, %s122
      %p134 = scmp.eq.s32.totalorder %s28, 1
      %p135 = por %p133, %p134
      %p137 = scmp.ne.s32.totalorder %s122, %s136
      %p138 = scmp.eq.s32.totalorder %s28, 0
      %p139 = por %p137, %p138
      %s141 = sadd.s32 %s140, 1
      %p144 = scmp.eq.s32.totalorder %s22, 1
      %p145 = scmp.ne.s32.totalorder %s140, %s142
      %p146 = scmp.eq.s32.totalorder %s22, 0
      %p147 = por %p145, %p146
      %p148 = scmp.ne.s32.totalorder %s140, %s142
      %p149 = scmp.eq.s32.totalorder %s27, 1
      %p150 = por %p148, %p149
      %p151 = scmp.ne.s32.totalorder %s142, %s143
      %p152 = scmp.eq.s32.totalorder %s27, 0
      %p153 = por %p151, %p152
      %p154 = scmp.ne.s32.totalorder %s142, %s143
      %p155 = scmp.eq.s32.totalorder %s28, 1
      %p156 = por %p154, %p155
      %p158 = scmp.ne.s32.totalorder %s143, %s157
      %p159 = scmp.eq.s32.totalorder %s28, 0
      %p160 = por %p158, %p159
      %s162 = sadd.s32 %s161, 1
      %p165 = scmp.eq.s32.totalorder %s22, 1
      %p166 = scmp.ne.s32.totalorder %s161, %s163
      %p167 = scmp.eq.s32.totalorder %s22, 0
      %p168 = por %p166, %p167
      %p169 = scmp.ne.s32.totalorder %s161, %s163
      %p170 = scmp.eq.s32.totalorder %s27, 1
      %p171 = por %p169, %p170
      %p172 = scmp.ne.s32.totalorder %s163, %s164
      %p173 = scmp.eq.s32.totalorder %s27, 0
      %p174 = por %p172, %p173
      %p175 = scmp.ne.s32.totalorder %s163, %s164
      %p176 = scmp.eq.s32.totalorder %s28, 1
      %p177 = por %p175, %p176
      %p179 = scmp.ne.s32.totalorder %s164, %s178
      %p180 = scmp.eq.s32.totalorder %s28, 0
      %p181 = por %p179, %p180
      %s183 = sadd.s32 %s182, 1
      %p186 = scmp.eq.s32.totalorder %s22, 1
      %p187 = scmp.ne.s32.totalorder %s182, %s184
      %p188 = scmp.eq.s32.totalorder %s22, 0
      %p189 = por %p187, %p188
      %p190 = scmp.ne.s32.totalorder %s182, %s184
      %p191 = scmp.eq.s32.totalorder %s27, 1
      %p192 = por %p190, %p191
      %p193 = scmp.ne.s32.totalorder %s184, %s185
      %p194 = scmp.eq.s32.totalorder %s27, 0
      %p195 = por %p193, %p194
      %p196 = scmp.ne.s32.totalorder %s184, %s185
      %p197 = scmp.eq.s32.totalorder %s28, 1
      %p198 = por %p196, %p197
      %p200 = scmp.ne.s32.totalorder %s185, %s199
      %p201 = scmp.eq.s32.totalorder %s28, 0
      %p202 = por %p200, %p201
      %s204 = sadd.s32 %s203, 1
      %p207 = scmp.eq.s32.totalorder %s22, 1
      %p208 = scmp.ne.s32.totalorder %s203, %s205
      %p209 = scmp.eq.s32.totalorder %s22, 0
      %p210 = por %p208, %p209
      %p211 = scmp.ne.s32.totalorder %s203, %s205
      %p212 = scmp.eq.s32.totalorder %s27, 1
      %p213 = por %p211, %p212
      %p214 = scmp.ne.s32.totalorder %s205, %s206
      %p215 = scmp.eq.s32.totalorder %s27, 0
      %p216 = por %p214, %p215
      %p217 = scmp.ne.s32.totalorder %s205, %s206
      %p218 = scmp.eq.s32.totalorder %s28, 1
      %p219 = por %p217, %p218
      %p221 = scmp.ne.s32.totalorder %s206, %s220
      %p222 = scmp.eq.s32.totalorder %s28, 0
      %p223 = por %p221, %p222
      %s225 = sadd.s32 %s224, 1
      %p228 = scmp.eq.s32.totalorder %s22, 1
      %p229 = scmp.ne.s32.totalorder %s224, %s226
      %p230 = scmp.eq.s32.totalorder %s22, 0
      %p231 = por %p229, %p230
      %p232 = scmp.ne.s32.totalorder %s224, %s226
      %p233 = scmp.eq.s32.totalorder %s27, 1
      %p234 = por %p232, %p233
      %p235 = scmp.ne.s32.totalorder %s226, %s227
      %p236 = scmp.eq.s32.totalorder %s27, 0
      %p237 = por %p235, %p236
      %p238 = scmp.ne.s32.totalorder %s226, %s227
      %p239 = scmp.eq.s32.totalorder %s28, 1
      %p240 = por %p238, %p239
      %p242 = scmp.ne.s32.totalorder %s227, %s241
      %p243 = scmp.eq.s32.totalorder %s28, 0
      %p244 = por %p242, %p243
      %s245 = ssub.s32 %s22, %s29
      %p246 = scmp.eq.s32.totalorder %s245, 0
      %s248 = sadd.s32 %s247, 1
      %s249 = scalar_select %p246, %s247, %s248
      %p252 = pneg %p246
      %p253 = scmp.eq.s32.totalorder %s22, 1
      %p254 = por %p252, %p253
      %p255 = scmp.ne.s32.totalorder %s247, %s250
      %p256 = scmp.eq.s32.totalorder %s22, 0
      %p257 = por %p255, %p256
      %p258 = scmp.ne.s32.totalorder %s247, %s250
      %p259 = scmp.eq.s32.totalorder %s27, 1
      %p260 = por %p258, %p259
      %p261 = scmp.ne.s32.totalorder %s250, %s251
      %p262 = scmp.eq.s32.totalorder %s27, 0
      %p263 = por %p261, %p262
      %p264 = scmp.ne.s32.totalorder %s250, %s251
      %p265 = scmp.eq.s32.totalorder %s28, 1
      %p266 = por %p264, %p265
      %p268 = scmp.ne.s32.totalorder %s251, %s267
      %p269 = scmp.eq.s32.totalorder %s28, 0
      %p270 = por %p268, %p269
      %p271 = scmp.le.s32.totalorder 1, %s22
      %p272 = scmp.lt.s32.totalorder %s22, 3
      %p273 = pnand %p271, %p272
      %p274 = pneg %p273
      // Predicated region
      $region9: #{tpu_custom_call.1} parent=5 // pred_check
        _
      $region10: #{tpu_custom_call.1} parent=5 // pred_check_branch
        %276 = sbr.rel (%p273) target = $region12
      $region11: #{tpu_custom_call.1} parent=5 // pred_region
        %s277 = ssub.s32 %s22, 1
        // Predicated region
        $region13: #{tpu_custom_call.1} parent=11 // pred_check
          %p278 = pneg %p69
        $region14: #{tpu_custom_call.1} parent=11 // pred_check_branch
          %280 = sbr.rel (%p278) target = $region16
        $region15: #{tpu_custom_call.1} parent=11 // pred_region
          _
        $region16: #{tpu_custom_call.1} parent=11 // pred_fallthru
          _
        // Predicated region
        $region17: #{tpu_custom_call.1} parent=11 // pred_check
          %p281 = pneg %p90
        $region18: #{tpu_custom_call.1} parent=11 // pred_check_branch
          %283 = sbr.rel (%p281) target = $region20
        $region19: #{tpu_custom_call.1} parent=11 // pred_region
          _
        $region20: #{tpu_custom_call.1} parent=11 // pred_fallthru
          _
        // Predicated region
        $region21: #{tpu_custom_call.1} parent=11 // pred_check
          %p284 = pneg %p111
        $region22: #{tpu_custom_call.1} parent=11 // pred_check_branch
          %286 = sbr.rel (%p284) target = $region24
        $region23: #{tpu_custom_call.1} parent=11 // pred_region
          _
        $region24: #{tpu_custom_call.1} parent=11 // pred_fallthru
          _
        // Predicated region
        $region25: #{tpu_custom_call.1} parent=11 // pred_check
          %p287 = pneg %p132
        $region26: #{tpu_custom_call.1} parent=11 // pred_check_branch
          %289 = sbr.rel (%p287) target = $region28
        $region27: #{tpu_custom_call.1} parent=11 // pred_region
          _
        $region28: #{tpu_custom_call.1} parent=11 // pred_fallthru
          _
        // Predicated region
        $region29: #{tpu_custom_call.1} parent=11 // pred_check
          %p290 = pneg %p153
        $region30: #{tpu_custom_call.1} parent=11 // pred_check_branch
          %292 = sbr.rel (%p290) target = $region32
        $region31: #{tpu_custom_call.1} parent=11 // pred_region
          _
        $region32: #{tpu_custom_call.1} parent=11 // pred_fallthru
          _
        // Predicated region
        $region33: #{tpu_custom_call.1} parent=11 // pred_check
          %p293 = pneg %p174
        $region34: #{tpu_custom_call.1} parent=11 // pred_check_branch
          %295 = sbr.rel (%p293) target = $region36
        $region35: #{tpu_custom_call.1} parent=11 // pred_region
          _
        $region36: #{tpu_custom_call.1} parent=11 // pred_fallthru
          _
        // Predicated region
        $region37: #{tpu_custom_call.1} parent=11 // pred_check
          %p296 = pneg %p195
        $region38: #{tpu_custom_call.1} parent=11 // pred_check_branch
          %298 = sbr.rel (%p296) target = $region40
        $region39: #{tpu_custom_call.1} parent=11 // pred_region
          _
        $region40: #{tpu_custom_call.1} parent=11 // pred_fallthru
          _
        // Predicated region
        $region41: #{tpu_custom_call.1} parent=11 // pred_check
          %p299 = pneg %p216
        $region42: #{tpu_custom_call.1} parent=11 // pred_check_branch
          %301 = sbr.rel (%p299) target = $region44
        $region43: #{tpu_custom_call.1} parent=11 // pred_region
          _
        $region44: #{tpu_custom_call.1} parent=11 // pred_fallthru
          _
        // Predicated region
        $region45: #{tpu_custom_call.1} parent=11 // pred_check
          %p302 = pneg %p237
        $region46: #{tpu_custom_call.1} parent=11 // pred_check_branch
          %304 = sbr.rel (%p302) target = $region48
        $region47: #{tpu_custom_call.1} parent=11 // pred_region
          _
        $region48: #{tpu_custom_call.1} parent=11 // pred_fallthru
          _
      $region12: #{tpu_custom_call.1} parent=5 // pred_fallthru
        _
      %p305 = scmp.lt.s32.totalorder %s22, 2
      // Predicated region
      $region49: #{tpu_custom_call.1} parent=5 // pred_check
        %p306 = pneg %p305
      $region50: #{tpu_custom_call.1} parent=5 // pred_check_branch
        %308 = sbr.rel (%p306) target = $region52
      $region51: #{tpu_custom_call.1} parent=5 // pred_region
        // Predicated region
        $region53: #{tpu_custom_call.1} parent=51 // pred_check
          %p309 = pneg %p42
        $region54: #{tpu_custom_call.1} parent=51 // pred_check_branch
          %311 = sbr.rel (%p309) target = $region56
        $region55: #{tpu_custom_call.1} parent=51 // pred_region
          %s312 = sand.u32 %s32, 1
          %s313 = scalar_lea.sflag [#allocation6], %s312
          %s314 = sand.u32 %s32, 1
          %s315 = smul.addr %s314, 256
          %s316 = scalar_lea.vmem [#allocation5], %s315
          %s318 = ssub.s32 4096, 4096
          %319 = vsyncadd %s313, %s318
          %s320 = smul.addr %s22, 32
          %s321 = smul.addr %s320, 128
          %s322 = scalar_lea.hbm %s0, %s321
          %s323 = sshll.u32 %s316, 4
          %s324 = int_to_ptr.vmem [resolvable:$true] %s323
          %329 = dma.hbm_to_vmem [thread:$0]  %s322, 4096, %s324, %s313, 128, 128, 8
        $region56: #{tpu_custom_call.1} parent=51 // pred_fallthru
          _
      $region52: #{tpu_custom_call.1} parent=5 // pred_fallthru
        _
      %p330 = scmp.le.s32.totalorder 1, %s22
      %p331 = scmp.lt.s32.totalorder %s22, 3
      %p332 = pnand %p330, %p331
      %p333 = pneg %p332
      // Predicated region
      $region57: #{tpu_custom_call.1} parent=5 // pred_check
        _
      $region58: #{tpu_custom_call.1} parent=5 // pred_check_branch
        %335 = sbr.rel (%p332) target = $region60
      $region59: #{tpu_custom_call.1} parent=5 // pred_region
        %s336 = ssub.s32 %s22, 1
        %s337 = sand.u32 %s35, 1
        %s338 = scalar_lea.sflag [#allocation6], %s337
        %s339 = sand.u32 %s35, 1
        %s340 = smul.addr %s339, 256
        %s341 = scalar_lea.vmem [#allocation5], %s340
        // Predicated region
        $region61: #{tpu_custom_call.1} parent=59 // pred_check
          %p342 = pneg %p48
        $region62: #{tpu_custom_call.1} parent=59 // pred_check_branch
          %344 = sbr.rel (%p342) target = $region64
        $region63: #{tpu_custom_call.1} parent=59 // pred_region
          %345 = dma.done %s338, 4096
        $region64: #{tpu_custom_call.1} parent=59 // pred_fallthru
          _
        %s346 = sand.u32 %s35, 1
        %s347 = scalar_lea.sflag [#allocation6], %s346
        %s348 = sand.u32 %s35, 1
        %s349 = smul.addr %s348, 256
        %s350 = scalar_lea.vmem [#allocation5], %s349
        %p351 = pneg %p48
        %p352 = pneg %p45
        %p353 = pneg %p69
        %p354 = pneg %p66
        %p355 = pneg %p90
        %p356 = pneg %p87
        %p357 = pneg %p111
        %p358 = pneg %p108
        %p359 = pneg %p132
        %p360 = pneg %p129
        %p361 = pneg %p153
        %p362 = pneg %p150
        %p363 = pneg %p174
        %p364 = pneg %p171
        %p365 = pneg %p195
        %p366 = pneg %p192
        %p367 = pneg %p216
        %p368 = pneg %p213
        %p369 = pneg %p237
        %p370 = pneg %p234
        %p371 = pneg %p263
        %p372 = pneg %p260
        %s373 = sand.u32 %s250, 1
        %s374 = scalar_lea.sflag [#allocation7], %s373
        %s375 = sand.u32 %s250, 1
        %s376 = smul.addr %s375, 256
        %s377 = scalar_lea.vmem [#allocation8], %s376
        %vm379 = vcmask 195584
        %380 = vst.msk [vmem:[#allocation2] sm:$0xff] %vm379, 0.0
        %381 = vst.msk [vmem:[#allocation2 + $0x8] sm:$0xff] %vm379, 0.0
        %vm382 = vcmask 189440
        %383 = vst.msk [vmem:[#allocation2 + $0x10] sm:$0x3] %vm382, 0.0
        %s384 = scalar_lea.vmem [#allocation2], 408
        %385 = vst.msk [vmem:[%s384] sm:$0xff] %vm379, 0.0
        %386 = vst.msk [vmem:[%s384 + $0x8] sm:$0xff] %vm379, 0.0
        %387 = vst.msk [vmem:[%s384 + $0x10] sm:$0x3] %vm382, 0.0
        %vm388 = vcmask 188416
        %389 = vst.msk [vmem:[#allocation2] sm:$0x1] %vm388, 0.0
        %390 = vst.msk [vmem:[#allocation2 + $0x18] sm:$0x1] %vm388, 0.0
        %391 = vst.msk [vmem:[#allocation2 + $0x30] sm:$0x1] %vm388, 0.0
        %392 = vst.msk [vmem:[#allocation2 + $0x48] sm:$0x1] %vm388, 0.0
        %393 = vst.msk [vmem:[#allocation2 + $0x60] sm:$0x1] %vm388, 0.0
        %394 = vst.msk [vmem:[#allocation2 + $0x78] sm:$0x1] %vm388, 0.0
        %395 = vst.msk [vmem:[#allocation2 + $0x90] sm:$0x1] %vm388, 0.0
        %396 = vst.msk [vmem:[#allocation2 + $0xa8] sm:$0x1] %vm388, 0.0
        %397 = vst.msk [vmem:[#allocation2 + $0xc0] sm:$0x1] %vm388, 0.0
        %398 = vst.msk [vmem:[#allocation2 + $0xd8] sm:$0x1] %vm388, 0.0
        %399 = vst.msk [vmem:[#allocation2 + $0xf0] sm:$0x1] %vm388, 0.0
        %400 = vst.msk [vmem:[#allocation2 + $0x108] sm:$0x1] %vm388, 0.0
        %401 = vst.msk [vmem:[#allocation2 + $0x120] sm:$0x1] %vm388, 0.0
        %402 = vst.msk [vmem:[#allocation2 + $0x138] sm:$0x1] %vm388, 0.0
        %403 = vst.msk [vmem:[#allocation2 + $0x150] sm:$0x1] %vm388, 0.0
        %404 = vst.msk [vmem:[#allocation2 + $0x168] sm:$0x1] %vm388, 0.0
        %405 = vst.msk [vmem:[#allocation2 + $0x180] sm:$0x1] %vm388, 0.0
        %406 = vst.msk [vmem:[#allocation2 + $0x198] sm:$0x1] %vm388, 0.0
        %407 = vst.msk [vmem:[#allocation2 + $0x11] sm:$0x1] %vm388, 0.0
        %408 = vst.msk [vmem:[#allocation2 + $0x29] sm:$0x1] %vm388, 0.0
        %409 = vst.msk [vmem:[#allocation2 + $0x41] sm:$0x1] %vm388, 0.0
        %410 = vst.msk [vmem:[#allocation2 + $0x59] sm:$0x1] %vm388, 0.0
        %411 = vst.msk [vmem:[#allocation2 + $0x71] sm:$0x1] %vm388, 0.0
        %412 = vst.msk [vmem:[#allocation2 + $0x89] sm:$0x1] %vm388, 0.0
        %413 = vst.msk [vmem:[#allocation2 + $0xa1] sm:$0x1] %vm388, 0.0
        %414 = vst.msk [vmem:[#allocation2 + $0xb9] sm:$0x1] %vm388, 0.0
        %415 = vst.msk [vmem:[#allocation2 + $0xd1] sm:$0x1] %vm388, 0.0
        %416 = vst.msk [vmem:[#allocation2 + $0xe9] sm:$0x1] %vm388, 0.0
        %417 = vst.msk [vmem:[#allocation2 + $0x101] sm:$0x1] %vm388, 0.0
        %418 = vst.msk [vmem:[#allocation2 + $0x119] sm:$0x1] %vm388, 0.0
        %419 = vst.msk [vmem:[#allocation2 + $0x131] sm:$0x1] %vm388, 0.0
        %420 = vst.msk [vmem:[#allocation2 + $0x149] sm:$0x1] %vm388, 0.0
        %421 = vst.msk [vmem:[#allocation2 + $0x161] sm:$0x1] %vm388, 0.0
        %422 = vst.msk [vmem:[#allocation2 + $0x179] sm:$0x1] %vm388, 0.0
        %423 = vst.msk [vmem:[#allocation2 + $0x191] sm:$0x1] %vm388, 0.0
        %424 = vst.msk [vmem:[#allocation2 + $0x1a9] sm:$0x1] %vm388, 0.0
        %vm425 = vcmask 523264
        %426 = vst.msk [vmem:[#allocation3] sm:$0xff] %vm425, 0.0
        %427 = vst.msk [vmem:[#allocation3 + $0x8] sm:$0xff] %vm425, 0.0
        %428 = vst.msk [vmem:[#allocation3 + $0x10] sm:$0xff] %vm425, 0.0
        %vm429 = vcmask 517120
        %430 = vst.msk [vmem:[#allocation3 + $0x18] sm:$0x3] %vm429, 0.0
        %431 = vst.msk [vmem:[#allocation3 + $0x20] sm:$0xff] %vm425, 0.0
        %432 = vst.msk [vmem:[#allocation3 + $0x28] sm:$0xff] %vm425, 0.0
        %433 = vst.msk [vmem:[#allocation3 + $0x30] sm:$0xff] %vm425, 0.0
        %434 = vst.msk [vmem:[#allocation3 + $0x38] sm:$0x3] %vm429, 0.0
        %435 = vst.msk [vmem:[#allocation3 + $0x40] sm:$0xff] %vm425, 0.0
        %436 = vst.msk [vmem:[#allocation3 + $0x48] sm:$0xff] %vm425, 0.0
        %437 = vst.msk [vmem:[#allocation3 + $0x50] sm:$0xff] %vm425, 0.0
        %438 = vst.msk [vmem:[#allocation3 + $0x58] sm:$0x3] %vm429, 0.0
        %439 = vst.msk [vmem:[#allocation3 + $0x60] sm:$0xff] %vm425, 0.0
        %440 = vst.msk [vmem:[#allocation3 + $0x68] sm:$0xff] %vm425, 0.0
        %441 = vst.msk [vmem:[#allocation3 + $0x70] sm:$0xff] %vm425, 0.0
        %442 = vst.msk [vmem:[#allocation3 + $0x78] sm:$0x3] %vm429, 0.0
        %443 = vst.msk [vmem:[#allocation3 + $0x80] sm:$0xff] %vm425, 0.0
        %444 = vst.msk [vmem:[#allocation3 + $0x88] sm:$0xff] %vm425, 0.0
        %445 = vst.msk [vmem:[#allocation3 + $0x90] sm:$0xff] %vm425, 0.0
        %446 = vst.msk [vmem:[#allocation3 + $0x98] sm:$0x3] %vm429, 0.0
        %s447 = scalar_lea.vmem [#allocation3], 672
        %448 = vst.msk [vmem:[%s447] sm:$0xff] %vm425, 0.0
        %449 = vst.msk [vmem:[%s447 + $0x8] sm:$0xff] %vm425, 0.0
        %450 = vst.msk [vmem:[%s447 + $0x10] sm:$0xff] %vm425, 0.0
        %451 = vst.msk [vmem:[%s447 + $0x18] sm:$0x3] %vm429, 0.0
        %452 = vst.msk [vmem:[%s447 + $0x20] sm:$0xff] %vm425, 0.0
        %453 = vst.msk [vmem:[%s447 + $0x28] sm:$0xff] %vm425, 0.0
        %454 = vst.msk [vmem:[%s447 + $0x30] sm:$0xff] %vm425, 0.0
        %455 = vst.msk [vmem:[%s447 + $0x38] sm:$0x3] %vm429, 0.0
        %456 = vst.msk [vmem:[%s447 + $0x40] sm:$0xff] %vm425, 0.0
        %457 = vst.msk [vmem:[%s447 + $0x48] sm:$0xff] %vm425, 0.0
        %458 = vst.msk [vmem:[%s447 + $0x50] sm:$0xff] %vm425, 0.0
        %459 = vst.msk [vmem:[%s447 + $0x58] sm:$0x3] %vm429, 0.0
        %460 = vst.msk [vmem:[%s447 + $0x60] sm:$0xff] %vm425, 0.0
        %461 = vst.msk [vmem:[%s447 + $0x68] sm:$0xff] %vm425, 0.0
        %462 = vst.msk [vmem:[%s447 + $0x70] sm:$0xff] %vm425, 0.0
        %463 = vst.msk [vmem:[%s447 + $0x78] sm:$0x3] %vm429, 0.0
        %464 = vst.msk [vmem:[%s447 + $0x80] sm:$0xff] %vm425, 0.0
        %465 = vst.msk [vmem:[%s447 + $0x88] sm:$0xff] %vm425, 0.0
        %466 = vst.msk [vmem:[%s447 + $0x90] sm:$0xff] %vm425, 0.0
        %467 = vst.msk [vmem:[%s447 + $0x98] sm:$0x3] %vm429, 0.0
        %vm468 = vcmask 520192
        %469 = vst.msk [vmem:[#allocation3] sm:$0x1f] %vm468, 0.0
        %470 = vst.msk [vmem:[#allocation3 + $0x20] sm:$0x1f] %vm468, 0.0
        %471 = vst.msk [vmem:[#allocation3 + $0x40] sm:$0x1f] %vm468, 0.0
        %472 = vst.msk [vmem:[#allocation3 + $0x60] sm:$0x1f] %vm468, 0.0
        %473 = vst.msk [vmem:[#allocation3 + $0x80] sm:$0x1f] %vm468, 0.0
        %474 = vst.msk [vmem:[#allocation3 + $0xa0] sm:$0x1f] %vm468, 0.0
        %475 = vst.msk [vmem:[#allocation3 + $0xc0] sm:$0x1f] %vm468, 0.0
        %476 = vst.msk [vmem:[#allocation3 + $0xe0] sm:$0x1f] %vm468, 0.0
        %477 = vst.msk [vmem:[#allocation3 + $0x100] sm:$0x1f] %vm468, 0.0
        %478 = vst.msk [vmem:[#allocation3 + $0x120] sm:$0x1f] %vm468, 0.0
        %479 = vst.msk [vmem:[#allocation3 + $0x140] sm:$0x1f] %vm468, 0.0
        %480 = vst.msk [vmem:[#allocation3 + $0x160] sm:$0x1f] %vm468, 0.0
        %481 = vst.msk [vmem:[#allocation3 + $0x180] sm:$0x1f] %vm468, 0.0
        %482 = vst.msk [vmem:[#allocation3 + $0x1a0] sm:$0x1f] %vm468, 0.0
        %483 = vst.msk [vmem:[#allocation3 + $0x1c0] sm:$0x1f] %vm468, 0.0
        %484 = vst.msk [vmem:[#allocation3 + $0x1e0] sm:$0x1f] %vm468, 0.0
        %485 = vst.msk [vmem:[#allocation3 + $0x200] sm:$0x1f] %vm468, 0.0
        %486 = vst.msk [vmem:[#allocation3 + $0x220] sm:$0x1f] %vm468, 0.0
        %487 = vst.msk [vmem:[#allocation3 + $0x240] sm:$0x1f] %vm468, 0.0
        %488 = vst.msk [vmem:[#allocation3 + $0x260] sm:$0x1f] %vm468, 0.0
        %489 = vst.msk [vmem:[#allocation3 + $0x280] sm:$0x1f] %vm468, 0.0
        %490 = vst.msk [vmem:[#allocation3 + $0x2a0] sm:$0x1f] %vm468, 0.0
        %491 = vst.msk [vmem:[#allocation3 + $0x2c0] sm:$0x1f] %vm468, 0.0
        %492 = vst.msk [vmem:[#allocation3 + $0x2e0] sm:$0x1f] %vm468, 0.0
        %493 = vst.msk [vmem:[#allocation3 + $0x300] sm:$0x1f] %vm468, 0.0
        %494 = vst.msk [vmem:[#allocation3 + $0x320] sm:$0x1f] %vm468, 0.0
        %495 = vst.msk [vmem:[#allocation3 + $0x15] sm:$0x1f] %vm468, 0.0
        %496 = vst.msk [vmem:[#allocation3 + $0x35] sm:$0x1f] %vm468, 0.0
        %497 = vst.msk [vmem:[#allocation3 + $0x55] sm:$0x1f] %vm468, 0.0
        %498 = vst.msk [vmem:[#allocation3 + $0x75] sm:$0x1f] %vm468, 0.0
        %499 = vst.msk [vmem:[#allocation3 + $0x95] sm:$0x1f] %vm468, 0.0
        %500 = vst.msk [vmem:[#allocation3 + $0xb5] sm:$0x1f] %vm468, 0.0
        %501 = vst.msk [vmem:[#allocation3 + $0xd5] sm:$0x1f] %vm468, 0.0
        %502 = vst.msk [vmem:[#allocation3 + $0xf5] sm:$0x1f] %vm468, 0.0
        %503 = vst.msk [vmem:[#allocation3 + $0x115] sm:$0x1f] %vm468, 0.0
        %504 = vst.msk [vmem:[#allocation3 + $0x135] sm:$0x1f] %vm468, 0.0
        %505 = vst.msk [vmem:[#allocation3 + $0x155] sm:$0x1f] %vm468, 0.0
        %506 = vst.msk [vmem:[#allocation3 + $0x175] sm:$0x1f] %vm468, 0.0
        %507 = vst.msk [vmem:[#allocation3 + $0x195] sm:$0x1f] %vm468, 0.0
        %508 = vst.msk [vmem:[#allocation3 + $0x1b5] sm:$0x1f] %vm468, 0.0
        %509 = vst.msk [vmem:[#allocation3 + $0x1d5] sm:$0x1f] %vm468, 0.0
        %510 = vst.msk [vmem:[#allocation3 + $0x1f5] sm:$0x1f] %vm468, 0.0
        %511 = vst.msk [vmem:[#allocation3 + $0x215] sm:$0x1f] %vm468, 0.0
        %512 = vst.msk [vmem:[#allocation3 + $0x235] sm:$0x1f] %vm468, 0.0
        %513 = vst.msk [vmem:[#allocation3 + $0x255] sm:$0x1f] %vm468, 0.0
        %514 = vst.msk [vmem:[#allocation3 + $0x275] sm:$0x1f] %vm468, 0.0
        %515 = vst.msk [vmem:[#allocation3 + $0x295] sm:$0x1f] %vm468, 0.0
        %516 = vst.msk [vmem:[#allocation3 + $0x2b5] sm:$0x1f] %vm468, 0.0
        %517 = vst.msk [vmem:[#allocation3 + $0x2d5] sm:$0x1f] %vm468, 0.0
        %518 = vst.msk [vmem:[#allocation3 + $0x2f5] sm:$0x1f] %vm468, 0.0
        %519 = vst.msk [vmem:[#allocation3 + $0x315] sm:$0x1f] %vm468, 0.0
        %520 = vst.msk [vmem:[#allocation3 + $0x335] sm:$0x1f] %vm468, 0.0
        %521 = vst.msk [vmem:[#allocation4] sm:$0xff] %vm425, 0.0
        %522 = vst.msk [vmem:[#allocation4 + $0x8] sm:$0xff] %vm425, 0.0
        %523 = vst.msk [vmem:[#allocation4 + $0x10] sm:$0x3] %vm429, 0.0
        %s524 = scalar_lea.vmem [#allocation4], 408
        %525 = vst.msk [vmem:[%s524] sm:$0xff] %vm425, 0.0
        %526 = vst.msk [vmem:[%s524 + $0x8] sm:$0xff] %vm425, 0.0
        %527 = vst.msk [vmem:[%s524 + $0x10] sm:$0x3] %vm429, 0.0
        %vm528 = vcmask 516096
        %529 = vst.msk [vmem:[#allocation4] sm:$0x1] %vm528, 0.0
        %530 = vst.msk [vmem:[#allocation4 + $0x18] sm:$0x1] %vm528, 0.0
        %531 = vst.msk [vmem:[#allocation4 + $0x30] sm:$0x1] %vm528, 0.0
        %532 = vst.msk [vmem:[#allocation4 + $0x48] sm:$0x1] %vm528, 0.0
        %533 = vst.msk [vmem:[#allocation4 + $0x60] sm:$0x1] %vm528, 0.0
        %534 = vst.msk [vmem:[#allocation4 + $0x78] sm:$0x1] %vm528, 0.0
        %535 = vst.msk [vmem:[#allocation4 + $0x90] sm:$0x1] %vm528, 0.0
        %536 = vst.msk [vmem:[#allocation4 + $0xa8] sm:$0x1] %vm528, 0.0
        %537 = vst.msk [vmem:[#allocation4 + $0xc0] sm:$0x1] %vm528, 0.0
        %538 = vst.msk [vmem:[#allocation4 + $0xd8] sm:$0x1] %vm528, 0.0
        %539 = vst.msk [vmem:[#allocation4 + $0xf0] sm:$0x1] %vm528, 0.0
        %540 = vst.msk [vmem:[#allocation4 + $0x108] sm:$0x1] %vm528, 0.0
        %541 = vst.msk [vmem:[#allocation4 + $0x120] sm:$0x1] %vm528, 0.0
        %542 = vst.msk [vmem:[#allocation4 + $0x138] sm:$0x1] %vm528, 0.0
        %543 = vst.msk [vmem:[#allocation4 + $0x150] sm:$0x1] %vm528, 0.0
        %544 = vst.msk [vmem:[#allocation4 + $0x168] sm:$0x1] %vm528, 0.0
        %545 = vst.msk [vmem:[#allocation4 + $0x180] sm:$0x1] %vm528, 0.0
        %546 = vst.msk [vmem:[#allocation4 + $0x198] sm:$0x1] %vm528, 0.0
        %547 = vst.msk [vmem:[#allocation4 + $0x11] sm:$0x1] %vm528, 0.0
        %548 = vst.msk [vmem:[#allocation4 + $0x29] sm:$0x1] %vm528, 0.0
        %549 = vst.msk [vmem:[#allocation4 + $0x41] sm:$0x1] %vm528, 0.0
        %550 = vst.msk [vmem:[#allocation4 + $0x59] sm:$0x1] %vm528, 0.0
        %551 = vst.msk [vmem:[#allocation4 + $0x71] sm:$0x1] %vm528, 0.0
        %552 = vst.msk [vmem:[#allocation4 + $0x89] sm:$0x1] %vm528, 0.0
        %553 = vst.msk [vmem:[#allocation4 + $0xa1] sm:$0x1] %vm528, 0.0
        %554 = vst.msk [vmem:[#allocation4 + $0xb9] sm:$0x1] %vm528, 0.0
        %555 = vst.msk [vmem:[#allocation4 + $0xd1] sm:$0x1] %vm528, 0.0
        %556 = vst.msk [vmem:[#allocation4 + $0xe9] sm:$0x1] %vm528, 0.0
        %557 = vst.msk [vmem:[#allocation4 + $0x101] sm:$0x1] %vm528, 0.0
        %558 = vst.msk [vmem:[#allocation4 + $0x119] sm:$0x1] %vm528, 0.0
        %559 = vst.msk [vmem:[#allocation4 + $0x131] sm:$0x1] %vm528, 0.0
        %560 = vst.msk [vmem:[#allocation4 + $0x149] sm:$0x1] %vm528, 0.0
        %561 = vst.msk [vmem:[#allocation4 + $0x161] sm:$0x1] %vm528, 0.0
        %562 = vst.msk [vmem:[#allocation4 + $0x179] sm:$0x1] %vm528, 0.0
        %563 = vst.msk [vmem:[#allocation4 + $0x191] sm:$0x1] %vm528, 0.0
        %564 = vst.msk [vmem:[#allocation4 + $0x1a9] sm:$0x1] %vm528, 0.0
        %v565 = vld [vmem:[%s341] sm:$0xff]
        %v566 = vld [vmem:[%s341 + $0x8] sm:$0xff]
        %v567 = vld [vmem:[%s341 + $0x10] sm:$0xff]
        %v568 = vld [vmem:[%s341 + $0x18] sm:$0xff]
        %v569 = vld [vmem:[%s341 + $0x20] sm:$0xff]
        %v570 = vld [vmem:[%s341 + $0x28] sm:$0xff]
        %v571 = vld [vmem:[%s341 + $0x30] sm:$0xff]
        %v572 = vld [vmem:[%s341 + $0x38] sm:$0xff]
        %v573 = vld [vmem:[%s341 + $0x40] sm:$0xff]
        %v574 = vld [vmem:[%s341 + $0x48] sm:$0xff]
        %v575 = vld [vmem:[%s341 + $0x50] sm:$0xff]
        %v576 = vld [vmem:[%s341 + $0x58] sm:$0xff]
        %v577 = vld [vmem:[%s341 + $0x60] sm:$0xff]
        %v578 = vld [vmem:[%s341 + $0x68] sm:$0xff]
        %v579 = vld [vmem:[%s341 + $0x70] sm:$0xff]
        %v580 = vld [vmem:[%s341 + $0x78] sm:$0xff]
        %v581 = vld [vmem:[%s341 + $0x80] sm:$0xff]
        %v582 = vld [vmem:[%s341 + $0x88] sm:$0xff]
        %v583 = vld [vmem:[%s341 + $0x90] sm:$0xff]
        %v584 = vld [vmem:[%s341 + $0x98] sm:$0xff]
        %v585 = vld [vmem:[%s341 + $0xa0] sm:$0xff]
        %v586 = vld [vmem:[%s341 + $0xa8] sm:$0xff]
        %v587 = vld [vmem:[%s341 + $0xb0] sm:$0xff]
        %v588 = vld [vmem:[%s341 + $0xb8] sm:$0xff]
        %v589 = vld [vmem:[%s341 + $0xc0] sm:$0xff]
        %v590 = vld [vmem:[%s341 + $0xc8] sm:$0xff]
        %v591 = vld [vmem:[%s341 + $0xd0] sm:$0xff]
        %v592 = vld [vmem:[%s341 + $0xd8] sm:$0xff]
        %v593 = vld [vmem:[%s341 + $0xe0] sm:$0xff]
        %v594 = vld [vmem:[%s341 + $0xe8] sm:$0xff]
        %v595 = vld [vmem:[%s341 + $0xf0] sm:$0xff]
        %v596 = vld [vmem:[%s341 + $0xf8] sm:$0xff]
        %v597 = vmul.f32 %v565, %v565
        %v598 = vmul.f32 %v566, %v566
        %v599 = vmul.f32 %v567, %v567
        %v600 = vmul.f32 %v568, %v568
        %v601 = vmul.f32 %v569, %v569
        %v602 = vmul.f32 %v570, %v570
        %v603 = vmul.f32 %v571, %v571
        %v604 = vmul.f32 %v572, %v572
        %v605 = vmul.f32 %v573, %v573
        %v606 = vmul.f32 %v574, %v574
        %v607 = vmul.f32 %v575, %v575
        %v608 = vmul.f32 %v576, %v576
        %v609 = vmul.f32 %v577, %v577
        %v610 = vmul.f32 %v578, %v578
        %v611 = vmul.f32 %v579, %v579
        %v612 = vmul.f32 %v580, %v580
        %v613 = vmul.f32 %v581, %v581
        %v614 = vmul.f32 %v582, %v582
        %v615 = vmul.f32 %v583, %v583
        %v616 = vmul.f32 %v584, %v584
        %v617 = vmul.f32 %v585, %v585
        %v618 = vmul.f32 %v586, %v586
        %v619 = vmul.f32 %v587, %v587
        %v620 = vmul.f32 %v588, %v588
        %v621 = vmul.f32 %v589, %v589
        %v622 = vmul.f32 %v590, %v590
        %v623 = vmul.f32 %v591, %v591
        %v624 = vmul.f32 %v592, %v592
        %v625 = vmul.f32 %v593, %v593
        %v626 = vmul.f32 %v594, %v594
        %v627 = vmul.f32 %v595, %v595
        %v628 = vmul.f32 %v596, %v596
        %v629 = vsel %vm379, %v597, 0.0
        %630 = vadd.xlane.f32.xlu0 %v629
        %v631 = vpop.xlane.xlu0 %630
        %v632 = vsel %vm379, %v598, 0.0
        %633 = vadd.xlane.f32.xlu0 %v632
        %v634 = vpop.xlane.xlu0 %633
        %v635 = vsel %vm379, %v599, 0.0
        %636 = vadd.xlane.f32.xlu0 %v635
        %v637 = vpop.xlane.xlu0 %636
        %v638 = vsel %vm379, %v600, 0.0
        %639 = vadd.xlane.f32.xlu0 %v638
        %v640 = vpop.xlane.xlu0 %639
        %v641 = vsel %vm379, %v601, 0.0
        %642 = vadd.xlane.f32.xlu0 %v641
        %v643 = vpop.xlane.xlu0 %642
        %v644 = vsel %vm379, %v602, 0.0
        %645 = vadd.xlane.f32.xlu0 %v644
        %v646 = vpop.xlane.xlu0 %645
        %v647 = vsel %vm379, %v603, 0.0
        %648 = vadd.xlane.f32.xlu0 %v647
        %v649 = vpop.xlane.xlu0 %648
        %v650 = vsel %vm379, %v604, 0.0
        %651 = vadd.xlane.f32.xlu0 %v650
        %v652 = vpop.xlane.xlu0 %651
        %v653 = vsel %vm379, %v605, 0.0
        %654 = vadd.xlane.f32.xlu0 %v653
        %v655 = vpop.xlane.xlu0 %654
        %v656 = vsel %vm379, %v606, 0.0
        %657 = vadd.xlane.f32.xlu0 %v656
        %v658 = vpop.xlane.xlu0 %657
        %v659 = vsel %vm379, %v607, 0.0
        %660 = vadd.xlane.f32.xlu0 %v659
        %v661 = vpop.xlane.xlu0 %660
        %v662 = vsel %vm379, %v608, 0.0
        %663 = vadd.xlane.f32.xlu0 %v662
        %v664 = vpop.xlane.xlu0 %663
        %v665 = vsel %vm379, %v609, 0.0
        %666 = vadd.xlane.f32.xlu0 %v665
        %v667 = vpop.xlane.xlu0 %666
        %v668 = vsel %vm379, %v610, 0.0
        %669 = vadd.xlane.f32.xlu0 %v668
        %v670 = vpop.xlane.xlu0 %669
        %v671 = vsel %vm379, %v611, 0.0
        %672 = vadd.xlane.f32.xlu0 %v671
        %v673 = vpop.xlane.xlu0 %672
        %v674 = vsel %vm379, %v612, 0.0
        %675 = vadd.xlane.f32.xlu0 %v674
        %v676 = vpop.xlane.xlu0 %675
        %v677 = vsel %vm379, %v613, 0.0
        %678 = vadd.xlane.f32.xlu0 %v677
        %v679 = vpop.xlane.xlu0 %678
        %v680 = vsel %vm379, %v614, 0.0
        %681 = vadd.xlane.f32.xlu0 %v680
        %v682 = vpop.xlane.xlu0 %681
        %v683 = vsel %vm379, %v615, 0.0
        %684 = vadd.xlane.f32.xlu0 %v683
        %v685 = vpop.xlane.xlu0 %684
        %v686 = vsel %vm379, %v616, 0.0
        %687 = vadd.xlane.f32.xlu0 %v686
        %v688 = vpop.xlane.xlu0 %687
        %v689 = vsel %vm379, %v617, 0.0
        %690 = vadd.xlane.f32.xlu0 %v689
        %v691 = vpop.xlane.xlu0 %690
        %v692 = vsel %vm379, %v618, 0.0
        %693 = vadd.xlane.f32.xlu0 %v692
        %v694 = vpop.xlane.xlu0 %693
        %v695 = vsel %vm379, %v619, 0.0
        %696 = vadd.xlane.f32.xlu0 %v695
        %v697 = vpop.xlane.xlu0 %696
        %v698 = vsel %vm379, %v620, 0.0
        %699 = vadd.xlane.f32.xlu0 %v698
        %v700 = vpop.xlane.xlu0 %699
        %v701 = vsel %vm379, %v621, 0.0
        %702 = vadd.xlane.f32.xlu0 %v701
        %v703 = vpop.xlane.xlu0 %702
        %v704 = vsel %vm379, %v622, 0.0
        %705 = vadd.xlane.f32.xlu0 %v704
        %v706 = vpop.xlane.xlu0 %705
        %v707 = vsel %vm379, %v623, 0.0
        %708 = vadd.xlane.f32.xlu0 %v707
        %v709 = vpop.xlane.xlu0 %708
        %v710 = vsel %vm379, %v624, 0.0
        %711 = vadd.xlane.f32.xlu0 %v710
        %v712 = vpop.xlane.xlu0 %711
        %v713 = vsel %vm379, %v625, 0.0
        %714 = vadd.xlane.f32.xlu0 %v713
        %v715 = vpop.xlane.xlu0 %714
        %v716 = vsel %vm379, %v626, 0.0
        %717 = vadd.xlane.f32.xlu0 %v716
        %v718 = vpop.xlane.xlu0 %717
        %v719 = vsel %vm379, %v627, 0.0
        %720 = vadd.xlane.f32.xlu0 %v719
        %v721 = vpop.xlane.xlu0 %720
        %v722 = vsel %vm379, %v628, 0.0
        %723 = vadd.xlane.f32.xlu0 %v722
        %v724 = vpop.xlane.xlu0 %723
        %v725 = vmul.f32 %v631, 0.041666668
        %v726 = vmul.f32 %v634, 0.041666668
        %v727 = vmul.f32 %v637, 0.041666668
        %v728 = vmul.f32 %v640, 0.041666668
        %v729 = vmul.f32 %v643, 0.041666668
        %v730 = vmul.f32 %v646, 0.041666668
        %v731 = vmul.f32 %v649, 0.041666668
        %v732 = vmul.f32 %v652, 0.041666668
        %v733 = vmul.f32 %v655, 0.041666668
        %v734 = vmul.f32 %v658, 0.041666668
        %v735 = vmul.f32 %v661, 0.041666668
        %v736 = vmul.f32 %v664, 0.041666668
        %v737 = vmul.f32 %v667, 0.041666668
        %v738 = vmul.f32 %v670, 0.041666668
        %v739 = vmul.f32 %v673, 0.041666668
        %v740 = vmul.f32 %v676, 0.041666668
        %v741 = vmul.f32 %v679, 0.041666668
        %v742 = vmul.f32 %v682, 0.041666668
        %v743 = vmul.f32 %v685, 0.041666668
        %v744 = vmul.f32 %v688, 0.041666668
        %v745 = vmul.f32 %v691, 0.041666668
        %v746 = vmul.f32 %v694, 0.041666668
        %v747 = vmul.f32 %v697, 0.041666668
        %v748 = vmul.f32 %v700, 0.041666668
        %v749 = vmul.f32 %v703, 0.041666668
        %v750 = vmul.f32 %v706, 0.041666668
        %v751 = vmul.f32 %v709, 0.041666668
        %v752 = vmul.f32 %v712, 0.041666668
        %v753 = vmul.f32 %v715, 0.041666668
        %v754 = vmul.f32 %v718, 0.041666668
        %v755 = vmul.f32 %v721, 0.041666668
        %v756 = vmul.f32 %v724, 0.041666668
        %v757 = vrsqrt.pop %v725
        %v758 = vmul.f32 %v725, %v757
        %vm759 = vcmp.eq.f32.partialorder %v725, inf
        %v760 = vsel %vm759, %v725, %v758
        %vm761 = vcmp.eq.f32.partialorder %v725, 0.0
        %v762 = vand.u32 %v725, 2147483648
        %v763 = vsel %vm761, %v762, %v760
        %v764 = vrsqrt.pop %v726
        %v765 = vmul.f32 %v726, %v764
        %vm766 = vcmp.eq.f32.partialorder %v726, inf
        %v767 = vsel %vm766, %v726, %v765
        %vm768 = vcmp.eq.f32.partialorder %v726, 0.0
        %v769 = vand.u32 %v726, 2147483648
        %v770 = vsel %vm768, %v769, %v767
        %v771 = vrsqrt.pop %v727
        %v772 = vmul.f32 %v727, %v771
        %vm773 = vcmp.eq.f32.partialorder %v727, inf
        %v774 = vsel %vm773, %v727, %v772
        %vm775 = vcmp.eq.f32.partialorder %v727, 0.0
        %v776 = vand.u32 %v727, 2147483648
        %v777 = vsel %vm775, %v776, %v774
        %v778 = vrsqrt.pop %v728
        %v779 = vmul.f32 %v728, %v778
        %vm780 = vcmp.eq.f32.partialorder %v728, inf
        %v781 = vsel %vm780, %v728, %v779
        %vm782 = vcmp.eq.f32.partialorder %v728, 0.0
        %v783 = vand.u32 %v728, 2147483648
        %v784 = vsel %vm782, %v783, %v781
        %v785 = vrsqrt.pop %v729
        %v786 = vmul.f32 %v729, %v785
        %vm787 = vcmp.eq.f32.partialorder %v729, inf
        %v788 = vsel %vm787, %v729, %v786
        %vm789 = vcmp.eq.f32.partialorder %v729, 0.0
        %v790 = vand.u32 %v729, 2147483648
        %v791 = vsel %vm789, %v790, %v788
        %v792 = vrsqrt.pop %v730
        %v793 = vmul.f32 %v730, %v792
        %vm794 = vcmp.eq.f32.partialorder %v730, inf
        %v795 = vsel %vm794, %v730, %v793
        %vm796 = vcmp.eq.f32.partialorder %v730, 0.0
        %v797 = vand.u32 %v730, 2147483648
        %v798 = vsel %vm796, %v797, %v795
        %v799 = vrsqrt.pop %v731
        %v800 = vmul.f32 %v731, %v799
        %vm801 = vcmp.eq.f32.partialorder %v731, inf
        %v802 = vsel %vm801, %v731, %v800
        %vm803 = vcmp.eq.f32.partialorder %v731, 0.0
        %v804 = vand.u32 %v731, 2147483648
        %v805 = vsel %vm803, %v804, %v802
        %v806 = vrsqrt.pop %v732
        %v807 = vmul.f32 %v732, %v806
        %vm808 = vcmp.eq.f32.partialorder %v732, inf
        %v809 = vsel %vm808, %v732, %v807
        %vm810 = vcmp.eq.f32.partialorder %v732, 0.0
        %v811 = vand.u32 %v732, 2147483648
        %v812 = vsel %vm810, %v811, %v809
        %v813 = vrsqrt.pop %v733
        %v814 = vmul.f32 %v733, %v813
        %vm815 = vcmp.eq.f32.partialorder %v733, inf
        %v816 = vsel %vm815, %v733, %v814
        %vm817 = vcmp.eq.f32.partialorder %v733, 0.0
        %v818 = vand.u32 %v733, 2147483648
        %v819 = vsel %vm817, %v818, %v816
        %v820 = vrsqrt.pop %v734
        %v821 = vmul.f32 %v734, %v820
        %vm822 = vcmp.eq.f32.partialorder %v734, inf
        %v823 = vsel %vm822, %v734, %v821
        %vm824 = vcmp.eq.f32.partialorder %v734, 0.0
        %v825 = vand.u32 %v734, 2147483648
        %v826 = vsel %vm824, %v825, %v823
        %v827 = vrsqrt.pop %v735
        %v828 = vmul.f32 %v735, %v827
        %vm829 = vcmp.eq.f32.partialorder %v735, inf
        %v830 = vsel %vm829, %v735, %v828
        %vm831 = vcmp.eq.f32.partialorder %v735, 0.0
        %v832 = vand.u32 %v735, 2147483648
        %v833 = vsel %vm831, %v832, %v830
        %v834 = vrsqrt.pop %v736
        %v835 = vmul.f32 %v736, %v834
        %vm836 = vcmp.eq.f32.partialorder %v736, inf
        %v837 = vsel %vm836, %v736, %v835
        %vm838 = vcmp.eq.f32.partialorder %v736, 0.0
        %v839 = vand.u32 %v736, 2147483648
        %v840 = vsel %vm838, %v839, %v837
        %v841 = vrsqrt.pop %v737
        %v842 = vmul.f32 %v737, %v841
        %vm843 = vcmp.eq.f32.partialorder %v737, inf
        %v844 = vsel %vm843, %v737, %v842
        %vm845 = vcmp.eq.f32.partialorder %v737, 0.0
        %v846 = vand.u32 %v737, 2147483648
        %v847 = vsel %vm845, %v846, %v844
        %v848 = vrsqrt.pop %v738
        %v849 = vmul.f32 %v738, %v848
        %vm850 = vcmp.eq.f32.partialorder %v738, inf
        %v851 = vsel %vm850, %v738, %v849
        %vm852 = vcmp.eq.f32.partialorder %v738, 0.0
        %v853 = vand.u32 %v738, 2147483648
        %v854 = vsel %vm852, %v853, %v851
        %v855 = vrsqrt.pop %v739
        %v856 = vmul.f32 %v739, %v855
        %vm857 = vcmp.eq.f32.partialorder %v739, inf
        %v858 = vsel %vm857, %v739, %v856
        %vm859 = vcmp.eq.f32.partialorder %v739, 0.0
        %v860 = vand.u32 %v739, 2147483648
        %v861 = vsel %vm859, %v860, %v858
        %v862 = vrsqrt.pop %v740
        %v863 = vmul.f32 %v740, %v862
        %vm864 = vcmp.eq.f32.partialorder %v740, inf
        %v865 = vsel %vm864, %v740, %v863
        %vm866 = vcmp.eq.f32.partialorder %v740, 0.0
        %v867 = vand.u32 %v740, 2147483648
        %v868 = vsel %vm866, %v867, %v865
        %v869 = vrsqrt.pop %v741
        %v870 = vmul.f32 %v741, %v869
        %vm871 = vcmp.eq.f32.partialorder %v741, inf
        %v872 = vsel %vm871, %v741, %v870
        %vm873 = vcmp.eq.f32.partialorder %v741, 0.0
        %v874 = vand.u32 %v741, 2147483648
        %v875 = vsel %vm873, %v874, %v872
        %v876 = vrsqrt.pop %v742
        %v877 = vmul.f32 %v742, %v876
        %vm878 = vcmp.eq.f32.partialorder %v742, inf
        %v879 = vsel %vm878, %v742, %v877
        %vm880 = vcmp.eq.f32.partialorder %v742, 0.0
        %v881 = vand.u32 %v742, 2147483648
        %v882 = vsel %vm880, %v881, %v879
        %v883 = vrsqrt.pop %v743
        %v884 = vmul.f32 %v743, %v883
        %vm885 = vcmp.eq.f32.partialorder %v743, inf
        %v886 = vsel %vm885, %v743, %v884
        %vm887 = vcmp.eq.f32.partialorder %v743, 0.0
        %v888 = vand.u32 %v743, 2147483648
        %v889 = vsel %vm887, %v888, %v886
        %v890 = vrsqrt.pop %v744
        %v891 = vmul.f32 %v744, %v890
        %vm892 = vcmp.eq.f32.partialorder %v744, inf
        %v893 = vsel %vm892, %v744, %v891
        %vm894 = vcmp.eq.f32.partialorder %v744, 0.0
        %v895 = vand.u32 %v744, 2147483648
        %v896 = vsel %vm894, %v895, %v893
        %v897 = vrsqrt.pop %v745
        %v898 = vmul.f32 %v745, %v897
        %vm899 = vcmp.eq.f32.partialorder %v745, inf
        %v900 = vsel %vm899, %v745, %v898
        %vm901 = vcmp.eq.f32.partialorder %v745, 0.0
        %v902 = vand.u32 %v745, 2147483648
        %v903 = vsel %vm901, %v902, %v900
        %v904 = vrsqrt.pop %v746
        %v905 = vmul.f32 %v746, %v904
        %vm906 = vcmp.eq.f32.partialorder %v746, inf
        %v907 = vsel %vm906, %v746, %v905
        %vm908 = vcmp.eq.f32.partialorder %v746, 0.0
        %v909 = vand.u32 %v746, 2147483648
        %v910 = vsel %vm908, %v909, %v907
        %v911 = vrsqrt.pop %v747
        %v912 = vmul.f32 %v747, %v911
        %vm913 = vcmp.eq.f32.partialorder %v747, inf
        %v914 = vsel %vm913, %v747, %v912
        %vm915 = vcmp.eq.f32.partialorder %v747, 0.0
        %v916 = vand.u32 %v747, 2147483648
        %v917 = vsel %vm915, %v916, %v914
        %v918 = vrsqrt.pop %v748
        %v919 = vmul.f32 %v748, %v918
        %vm920 = vcmp.eq.f32.partialorder %v748, inf
        %v921 = vsel %vm920, %v748, %v919
        %vm922 = vcmp.eq.f32.partialorder %v748, 0.0
        %v923 = vand.u32 %v748, 2147483648
        %v924 = vsel %vm922, %v923, %v921
        %v925 = vrsqrt.pop %v749
        %v926 = vmul.f32 %v749, %v925
        %vm927 = vcmp.eq.f32.partialorder %v749, inf
        %v928 = vsel %vm927, %v749, %v926
        %vm929 = vcmp.eq.f32.partialorder %v749, 0.0
        %v930 = vand.u32 %v749, 2147483648
        %v931 = vsel %vm929, %v930, %v928
        %v932 = vrsqrt.pop %v750
        %v933 = vmul.f32 %v750, %v932
        %vm934 = vcmp.eq.f32.partialorder %v750, inf
        %v935 = vsel %vm934, %v750, %v933
        %vm936 = vcmp.eq.f32.partialorder %v750, 0.0
        %v937 = vand.u32 %v750, 2147483648
        %v938 = vsel %vm936, %v937, %v935
        %v939 = vrsqrt.pop %v751
        %v940 = vmul.f32 %v751, %v939
        %vm941 = vcmp.eq.f32.partialorder %v751, inf
        %v942 = vsel %vm941, %v751, %v940
        %vm943 = vcmp.eq.f32.partialorder %v751, 0.0
        %v944 = vand.u32 %v751, 2147483648
        %v945 = vsel %vm943, %v944, %v942
        %v946 = vrsqrt.pop %v752
        %v947 = vmul.f32 %v752, %v946
        %vm948 = vcmp.eq.f32.partialorder %v752, inf
        %v949 = vsel %vm948, %v752, %v947
        %vm950 = vcmp.eq.f32.partialorder %v752, 0.0
        %v951 = vand.u32 %v752, 2147483648
        %v952 = vsel %vm950, %v951, %v949
        %v953 = vrsqrt.pop %v753
        %v954 = vmul.f32 %v753, %v953
        %vm955 = vcmp.eq.f32.partialorder %v753, inf
        %v956 = vsel %vm955, %v753, %v954
        %vm957 = vcmp.eq.f32.partialorder %v753, 0.0
        %v958 = vand.u32 %v753, 2147483648
        %v959 = vsel %vm957, %v958, %v956
        %v960 = vrsqrt.pop %v754
        %v961 = vmul.f32 %v754, %v960
        %vm962 = vcmp.eq.f32.partialorder %v754, inf
        %v963 = vsel %vm962, %v754, %v961
        %vm964 = vcmp.eq.f32.partialorder %v754, 0.0
        %v965 = vand.u32 %v754, 2147483648
        %v966 = vsel %vm964, %v965, %v963
        %v967 = vrsqrt.pop %v755
        %v968 = vmul.f32 %v755, %v967
        %vm969 = vcmp.eq.f32.partialorder %v755, inf
        %v970 = vsel %vm969, %v755, %v968
        %vm971 = vcmp.eq.f32.partialorder %v755, 0.0
        %v972 = vand.u32 %v755, 2147483648
        %v973 = vsel %vm971, %v972, %v970
        %v974 = vrsqrt.pop %v756
        %v975 = vmul.f32 %v756, %v974
        %vm976 = vcmp.eq.f32.partialorder %v756, inf
        %v977 = vsel %vm976, %v756, %v975
        %vm978 = vcmp.eq.f32.partialorder %v756, 0.0
        %v979 = vand.u32 %v756, 2147483648
        %v980 = vsel %vm978, %v979, %v977
        %v981 = vadd.f32 %v763, 1e-06
        %v982 = vadd.f32 %v770, 1e-06
        %v983 = vadd.f32 %v777, 1e-06
        %v984 = vadd.f32 %v784, 1e-06
        %v985 = vadd.f32 %v791, 1e-06
        %v986 = vadd.f32 %v798, 1e-06
        %v987 = vadd.f32 %v805, 1e-06
        %v988 = vadd.f32 %v812, 1e-06
        %v989 = vadd.f32 %v819, 1e-06
        %v990 = vadd.f32 %v826, 1e-06
        %v991 = vadd.f32 %v833, 1e-06
        %v992 = vadd.f32 %v840, 1e-06
        %v993 = vadd.f32 %v847, 1e-06
        %v994 = vadd.f32 %v854, 1e-06
        %v995 = vadd.f32 %v861, 1e-06
        %v996 = vadd.f32 %v868, 1e-06
        %v997 = vadd.f32 %v875, 1e-06
        %v998 = vadd.f32 %v882, 1e-06
        %v999 = vadd.f32 %v889, 1e-06
        %v1000 = vadd.f32 %v896, 1e-06
        %v1001 = vadd.f32 %v903, 1e-06
        %v1002 = vadd.f32 %v910, 1e-06
        %v1003 = vadd.f32 %v917, 1e-06
        %v1004 = vadd.f32 %v924, 1e-06
        %v1005 = vadd.f32 %v931, 1e-06
        %v1006 = vadd.f32 %v938, 1e-06
        %v1007 = vadd.f32 %v945, 1e-06
        %v1008 = vadd.f32 %v952, 1e-06
        %v1009 = vadd.f32 %v959, 1e-06
        %v1010 = vadd.f32 %v966, 1e-06
        %v1011 = vadd.f32 %v973, 1e-06
        %v1012 = vadd.f32 %v980, 1e-06
        %v1013 = vrcp.pop %v981
        %v1014 = vrcp.pop %v982
        %v1015 = vrcp.pop %v983
        %v1016 = vrcp.pop %v984
        %v1017 = vrcp.pop %v985
        %v1018 = vrcp.pop %v986
        %v1019 = vrcp.pop %v987
        %v1020 = vrcp.pop %v988
        %v1021 = vrcp.pop %v989
        %v1022 = vrcp.pop %v990
        %v1023 = vrcp.pop %v991
        %v1024 = vrcp.pop %v992
        %v1025 = vrcp.pop %v993
        %v1026 = vrcp.pop %v994
        %v1027 = vrcp.pop %v995
        %v1028 = vrcp.pop %v996
        %v1029 = vrcp.pop %v997
        %v1030 = vrcp.pop %v998
        %v1031 = vrcp.pop %v999
        %v1032 = vrcp.pop %v1000
        %v1033 = vrcp.pop %v1001
        %v1034 = vrcp.pop %v1002
        %v1035 = vrcp.pop %v1003
        %v1036 = vrcp.pop %v1004
        %v1037 = vrcp.pop %v1005
        %v1038 = vrcp.pop %v1006
        %v1039 = vrcp.pop %v1007
        %v1040 = vrcp.pop %v1008
        %v1041 = vrcp.pop %v1009
        %v1042 = vrcp.pop %v1010
        %v1043 = vrcp.pop %v1011
        %v1044 = vrcp.pop %v1012
        %v1045 = vmul.f32 %v565, %v1013
        %v1046 = vmul.f32 %v566, %v1014
        %v1047 = vmul.f32 %v567, %v1015
        %v1048 = vmul.f32 %v568, %v1016
        %v1049 = vmul.f32 %v569, %v1017
        %v1050 = vmul.f32 %v570, %v1018
        %v1051 = vmul.f32 %v571, %v1019
        %v1052 = vmul.f32 %v572, %v1020
        %v1053 = vmul.f32 %v573, %v1021
        %v1054 = vmul.f32 %v574, %v1022
        %v1055 = vmul.f32 %v575, %v1023
        %v1056 = vmul.f32 %v576, %v1024
        %v1057 = vmul.f32 %v577, %v1025
        %v1058 = vmul.f32 %v578, %v1026
        %v1059 = vmul.f32 %v579, %v1027
        %v1060 = vmul.f32 %v580, %v1028
        %v1061 = vmul.f32 %v581, %v1029
        %v1062 = vmul.f32 %v582, %v1030
        %v1063 = vmul.f32 %v583, %v1031
        %v1064 = vmul.f32 %v584, %v1032
        %v1065 = vmul.f32 %v585, %v1033
        %v1066 = vmul.f32 %v586, %v1034
        %v1067 = vmul.f32 %v587, %v1035
        %v1068 = vmul.f32 %v588, %v1036
        %v1069 = vmul.f32 %v589, %v1037
        %v1070 = vmul.f32 %v590, %v1038
        %v1071 = vmul.f32 %v591, %v1039
        %v1072 = vmul.f32 %v592, %v1040
        %v1073 = vmul.f32 %v593, %v1041
        %v1074 = vmul.f32 %v594, %v1042
        %v1075 = vmul.f32 %v595, %v1043
        %v1076 = vmul.f32 %v596, %v1044
        %v1077 = vld [vmem:[%s1] sm:$0x1]
        %v1079 = vlaneseq
        %v1080 = vshrl.u32 %v1079, 7
        %v1081 = vsub.s32 0, %v1080
        %v1082 = vrot.slane %v1077, %v1081
        %v1084 = vmul.f32 %v1045, %v1082
        %v1085 = vmul.f32 %v1046, %v1082
        %v1086 = vmul.f32 %v1047, %v1082
        %v1087 = vmul.f32 %v1048, %v1082
        %v1088 = vmul.f32 %v1049, %v1082
        %v1089 = vmul.f32 %v1050, %v1082
        %v1090 = vmul.f32 %v1051, %v1082
        %v1091 = vmul.f32 %v1052, %v1082
        %v1092 = vmul.f32 %v1053, %v1082
        %v1093 = vmul.f32 %v1054, %v1082
        %v1094 = vmul.f32 %v1055, %v1082
        %v1095 = vmul.f32 %v1056, %v1082
        %v1096 = vmul.f32 %v1057, %v1082
        %v1097 = vmul.f32 %v1058, %v1082
        %v1098 = vmul.f32 %v1059, %v1082
        %v1099 = vmul.f32 %v1060, %v1082
        %v1100 = vmul.f32 %v1061, %v1082
        %v1101 = vmul.f32 %v1062, %v1082
        %v1102 = vmul.f32 %v1063, %v1082
        %v1103 = vmul.f32 %v1064, %v1082
        %v1104 = vmul.f32 %v1065, %v1082
        %v1105 = vmul.f32 %v1066, %v1082
        %v1106 = vmul.f32 %v1067, %v1082
        %v1107 = vmul.f32 %v1068, %v1082
        %v1108 = vmul.f32 %v1069, %v1082
        %v1109 = vmul.f32 %v1070, %v1082
        %v1110 = vmul.f32 %v1071, %v1082
        %v1111 = vmul.f32 %v1072, %v1082
        %v1112 = vmul.f32 %v1073, %v1082
        %v1113 = vmul.f32 %v1074, %v1082
        %v1114 = vmul.f32 %v1075, %v1082
        %v1115 = vmul.f32 %v1076, %v1082
        %v1116 = vld [vmem:[%s2] sm:$0x1]
        %v1118 = vlaneseq
        %v1119 = vshrl.u32 %v1118, 7
        %v1120 = vsub.s32 0, %v1119
        %v1121 = vrot.slane %v1116, %v1120
        %v1123 = vadd.f32 %v1084, %v1121
        %v1124 = vadd.f32 %v1085, %v1121
        %v1125 = vadd.f32 %v1086, %v1121
        %v1126 = vadd.f32 %v1087, %v1121
        %v1127 = vadd.f32 %v1088, %v1121
        %v1128 = vadd.f32 %v1089, %v1121
        %v1129 = vadd.f32 %v1090, %v1121
        %v1130 = vadd.f32 %v1091, %v1121
        %v1131 = vadd.f32 %v1092, %v1121
        %v1132 = vadd.f32 %v1093, %v1121
        %v1133 = vadd.f32 %v1094, %v1121
        %v1134 = vadd.f32 %v1095, %v1121
        %v1135 = vadd.f32 %v1096, %v1121
        %v1136 = vadd.f32 %v1097, %v1121
        %v1137 = vadd.f32 %v1098, %v1121
        %v1138 = vadd.f32 %v1099, %v1121
        %v1139 = vadd.f32 %v1100, %v1121
        %v1140 = vadd.f32 %v1101, %v1121
        %v1141 = vadd.f32 %v1102, %v1121
        %v1142 = vadd.f32 %v1103, %v1121
        %v1143 = vadd.f32 %v1104, %v1121
        %v1144 = vadd.f32 %v1105, %v1121
        %v1145 = vadd.f32 %v1106, %v1121
        %v1146 = vadd.f32 %v1107, %v1121
        %v1147 = vadd.f32 %v1108, %v1121
        %v1148 = vadd.f32 %v1109, %v1121
        %v1149 = vadd.f32 %v1110, %v1121
        %v1150 = vadd.f32 %v1111, %v1121
        %v1151 = vadd.f32 %v1112, %v1121
        %v1152 = vadd.f32 %v1113, %v1121
        %v1153 = vadd.f32 %v1114, %v1121
        %v1154 = vadd.f32 %v1115, %v1121
        %s1155 = scalar_lea.vmem [#allocation2], 24
        %1156 = vst.msk [vmem:[%s1155 + $0x1] sm:$0xff] %vm379, %v1123
        %1157 = vst.msk [vmem:[%s1155 + $0x9] sm:$0xff] %vm379, %v1124
        %1158 = vst.msk [vmem:[%s1155 + $0x19] sm:$0xff] %vm379, %v1125
        %1159 = vst.msk [vmem:[%s1155 + $0x21] sm:$0xff] %vm379, %v1126
        %1160 = vst.msk [vmem:[%s1155 + $0x31] sm:$0xff] %vm379, %v1127
        %1161 = vst.msk [vmem:[%s1155 + $0x39] sm:$0xff] %vm379, %v1128
        %1162 = vst.msk [vmem:[%s1155 + $0x49] sm:$0xff] %vm379, %v1129
        %1163 = vst.msk [vmem:[%s1155 + $0x51] sm:$0xff] %vm379, %v1130
        %1164 = vst.msk [vmem:[%s1155 + $0x61] sm:$0xff] %vm379, %v1131
        %1165 = vst.msk [vmem:[%s1155 + $0x69] sm:$0xff] %vm379, %v1132
        %1166 = vst.msk [vmem:[%s1155 + $0x79] sm:$0xff] %vm379, %v1133
        %1167 = vst.msk [vmem:[%s1155 + $0x81] sm:$0xff] %vm379, %v1134
        %1168 = vst.msk [vmem:[%s1155 + $0x91] sm:$0xff] %vm379, %v1135
        %1169 = vst.msk [vmem:[%s1155 + $0x99] sm:$0xff] %vm379, %v1136
        %1170 = vst.msk [vmem:[%s1155 + $0xa9] sm:$0xff] %vm379, %v1137
        %1171 = vst.msk [vmem:[%s1155 + $0xb1] sm:$0xff] %vm379, %v1138
        %1172 = vst.msk [vmem:[%s1155 + $0xc1] sm:$0xff] %vm379, %v1139
        %1173 = vst.msk [vmem:[%s1155 + $0xc9] sm:$0xff] %vm379, %v1140
        %1174 = vst.msk [vmem:[%s1155 + $0xd9] sm:$0xff] %vm379, %v1141
        %1175 = vst.msk [vmem:[%s1155 + $0xe1] sm:$0xff] %vm379, %v1142
        %1176 = vst.msk [vmem:[%s1155 + $0xf1] sm:$0xff] %vm379, %v1143
        %1177 = vst.msk [vmem:[%s1155 + $0xf9] sm:$0xff] %vm379, %v1144
        %1178 = vst.msk [vmem:[%s1155 + $0x109] sm:$0xff] %vm379, %v1145
        %1179 = vst.msk [vmem:[%s1155 + $0x111] sm:$0xff] %vm379, %v1146
        %1180 = vst.msk [vmem:[%s1155 + $0x121] sm:$0xff] %vm379, %v1147
        %1181 = vst.msk [vmem:[%s1155 + $0x129] sm:$0xff] %vm379, %v1148
        %1182 = vst.msk [vmem:[%s1155 + $0x139] sm:$0xff] %vm379, %v1149
        %1183 = vst.msk [vmem:[%s1155 + $0x141] sm:$0xff] %vm379, %v1150
        %1184 = vst.msk [vmem:[%s1155 + $0x151] sm:$0xff] %vm379, %v1151
        %1185 = vst.msk [vmem:[%s1155 + $0x159] sm:$0xff] %vm379, %v1152
        %1186 = vst.msk [vmem:[%s1155 + $0x169] sm:$0xff] %vm379, %v1153
        %1187 = vst.msk [vmem:[%s1155 + $0x171] sm:$0xff] %vm379, %v1154
        %v1188 = vld [vmem:[#allocation2] sm:$0xff]
        %v1189 = vld [vmem:[#allocation2 + $0x8] sm:$0xff]
        %v1190 = vld [vmem:[#allocation2 + $0x18] sm:$0xff]
        %v1191 = vld [vmem:[#allocation2 + $0x20] sm:$0xff]
        %v1192 = vld [vmem:[#allocation2 + $0x30] sm:$0xff]
        %v1193 = vld [vmem:[#allocation2 + $0x38] sm:$0xff]
        %v1194 = vld [vmem:[#allocation2 + $0x48] sm:$0xff]
        %v1195 = vld [vmem:[#allocation2 + $0x50] sm:$0xff]
        %v1196 = vld [vmem:[#allocation2 + $0x60] sm:$0xff]
        %v1197 = vld [vmem:[#allocation2 + $0x68] sm:$0xff]
        %v1198 = vld [vmem:[#allocation2 + $0x78] sm:$0xff]
        %v1199 = vld [vmem:[#allocation2 + $0x80] sm:$0xff]
        %v1200 = vld [vmem:[#allocation2 + $0x90] sm:$0xff]
        %v1201 = vld [vmem:[#allocation2 + $0x98] sm:$0xff]
        %v1202 = vld [vmem:[#allocation2 + $0xa8] sm:$0xff]
        %v1203 = vld [vmem:[#allocation2 + $0xb0] sm:$0xff]
        %v1204 = vld [vmem:[#allocation2 + $0xc0] sm:$0xff]
        %v1205 = vld [vmem:[#allocation2 + $0xc8] sm:$0xff]
        %v1206 = vld [vmem:[#allocation2 + $0xd8] sm:$0xff]
        %v1207 = vld [vmem:[#allocation2 + $0xe0] sm:$0xff]
        %v1208 = vld [vmem:[#allocation2 + $0xf0] sm:$0xff]
        %v1209 = vld [vmem:[#allocation2 + $0xf8] sm:$0xff]
        %v1210 = vld [vmem:[#allocation2 + $0x108] sm:$0xff]
        %v1211 = vld [vmem:[#allocation2 + $0x110] sm:$0xff]
        %v1212 = vld [vmem:[#allocation2 + $0x120] sm:$0xff]
        %v1213 = vld [vmem:[#allocation2 + $0x128] sm:$0xff]
        %v1214 = vld [vmem:[#allocation2 + $0x138] sm:$0xff]
        %v1215 = vld [vmem:[#allocation2 + $0x140] sm:$0xff]
        %v1216 = vld [vmem:[#allocation2 + $0x150] sm:$0xff]
        %v1217 = vld [vmem:[#allocation2 + $0x158] sm:$0xff]
        %v1218 = vld [vmem:[#allocation2 + $0x168] sm:$0xff]
        %v1219 = vld [vmem:[#allocation2 + $0x170] sm:$0xff]
        %v1220 = vpack.c.bf16 %v1189, %v1188
        %v1221 = vpack.c.bf16 %v1191, %v1190
        %v1222 = vpack.c.bf16 %v1193, %v1192
        %v1223 = vpack.c.bf16 %v1195, %v1194
        %v1224 = vpack.c.bf16 %v1197, %v1196
        %v1225 = vpack.c.bf16 %v1199, %v1198
        %v1226 = vpack.c.bf16 %v1201, %v1200
        %v1227 = vpack.c.bf16 %v1203, %v1202
        %v1228 = vpack.c.bf16 %v1205, %v1204
        %v1229 = vpack.c.bf16 %v1207, %v1206
        %v1230 = vpack.c.bf16 %v1209, %v1208
        %v1231 = vpack.c.bf16 %v1211, %v1210
        %v1232 = vpack.c.bf16 %v1213, %v1212
        %v1233 = vpack.c.bf16 %v1215, %v1214
        %v1234 = vpack.c.bf16 %v1217, %v1216
        %v1235 = vpack.c.bf16 %v1219, %v1218
        %v1236 = vld [vmem:[%s4] sm:$0xf]
        %v1237 = vld [vmem:[%s4 + $0x4] sm:$0xf]
        %v1238 = vld [vmem:[%s4 + $0x8] sm:$0xf]
        %v1239 = vld [vmem:[#allocation2 + $0x1] sm:$0xff]
        %v1240 = vld [vmem:[#allocation2 + $0x9] sm:$0xff]
        %v1241 = vld [vmem:[#allocation2 + $0x19] sm:$0xff]
        %v1242 = vld [vmem:[#allocation2 + $0x21] sm:$0xff]
        %v1243 = vld [vmem:[#allocation2 + $0x31] sm:$0xff]
        %v1244 = vld [vmem:[#allocation2 + $0x39] sm:$0xff]
        %v1245 = vld [vmem:[#allocation2 + $0x49] sm:$0xff]
        %v1246 = vld [vmem:[#allocation2 + $0x51] sm:$0xff]
        %v1247 = vld [vmem:[#allocation2 + $0x61] sm:$0xff]
        %v1248 = vld [vmem:[#allocation2 + $0x69] sm:$0xff]
        %v1249 = vld [vmem:[#allocation2 + $0x79] sm:$0xff]
        %v1250 = vld [vmem:[#allocation2 + $0x81] sm:$0xff]
        %v1251 = vld [vmem:[#allocation2 + $0x91] sm:$0xff]
        %v1252 = vld [vmem:[#allocation2 + $0x99] sm:$0xff]
        %v1253 = vld [vmem:[#allocation2 + $0xa9] sm:$0xff]
        %v1254 = vld [vmem:[#allocation2 + $0xb1] sm:$0xff]
        %v1255 = vld [vmem:[#allocation2 + $0xc1] sm:$0xff]
        %v1256 = vld [vmem:[#allocation2 + $0xc9] sm:$0xff]
        %v1257 = vld [vmem:[#allocation2 + $0xd9] sm:$0xff]
        %v1258 = vld [vmem:[#allocation2 + $0xe1] sm:$0xff]
        %v1259 = vld [vmem:[#allocation2 + $0xf1] sm:$0xff]
        %v1260 = vld [vmem:[#allocation2 + $0xf9] sm:$0xff]
        %v1261 = vld [vmem:[#allocation2 + $0x109] sm:$0xff]
        %v1262 = vld [vmem:[#allocation2 + $0x111] sm:$0xff]
        %v1263 = vld [vmem:[#allocation2 + $0x121] sm:$0xff]
        %v1264 = vld [vmem:[#allocation2 + $0x129] sm:$0xff]
        %v1265 = vld [vmem:[#allocation2 + $0x139] sm:$0xff]
        %v1266 = vld [vmem:[#allocation2 + $0x141] sm:$0xff]
        %v1267 = vld [vmem:[#allocation2 + $0x151] sm:$0xff]
        %v1268 = vld [vmem:[#allocation2 + $0x159] sm:$0xff]
        %v1269 = vld [vmem:[#allocation2 + $0x169] sm:$0xff]
        %v1270 = vld [vmem:[#allocation2 + $0x171] sm:$0xff]
        %v1271 = vpack.c.bf16 %v1240, %v1239
        %v1272 = vpack.c.bf16 %v1242, %v1241
        %v1273 = vpack.c.bf16 %v1244, %v1243
        %v1274 = vpack.c.bf16 %v1246, %v1245
        %v1275 = vpack.c.bf16 %v1248, %v1247
        %v1276 = vpack.c.bf16 %v1250, %v1249
        %v1277 = vpack.c.bf16 %v1252, %v1251
        %v1278 = vpack.c.bf16 %v1254, %v1253
        %v1279 = vpack.c.bf16 %v1256, %v1255
        %v1280 = vpack.c.bf16 %v1258, %v1257
        %v1281 = vpack.c.bf16 %v1260, %v1259
        %v1282 = vpack.c.bf16 %v1262, %v1261
        %v1283 = vpack.c.bf16 %v1264, %v1263
        %v1284 = vpack.c.bf16 %v1266, %v1265
        %v1285 = vpack.c.bf16 %v1268, %v1267
        %v1286 = vpack.c.bf16 %v1270, %v1269
        %s1287 = scalar_lea.vmem %s4, 12
        %v1288 = vld [vmem:[%s1287] sm:$0xf]
        %v1289 = vld [vmem:[%s1287 + $0x4] sm:$0xf]
        %v1290 = vld [vmem:[%s1287 + $0x8] sm:$0xf]
        %v1294 = vunpack.c.l.b16 %v1288
        %v1295 = vunpack.c.l.b16 %v1289
        %v1296 = vunpack.c.l.b16 %v1290
        %v1297 = vpack.c.b16 %v1295, %v1294
        %v1298 = vpack.c.b16 %v1296, %v1296
        %v1301 = vsel %vm379, %v1271, 0
        %v1304 = vsel %vm379, %v1272, 0
        %v1307 = vsel %vm379, %v1273, 0
        %v1310 = vsel %vm379, %v1274, 0
        %v1313 = vsel %vm379, %v1275, 0
        %v1316 = vsel %vm379, %v1276, 0
        %v1319 = vsel %vm379, %v1277, 0
        %v1322 = vsel %vm379, %v1278, 0
        %v1325 = vsel %vm379, %v1279, 0
        %v1328 = vsel %vm379, %v1280, 0
        %v1331 = vsel %vm379, %v1281, 0
        %v1334 = vsel %vm379, %v1282, 0
        %v1337 = vsel %vm379, %v1283, 0
        %v1340 = vsel %vm379, %v1284, 0
        %v1343 = vsel %vm379, %v1285, 0
        %v1346 = vsel %vm379, %v1286, 0
        %vm1348 = vcmask 1043456
        %v1350 = vsel %vm1348, %v1298, 0
        %1352 = vmatprep.subr.bf16.mxu0 0
        %1353 = vmatpush1.bf16.msra.mxu0 0
        %1354 = vmatprep.subr.bf16.mxu0 0
        %1355 = vmatpush1.bf16.msra.mxu0 0
        %1356 = vmatprep.subr.bf16.mxu0 0
        %1357 = vmatpush1.bf16.msra.mxu0 0
        %1358 = vmatprep.subr.bf16.mxu0 0
        %1359 = vmatpush1.bf16.msra.mxu0 0
        %1360 = vmatprep.subr.bf16.mxu0 0
        %1361 = vmatpush1.bf16.msra.mxu0 0
        %1362 = vmatprep.subr.bf16.mxu0 0
        %1363 = vmatpush1.bf16.msra.mxu0 0
        %1364 = vmatprep.subr.bf16.mxu0 0
        %1365 = vmatpush1.bf16.msra.mxu0 %v1350
        %1366 = vmatprep.subr.bf16.mxu0 0
        %1367 = vmatpush1.bf16.msra.mxu0 %v1297
        %1368 = vmatprep.subr.bf16.mxu0 0
        %1369 = vmatpush2.bf16.msra.mxu0 0
        %1370 = vmatprep.subr.bf16.mxu0 0
        %1371 = vmatpush2.bf16.msra.mxu0 0
        %1372 = vmatprep.subr.bf16.mxu0 0
        %1373 = vmatpush2.bf16.msra.mxu0 0
        %1374 = vmatprep.subr.bf16.mxu0 0
        %1375 = vmatpush2.bf16.msra.mxu0 0
        %1376 = vmatprep.subr.bf16.mxu0 0
        %1377 = vmatpush2.bf16.msra.mxu0 0
        %1378 = vmatprep.subr.bf16.mxu0 0
        %1379 = vmatpush2.bf16.msra.mxu0 0
        %1380 = vmatprep.subr.bf16.mxu0 0
        %1381 = vmatpush2.bf16.msra.mxu0 0
        %1382 = vmatprep.subr.bf16.mxu0 0
        %1383 = vmatpush2.bf16.msra.mxu0 0
        %1384 = vmatprep.mubr.bf16.mxu0 0
        %1385 = vmatmul.mubr.bf16.gmra.mxu0 %v1301
        %v1386 = vpop.f32.mrf.mxu0
        %v1387 = vadd.f32 0.0, %v1386
        %v1388 = vpop.f32.mrf.mxu0
        %v1389 = vpop.f32.mrf.mxu0
        %v1390 = vadd.f32 0.0, %v1389
        %v1391 = vpop.f32.mrf.mxu0
        %1392 = vmatprep.mubr.bf16.mxu0 0
        %1393 = vmatmul.mubr.bf16.gmra.mxu0 %v1304
        %v1394 = vpop.f32.mrf.mxu0
        %v1395 = vadd.f32 0.0, %v1394
        %v1396 = vpop.f32.mrf.mxu0
        %v1397 = vpop.f32.mrf.mxu0
        %v1398 = vadd.f32 0.0, %v1397
        %v1399 = vpop.f32.mrf.mxu0
        %1400 = vmatprep.mubr.bf16.mxu0 0
        %1401 = vmatmul.mubr.bf16.gmra.mxu0 %v1307
        %v1402 = vpop.f32.mrf.mxu0
        %v1403 = vadd.f32 0.0, %v1402
        %v1404 = vpop.f32.mrf.mxu0
        %v1405 = vpop.f32.mrf.mxu0
        %v1406 = vadd.f32 0.0, %v1405
        %v1407 = vpop.f32.mrf.mxu0
        %1408 = vmatprep.mubr.bf16.mxu0 0
        %1409 = vmatmul.mubr.bf16.gmra.mxu0 %v1310
        %v1410 = vpop.f32.mrf.mxu0
        %v1411 = vadd.f32 0.0, %v1410
        %v1412 = vpop.f32.mrf.mxu0
        %v1413 = vpop.f32.mrf.mxu0
        %v1414 = vadd.f32 0.0, %v1413
        %v1415 = vpop.f32.mrf.mxu0
        %1416 = vmatprep.mubr.bf16.mxu0 0
        %1417 = vmatmul.mubr.bf16.gmra.mxu0 %v1313
        %v1418 = vpop.f32.mrf.mxu0
        %v1419 = vadd.f32 0.0, %v1418
        %v1420 = vpop.f32.mrf.mxu0
        %v1421 = vpop.f32.mrf.mxu0
        %v1422 = vadd.f32 0.0, %v1421
        %v1423 = vpop.f32.mrf.mxu0
        %1424 = vmatprep.mubr.bf16.mxu0 0
        %1425 = vmatmul.mubr.bf16.gmra.mxu0 %v1316
        %v1426 = vpop.f32.mrf.mxu0
        %v1427 = vadd.f32 0.0, %v1426
        %v1428 = vpop.f32.mrf.mxu0
        %v1429 = vpop.f32.mrf.mxu0
        %v1430 = vadd.f32 0.0, %v1429
        %v1431 = vpop.f32.mrf.mxu0
        %1432 = vmatprep.mubr.bf16.mxu0 0
        %1433 = vmatmul.mubr.bf16.gmra.mxu0 %v1319
        %v1434 = vpop.f32.mrf.mxu0
        %v1435 = vadd.f32 0.0, %v1434
        %v1436 = vpop.f32.mrf.mxu0
        %v1437 = vpop.f32.mrf.mxu0
        %v1438 = vadd.f32 0.0, %v1437
        %v1439 = vpop.f32.mrf.mxu0
        %1440 = vmatprep.mubr.bf16.mxu0 0
        %1441 = vmatmul.mubr.bf16.gmra.mxu0 %v1322
        %v1442 = vpop.f32.mrf.mxu0
        %v1443 = vadd.f32 0.0, %v1442
        %v1444 = vpop.f32.mrf.mxu0
        %v1445 = vpop.f32.mrf.mxu0
        %v1446 = vadd.f32 0.0, %v1445
        %v1447 = vpop.f32.mrf.mxu0
        %1448 = vmatprep.mubr.bf16.mxu0 0
        %1449 = vmatmul.mubr.bf16.gmra.mxu0 %v1325
        %v1450 = vpop.f32.mrf.mxu0
        %v1451 = vadd.f32 0.0, %v1450
        %v1452 = vpop.f32.mrf.mxu0
        %v1453 = vpop.f32.mrf.mxu0
        %v1454 = vadd.f32 0.0, %v1453
        %v1455 = vpop.f32.mrf.mxu0
        %1456 = vmatprep.mubr.bf16.mxu0 0
        %1457 = vmatmul.mubr.bf16.gmra.mxu0 %v1328
        %v1458 = vpop.f32.mrf.mxu0
        %v1459 = vadd.f32 0.0, %v1458
        %v1460 = vpop.f32.mrf.mxu0
        %v1461 = vpop.f32.mrf.mxu0
        %v1462 = vadd.f32 0.0, %v1461
        %v1463 = vpop.f32.mrf.mxu0
        %1464 = vmatprep.mubr.bf16.mxu0 0
        %1465 = vmatmul.mubr.bf16.gmra.mxu0 %v1331
        %v1466 = vpop.f32.mrf.mxu0
        %v1467 = vadd.f32 0.0, %v1466
        %v1468 = vpop.f32.mrf.mxu0
        %v1469 = vpop.f32.mrf.mxu0
        %v1470 = vadd.f32 0.0, %v1469
        %v1471 = vpop.f32.mrf.mxu0
        %1472 = vmatprep.mubr.bf16.mxu0 0
        %1473 = vmatmul.mubr.bf16.gmra.mxu0 %v1334
        %v1474 = vpop.f32.mrf.mxu0
        %v1475 = vadd.f32 0.0, %v1474
        %v1476 = vpop.f32.mrf.mxu0
        %v1477 = vpop.f32.mrf.mxu0
        %v1478 = vadd.f32 0.0, %v1477
        %v1479 = vpop.f32.mrf.mxu0
        %1480 = vmatprep.mubr.bf16.mxu0 0
        %1481 = vmatmul.mubr.bf16.gmra.mxu0 %v1337
        %v1482 = vpop.f32.mrf.mxu0
        %v1483 = vadd.f32 0.0, %v1482
        %v1484 = vpop.f32.mrf.mxu0
        %v1485 = vpop.f32.mrf.mxu0
        %v1486 = vadd.f32 0.0, %v1485
        %v1487 = vpop.f32.mrf.mxu0
        %1488 = vmatprep.mubr.bf16.mxu0 0
        %1489 = vmatmul.mubr.bf16.gmra.mxu0 %v1340
        %v1490 = vpop.f32.mrf.mxu0
        %v1491 = vadd.f32 0.0, %v1490
        %v1492 = vpop.f32.mrf.mxu0
        %v1493 = vpop.f32.mrf.mxu0
        %v1494 = vadd.f32 0.0, %v1493
        %v1495 = vpop.f32.mrf.mxu0
        %1496 = vmatprep.mubr.bf16.mxu0 0
        %1497 = vmatmul.mubr.bf16.gmra.mxu0 %v1343
        %v1498 = vpop.f32.mrf.mxu0
        %v1499 = vadd.f32 0.0, %v1498
        %v1500 = vpop.f32.mrf.mxu0
        %v1501 = vpop.f32.mrf.mxu0
        %v1502 = vadd.f32 0.0, %v1501
        %v1503 = vpop.f32.mrf.mxu0
        %1504 = vmatprep.mubr.bf16.mxu0 0
        %1505 = vmatmul.mubr.bf16.gmra.mxu0 %v1346
        %v1506 = vpop.f32.mrf.mxu0
        %v1507 = vadd.f32 0.0, %v1506
        %v1508 = vpop.f32.mrf.mxu0
        %v1509 = vpop.f32.mrf.mxu0
        %v1510 = vadd.f32 0.0, %v1509
        %v1511 = vpop.f32.mrf.mxu0
        %1512 = vdwg.mxu0
        %v1516 = vunpack.c.l.b16 %v1236
        %v1517 = vunpack.c.l.b16 %v1237
        %v1518 = vunpack.c.l.b16 %v1238
        %v1519 = vpack.c.b16 %v1517, %v1516
        %v1520 = vpack.c.b16 %v1518, %v1518
        %v1523 = vsel %vm379, %v1220, 0
        %v1526 = vsel %vm379, %v1221, 0
        %v1529 = vsel %vm379, %v1222, 0
        %v1532 = vsel %vm379, %v1223, 0
        %v1535 = vsel %vm379, %v1224, 0
        %v1538 = vsel %vm379, %v1225, 0
        %v1541 = vsel %vm379, %v1226, 0
        %v1544 = vsel %vm379, %v1227, 0
        %v1547 = vsel %vm379, %v1228, 0
        %v1550 = vsel %vm379, %v1229, 0
        %v1553 = vsel %vm379, %v1230, 0
        %v1556 = vsel %vm379, %v1231, 0
        %v1559 = vsel %vm379, %v1232, 0
        %v1562 = vsel %vm379, %v1233, 0
        %v1565 = vsel %vm379, %v1234, 0
        %v1568 = vsel %vm379, %v1235, 0
        %v1571 = vsel %vm1348, %v1520, 0
        %1573 = vmatprep.subr.bf16.mxu0 0
        %1574 = vmatpush1.bf16.msra.mxu0 0
        %1575 = vmatprep.subr.bf16.mxu0 0
        %1576 = vmatpush1.bf16.msra.mxu0 0
        %1577 = vmatprep.subr.bf16.mxu0 0
        %1578 = vmatpush1.bf16.msra.mxu0 0
        %1579 = vmatprep.subr.bf16.mxu0 0
        %1580 = vmatpush1.bf16.msra.mxu0 0
        %1581 = vmatprep.subr.bf16.mxu0 0
        %1582 = vmatpush1.bf16.msra.mxu0 0
        %1583 = vmatprep.subr.bf16.mxu0 0
        %1584 = vmatpush1.bf16.msra.mxu0 0
        %1585 = vmatprep.subr.bf16.mxu0 0
        %1586 = vmatpush1.bf16.msra.mxu0 %v1571
        %1587 = vmatprep.subr.bf16.mxu0 0
        %1588 = vmatpush1.bf16.msra.mxu0 %v1519
        %1589 = vmatprep.subr.bf16.mxu0 0
        %1590 = vmatpush2.bf16.msra.mxu0 0
        %1591 = vmatprep.subr.bf16.mxu0 0
        %1592 = vmatpush2.bf16.msra.mxu0 0
        %1593 = vmatprep.subr.bf16.mxu0 0
        %1594 = vmatpush2.bf16.msra.mxu0 0
        %1595 = vmatprep.subr.bf16.mxu0 0
        %1596 = vmatpush2.bf16.msra.mxu0 0
        %1597 = vmatprep.subr.bf16.mxu0 0
        %1598 = vmatpush2.bf16.msra.mxu0 0
        %1599 = vmatprep.subr.bf16.mxu0 0
        %1600 = vmatpush2.bf16.msra.mxu0 0
        %1601 = vmatprep.subr.bf16.mxu0 0
        %1602 = vmatpush2.bf16.msra.mxu0 0
        %1603 = vmatprep.subr.bf16.mxu0 0
        %1604 = vmatpush2.bf16.msra.mxu0 0
        %1605 = vmatprep.mubr.bf16.mxu0 0
        %1606 = vmatmul.mubr.bf16.gmra.mxu0 %v1523
        %v1607 = vpop.f32.mrf.mxu0
        %v1608 = vadd.f32 %v1387, %v1607
        %v1609 = vpop.f32.mrf.mxu0
        %v1610 = vpop.f32.mrf.mxu0
        %v1611 = vadd.f32 %v1390, %v1610
        %v1612 = vpop.f32.mrf.mxu0
        %1613 = vmatprep.mubr.bf16.mxu0 0
        %1614 = vmatmul.mubr.bf16.gmra.mxu0 %v1526
        %v1615 = vpop.f32.mrf.mxu0
        %v1616 = vadd.f32 %v1395, %v1615
        %v1617 = vpop.f32.mrf.mxu0
        %v1618 = vpop.f32.mrf.mxu0
        %v1619 = vadd.f32 %v1398, %v1618
        %v1620 = vpop.f32.mrf.mxu0
        %1621 = vmatprep.mubr.bf16.mxu0 0
        %1622 = vmatmul.mubr.bf16.gmra.mxu0 %v1529
        %v1623 = vpop.f32.mrf.mxu0
        %v1624 = vadd.f32 %v1403, %v1623
        %v1625 = vpop.f32.mrf.mxu0
        %v1626 = vpop.f32.mrf.mxu0
        %v1627 = vadd.f32 %v1406, %v1626
        %v1628 = vpop.f32.mrf.mxu0
        %1629 = vmatprep.mubr.bf16.mxu0 0
        %1630 = vmatmul.mubr.bf16.gmra.mxu0 %v1532
        %v1631 = vpop.f32.mrf.mxu0
        %v1632 = vadd.f32 %v1411, %v1631
        %v1633 = vpop.f32.mrf.mxu0
        %v1634 = vpop.f32.mrf.mxu0
        %v1635 = vadd.f32 %v1414, %v1634
        %v1636 = vpop.f32.mrf.mxu0
        %1637 = vmatprep.mubr.bf16.mxu0 0
        %1638 = vmatmul.mubr.bf16.gmra.mxu0 %v1535
        %v1639 = vpop.f32.mrf.mxu0
        %v1640 = vadd.f32 %v1419, %v1639
        %v1641 = vpop.f32.mrf.mxu0
        %v1642 = vpop.f32.mrf.mxu0
        %v1643 = vadd.f32 %v1422, %v1642
        %v1644 = vpop.f32.mrf.mxu0
        %1645 = vmatprep.mubr.bf16.mxu0 0
        %1646 = vmatmul.mubr.bf16.gmra.mxu0 %v1538
        %v1647 = vpop.f32.mrf.mxu0
        %v1648 = vadd.f32 %v1427, %v1647
        %v1649 = vpop.f32.mrf.mxu0
        %v1650 = vpop.f32.mrf.mxu0
        %v1651 = vadd.f32 %v1430, %v1650
        %v1652 = vpop.f32.mrf.mxu0
        %1653 = vmatprep.mubr.bf16.mxu0 0
        %1654 = vmatmul.mubr.bf16.gmra.mxu0 %v1541
        %v1655 = vpop.f32.mrf.mxu0
        %v1656 = vadd.f32 %v1435, %v1655
        %v1657 = vpop.f32.mrf.mxu0
        %v1658 = vpop.f32.mrf.mxu0
        %v1659 = vadd.f32 %v1438, %v1658
        %v1660 = vpop.f32.mrf.mxu0
        %1661 = vmatprep.mubr.bf16.mxu0 0
        %1662 = vmatmul.mubr.bf16.gmra.mxu0 %v1544
        %v1663 = vpop.f32.mrf.mxu0
        %v1664 = vadd.f32 %v1443, %v1663
        %v1665 = vpop.f32.mrf.mxu0
        %v1666 = vpop.f32.mrf.mxu0
        %v1667 = vadd.f32 %v1446, %v1666
        %v1668 = vpop.f32.mrf.mxu0
        %1669 = vmatprep.mubr.bf16.mxu0 0
        %1670 = vmatmul.mubr.bf16.gmra.mxu0 %v1547
        %v1671 = vpop.f32.mrf.mxu0
        %v1672 = vadd.f32 %v1451, %v1671
        %v1673 = vpop.f32.mrf.mxu0
        %v1674 = vpop.f32.mrf.mxu0
        %v1675 = vadd.f32 %v1454, %v1674
        %v1676 = vpop.f32.mrf.mxu0
        %1677 = vmatprep.mubr.bf16.mxu0 0
        %1678 = vmatmul.mubr.bf16.gmra.mxu0 %v1550
        %v1679 = vpop.f32.mrf.mxu0
        %v1680 = vadd.f32 %v1459, %v1679
        %v1681 = vpop.f32.mrf.mxu0
        %v1682 = vpop.f32.mrf.mxu0
        %v1683 = vadd.f32 %v1462, %v1682
        %v1684 = vpop.f32.mrf.mxu0
        %1685 = vmatprep.mubr.bf16.mxu0 0
        %1686 = vmatmul.mubr.bf16.gmra.mxu0 %v1553
        %v1687 = vpop.f32.mrf.mxu0
        %v1688 = vadd.f32 %v1467, %v1687
        %v1689 = vpop.f32.mrf.mxu0
        %v1690 = vpop.f32.mrf.mxu0
        %v1691 = vadd.f32 %v1470, %v1690
        %v1692 = vpop.f32.mrf.mxu0
        %1693 = vmatprep.mubr.bf16.mxu0 0
        %1694 = vmatmul.mubr.bf16.gmra.mxu0 %v1556
        %v1695 = vpop.f32.mrf.mxu0
        %v1696 = vadd.f32 %v1475, %v1695
        %v1697 = vpop.f32.mrf.mxu0
        %v1698 = vpop.f32.mrf.mxu0
        %v1699 = vadd.f32 %v1478, %v1698
        %v1700 = vpop.f32.mrf.mxu0
        %1701 = vmatprep.mubr.bf16.mxu0 0
        %1702 = vmatmul.mubr.bf16.gmra.mxu0 %v1559
        %v1703 = vpop.f32.mrf.mxu0
        %v1704 = vadd.f32 %v1483, %v1703
        %v1705 = vpop.f32.mrf.mxu0
        %v1706 = vpop.f32.mrf.mxu0
        %v1707 = vadd.f32 %v1486, %v1706
        %v1708 = vpop.f32.mrf.mxu0
        %1709 = vmatprep.mubr.bf16.mxu0 0
        %1710 = vmatmul.mubr.bf16.gmra.mxu0 %v1562
        %v1711 = vpop.f32.mrf.mxu0
        %v1712 = vadd.f32 %v1491, %v1711
        %v1713 = vpop.f32.mrf.mxu0
        %v1714 = vpop.f32.mrf.mxu0
        %v1715 = vadd.f32 %v1494, %v1714
        %v1716 = vpop.f32.mrf.mxu0
        %1717 = vmatprep.mubr.bf16.mxu0 0
        %1718 = vmatmul.mubr.bf16.gmra.mxu0 %v1565
        %v1719 = vpop.f32.mrf.mxu0
        %v1720 = vadd.f32 %v1499, %v1719
        %v1721 = vpop.f32.mrf.mxu0
        %v1722 = vpop.f32.mrf.mxu0
        %v1723 = vadd.f32 %v1502, %v1722
        %v1724 = vpop.f32.mrf.mxu0
        %1725 = vmatprep.mubr.bf16.mxu0 0
        %1726 = vmatmul.mubr.bf16.gmra.mxu0 %v1568
        %v1727 = vpop.f32.mrf.mxu0
        %v1728 = vadd.f32 %v1507, %v1727
        %v1729 = vpop.f32.mrf.mxu0
        %v1730 = vpop.f32.mrf.mxu0
        %v1731 = vadd.f32 %v1510, %v1730
        %v1732 = vpop.f32.mrf.mxu0
        %1733 = vdwg.mxu0
        %v1734 = vld [vmem:[#allocation2 + $0x2] sm:$0xff]
        %v1735 = vld [vmem:[#allocation2 + $0xa] sm:$0xff]
        %v1736 = vld [vmem:[#allocation2 + $0x1a] sm:$0xff]
        %v1737 = vld [vmem:[#allocation2 + $0x22] sm:$0xff]
        %v1738 = vld [vmem:[#allocation2 + $0x32] sm:$0xff]
        %v1739 = vld [vmem:[#allocation2 + $0x3a] sm:$0xff]
        %v1740 = vld [vmem:[#allocation2 + $0x4a] sm:$0xff]
        %v1741 = vld [vmem:[#allocation2 + $0x52] sm:$0xff]
        %v1742 = vld [vmem:[#allocation2 + $0x62] sm:$0xff]
        %v1743 = vld [vmem:[#allocation2 + $0x6a] sm:$0xff]
        %v1744 = vld [vmem:[#allocation2 + $0x7a] sm:$0xff]
        %v1745 = vld [vmem:[#allocation2 + $0x82] sm:$0xff]
        %v1746 = vld [vmem:[#allocation2 + $0x92] sm:$0xff]
        %v1747 = vld [vmem:[#allocation2 + $0x9a] sm:$0xff]
        %v1748 = vld [vmem:[#allocation2 + $0xaa] sm:$0xff]
        %v1749 = vld [vmem:[#allocation2 + $0xb2] sm:$0xff]
        %v1750 = vld [vmem:[#allocation2 + $0xc2] sm:$0xff]
        %v1751 = vld [vmem:[#allocation2 + $0xca] sm:$0xff]
        %v1752 = vld [vmem:[#allocation2 + $0xda] sm:$0xff]
        %v1753 = vld [vmem:[#allocation2 + $0xe2] sm:$0xff]
        %v1754 = vld [vmem:[#allocation2 + $0xf2] sm:$0xff]
        %v1755 = vld [vmem:[#allocation2 + $0xfa] sm:$0xff]
        %v1756 = vld [vmem:[#allocation2 + $0x10a] sm:$0xff]
        %v1757 = vld [vmem:[#allocation2 + $0x112] sm:$0xff]
        %v1758 = vld [vmem:[#allocation2 + $0x122] sm:$0xff]
        %v1759 = vld [vmem:[#allocation2 + $0x12a] sm:$0xff]
        %v1760 = vld [vmem:[#allocation2 + $0x13a] sm:$0xff]
        %v1761 = vld [vmem:[#allocation2 + $0x142] sm:$0xff]
        %v1762 = vld [vmem:[#allocation2 + $0x152] sm:$0xff]
        %v1763 = vld [vmem:[#allocation2 + $0x15a] sm:$0xff]
        %v1764 = vld [vmem:[#allocation2 + $0x16a] sm:$0xff]
        %v1765 = vld [vmem:[#allocation2 + $0x172] sm:$0xff]
        %v1766 = vpack.c.bf16 %v1735, %v1734
        %v1767 = vpack.c.bf16 %v1737, %v1736
        %v1768 = vpack.c.bf16 %v1739, %v1738
        %v1769 = vpack.c.bf16 %v1741, %v1740
        %v1770 = vpack.c.bf16 %v1743, %v1742
        %v1771 = vpack.c.bf16 %v1745, %v1744
        %v1772 = vpack.c.bf16 %v1747, %v1746
        %v1773 = vpack.c.bf16 %v1749, %v1748
        %v1774 = vpack.c.bf16 %v1751, %v1750
        %v1775 = vpack.c.bf16 %v1753, %v1752
        %v1776 = vpack.c.bf16 %v1755, %v1754
        %v1777 = vpack.c.bf16 %v1757, %v1756
        %v1778 = vpack.c.bf16 %v1759, %v1758
        %v1779 = vpack.c.bf16 %v1761, %v1760
        %v1780 = vpack.c.bf16 %v1763, %v1762
        %v1781 = vpack.c.bf16 %v1765, %v1764
        %s1782 = scalar_lea.vmem %s4, 24
        %v1783 = vld [vmem:[%s1782] sm:$0xf]
        %v1784 = vld [vmem:[%s1782 + $0x4] sm:$0xf]
        %v1785 = vld [vmem:[%s1782 + $0x8] sm:$0xf]
        %v1789 = vunpack.c.l.b16 %v1783
        %v1790 = vunpack.c.l.b16 %v1784
        %v1791 = vunpack.c.l.b16 %v1785
        %v1792 = vpack.c.b16 %v1790, %v1789
        %v1793 = vpack.c.b16 %v1791, %v1791
        %v1796 = vsel %vm379, %v1766, 0
        %v1799 = vsel %vm379, %v1767, 0
        %v1802 = vsel %vm379, %v1768, 0
        %v1805 = vsel %vm379, %v1769, 0
        %v1808 = vsel %vm379, %v1770, 0
        %v1811 = vsel %vm379, %v1771, 0
        %v1814 = vsel %vm379, %v1772, 0
        %v1817 = vsel %vm379, %v1773, 0
        %v1820 = vsel %vm379, %v1774, 0
        %v1823 = vsel %vm379, %v1775, 0
        %v1826 = vsel %vm379, %v1776, 0
        %v1829 = vsel %vm379, %v1777, 0
        %v1832 = vsel %vm379, %v1778, 0
        %v1835 = vsel %vm379, %v1779, 0
        %v1838 = vsel %vm379, %v1780, 0
        %v1841 = vsel %vm379, %v1781, 0
        %v1844 = vsel %vm1348, %v1793, 0
        %1846 = vmatprep.subr.bf16.mxu0 0
        %1847 = vmatpush1.bf16.msra.mxu0 0
        %1848 = vmatprep.subr.bf16.mxu0 0
        %1849 = vmatpush1.bf16.msra.mxu0 0
        %1850 = vmatprep.subr.bf16.mxu0 0
        %1851 = vmatpush1.bf16.msra.mxu0 0
        %1852 = vmatprep.subr.bf16.mxu0 0
        %1853 = vmatpush1.bf16.msra.mxu0 0
        %1854 = vmatprep.subr.bf16.mxu0 0
        %1855 = vmatpush1.bf16.msra.mxu0 0
        %1856 = vmatprep.subr.bf16.mxu0 0
        %1857 = vmatpush1.bf16.msra.mxu0 0
        %1858 = vmatprep.subr.bf16.mxu0 0
        %1859 = vmatpush1.bf16.msra.mxu0 %v1844
        %1860 = vmatprep.subr.bf16.mxu0 0
        %1861 = vmatpush1.bf16.msra.mxu0 %v1792
        %1862 = vmatprep.subr.bf16.mxu0 0
        %1863 = vmatpush2.bf16.msra.mxu0 0
        %1864 = vmatprep.subr.bf16.mxu0 0
        %1865 = vmatpush2.bf16.msra.mxu0 0
        %1866 = vmatprep.subr.bf16.mxu0 0
        %1867 = vmatpush2.bf16.msra.mxu0 0
        %1868 = vmatprep.subr.bf16.mxu0 0
        %1869 = vmatpush2.bf16.msra.mxu0 0
        %1870 = vmatprep.subr.bf16.mxu0 0
        %1871 = vmatpush2.bf16.msra.mxu0 0
        %1872 = vmatprep.subr.bf16.mxu0 0
        %1873 = vmatpush2.bf16.msra.mxu0 0
        %1874 = vmatprep.subr.bf16.mxu0 0
        %1875 = vmatpush2.bf16.msra.mxu0 0
        %1876 = vmatprep.subr.bf16.mxu0 0
        %1877 = vmatpush2.bf16.msra.mxu0 0
        %1878 = vmatprep.mubr.bf16.mxu0 0
        %1879 = vmatmul.mubr.bf16.gmra.mxu0 %v1796
        %v1880 = vpop.f32.mrf.mxu0
        %v1881 = vadd.f32 0.0, %v1880
        %v1882 = vpop.f32.mrf.mxu0
        %v1883 = vpop.f32.mrf.mxu0
        %v1884 = vadd.f32 0.0, %v1883
        %v1885 = vpop.f32.mrf.mxu0
        %1886 = vmatprep.mubr.bf16.mxu0 0
        %1887 = vmatmul.mubr.bf16.gmra.mxu0 %v1799
        %v1888 = vpop.f32.mrf.mxu0
        %v1889 = vadd.f32 0.0, %v1888
        %v1890 = vpop.f32.mrf.mxu0
        %v1891 = vpop.f32.mrf.mxu0
        %v1892 = vadd.f32 0.0, %v1891
        %v1893 = vpop.f32.mrf.mxu0
        %1894 = vmatprep.mubr.bf16.mxu0 0
        %1895 = vmatmul.mubr.bf16.gmra.mxu0 %v1802
        %v1896 = vpop.f32.mrf.mxu0
        %v1897 = vadd.f32 0.0, %v1896
        %v1898 = vpop.f32.mrf.mxu0
        %v1899 = vpop.f32.mrf.mxu0
        %v1900 = vadd.f32 0.0, %v1899
        %v1901 = vpop.f32.mrf.mxu0
        %1902 = vmatprep.mubr.bf16.mxu0 0
        %1903 = vmatmul.mubr.bf16.gmra.mxu0 %v1805
        %v1904 = vpop.f32.mrf.mxu0
        %v1905 = vadd.f32 0.0, %v1904
        %v1906 = vpop.f32.mrf.mxu0
        %v1907 = vpop.f32.mrf.mxu0
        %v1908 = vadd.f32 0.0, %v1907
        %v1909 = vpop.f32.mrf.mxu0
        %1910 = vmatprep.mubr.bf16.mxu0 0
        %1911 = vmatmul.mubr.bf16.gmra.mxu0 %v1808
        %v1912 = vpop.f32.mrf.mxu0
        %v1913 = vadd.f32 0.0, %v1912
        %v1914 = vpop.f32.mrf.mxu0
        %v1915 = vpop.f32.mrf.mxu0
        %v1916 = vadd.f32 0.0, %v1915
        %v1917 = vpop.f32.mrf.mxu0
        %1918 = vmatprep.mubr.bf16.mxu0 0
        %1919 = vmatmul.mubr.bf16.gmra.mxu0 %v1811
        %v1920 = vpop.f32.mrf.mxu0
        %v1921 = vadd.f32 0.0, %v1920
        %v1922 = vpop.f32.mrf.mxu0
        %v1923 = vpop.f32.mrf.mxu0
        %v1924 = vadd.f32 0.0, %v1923
        %v1925 = vpop.f32.mrf.mxu0
        %1926 = vmatprep.mubr.bf16.mxu0 0
        %1927 = vmatmul.mubr.bf16.gmra.mxu0 %v1814
        %v1928 = vpop.f32.mrf.mxu0
        %v1929 = vadd.f32 0.0, %v1928
        %v1930 = vpop.f32.mrf.mxu0
        %v1931 = vpop.f32.mrf.mxu0
        %v1932 = vadd.f32 0.0, %v1931
        %v1933 = vpop.f32.mrf.mxu0
        %1934 = vmatprep.mubr.bf16.mxu0 0
        %1935 = vmatmul.mubr.bf16.gmra.mxu0 %v1817
        %v1936 = vpop.f32.mrf.mxu0
        %v1937 = vadd.f32 0.0, %v1936
        %v1938 = vpop.f32.mrf.mxu0
        %v1939 = vpop.f32.mrf.mxu0
        %v1940 = vadd.f32 0.0, %v1939
        %v1941 = vpop.f32.mrf.mxu0
        %1942 = vmatprep.mubr.bf16.mxu0 0
        %1943 = vmatmul.mubr.bf16.gmra.mxu0 %v1820
        %v1944 = vpop.f32.mrf.mxu0
        %v1945 = vadd.f32 0.0, %v1944
        %v1946 = vpop.f32.mrf.mxu0
        %v1947 = vpop.f32.mrf.mxu0
        %v1948 = vadd.f32 0.0, %v1947
        %v1949 = vpop.f32.mrf.mxu0
        %1950 = vmatprep.mubr.bf16.mxu0 0
        %1951 = vmatmul.mubr.bf16.gmra.mxu0 %v1823
        %v1952 = vpop.f32.mrf.mxu0
        %v1953 = vadd.f32 0.0, %v1952
        %v1954 = vpop.f32.mrf.mxu0
        %v1955 = vpop.f32.mrf.mxu0
        %v1956 = vadd.f32 0.0, %v1955
        %v1957 = vpop.f32.mrf.mxu0
        %1958 = vmatprep.mubr.bf16.mxu0 0
        %1959 = vmatmul.mubr.bf16.gmra.mxu0 %v1826
        %v1960 = vpop.f32.mrf.mxu0
        %v1961 = vadd.f32 0.0, %v1960
        %v1962 = vpop.f32.mrf.mxu0
        %v1963 = vpop.f32.mrf.mxu0
        %v1964 = vadd.f32 0.0, %v1963
        %v1965 = vpop.f32.mrf.mxu0
        %1966 = vmatprep.mubr.bf16.mxu0 0
        %1967 = vmatmul.mubr.bf16.gmra.mxu0 %v1829
        %v1968 = vpop.f32.mrf.mxu0
        %v1969 = vadd.f32 0.0, %v1968
        %v1970 = vpop.f32.mrf.mxu0
        %v1971 = vpop.f32.mrf.mxu0
        %v1972 = vadd.f32 0.0, %v1971
        %v1973 = vpop.f32.mrf.mxu0
        %1974 = vmatprep.mubr.bf16.mxu0 0
        %1975 = vmatmul.mubr.bf16.gmra.mxu0 %v1832
        %v1976 = vpop.f32.mrf.mxu0
        %v1977 = vadd.f32 0.0, %v1976
        %v1978 = vpop.f32.mrf.mxu0
        %v1979 = vpop.f32.mrf.mxu0
        %v1980 = vadd.f32 0.0, %v1979
        %v1981 = vpop.f32.mrf.mxu0
        %1982 = vmatprep.mubr.bf16.mxu0 0
        %1983 = vmatmul.mubr.bf16.gmra.mxu0 %v1835
        %v1984 = vpop.f32.mrf.mxu0
        %v1985 = vadd.f32 0.0, %v1984
        %v1986 = vpop.f32.mrf.mxu0
        %v1987 = vpop.f32.mrf.mxu0
        %v1988 = vadd.f32 0.0, %v1987
        %v1989 = vpop.f32.mrf.mxu0
        %1990 = vmatprep.mubr.bf16.mxu0 0
        %1991 = vmatmul.mubr.bf16.gmra.mxu0 %v1838
        %v1992 = vpop.f32.mrf.mxu0
        %v1993 = vadd.f32 0.0, %v1992
        %v1994 = vpop.f32.mrf.mxu0
        %v1995 = vpop.f32.mrf.mxu0
        %v1996 = vadd.f32 0.0, %v1995
        %v1997 = vpop.f32.mrf.mxu0
        %1998 = vmatprep.mubr.bf16.mxu0 0
        %1999 = vmatmul.mubr.bf16.gmra.mxu0 %v1841
        %v2000 = vpop.f32.mrf.mxu0
        %v2001 = vadd.f32 0.0, %v2000
        %v2002 = vpop.f32.mrf.mxu0
        %v2003 = vpop.f32.mrf.mxu0
        %v2004 = vadd.f32 0.0, %v2003
        %v2005 = vpop.f32.mrf.mxu0
        %2006 = vdwg.mxu0
        %v2007 = vadd.f32 %v1608, %v1881
        %v2008 = vadd.f32 %v1611, %v1884
        %v2009 = vadd.f32 %v1616, %v1889
        %v2010 = vadd.f32 %v1619, %v1892
        %v2011 = vadd.f32 %v1624, %v1897
        %v2012 = vadd.f32 %v1627, %v1900
        %v2013 = vadd.f32 %v1632, %v1905
        %v2014 = vadd.f32 %v1635, %v1908
        %v2015 = vadd.f32 %v1640, %v1913
        %v2016 = vadd.f32 %v1643, %v1916
        %v2017 = vadd.f32 %v1648, %v1921
        %v2018 = vadd.f32 %v1651, %v1924
        %v2019 = vadd.f32 %v1656, %v1929
        %v2020 = vadd.f32 %v1659, %v1932
        %v2021 = vadd.f32 %v1664, %v1937
        %v2022 = vadd.f32 %v1667, %v1940
        %v2023 = vadd.f32 %v1672, %v1945
        %v2024 = vadd.f32 %v1675, %v1948
        %v2025 = vadd.f32 %v1680, %v1953
        %v2026 = vadd.f32 %v1683, %v1956
        %v2027 = vadd.f32 %v1688, %v1961
        %v2028 = vadd.f32 %v1691, %v1964
        %v2029 = vadd.f32 %v1696, %v1969
        %v2030 = vadd.f32 %v1699, %v1972
        %v2031 = vadd.f32 %v1704, %v1977
        %v2032 = vadd.f32 %v1707, %v1980
        %v2033 = vadd.f32 %v1712, %v1985
        %v2034 = vadd.f32 %v1715, %v1988
        %v2035 = vadd.f32 %v1720, %v1993
        %v2036 = vadd.f32 %v1723, %v1996
        %v2037 = vadd.f32 %v1728, %v2001
        %v2038 = vadd.f32 %v1731, %v2004
        %v2039 = vld [vmem:[%s1155] sm:$0xff]
        %v2040 = vld [vmem:[%s1155 + $0x8] sm:$0xff]
        %v2041 = vld [vmem:[%s1155 + $0x18] sm:$0xff]
        %v2042 = vld [vmem:[%s1155 + $0x20] sm:$0xff]
        %v2043 = vld [vmem:[%s1155 + $0x30] sm:$0xff]
        %v2044 = vld [vmem:[%s1155 + $0x38] sm:$0xff]
        %v2045 = vld [vmem:[%s1155 + $0x48] sm:$0xff]
        %v2046 = vld [vmem:[%s1155 + $0x50] sm:$0xff]
        %v2047 = vld [vmem:[%s1155 + $0x60] sm:$0xff]
        %v2048 = vld [vmem:[%s1155 + $0x68] sm:$0xff]
        %v2049 = vld [vmem:[%s1155 + $0x78] sm:$0xff]
        %v2050 = vld [vmem:[%s1155 + $0x80] sm:$0xff]
        %v2051 = vld [vmem:[%s1155 + $0x90] sm:$0xff]
        %v2052 = vld [vmem:[%s1155 + $0x98] sm:$0xff]
        %v2053 = vld [vmem:[%s1155 + $0xa8] sm:$0xff]
        %v2054 = vld [vmem:[%s1155 + $0xb0] sm:$0xff]
        %v2055 = vld [vmem:[%s1155 + $0xc0] sm:$0xff]
        %v2056 = vld [vmem:[%s1155 + $0xc8] sm:$0xff]
        %v2057 = vld [vmem:[%s1155 + $0xd8] sm:$0xff]
        %v2058 = vld [vmem:[%s1155 + $0xe0] sm:$0xff]
        %v2059 = vld [vmem:[%s1155 + $0xf0] sm:$0xff]
        %v2060 = vld [vmem:[%s1155 + $0xf8] sm:$0xff]
        %v2061 = vld [vmem:[%s1155 + $0x108] sm:$0xff]
        %v2062 = vld [vmem:[%s1155 + $0x110] sm:$0xff]
        %v2063 = vld [vmem:[%s1155 + $0x120] sm:$0xff]
        %v2064 = vld [vmem:[%s1155 + $0x128] sm:$0xff]
        %v2065 = vld [vmem:[%s1155 + $0x138] sm:$0xff]
        %v2066 = vld [vmem:[%s1155 + $0x140] sm:$0xff]
        %v2067 = vld [vmem:[%s1155 + $0x150] sm:$0xff]
        %v2068 = vld [vmem:[%s1155 + $0x158] sm:$0xff]
        %v2069 = vld [vmem:[%s1155 + $0x168] sm:$0xff]
        %v2070 = vld [vmem:[%s1155 + $0x170] sm:$0xff]
        %v2071 = vpack.c.bf16 %v2040, %v2039
        %v2072 = vpack.c.bf16 %v2042, %v2041
        %v2073 = vpack.c.bf16 %v2044, %v2043
        %v2074 = vpack.c.bf16 %v2046, %v2045
        %v2075 = vpack.c.bf16 %v2048, %v2047
        %v2076 = vpack.c.bf16 %v2050, %v2049
        %v2077 = vpack.c.bf16 %v2052, %v2051
        %v2078 = vpack.c.bf16 %v2054, %v2053
        %v2079 = vpack.c.bf16 %v2056, %v2055
        %v2080 = vpack.c.bf16 %v2058, %v2057
        %v2081 = vpack.c.bf16 %v2060, %v2059
        %v2082 = vpack.c.bf16 %v2062, %v2061
        %v2083 = vpack.c.bf16 %v2064, %v2063
        %v2084 = vpack.c.bf16 %v2066, %v2065
        %v2085 = vpack.c.bf16 %v2068, %v2067
        %v2086 = vpack.c.bf16 %v2070, %v2069
        %s2087 = scalar_lea.vmem %s4, 36
        %v2088 = vld [vmem:[%s2087] sm:$0xf]
        %v2089 = vld [vmem:[%s2087 + $0x4] sm:$0xf]
        %v2090 = vld [vmem:[%s2087 + $0x8] sm:$0xf]
        %v2094 = vunpack.c.l.b16 %v2088
        %v2095 = vunpack.c.l.b16 %v2089
        %v2096 = vunpack.c.l.b16 %v2090
        %v2097 = vpack.c.b16 %v2095, %v2094
        %v2098 = vpack.c.b16 %v2096, %v2096
        %v2101 = vsel %vm379, %v2071, 0
        %v2104 = vsel %vm379, %v2072, 0
        %v2107 = vsel %vm379, %v2073, 0
        %v2110 = vsel %vm379, %v2074, 0
        %v2113 = vsel %vm379, %v2075, 0
        %v2116 = vsel %vm379, %v2076, 0
        %v2119 = vsel %vm379, %v2077, 0
        %v2122 = vsel %vm379, %v2078, 0
        %v2125 = vsel %vm379, %v2079, 0
        %v2128 = vsel %vm379, %v2080, 0
        %v2131 = vsel %vm379, %v2081, 0
        %v2134 = vsel %vm379, %v2082, 0
        %v2137 = vsel %vm379, %v2083, 0
        %v2140 = vsel %vm379, %v2084, 0
        %v2143 = vsel %vm379, %v2085, 0
        %v2146 = vsel %vm379, %v2086, 0
        %v2149 = vsel %vm1348, %v2098, 0
        %2151 = vmatprep.subr.bf16.mxu0 0
        %2152 = vmatpush1.bf16.msra.mxu0 0
        %2153 = vmatprep.subr.bf16.mxu0 0
        %2154 = vmatpush1.bf16.msra.mxu0 0
        %2155 = vmatprep.subr.bf16.mxu0 0
        %2156 = vmatpush1.bf16.msra.mxu0 0
        %2157 = vmatprep.subr.bf16.mxu0 0
        %2158 = vmatpush1.bf16.msra.mxu0 0
        %2159 = vmatprep.subr.bf16.mxu0 0
        %2160 = vmatpush1.bf16.msra.mxu0 0
        %2161 = vmatprep.subr.bf16.mxu0 0
        %2162 = vmatpush1.bf16.msra.mxu0 0
        %2163 = vmatprep.subr.bf16.mxu0 0
        %2164 = vmatpush1.bf16.msra.mxu0 %v2149
        %2165 = vmatprep.subr.bf16.mxu0 0
        %2166 = vmatpush1.bf16.msra.mxu0 %v2097
        %2167 = vmatprep.subr.bf16.mxu0 0
        %2168 = vmatpush2.bf16.msra.mxu0 0
        %2169 = vmatprep.subr.bf16.mxu0 0
        %2170 = vmatpush2.bf16.msra.mxu0 0
        %2171 = vmatprep.subr.bf16.mxu0 0
        %2172 = vmatpush2.bf16.msra.mxu0 0
        %2173 = vmatprep.subr.bf16.mxu0 0
        %2174 = vmatpush2.bf16.msra.mxu0 0
        %2175 = vmatprep.subr.bf16.mxu0 0
        %2176 = vmatpush2.bf16.msra.mxu0 0
        %2177 = vmatprep.subr.bf16.mxu0 0
        %2178 = vmatpush2.bf16.msra.mxu0 0
        %2179 = vmatprep.subr.bf16.mxu0 0
        %2180 = vmatpush2.bf16.msra.mxu0 0
        %2181 = vmatprep.subr.bf16.mxu0 0
        %2182 = vmatpush2.bf16.msra.mxu0 0
        %2183 = vmatprep.mubr.bf16.mxu0 0
        %2184 = vmatmul.mubr.bf16.gmra.mxu0 %v2101
        %v2185 = vpop.f32.mrf.mxu0
        %v2186 = vadd.f32 0.0, %v2185
        %v2187 = vpop.f32.mrf.mxu0
        %v2188 = vpop.f32.mrf.mxu0
        %v2189 = vadd.f32 0.0, %v2188
        %v2190 = vpop.f32.mrf.mxu0
        %2191 = vmatprep.mubr.bf16.mxu0 0
        %2192 = vmatmul.mubr.bf16.gmra.mxu0 %v2104
        %v2193 = vpop.f32.mrf.mxu0
        %v2194 = vadd.f32 0.0, %v2193
        %v2195 = vpop.f32.mrf.mxu0
        %v2196 = vpop.f32.mrf.mxu0
        %v2197 = vadd.f32 0.0, %v2196
        %v2198 = vpop.f32.mrf.mxu0
        %2199 = vmatprep.mubr.bf16.mxu0 0
        %2200 = vmatmul.mubr.bf16.gmra.mxu0 %v2107
        %v2201 = vpop.f32.mrf.mxu0
        %v2202 = vadd.f32 0.0, %v2201
        %v2203 = vpop.f32.mrf.mxu0
        %v2204 = vpop.f32.mrf.mxu0
        %v2205 = vadd.f32 0.0, %v2204
        %v2206 = vpop.f32.mrf.mxu0
        %2207 = vmatprep.mubr.bf16.mxu0 0
        %2208 = vmatmul.mubr.bf16.gmra.mxu0 %v2110
        %v2209 = vpop.f32.mrf.mxu0
        %v2210 = vadd.f32 0.0, %v2209
        %v2211 = vpop.f32.mrf.mxu0
        %v2212 = vpop.f32.mrf.mxu0
        %v2213 = vadd.f32 0.0, %v2212
        %v2214 = vpop.f32.mrf.mxu0
        %2215 = vmatprep.mubr.bf16.mxu0 0
        %2216 = vmatmul.mubr.bf16.gmra.mxu0 %v2113
        %v2217 = vpop.f32.mrf.mxu0
        %v2218 = vadd.f32 0.0, %v2217
        %v2219 = vpop.f32.mrf.mxu0
        %v2220 = vpop.f32.mrf.mxu0
        %v2221 = vadd.f32 0.0, %v2220
        %v2222 = vpop.f32.mrf.mxu0
        %2223 = vmatprep.mubr.bf16.mxu0 0
        %2224 = vmatmul.mubr.bf16.gmra.mxu0 %v2116
        %v2225 = vpop.f32.mrf.mxu0
        %v2226 = vadd.f32 0.0, %v2225
        %v2227 = vpop.f32.mrf.mxu0
        %v2228 = vpop.f32.mrf.mxu0
        %v2229 = vadd.f32 0.0, %v2228
        %v2230 = vpop.f32.mrf.mxu0
        %2231 = vmatprep.mubr.bf16.mxu0 0
        %2232 = vmatmul.mubr.bf16.gmra.mxu0 %v2119
        %v2233 = vpop.f32.mrf.mxu0
        %v2234 = vadd.f32 0.0, %v2233
        %v2235 = vpop.f32.mrf.mxu0
        %v2236 = vpop.f32.mrf.mxu0
        %v2237 = vadd.f32 0.0, %v2236
        %v2238 = vpop.f32.mrf.mxu0
        %2239 = vmatprep.mubr.bf16.mxu0 0
        %2240 = vmatmul.mubr.bf16.gmra.mxu0 %v2122
        %v2241 = vpop.f32.mrf.mxu0
        %v2242 = vadd.f32 0.0, %v2241
        %v2243 = vpop.f32.mrf.mxu0
        %v2244 = vpop.f32.mrf.mxu0
        %v2245 = vadd.f32 0.0, %v2244
        %v2246 = vpop.f32.mrf.mxu0
        %2247 = vmatprep.mubr.bf16.mxu0 0
        %2248 = vmatmul.mubr.bf16.gmra.mxu0 %v2125
        %v2249 = vpop.f32.mrf.mxu0
        %v2250 = vadd.f32 0.0, %v2249
        %v2251 = vpop.f32.mrf.mxu0
        %v2252 = vpop.f32.mrf.mxu0
        %v2253 = vadd.f32 0.0, %v2252
        %v2254 = vpop.f32.mrf.mxu0
        %2255 = vmatprep.mubr.bf16.mxu0 0
        %2256 = vmatmul.mubr.bf16.gmra.mxu0 %v2128
        %v2257 = vpop.f32.mrf.mxu0
        %v2258 = vadd.f32 0.0, %v2257
        %v2259 = vpop.f32.mrf.mxu0
        %v2260 = vpop.f32.mrf.mxu0
        %v2261 = vadd.f32 0.0, %v2260
        %v2262 = vpop.f32.mrf.mxu0
        %2263 = vmatprep.mubr.bf16.mxu0 0
        %2264 = vmatmul.mubr.bf16.gmra.mxu0 %v2131
        %v2265 = vpop.f32.mrf.mxu0
        %v2266 = vadd.f32 0.0, %v2265
        %v2267 = vpop.f32.mrf.mxu0
        %v2268 = vpop.f32.mrf.mxu0
        %v2269 = vadd.f32 0.0, %v2268
        %v2270 = vpop.f32.mrf.mxu0
        %2271 = vmatprep.mubr.bf16.mxu0 0
        %2272 = vmatmul.mubr.bf16.gmra.mxu0 %v2134
        %v2273 = vpop.f32.mrf.mxu0
        %v2274 = vadd.f32 0.0, %v2273
        %v2275 = vpop.f32.mrf.mxu0
        %v2276 = vpop.f32.mrf.mxu0
        %v2277 = vadd.f32 0.0, %v2276
        %v2278 = vpop.f32.mrf.mxu0
        %2279 = vmatprep.mubr.bf16.mxu0 0
        %2280 = vmatmul.mubr.bf16.gmra.mxu0 %v2137
        %v2281 = vpop.f32.mrf.mxu0
        %v2282 = vadd.f32 0.0, %v2281
        %v2283 = vpop.f32.mrf.mxu0
        %v2284 = vpop.f32.mrf.mxu0
        %v2285 = vadd.f32 0.0, %v2284
        %v2286 = vpop.f32.mrf.mxu0
        %2287 = vmatprep.mubr.bf16.mxu0 0
        %2288 = vmatmul.mubr.bf16.gmra.mxu0 %v2140
        %v2289 = vpop.f32.mrf.mxu0
        %v2290 = vadd.f32 0.0, %v2289
        %v2291 = vpop.f32.mrf.mxu0
        %v2292 = vpop.f32.mrf.mxu0
        %v2293 = vadd.f32 0.0, %v2292
        %v2294 = vpop.f32.mrf.mxu0
        %2295 = vmatprep.mubr.bf16.mxu0 0
        %2296 = vmatmul.mubr.bf16.gmra.mxu0 %v2143
        %v2297 = vpop.f32.mrf.mxu0
        %v2298 = vadd.f32 0.0, %v2297
        %v2299 = vpop.f32.mrf.mxu0
        %v2300 = vpop.f32.mrf.mxu0
        %v2301 = vadd.f32 0.0, %v2300
        %v2302 = vpop.f32.mrf.mxu0
        %2303 = vmatprep.mubr.bf16.mxu0 0
        %2304 = vmatmul.mubr.bf16.gmra.mxu0 %v2146
        %v2305 = vpop.f32.mrf.mxu0
        %v2306 = vadd.f32 0.0, %v2305
        %v2307 = vpop.f32.mrf.mxu0
        %v2308 = vpop.f32.mrf.mxu0
        %v2309 = vadd.f32 0.0, %v2308
        %v2310 = vpop.f32.mrf.mxu0
        %2311 = vdwg.mxu0
        %v2312 = vadd.f32 %v2007, %v2186
        %v2313 = vadd.f32 %v2008, %v2189
        %v2314 = vadd.f32 %v2009, %v2194
        %v2315 = vadd.f32 %v2010, %v2197
        %v2316 = vadd.f32 %v2011, %v2202
        %v2317 = vadd.f32 %v2012, %v2205
        %v2318 = vadd.f32 %v2013, %v2210
        %v2319 = vadd.f32 %v2014, %v2213
        %v2320 = vadd.f32 %v2015, %v2218
        %v2321 = vadd.f32 %v2016, %v2221
        %v2322 = vadd.f32 %v2017, %v2226
        %v2323 = vadd.f32 %v2018, %v2229
        %v2324 = vadd.f32 %v2019, %v2234
        %v2325 = vadd.f32 %v2020, %v2237
        %v2326 = vadd.f32 %v2021, %v2242
        %v2327 = vadd.f32 %v2022, %v2245
        %v2328 = vadd.f32 %v2023, %v2250
        %v2329 = vadd.f32 %v2024, %v2253
        %v2330 = vadd.f32 %v2025, %v2258
        %v2331 = vadd.f32 %v2026, %v2261
        %v2332 = vadd.f32 %v2027, %v2266
        %v2333 = vadd.f32 %v2028, %v2269
        %v2334 = vadd.f32 %v2029, %v2274
        %v2335 = vadd.f32 %v2030, %v2277
        %v2336 = vadd.f32 %v2031, %v2282
        %v2337 = vadd.f32 %v2032, %v2285
        %v2338 = vadd.f32 %v2033, %v2290
        %v2339 = vadd.f32 %v2034, %v2293
        %v2340 = vadd.f32 %v2035, %v2298
        %v2341 = vadd.f32 %v2036, %v2301
        %v2342 = vadd.f32 %v2037, %v2306
        %v2343 = vadd.f32 %v2038, %v2309
        %v2344 = vld [vmem:[%s1155 + $0x1] sm:$0xff]
        %v2345 = vld [vmem:[%s1155 + $0x9] sm:$0xff]
        %v2346 = vld [vmem:[%s1155 + $0x19] sm:$0xff]
        %v2347 = vld [vmem:[%s1155 + $0x21] sm:$0xff]
        %v2348 = vld [vmem:[%s1155 + $0x31] sm:$0xff]
        %v2349 = vld [vmem:[%s1155 + $0x39] sm:$0xff]
        %v2350 = vld [vmem:[%s1155 + $0x49] sm:$0xff]
        %v2351 = vld [vmem:[%s1155 + $0x51] sm:$0xff]
        %v2352 = vld [vmem:[%s1155 + $0x61] sm:$0xff]
        %v2353 = vld [vmem:[%s1155 + $0x69] sm:$0xff]
        %v2354 = vld [vmem:[%s1155 + $0x79] sm:$0xff]
        %v2355 = vld [vmem:[%s1155 + $0x81] sm:$0xff]
        %v2356 = vld [vmem:[%s1155 + $0x91] sm:$0xff]
        %v2357 = vld [vmem:[%s1155 + $0x99] sm:$0xff]
        %v2358 = vld [vmem:[%s1155 + $0xa9] sm:$0xff]
        %v2359 = vld [vmem:[%s1155 + $0xb1] sm:$0xff]
        %v2360 = vld [vmem:[%s1155 + $0xc1] sm:$0xff]
        %v2361 = vld [vmem:[%s1155 + $0xc9] sm:$0xff]
        %v2362 = vld [vmem:[%s1155 + $0xd9] sm:$0xff]
        %v2363 = vld [vmem:[%s1155 + $0xe1] sm:$0xff]
        %v2364 = vld [vmem:[%s1155 + $0xf1] sm:$0xff]
        %v2365 = vld [vmem:[%s1155 + $0xf9] sm:$0xff]
        %v2366 = vld [vmem:[%s1155 + $0x109] sm:$0xff]
        %v2367 = vld [vmem:[%s1155 + $0x111] sm:$0xff]
        %v2368 = vld [vmem:[%s1155 + $0x121] sm:$0xff]
        %v2369 = vld [vmem:[%s1155 + $0x129] sm:$0xff]
        %v2370 = vld [vmem:[%s1155 + $0x139] sm:$0xff]
        %v2371 = vld [vmem:[%s1155 + $0x141] sm:$0xff]
        %v2372 = vld [vmem:[%s1155 + $0x151] sm:$0xff]
        %v2373 = vld [vmem:[%s1155 + $0x159] sm:$0xff]
        %v2374 = vld [vmem:[%s1155 + $0x169] sm:$0xff]
        %v2375 = vld [vmem:[%s1155 + $0x171] sm:$0xff]
        %v2376 = vpack.c.bf16 %v2345, %v2344
        %v2377 = vpack.c.bf16 %v2347, %v2346
        %v2378 = vpack.c.bf16 %v2349, %v2348
        %v2379 = vpack.c.bf16 %v2351, %v2350
        %v2380 = vpack.c.bf16 %v2353, %v2352
        %v2381 = vpack.c.bf16 %v2355, %v2354
        %v2382 = vpack.c.bf16 %v2357, %v2356
        %v2383 = vpack.c.bf16 %v2359, %v2358
        %v2384 = vpack.c.bf16 %v2361, %v2360
        %v2385 = vpack.c.bf16 %v2363, %v2362
        %v2386 = vpack.c.bf16 %v2365, %v2364
        %v2387 = vpack.c.bf16 %v2367, %v2366
        %v2388 = vpack.c.bf16 %v2369, %v2368
        %v2389 = vpack.c.bf16 %v2371, %v2370
        %v2390 = vpack.c.bf16 %v2373, %v2372
        %v2391 = vpack.c.bf16 %v2375, %v2374
        %s2392 = scalar_lea.vmem %s4, 48
        %v2393 = vld [vmem:[%s2392] sm:$0xf]
        %v2394 = vld [vmem:[%s2392 + $0x4] sm:$0xf]
        %v2395 = vld [vmem:[%s2392 + $0x8] sm:$0xf]
        %v2399 = vunpack.c.l.b16 %v2393
        %v2400 = vunpack.c.l.b16 %v2394
        %v2401 = vunpack.c.l.b16 %v2395
        %v2402 = vpack.c.b16 %v2400, %v2399
        %v2403 = vpack.c.b16 %v2401, %v2401
        %v2406 = vsel %vm379, %v2376, 0
        %v2409 = vsel %vm379, %v2377, 0
        %v2412 = vsel %vm379, %v2378, 0
        %v2415 = vsel %vm379, %v2379, 0
        %v2418 = vsel %vm379, %v2380, 0
        %v2421 = vsel %vm379, %v2381, 0
        %v2424 = vsel %vm379, %v2382, 0
        %v2427 = vsel %vm379, %v2383, 0
        %v2430 = vsel %vm379, %v2384, 0
        %v2433 = vsel %vm379, %v2385, 0
        %v2436 = vsel %vm379, %v2386, 0
        %v2439 = vsel %vm379, %v2387, 0
        %v2442 = vsel %vm379, %v2388, 0
        %v2445 = vsel %vm379, %v2389, 0
        %v2448 = vsel %vm379, %v2390, 0
        %v2451 = vsel %vm379, %v2391, 0
        %v2454 = vsel %vm1348, %v2403, 0
        %2456 = vmatprep.subr.bf16.mxu0 0
        %2457 = vmatpush1.bf16.msra.mxu0 0
        %2458 = vmatprep.subr.bf16.mxu0 0
        %2459 = vmatpush1.bf16.msra.mxu0 0
        %2460 = vmatprep.subr.bf16.mxu0 0
        %2461 = vmatpush1.bf16.msra.mxu0 0
        %2462 = vmatprep.subr.bf16.mxu0 0
        %2463 = vmatpush1.bf16.msra.mxu0 0
        %2464 = vmatprep.subr.bf16.mxu0 0
        %2465 = vmatpush1.bf16.msra.mxu0 0
        %2466 = vmatprep.subr.bf16.mxu0 0
        %2467 = vmatpush1.bf16.msra.mxu0 0
        %2468 = vmatprep.subr.bf16.mxu0 0
        %2469 = vmatpush1.bf16.msra.mxu0 %v2454
        %2470 = vmatprep.subr.bf16.mxu0 0
        %2471 = vmatpush1.bf16.msra.mxu0 %v2402
        %2472 = vmatprep.subr.bf16.mxu0 0
        %2473 = vmatpush2.bf16.msra.mxu0 0
        %2474 = vmatprep.subr.bf16.mxu0 0
        %2475 = vmatpush2.bf16.msra.mxu0 0
        %2476 = vmatprep.subr.bf16.mxu0 0
        %2477 = vmatpush2.bf16.msra.mxu0 0
        %2478 = vmatprep.subr.bf16.mxu0 0
        %2479 = vmatpush2.bf16.msra.mxu0 0
        %2480 = vmatprep.subr.bf16.mxu0 0
        %2481 = vmatpush2.bf16.msra.mxu0 0
        %2482 = vmatprep.subr.bf16.mxu0 0
        %2483 = vmatpush2.bf16.msra.mxu0 0
        %2484 = vmatprep.subr.bf16.mxu0 0
        %2485 = vmatpush2.bf16.msra.mxu0 0
        %2486 = vmatprep.subr.bf16.mxu0 0
        %2487 = vmatpush2.bf16.msra.mxu0 0
        %2488 = vmatprep.mubr.bf16.mxu0 0
        %2489 = vmatmul.mubr.bf16.gmra.mxu0 %v2406
        %v2490 = vpop.f32.mrf.mxu0
        %v2491 = vadd.f32 0.0, %v2490
        %v2492 = vpop.f32.mrf.mxu0
        %v2493 = vpop.f32.mrf.mxu0
        %v2494 = vadd.f32 0.0, %v2493
        %v2495 = vpop.f32.mrf.mxu0
        %2496 = vmatprep.mubr.bf16.mxu0 0
        %2497 = vmatmul.mubr.bf16.gmra.mxu0 %v2409
        %v2498 = vpop.f32.mrf.mxu0
        %v2499 = vadd.f32 0.0, %v2498
        %v2500 = vpop.f32.mrf.mxu0
        %v2501 = vpop.f32.mrf.mxu0
        %v2502 = vadd.f32 0.0, %v2501
        %v2503 = vpop.f32.mrf.mxu0
        %2504 = vmatprep.mubr.bf16.mxu0 0
        %2505 = vmatmul.mubr.bf16.gmra.mxu0 %v2412
        %v2506 = vpop.f32.mrf.mxu0
        %v2507 = vadd.f32 0.0, %v2506
        %v2508 = vpop.f32.mrf.mxu0
        %v2509 = vpop.f32.mrf.mxu0
        %v2510 = vadd.f32 0.0, %v2509
        %v2511 = vpop.f32.mrf.mxu0
        %2512 = vmatprep.mubr.bf16.mxu0 0
        %2513 = vmatmul.mubr.bf16.gmra.mxu0 %v2415
        %v2514 = vpop.f32.mrf.mxu0
        %v2515 = vadd.f32 0.0, %v2514
        %v2516 = vpop.f32.mrf.mxu0
        %v2517 = vpop.f32.mrf.mxu0
        %v2518 = vadd.f32 0.0, %v2517
        %v2519 = vpop.f32.mrf.mxu0
        %2520 = vmatprep.mubr.bf16.mxu0 0
        %2521 = vmatmul.mubr.bf16.gmra.mxu0 %v2418
        %v2522 = vpop.f32.mrf.mxu0
        %v2523 = vadd.f32 0.0, %v2522
        %v2524 = vpop.f32.mrf.mxu0
        %v2525 = vpop.f32.mrf.mxu0
        %v2526 = vadd.f32 0.0, %v2525
        %v2527 = vpop.f32.mrf.mxu0
        %2528 = vmatprep.mubr.bf16.mxu0 0
        %2529 = vmatmul.mubr.bf16.gmra.mxu0 %v2421
        %v2530 = vpop.f32.mrf.mxu0
        %v2531 = vadd.f32 0.0, %v2530
        %v2532 = vpop.f32.mrf.mxu0
        %v2533 = vpop.f32.mrf.mxu0
        %v2534 = vadd.f32 0.0, %v2533
        %v2535 = vpop.f32.mrf.mxu0
        %2536 = vmatprep.mubr.bf16.mxu0 0
        %2537 = vmatmul.mubr.bf16.gmra.mxu0 %v2424
        %v2538 = vpop.f32.mrf.mxu0
        %v2539 = vadd.f32 0.0, %v2538
        %v2540 = vpop.f32.mrf.mxu0
        %v2541 = vpop.f32.mrf.mxu0
        %v2542 = vadd.f32 0.0, %v2541
        %v2543 = vpop.f32.mrf.mxu0
        %2544 = vmatprep.mubr.bf16.mxu0 0
        %2545 = vmatmul.mubr.bf16.gmra.mxu0 %v2427
        %v2546 = vpop.f32.mrf.mxu0
        %v2547 = vadd.f32 0.0, %v2546
        %v2548 = vpop.f32.mrf.mxu0
        %v2549 = vpop.f32.mrf.mxu0
        %v2550 = vadd.f32 0.0, %v2549
        %v2551 = vpop.f32.mrf.mxu0
        %2552 = vmatprep.mubr.bf16.mxu0 0
        %2553 = vmatmul.mubr.bf16.gmra.mxu0 %v2430
        %v2554 = vpop.f32.mrf.mxu0
        %v2555 = vadd.f32 0.0, %v2554
        %v2556 = vpop.f32.mrf.mxu0
        %v2557 = vpop.f32.mrf.mxu0
        %v2558 = vadd.f32 0.0, %v2557
        %v2559 = vpop.f32.mrf.mxu0
        %2560 = vmatprep.mubr.bf16.mxu0 0
        %2561 = vmatmul.mubr.bf16.gmra.mxu0 %v2433
        %v2562 = vpop.f32.mrf.mxu0
        %v2563 = vadd.f32 0.0, %v2562
        %v2564 = vpop.f32.mrf.mxu0
        %v2565 = vpop.f32.mrf.mxu0
        %v2566 = vadd.f32 0.0, %v2565
        %v2567 = vpop.f32.mrf.mxu0
        %2568 = vmatprep.mubr.bf16.mxu0 0
        %2569 = vmatmul.mubr.bf16.gmra.mxu0 %v2436
        %v2570 = vpop.f32.mrf.mxu0
        %v2571 = vadd.f32 0.0, %v2570
        %v2572 = vpop.f32.mrf.mxu0
        %v2573 = vpop.f32.mrf.mxu0
        %v2574 = vadd.f32 0.0, %v2573
        %v2575 = vpop.f32.mrf.mxu0
        %2576 = vmatprep.mubr.bf16.mxu0 0
        %2577 = vmatmul.mubr.bf16.gmra.mxu0 %v2439
        %v2578 = vpop.f32.mrf.mxu0
        %v2579 = vadd.f32 0.0, %v2578
        %v2580 = vpop.f32.mrf.mxu0
        %v2581 = vpop.f32.mrf.mxu0
        %v2582 = vadd.f32 0.0, %v2581
        %v2583 = vpop.f32.mrf.mxu0
        %2584 = vmatprep.mubr.bf16.mxu0 0
        %2585 = vmatmul.mubr.bf16.gmra.mxu0 %v2442
        %v2586 = vpop.f32.mrf.mxu0
        %v2587 = vadd.f32 0.0, %v2586
        %v2588 = vpop.f32.mrf.mxu0
        %v2589 = vpop.f32.mrf.mxu0
        %v2590 = vadd.f32 0.0, %v2589
        %v2591 = vpop.f32.mrf.mxu0
        %2592 = vmatprep.mubr.bf16.mxu0 0
        %2593 = vmatmul.mubr.bf16.gmra.mxu0 %v2445
        %v2594 = vpop.f32.mrf.mxu0
        %v2595 = vadd.f32 0.0, %v2594
        %v2596 = vpop.f32.mrf.mxu0
        %v2597 = vpop.f32.mrf.mxu0
        %v2598 = vadd.f32 0.0, %v2597
        %v2599 = vpop.f32.mrf.mxu0
        %2600 = vmatprep.mubr.bf16.mxu0 0
        %2601 = vmatmul.mubr.bf16.gmra.mxu0 %v2448
        %v2602 = vpop.f32.mrf.mxu0
        %v2603 = vadd.f32 0.0, %v2602
        %v2604 = vpop.f32.mrf.mxu0
        %v2605 = vpop.f32.mrf.mxu0
        %v2606 = vadd.f32 0.0, %v2605
        %v2607 = vpop.f32.mrf.mxu0
        %2608 = vmatprep.mubr.bf16.mxu0 0
        %2609 = vmatmul.mubr.bf16.gmra.mxu0 %v2451
        %v2610 = vpop.f32.mrf.mxu0
        %v2611 = vadd.f32 0.0, %v2610
        %v2612 = vpop.f32.mrf.mxu0
        %v2613 = vpop.f32.mrf.mxu0
        %v2614 = vadd.f32 0.0, %v2613
        %v2615 = vpop.f32.mrf.mxu0
        %2616 = vdwg.mxu0
        %v2617 = vadd.f32 %v2312, %v2491
        %v2618 = vadd.f32 %v2313, %v2494
        %v2619 = vadd.f32 %v2314, %v2499
        %v2620 = vadd.f32 %v2315, %v2502
        %v2621 = vadd.f32 %v2316, %v2507
        %v2622 = vadd.f32 %v2317, %v2510
        %v2623 = vadd.f32 %v2318, %v2515
        %v2624 = vadd.f32 %v2319, %v2518
        %v2625 = vadd.f32 %v2320, %v2523
        %v2626 = vadd.f32 %v2321, %v2526
        %v2627 = vadd.f32 %v2322, %v2531
        %v2628 = vadd.f32 %v2323, %v2534
        %v2629 = vadd.f32 %v2324, %v2539
        %v2630 = vadd.f32 %v2325, %v2542
        %v2631 = vadd.f32 %v2326, %v2547
        %v2632 = vadd.f32 %v2327, %v2550
        %v2633 = vadd.f32 %v2328, %v2555
        %v2634 = vadd.f32 %v2329, %v2558
        %v2635 = vadd.f32 %v2330, %v2563
        %v2636 = vadd.f32 %v2331, %v2566
        %v2637 = vadd.f32 %v2332, %v2571
        %v2638 = vadd.f32 %v2333, %v2574
        %v2639 = vadd.f32 %v2334, %v2579
        %v2640 = vadd.f32 %v2335, %v2582
        %v2641 = vadd.f32 %v2336, %v2587
        %v2642 = vadd.f32 %v2337, %v2590
        %v2643 = vadd.f32 %v2338, %v2595
        %v2644 = vadd.f32 %v2339, %v2598
        %v2645 = vadd.f32 %v2340, %v2603
        %v2646 = vadd.f32 %v2341, %v2606
        %v2647 = vadd.f32 %v2342, %v2611
        %v2648 = vadd.f32 %v2343, %v2614
        %v2649 = vld [vmem:[%s1155 + $0x2] sm:$0xff]
        %v2650 = vld [vmem:[%s1155 + $0xa] sm:$0xff]
        %v2651 = vld [vmem:[%s1155 + $0x1a] sm:$0xff]
        %v2652 = vld [vmem:[%s1155 + $0x22] sm:$0xff]
        %v2653 = vld [vmem:[%s1155 + $0x32] sm:$0xff]
        %v2654 = vld [vmem:[%s1155 + $0x3a] sm:$0xff]
        %v2655 = vld [vmem:[%s1155 + $0x4a] sm:$0xff]
        %v2656 = vld [vmem:[%s1155 + $0x52] sm:$0xff]
        %v2657 = vld [vmem:[%s1155 + $0x62] sm:$0xff]
        %v2658 = vld [vmem:[%s1155 + $0x6a] sm:$0xff]
        %v2659 = vld [vmem:[%s1155 + $0x7a] sm:$0xff]
        %v2660 = vld [vmem:[%s1155 + $0x82] sm:$0xff]
        %v2661 = vld [vmem:[%s1155 + $0x92] sm:$0xff]
        %v2662 = vld [vmem:[%s1155 + $0x9a] sm:$0xff]
        %v2663 = vld [vmem:[%s1155 + $0xaa] sm:$0xff]
        %v2664 = vld [vmem:[%s1155 + $0xb2] sm:$0xff]
        %v2665 = vld [vmem:[%s1155 + $0xc2] sm:$0xff]
        %v2666 = vld [vmem:[%s1155 + $0xca] sm:$0xff]
        %v2667 = vld [vmem:[%s1155 + $0xda] sm:$0xff]
        %v2668 = vld [vmem:[%s1155 + $0xe2] sm:$0xff]
        %v2669 = vld [vmem:[%s1155 + $0xf2] sm:$0xff]
        %v2670 = vld [vmem:[%s1155 + $0xfa] sm:$0xff]
        %v2671 = vld [vmem:[%s1155 + $0x10a] sm:$0xff]
        %v2672 = vld [vmem:[%s1155 + $0x112] sm:$0xff]
        %v2673 = vld [vmem:[%s1155 + $0x122] sm:$0xff]
        %v2674 = vld [vmem:[%s1155 + $0x12a] sm:$0xff]
        %v2675 = vld [vmem:[%s1155 + $0x13a] sm:$0xff]
        %v2676 = vld [vmem:[%s1155 + $0x142] sm:$0xff]
        %v2677 = vld [vmem:[%s1155 + $0x152] sm:$0xff]
        %v2678 = vld [vmem:[%s1155 + $0x15a] sm:$0xff]
        %v2679 = vld [vmem:[%s1155 + $0x16a] sm:$0xff]
        %v2680 = vld [vmem:[%s1155 + $0x172] sm:$0xff]
        %v2681 = vpack.c.bf16 %v2650, %v2649
        %v2682 = vpack.c.bf16 %v2652, %v2651
        %v2683 = vpack.c.bf16 %v2654, %v2653
        %v2684 = vpack.c.bf16 %v2656, %v2655
        %v2685 = vpack.c.bf16 %v2658, %v2657
        %v2686 = vpack.c.bf16 %v2660, %v2659
        %v2687 = vpack.c.bf16 %v2662, %v2661
        %v2688 = vpack.c.bf16 %v2664, %v2663
        %v2689 = vpack.c.bf16 %v2666, %v2665
        %v2690 = vpack.c.bf16 %v2668, %v2667
        %v2691 = vpack.c.bf16 %v2670, %v2669
        %v2692 = vpack.c.bf16 %v2672, %v2671
        %v2693 = vpack.c.bf16 %v2674, %v2673
        %v2694 = vpack.c.bf16 %v2676, %v2675
        %v2695 = vpack.c.bf16 %v2678, %v2677
        %v2696 = vpack.c.bf16 %v2680, %v2679
        %s2697 = scalar_lea.vmem %s4, 60
        %v2698 = vld [vmem:[%s2697] sm:$0xf]
        %v2699 = vld [vmem:[%s2697 + $0x4] sm:$0xf]
        %v2700 = vld [vmem:[%s2697 + $0x8] sm:$0xf]
        %v2704 = vunpack.c.l.b16 %v2698
        %v2705 = vunpack.c.l.b16 %v2699
        %v2706 = vunpack.c.l.b16 %v2700
        %v2707 = vpack.c.b16 %v2705, %v2704
        %v2708 = vpack.c.b16 %v2706, %v2706
        %v2711 = vsel %vm379, %v2681, 0
        %v2714 = vsel %vm379, %v2682, 0
        %v2717 = vsel %vm379, %v2683, 0
        %v2720 = vsel %vm379, %v2684, 0
        %v2723 = vsel %vm379, %v2685, 0
        %v2726 = vsel %vm379, %v2686, 0
        %v2729 = vsel %vm379, %v2687, 0
        %v2732 = vsel %vm379, %v2688, 0
        %v2735 = vsel %vm379, %v2689, 0
        %v2738 = vsel %vm379, %v2690, 0
        %v2741 = vsel %vm379, %v2691, 0
        %v2744 = vsel %vm379, %v2692, 0
        %v2747 = vsel %vm379, %v2693, 0
        %v2750 = vsel %vm379, %v2694, 0
        %v2753 = vsel %vm379, %v2695, 0
        %v2756 = vsel %vm379, %v2696, 0
        %v2759 = vsel %vm1348, %v2708, 0
        %2761 = vmatprep.subr.bf16.mxu0 0
        %2762 = vmatpush1.bf16.msra.mxu0 0
        %2763 = vmatprep.subr.bf16.mxu0 0
        %2764 = vmatpush1.bf16.msra.mxu0 0
        %2765 = vmatprep.subr.bf16.mxu0 0
        %2766 = vmatpush1.bf16.msra.mxu0 0
        %2767 = vmatprep.subr.bf16.mxu0 0
        %2768 = vmatpush1.bf16.msra.mxu0 0
        %2769 = vmatprep.subr.bf16.mxu0 0
        %2770 = vmatpush1.bf16.msra.mxu0 0
        %2771 = vmatprep.subr.bf16.mxu0 0
        %2772 = vmatpush1.bf16.msra.mxu0 0
        %2773 = vmatprep.subr.bf16.mxu0 0
        %2774 = vmatpush1.bf16.msra.mxu0 %v2759
        %2775 = vmatprep.subr.bf16.mxu0 0
        %2776 = vmatpush1.bf16.msra.mxu0 %v2707
        %2777 = vmatprep.subr.bf16.mxu0 0
        %2778 = vmatpush2.bf16.msra.mxu0 0
        %2779 = vmatprep.subr.bf16.mxu0 0
        %2780 = vmatpush2.bf16.msra.mxu0 0
        %2781 = vmatprep.subr.bf16.mxu0 0
        %2782 = vmatpush2.bf16.msra.mxu0 0
        %2783 = vmatprep.subr.bf16.mxu0 0
        %2784 = vmatpush2.bf16.msra.mxu0 0
        %2785 = vmatprep.subr.bf16.mxu0 0
        %2786 = vmatpush2.bf16.msra.mxu0 0
        %2787 = vmatprep.subr.bf16.mxu0 0
        %2788 = vmatpush2.bf16.msra.mxu0 0
        %2789 = vmatprep.subr.bf16.mxu0 0
        %2790 = vmatpush2.bf16.msra.mxu0 0
        %2791 = vmatprep.subr.bf16.mxu0 0
        %2792 = vmatpush2.bf16.msra.mxu0 0
        %2793 = vmatprep.mubr.bf16.mxu0 0
        %2794 = vmatmul.mubr.bf16.gmra.mxu0 %v2711
        %v2795 = vpop.f32.mrf.mxu0
        %v2796 = vadd.f32 0.0, %v2795
        %v2797 = vpop.f32.mrf.mxu0
        %v2798 = vpop.f32.mrf.mxu0
        %v2799 = vadd.f32 0.0, %v2798
        %v2800 = vpop.f32.mrf.mxu0
        %2801 = vmatprep.mubr.bf16.mxu0 0
        %2802 = vmatmul.mubr.bf16.gmra.mxu0 %v2714
        %v2803 = vpop.f32.mrf.mxu0
        %v2804 = vadd.f32 0.0, %v2803
        %v2805 = vpop.f32.mrf.mxu0
        %v2806 = vpop.f32.mrf.mxu0
        %v2807 = vadd.f32 0.0, %v2806
        %v2808 = vpop.f32.mrf.mxu0
        %2809 = vmatprep.mubr.bf16.mxu0 0
        %2810 = vmatmul.mubr.bf16.gmra.mxu0 %v2717
        %v2811 = vpop.f32.mrf.mxu0
        %v2812 = vadd.f32 0.0, %v2811
        %v2813 = vpop.f32.mrf.mxu0
        %v2814 = vpop.f32.mrf.mxu0
        %v2815 = vadd.f32 0.0, %v2814
        %v2816 = vpop.f32.mrf.mxu0
        %2817 = vmatprep.mubr.bf16.mxu0 0
        %2818 = vmatmul.mubr.bf16.gmra.mxu0 %v2720
        %v2819 = vpop.f32.mrf.mxu0
        %v2820 = vadd.f32 0.0, %v2819
        %v2821 = vpop.f32.mrf.mxu0
        %v2822 = vpop.f32.mrf.mxu0
        %v2823 = vadd.f32 0.0, %v2822
        %v2824 = vpop.f32.mrf.mxu0
        %2825 = vmatprep.mubr.bf16.mxu0 0
        %2826 = vmatmul.mubr.bf16.gmra.mxu0 %v2723
        %v2827 = vpop.f32.mrf.mxu0
        %v2828 = vadd.f32 0.0, %v2827
        %v2829 = vpop.f32.mrf.mxu0
        %v2830 = vpop.f32.mrf.mxu0
        %v2831 = vadd.f32 0.0, %v2830
        %v2832 = vpop.f32.mrf.mxu0
        %2833 = vmatprep.mubr.bf16.mxu0 0
        %2834 = vmatmul.mubr.bf16.gmra.mxu0 %v2726
        %v2835 = vpop.f32.mrf.mxu0
        %v2836 = vadd.f32 0.0, %v2835
        %v2837 = vpop.f32.mrf.mxu0
        %v2838 = vpop.f32.mrf.mxu0
        %v2839 = vadd.f32 0.0, %v2838
        %v2840 = vpop.f32.mrf.mxu0
        %2841 = vmatprep.mubr.bf16.mxu0 0
        %2842 = vmatmul.mubr.bf16.gmra.mxu0 %v2729
        %v2843 = vpop.f32.mrf.mxu0
        %v2844 = vadd.f32 0.0, %v2843
        %v2845 = vpop.f32.mrf.mxu0
        %v2846 = vpop.f32.mrf.mxu0
        %v2847 = vadd.f32 0.0, %v2846
        %v2848 = vpop.f32.mrf.mxu0
        %2849 = vmatprep.mubr.bf16.mxu0 0
        %2850 = vmatmul.mubr.bf16.gmra.mxu0 %v2732
        %v2851 = vpop.f32.mrf.mxu0
        %v2852 = vadd.f32 0.0, %v2851
        %v2853 = vpop.f32.mrf.mxu0
        %v2854 = vpop.f32.mrf.mxu0
        %v2855 = vadd.f32 0.0, %v2854
        %v2856 = vpop.f32.mrf.mxu0
        %2857 = vmatprep.mubr.bf16.mxu0 0
        %2858 = vmatmul.mubr.bf16.gmra.mxu0 %v2735
        %v2859 = vpop.f32.mrf.mxu0
        %v2860 = vadd.f32 0.0, %v2859
        %v2861 = vpop.f32.mrf.mxu0
        %v2862 = vpop.f32.mrf.mxu0
        %v2863 = vadd.f32 0.0, %v2862
        %v2864 = vpop.f32.mrf.mxu0
        %2865 = vmatprep.mubr.bf16.mxu0 0
        %2866 = vmatmul.mubr.bf16.gmra.mxu0 %v2738
        %v2867 = vpop.f32.mrf.mxu0
        %v2868 = vadd.f32 0.0, %v2867
        %v2869 = vpop.f32.mrf.mxu0
        %v2870 = vpop.f32.mrf.mxu0
        %v2871 = vadd.f32 0.0, %v2870
        %v2872 = vpop.f32.mrf.mxu0
        %2873 = vmatprep.mubr.bf16.mxu0 0
        %2874 = vmatmul.mubr.bf16.gmra.mxu0 %v2741
        %v2875 = vpop.f32.mrf.mxu0
        %v2876 = vadd.f32 0.0, %v2875
        %v2877 = vpop.f32.mrf.mxu0
        %v2878 = vpop.f32.mrf.mxu0
        %v2879 = vadd.f32 0.0, %v2878
        %v2880 = vpop.f32.mrf.mxu0
        %2881 = vmatprep.mubr.bf16.mxu0 0
        %2882 = vmatmul.mubr.bf16.gmra.mxu0 %v2744
        %v2883 = vpop.f32.mrf.mxu0
        %v2884 = vadd.f32 0.0, %v2883
        %v2885 = vpop.f32.mrf.mxu0
        %v2886 = vpop.f32.mrf.mxu0
        %v2887 = vadd.f32 0.0, %v2886
        %v2888 = vpop.f32.mrf.mxu0
        %2889 = vmatprep.mubr.bf16.mxu0 0
        %2890 = vmatmul.mubr.bf16.gmra.mxu0 %v2747
        %v2891 = vpop.f32.mrf.mxu0
        %v2892 = vadd.f32 0.0, %v2891
        %v2893 = vpop.f32.mrf.mxu0
        %v2894 = vpop.f32.mrf.mxu0
        %v2895 = vadd.f32 0.0, %v2894
        %v2896 = vpop.f32.mrf.mxu0
        %2897 = vmatprep.mubr.bf16.mxu0 0
        %2898 = vmatmul.mubr.bf16.gmra.mxu0 %v2750
        %v2899 = vpop.f32.mrf.mxu0
        %v2900 = vadd.f32 0.0, %v2899
        %v2901 = vpop.f32.mrf.mxu0
        %v2902 = vpop.f32.mrf.mxu0
        %v2903 = vadd.f32 0.0, %v2902
        %v2904 = vpop.f32.mrf.mxu0
        %2905 = vmatprep.mubr.bf16.mxu0 0
        %2906 = vmatmul.mubr.bf16.gmra.mxu0 %v2753
        %v2907 = vpop.f32.mrf.mxu0
        %v2908 = vadd.f32 0.0, %v2907
        %v2909 = vpop.f32.mrf.mxu0
        %v2910 = vpop.f32.mrf.mxu0
        %v2911 = vadd.f32 0.0, %v2910
        %v2912 = vpop.f32.mrf.mxu0
        %2913 = vmatprep.mubr.bf16.mxu0 0
        %2914 = vmatmul.mubr.bf16.gmra.mxu0 %v2756
        %v2915 = vpop.f32.mrf.mxu0
        %v2916 = vadd.f32 0.0, %v2915
        %v2917 = vpop.f32.mrf.mxu0
        %v2918 = vpop.f32.mrf.mxu0
        %v2919 = vadd.f32 0.0, %v2918
        %v2920 = vpop.f32.mrf.mxu0
        %2921 = vdwg.mxu0
        %v2922 = vadd.f32 %v2617, %v2796
        %v2923 = vadd.f32 %v2618, %v2799
        %v2924 = vadd.f32 %v2619, %v2804
        %v2925 = vadd.f32 %v2620, %v2807
        %v2926 = vadd.f32 %v2621, %v2812
        %v2927 = vadd.f32 %v2622, %v2815
        %v2928 = vadd.f32 %v2623, %v2820
        %v2929 = vadd.f32 %v2624, %v2823
        %v2930 = vadd.f32 %v2625, %v2828
        %v2931 = vadd.f32 %v2626, %v2831
        %v2932 = vadd.f32 %v2627, %v2836
        %v2933 = vadd.f32 %v2628, %v2839
        %v2934 = vadd.f32 %v2629, %v2844
        %v2935 = vadd.f32 %v2630, %v2847
        %v2936 = vadd.f32 %v2631, %v2852
        %v2937 = vadd.f32 %v2632, %v2855
        %v2938 = vadd.f32 %v2633, %v2860
        %v2939 = vadd.f32 %v2634, %v2863
        %v2940 = vadd.f32 %v2635, %v2868
        %v2941 = vadd.f32 %v2636, %v2871
        %v2942 = vadd.f32 %v2637, %v2876
        %v2943 = vadd.f32 %v2638, %v2879
        %v2944 = vadd.f32 %v2639, %v2884
        %v2945 = vadd.f32 %v2640, %v2887
        %v2946 = vadd.f32 %v2641, %v2892
        %v2947 = vadd.f32 %v2642, %v2895
        %v2948 = vadd.f32 %v2643, %v2900
        %v2949 = vadd.f32 %v2644, %v2903
        %v2950 = vadd.f32 %v2645, %v2908
        %v2951 = vadd.f32 %v2646, %v2911
        %v2952 = vadd.f32 %v2647, %v2916
        %v2953 = vadd.f32 %v2648, %v2919
        %s2954 = scalar_lea.vmem [#allocation2], 48
        %v2955 = vld [vmem:[%s2954] sm:$0xff]
        %v2956 = vld [vmem:[%s2954 + $0x8] sm:$0xff]
        %v2957 = vld [vmem:[%s2954 + $0x18] sm:$0xff]
        %v2958 = vld [vmem:[%s2954 + $0x20] sm:$0xff]
        %v2959 = vld [vmem:[%s2954 + $0x30] sm:$0xff]
        %v2960 = vld [vmem:[%s2954 + $0x38] sm:$0xff]
        %v2961 = vld [vmem:[%s2954 + $0x48] sm:$0xff]
        %v2962 = vld [vmem:[%s2954 + $0x50] sm:$0xff]
        %v2963 = vld [vmem:[%s2954 + $0x60] sm:$0xff]
        %v2964 = vld [vmem:[%s2954 + $0x68] sm:$0xff]
        %v2965 = vld [vmem:[%s2954 + $0x78] sm:$0xff]
        %v2966 = vld [vmem:[%s2954 + $0x80] sm:$0xff]
        %v2967 = vld [vmem:[%s2954 + $0x90] sm:$0xff]
        %v2968 = vld [vmem:[%s2954 + $0x98] sm:$0xff]
        %v2969 = vld [vmem:[%s2954 + $0xa8] sm:$0xff]
        %v2970 = vld [vmem:[%s2954 + $0xb0] sm:$0xff]
        %v2971 = vld [vmem:[%s2954 + $0xc0] sm:$0xff]
        %v2972 = vld [vmem:[%s2954 + $0xc8] sm:$0xff]
        %v2973 = vld [vmem:[%s2954 + $0xd8] sm:$0xff]
        %v2974 = vld [vmem:[%s2954 + $0xe0] sm:$0xff]
        %v2975 = vld [vmem:[%s2954 + $0xf0] sm:$0xff]
        %v2976 = vld [vmem:[%s2954 + $0xf8] sm:$0xff]
        %v2977 = vld [vmem:[%s2954 + $0x108] sm:$0xff]
        %v2978 = vld [vmem:[%s2954 + $0x110] sm:$0xff]
        %v2979 = vld [vmem:[%s2954 + $0x120] sm:$0xff]
        %v2980 = vld [vmem:[%s2954 + $0x128] sm:$0xff]
        %v2981 = vld [vmem:[%s2954 + $0x138] sm:$0xff]
        %v2982 = vld [vmem:[%s2954 + $0x140] sm:$0xff]
        %v2983 = vld [vmem:[%s2954 + $0x150] sm:$0xff]
        %v2984 = vld [vmem:[%s2954 + $0x158] sm:$0xff]
        %v2985 = vld [vmem:[%s2954 + $0x168] sm:$0xff]
        %v2986 = vld [vmem:[%s2954 + $0x170] sm:$0xff]
        %v2987 = vpack.c.bf16 %v2956, %v2955
        %v2988 = vpack.c.bf16 %v2958, %v2957
        %v2989 = vpack.c.bf16 %v2960, %v2959
        %v2990 = vpack.c.bf16 %v2962, %v2961
        %v2991 = vpack.c.bf16 %v2964, %v2963
        %v2992 = vpack.c.bf16 %v2966, %v2965
        %v2993 = vpack.c.bf16 %v2968, %v2967
        %v2994 = vpack.c.bf16 %v2970, %v2969
        %v2995 = vpack.c.bf16 %v2972, %v2971
        %v2996 = vpack.c.bf16 %v2974, %v2973
        %v2997 = vpack.c.bf16 %v2976, %v2975
        %v2998 = vpack.c.bf16 %v2978, %v2977
        %v2999 = vpack.c.bf16 %v2980, %v2979
        %v3000 = vpack.c.bf16 %v2982, %v2981
        %v3001 = vpack.c.bf16 %v2984, %v2983
        %v3002 = vpack.c.bf16 %v2986, %v2985
        %s3003 = scalar_lea.vmem %s4, 72
        %v3004 = vld [vmem:[%s3003] sm:$0xf]
        %v3005 = vld [vmem:[%s3003 + $0x4] sm:$0xf]
        %v3006 = vld [vmem:[%s3003 + $0x8] sm:$0xf]
        %v3010 = vunpack.c.l.b16 %v3004
        %v3011 = vunpack.c.l.b16 %v3005
        %v3012 = vunpack.c.l.b16 %v3006
        %v3013 = vpack.c.b16 %v3011, %v3010
        %v3014 = vpack.c.b16 %v3012, %v3012
        %v3017 = vsel %vm379, %v2987, 0
        %v3020 = vsel %vm379, %v2988, 0
        %v3023 = vsel %vm379, %v2989, 0
        %v3026 = vsel %vm379, %v2990, 0
        %v3029 = vsel %vm379, %v2991, 0
        %v3032 = vsel %vm379, %v2992, 0
        %v3035 = vsel %vm379, %v2993, 0
        %v3038 = vsel %vm379, %v2994, 0
        %v3041 = vsel %vm379, %v2995, 0
        %v3044 = vsel %vm379, %v2996, 0
        %v3047 = vsel %vm379, %v2997, 0
        %v3050 = vsel %vm379, %v2998, 0
        %v3053 = vsel %vm379, %v2999, 0
        %v3056 = vsel %vm379, %v3000, 0
        %v3059 = vsel %vm379, %v3001, 0
        %v3062 = vsel %vm379, %v3002, 0
        %v3065 = vsel %vm1348, %v3014, 0
        %3067 = vmatprep.subr.bf16.mxu0 0
        %3068 = vmatpush1.bf16.msra.mxu0 0
        %3069 = vmatprep.subr.bf16.mxu0 0
        %3070 = vmatpush1.bf16.msra.mxu0 0
        %3071 = vmatprep.subr.bf16.mxu0 0
        %3072 = vmatpush1.bf16.msra.mxu0 0
        %3073 = vmatprep.subr.bf16.mxu0 0
        %3074 = vmatpush1.bf16.msra.mxu0 0
        %3075 = vmatprep.subr.bf16.mxu0 0
        %3076 = vmatpush1.bf16.msra.mxu0 0
        %3077 = vmatprep.subr.bf16.mxu0 0
        %3078 = vmatpush1.bf16.msra.mxu0 0
        %3079 = vmatprep.subr.bf16.mxu0 0
        %3080 = vmatpush1.bf16.msra.mxu0 %v3065
        %3081 = vmatprep.subr.bf16.mxu0 0
        %3082 = vmatpush1.bf16.msra.mxu0 %v3013
        %3083 = vmatprep.subr.bf16.mxu0 0
        %3084 = vmatpush2.bf16.msra.mxu0 0
        %3085 = vmatprep.subr.bf16.mxu0 0
        %3086 = vmatpush2.bf16.msra.mxu0 0
        %3087 = vmatprep.subr.bf16.mxu0 0
        %3088 = vmatpush2.bf16.msra.mxu0 0
        %3089 = vmatprep.subr.bf16.mxu0 0
        %3090 = vmatpush2.bf16.msra.mxu0 0
        %3091 = vmatprep.subr.bf16.mxu0 0
        %3092 = vmatpush2.bf16.msra.mxu0 0
        %3093 = vmatprep.subr.bf16.mxu0 0
        %3094 = vmatpush2.bf16.msra.mxu0 0
        %3095 = vmatprep.subr.bf16.mxu0 0
        %3096 = vmatpush2.bf16.msra.mxu0 0
        %3097 = vmatprep.subr.bf16.mxu0 0
        %3098 = vmatpush2.bf16.msra.mxu0 0
        %3099 = vmatprep.mubr.bf16.mxu0 0
        %3100 = vmatmul.mubr.bf16.gmra.mxu0 %v3017
        %v3101 = vpop.f32.mrf.mxu0
        %v3102 = vadd.f32 0.0, %v3101
        %v3103 = vpop.f32.mrf.mxu0
        %v3104 = vpop.f32.mrf.mxu0
        %v3105 = vadd.f32 0.0, %v3104
        %v3106 = vpop.f32.mrf.mxu0
        %3107 = vmatprep.mubr.bf16.mxu0 0
        %3108 = vmatmul.mubr.bf16.gmra.mxu0 %v3020
        %v3109 = vpop.f32.mrf.mxu0
        %v3110 = vadd.f32 0.0, %v3109
        %v3111 = vpop.f32.mrf.mxu0
        %v3112 = vpop.f32.mrf.mxu0
        %v3113 = vadd.f32 0.0, %v3112
        %v3114 = vpop.f32.mrf.mxu0
        %3115 = vmatprep.mubr.bf16.mxu0 0
        %3116 = vmatmul.mubr.bf16.gmra.mxu0 %v3023
        %v3117 = vpop.f32.mrf.mxu0
        %v3118 = vadd.f32 0.0, %v3117
        %v3119 = vpop.f32.mrf.mxu0
        %v3120 = vpop.f32.mrf.mxu0
        %v3121 = vadd.f32 0.0, %v3120
        %v3122 = vpop.f32.mrf.mxu0
        %3123 = vmatprep.mubr.bf16.mxu0 0
        %3124 = vmatmul.mubr.bf16.gmra.mxu0 %v3026
        %v3125 = vpop.f32.mrf.mxu0
        %v3126 = vadd.f32 0.0, %v3125
        %v3127 = vpop.f32.mrf.mxu0
        %v3128 = vpop.f32.mrf.mxu0
        %v3129 = vadd.f32 0.0, %v3128
        %v3130 = vpop.f32.mrf.mxu0
        %3131 = vmatprep.mubr.bf16.mxu0 0
        %3132 = vmatmul.mubr.bf16.gmra.mxu0 %v3029
        %v3133 = vpop.f32.mrf.mxu0
        %v3134 = vadd.f32 0.0, %v3133
        %v3135 = vpop.f32.mrf.mxu0
        %v3136 = vpop.f32.mrf.mxu0
        %v3137 = vadd.f32 0.0, %v3136
        %v3138 = vpop.f32.mrf.mxu0
        %3139 = vmatprep.mubr.bf16.mxu0 0
        %3140 = vmatmul.mubr.bf16.gmra.mxu0 %v3032
        %v3141 = vpop.f32.mrf.mxu0
        %v3142 = vadd.f32 0.0, %v3141
        %v3143 = vpop.f32.mrf.mxu0
        %v3144 = vpop.f32.mrf.mxu0
        %v3145 = vadd.f32 0.0, %v3144
        %v3146 = vpop.f32.mrf.mxu0
        %3147 = vmatprep.mubr.bf16.mxu0 0
        %3148 = vmatmul.mubr.bf16.gmra.mxu0 %v3035
        %v3149 = vpop.f32.mrf.mxu0
        %v3150 = vadd.f32 0.0, %v3149
        %v3151 = vpop.f32.mrf.mxu0
        %v3152 = vpop.f32.mrf.mxu0
        %v3153 = vadd.f32 0.0, %v3152
        %v3154 = vpop.f32.mrf.mxu0
        %3155 = vmatprep.mubr.bf16.mxu0 0
        %3156 = vmatmul.mubr.bf16.gmra.mxu0 %v3038
        %v3157 = vpop.f32.mrf.mxu0
        %v3158 = vadd.f32 0.0, %v3157
        %v3159 = vpop.f32.mrf.mxu0
        %v3160 = vpop.f32.mrf.mxu0
        %v3161 = vadd.f32 0.0, %v3160
        %v3162 = vpop.f32.mrf.mxu0
        %3163 = vmatprep.mubr.bf16.mxu0 0
        %3164 = vmatmul.mubr.bf16.gmra.mxu0 %v3041
        %v3165 = vpop.f32.mrf.mxu0
        %v3166 = vadd.f32 0.0, %v3165
        %v3167 = vpop.f32.mrf.mxu0
        %v3168 = vpop.f32.mrf.mxu0
        %v3169 = vadd.f32 0.0, %v3168
        %v3170 = vpop.f32.mrf.mxu0
        %3171 = vmatprep.mubr.bf16.mxu0 0
        %3172 = vmatmul.mubr.bf16.gmra.mxu0 %v3044
        %v3173 = vpop.f32.mrf.mxu0
        %v3174 = vadd.f32 0.0, %v3173
        %v3175 = vpop.f32.mrf.mxu0
        %v3176 = vpop.f32.mrf.mxu0
        %v3177 = vadd.f32 0.0, %v3176
        %v3178 = vpop.f32.mrf.mxu0
        %3179 = vmatprep.mubr.bf16.mxu0 0
        %3180 = vmatmul.mubr.bf16.gmra.mxu0 %v3047
        %v3181 = vpop.f32.mrf.mxu0
        %v3182 = vadd.f32 0.0, %v3181
        %v3183 = vpop.f32.mrf.mxu0
        %v3184 = vpop.f32.mrf.mxu0
        %v3185 = vadd.f32 0.0, %v3184
        %v3186 = vpop.f32.mrf.mxu0
        %3187 = vmatprep.mubr.bf16.mxu0 0
        %3188 = vmatmul.mubr.bf16.gmra.mxu0 %v3050
        %v3189 = vpop.f32.mrf.mxu0
        %v3190 = vadd.f32 0.0, %v3189
        %v3191 = vpop.f32.mrf.mxu0
        %v3192 = vpop.f32.mrf.mxu0
        %v3193 = vadd.f32 0.0, %v3192
        %v3194 = vpop.f32.mrf.mxu0
        %3195 = vmatprep.mubr.bf16.mxu0 0
        %3196 = vmatmul.mubr.bf16.gmra.mxu0 %v3053
        %v3197 = vpop.f32.mrf.mxu0
        %v3198 = vadd.f32 0.0, %v3197
        %v3199 = vpop.f32.mrf.mxu0
        %v3200 = vpop.f32.mrf.mxu0
        %v3201 = vadd.f32 0.0, %v3200
        %v3202 = vpop.f32.mrf.mxu0
        %3203 = vmatprep.mubr.bf16.mxu0 0
        %3204 = vmatmul.mubr.bf16.gmra.mxu0 %v3056
        %v3205 = vpop.f32.mrf.mxu0
        %v3206 = vadd.f32 0.0, %v3205
        %v3207 = vpop.f32.mrf.mxu0
        %v3208 = vpop.f32.mrf.mxu0
        %v3209 = vadd.f32 0.0, %v3208
        %v3210 = vpop.f32.mrf.mxu0
        %3211 = vmatprep.mubr.bf16.mxu0 0
        %3212 = vmatmul.mubr.bf16.gmra.mxu0 %v3059
        %v3213 = vpop.f32.mrf.mxu0
        %v3214 = vadd.f32 0.0, %v3213
        %v3215 = vpop.f32.mrf.mxu0
        %v3216 = vpop.f32.mrf.mxu0
        %v3217 = vadd.f32 0.0, %v3216
        %v3218 = vpop.f32.mrf.mxu0
        %3219 = vmatprep.mubr.bf16.mxu0 0
        %3220 = vmatmul.mubr.bf16.gmra.mxu0 %v3062
        %v3221 = vpop.f32.mrf.mxu0
        %v3222 = vadd.f32 0.0, %v3221
        %v3223 = vpop.f32.mrf.mxu0
        %v3224 = vpop.f32.mrf.mxu0
        %v3225 = vadd.f32 0.0, %v3224
        %v3226 = vpop.f32.mrf.mxu0
        %3227 = vdwg.mxu0
        %v3228 = vadd.f32 %v2922, %v3102
        %v3229 = vadd.f32 %v2923, %v3105
        %v3230 = vadd.f32 %v2924, %v3110
        %v3231 = vadd.f32 %v2925, %v3113
        %v3232 = vadd.f32 %v2926, %v3118
        %v3233 = vadd.f32 %v2927, %v3121
        %v3234 = vadd.f32 %v2928, %v3126
        %v3235 = vadd.f32 %v2929, %v3129
        %v3236 = vadd.f32 %v2930, %v3134
        %v3237 = vadd.f32 %v2931, %v3137
        %v3238 = vadd.f32 %v2932, %v3142
        %v3239 = vadd.f32 %v2933, %v3145
        %v3240 = vadd.f32 %v2934, %v3150
        %v3241 = vadd.f32 %v2935, %v3153
        %v3242 = vadd.f32 %v2936, %v3158
        %v3243 = vadd.f32 %v2937, %v3161
        %v3244 = vadd.f32 %v2938, %v3166
        %v3245 = vadd.f32 %v2939, %v3169
        %v3246 = vadd.f32 %v2940, %v3174
        %v3247 = vadd.f32 %v2941, %v3177
        %v3248 = vadd.f32 %v2942, %v3182
        %v3249 = vadd.f32 %v2943, %v3185
        %v3250 = vadd.f32 %v2944, %v3190
        %v3251 = vadd.f32 %v2945, %v3193
        %v3252 = vadd.f32 %v2946, %v3198
        %v3253 = vadd.f32 %v2947, %v3201
        %v3254 = vadd.f32 %v2948, %v3206
        %v3255 = vadd.f32 %v2949, %v3209
        %v3256 = vadd.f32 %v2950, %v3214
        %v3257 = vadd.f32 %v2951, %v3217
        %v3258 = vadd.f32 %v2952, %v3222
        %v3259 = vadd.f32 %v2953, %v3225
        %v3260 = vld [vmem:[%s2954 + $0x1] sm:$0xff]
        %v3261 = vld [vmem:[%s2954 + $0x9] sm:$0xff]
        %v3262 = vld [vmem:[%s2954 + $0x19] sm:$0xff]
        %v3263 = vld [vmem:[%s2954 + $0x21] sm:$0xff]
        %v3264 = vld [vmem:[%s2954 + $0x31] sm:$0xff]
        %v3265 = vld [vmem:[%s2954 + $0x39] sm:$0xff]
        %v3266 = vld [vmem:[%s2954 + $0x49] sm:$0xff]
        %v3267 = vld [vmem:[%s2954 + $0x51] sm:$0xff]
        %v3268 = vld [vmem:[%s2954 + $0x61] sm:$0xff]
        %v3269 = vld [vmem:[%s2954 + $0x69] sm:$0xff]
        %v3270 = vld [vmem:[%s2954 + $0x79] sm:$0xff]
        %v3271 = vld [vmem:[%s2954 + $0x81] sm:$0xff]
        %v3272 = vld [vmem:[%s2954 + $0x91] sm:$0xff]
        %v3273 = vld [vmem:[%s2954 + $0x99] sm:$0xff]
        %v3274 = vld [vmem:[%s2954 + $0xa9] sm:$0xff]
        %v3275 = vld [vmem:[%s2954 + $0xb1] sm:$0xff]
        %v3276 = vld [vmem:[%s2954 + $0xc1] sm:$0xff]
        %v3277 = vld [vmem:[%s2954 + $0xc9] sm:$0xff]
        %v3278 = vld [vmem:[%s2954 + $0xd9] sm:$0xff]
        %v3279 = vld [vmem:[%s2954 + $0xe1] sm:$0xff]
        %v3280 = vld [vmem:[%s2954 + $0xf1] sm:$0xff]
        %v3281 = vld [vmem:[%s2954 + $0xf9] sm:$0xff]
        %v3282 = vld [vmem:[%s2954 + $0x109] sm:$0xff]
        %v3283 = vld [vmem:[%s2954 + $0x111] sm:$0xff]
        %v3284 = vld [vmem:[%s2954 + $0x121] sm:$0xff]
        %v3285 = vld [vmem:[%s2954 + $0x129] sm:$0xff]
        %v3286 = vld [vmem:[%s2954 + $0x139] sm:$0xff]
        %v3287 = vld [vmem:[%s2954 + $0x141] sm:$0xff]
        %v3288 = vld [vmem:[%s2954 + $0x151] sm:$0xff]
        %v3289 = vld [vmem:[%s2954 + $0x159] sm:$0xff]
        %v3290 = vld [vmem:[%s2954 + $0x169] sm:$0xff]
        %v3291 = vld [vmem:[%s2954 + $0x171] sm:$0xff]
        %v3292 = vpack.c.bf16 %v3261, %v3260
        %v3293 = vpack.c.bf16 %v3263, %v3262
        %v3294 = vpack.c.bf16 %v3265, %v3264
        %v3295 = vpack.c.bf16 %v3267, %v3266
        %v3296 = vpack.c.bf16 %v3269, %v3268
        %v3297 = vpack.c.bf16 %v3271, %v3270
        %v3298 = vpack.c.bf16 %v3273, %v3272
        %v3299 = vpack.c.bf16 %v3275, %v3274
        %v3300 = vpack.c.bf16 %v3277, %v3276
        %v3301 = vpack.c.bf16 %v3279, %v3278
        %v3302 = vpack.c.bf16 %v3281, %v3280
        %v3303 = vpack.c.bf16 %v3283, %v3282
        %v3304 = vpack.c.bf16 %v3285, %v3284
        %v3305 = vpack.c.bf16 %v3287, %v3286
        %v3306 = vpack.c.bf16 %v3289, %v3288
        %v3307 = vpack.c.bf16 %v3291, %v3290
        %s3308 = scalar_lea.vmem %s4, 84
        %v3309 = vld [vmem:[%s3308] sm:$0xf]
        %v3310 = vld [vmem:[%s3308 + $0x4] sm:$0xf]
        %v3311 = vld [vmem:[%s3308 + $0x8] sm:$0xf]
        %v3315 = vunpack.c.l.b16 %v3309
        %v3316 = vunpack.c.l.b16 %v3310
        %v3317 = vunpack.c.l.b16 %v3311
        %v3318 = vpack.c.b16 %v3316, %v3315
        %v3319 = vpack.c.b16 %v3317, %v3317
        %v3322 = vsel %vm379, %v3292, 0
        %v3325 = vsel %vm379, %v3293, 0
        %v3328 = vsel %vm379, %v3294, 0
        %v3331 = vsel %vm379, %v3295, 0
        %v3334 = vsel %vm379, %v3296, 0
        %v3337 = vsel %vm379, %v3297, 0
        %v3340 = vsel %vm379, %v3298, 0
        %v3343 = vsel %vm379, %v3299, 0
        %v3346 = vsel %vm379, %v3300, 0
        %v3349 = vsel %vm379, %v3301, 0
        %v3352 = vsel %vm379, %v3302, 0
        %v3355 = vsel %vm379, %v3303, 0
        %v3358 = vsel %vm379, %v3304, 0
        %v3361 = vsel %vm379, %v3305, 0
        %v3364 = vsel %vm379, %v3306, 0
        %v3367 = vsel %vm379, %v3307, 0
        %v3370 = vsel %vm1348, %v3319, 0
        %3372 = vmatprep.subr.bf16.mxu0 0
        %3373 = vmatpush1.bf16.msra.mxu0 0
        %3374 = vmatprep.subr.bf16.mxu0 0
        %3375 = vmatpush1.bf16.msra.mxu0 0
        %3376 = vmatprep.subr.bf16.mxu0 0
        %3377 = vmatpush1.bf16.msra.mxu0 0
        %3378 = vmatprep.subr.bf16.mxu0 0
        %3379 = vmatpush1.bf16.msra.mxu0 0
        %3380 = vmatprep.subr.bf16.mxu0 0
        %3381 = vmatpush1.bf16.msra.mxu0 0
        %3382 = vmatprep.subr.bf16.mxu0 0
        %3383 = vmatpush1.bf16.msra.mxu0 0
        %3384 = vmatprep.subr.bf16.mxu0 0
        %3385 = vmatpush1.bf16.msra.mxu0 %v3370
        %3386 = vmatprep.subr.bf16.mxu0 0
        %3387 = vmatpush1.bf16.msra.mxu0 %v3318
        %3388 = vmatprep.subr.bf16.mxu0 0
        %3389 = vmatpush2.bf16.msra.mxu0 0
        %3390 = vmatprep.subr.bf16.mxu0 0
        %3391 = vmatpush2.bf16.msra.mxu0 0
        %3392 = vmatprep.subr.bf16.mxu0 0
        %3393 = vmatpush2.bf16.msra.mxu0 0
        %3394 = vmatprep.subr.bf16.mxu0 0
        %3395 = vmatpush2.bf16.msra.mxu0 0
        %3396 = vmatprep.subr.bf16.mxu0 0
        %3397 = vmatpush2.bf16.msra.mxu0 0
        %3398 = vmatprep.subr.bf16.mxu0 0
        %3399 = vmatpush2.bf16.msra.mxu0 0
        %3400 = vmatprep.subr.bf16.mxu0 0
        %3401 = vmatpush2.bf16.msra.mxu0 0
        %3402 = vmatprep.subr.bf16.mxu0 0
        %3403 = vmatpush2.bf16.msra.mxu0 0
        %3404 = vmatprep.mubr.bf16.mxu0 0
        %3405 = vmatmul.mubr.bf16.gmra.mxu0 %v3322
        %v3406 = vpop.f32.mrf.mxu0
        %v3407 = vadd.f32 0.0, %v3406
        %v3408 = vpop.f32.mrf.mxu0
        %v3409 = vpop.f32.mrf.mxu0
        %v3410 = vadd.f32 0.0, %v3409
        %v3411 = vpop.f32.mrf.mxu0
        %3412 = vmatprep.mubr.bf16.mxu0 0
        %3413 = vmatmul.mubr.bf16.gmra.mxu0 %v3325
        %v3414 = vpop.f32.mrf.mxu0
        %v3415 = vadd.f32 0.0, %v3414
        %v3416 = vpop.f32.mrf.mxu0
        %v3417 = vpop.f32.mrf.mxu0
        %v3418 = vadd.f32 0.0, %v3417
        %v3419 = vpop.f32.mrf.mxu0
        %3420 = vmatprep.mubr.bf16.mxu0 0
        %3421 = vmatmul.mubr.bf16.gmra.mxu0 %v3328
        %v3422 = vpop.f32.mrf.mxu0
        %v3423 = vadd.f32 0.0, %v3422
        %v3424 = vpop.f32.mrf.mxu0
        %v3425 = vpop.f32.mrf.mxu0
        %v3426 = vadd.f32 0.0, %v3425
        %v3427 = vpop.f32.mrf.mxu0
        %3428 = vmatprep.mubr.bf16.mxu0 0
        %3429 = vmatmul.mubr.bf16.gmra.mxu0 %v3331
        %v3430 = vpop.f32.mrf.mxu0
        %v3431 = vadd.f32 0.0, %v3430
        %v3432 = vpop.f32.mrf.mxu0
        %v3433 = vpop.f32.mrf.mxu0
        %v3434 = vadd.f32 0.0, %v3433
        %v3435 = vpop.f32.mrf.mxu0
        %3436 = vmatprep.mubr.bf16.mxu0 0
        %3437 = vmatmul.mubr.bf16.gmra.mxu0 %v3334
        %v3438 = vpop.f32.mrf.mxu0
        %v3439 = vadd.f32 0.0, %v3438
        %v3440 = vpop.f32.mrf.mxu0
        %v3441 = vpop.f32.mrf.mxu0
        %v3442 = vadd.f32 0.0, %v3441
        %v3443 = vpop.f32.mrf.mxu0
        %3444 = vmatprep.mubr.bf16.mxu0 0
        %3445 = vmatmul.mubr.bf16.gmra.mxu0 %v3337
        %v3446 = vpop.f32.mrf.mxu0
        %v3447 = vadd.f32 0.0, %v3446
        %v3448 = vpop.f32.mrf.mxu0
        %v3449 = vpop.f32.mrf.mxu0
        %v3450 = vadd.f32 0.0, %v3449
        %v3451 = vpop.f32.mrf.mxu0
        %3452 = vmatprep.mubr.bf16.mxu0 0
        %3453 = vmatmul.mubr.bf16.gmra.mxu0 %v3340
        %v3454 = vpop.f32.mrf.mxu0
        %v3455 = vadd.f32 0.0, %v3454
        %v3456 = vpop.f32.mrf.mxu0
        %v3457 = vpop.f32.mrf.mxu0
        %v3458 = vadd.f32 0.0, %v3457
        %v3459 = vpop.f32.mrf.mxu0
        %3460 = vmatprep.mubr.bf16.mxu0 0
        %3461 = vmatmul.mubr.bf16.gmra.mxu0 %v3343
        %v3462 = vpop.f32.mrf.mxu0
        %v3463 = vadd.f32 0.0, %v3462
        %v3464 = vpop.f32.mrf.mxu0
        %v3465 = vpop.f32.mrf.mxu0
        %v3466 = vadd.f32 0.0, %v3465
        %v3467 = vpop.f32.mrf.mxu0
        %3468 = vmatprep.mubr.bf16.mxu0 0
        %3469 = vmatmul.mubr.bf16.gmra.mxu0 %v3346
        %v3470 = vpop.f32.mrf.mxu0
        %v3471 = vadd.f32 0.0, %v3470
        %v3472 = vpop.f32.mrf.mxu0
        %v3473 = vpop.f32.mrf.mxu0
        %v3474 = vadd.f32 0.0, %v3473
        %v3475 = vpop.f32.mrf.mxu0
        %3476 = vmatprep.mubr.bf16.mxu0 0
        %3477 = vmatmul.mubr.bf16.gmra.mxu0 %v3349
        %v3478 = vpop.f32.mrf.mxu0
        %v3479 = vadd.f32 0.0, %v3478
        %v3480 = vpop.f32.mrf.mxu0
        %v3481 = vpop.f32.mrf.mxu0
        %v3482 = vadd.f32 0.0, %v3481
        %v3483 = vpop.f32.mrf.mxu0
        %3484 = vmatprep.mubr.bf16.mxu0 0
        %3485 = vmatmul.mubr.bf16.gmra.mxu0 %v3352
        %v3486 = vpop.f32.mrf.mxu0
        %v3487 = vadd.f32 0.0, %v3486
        %v3488 = vpop.f32.mrf.mxu0
        %v3489 = vpop.f32.mrf.mxu0
        %v3490 = vadd.f32 0.0, %v3489
        %v3491 = vpop.f32.mrf.mxu0
        %3492 = vmatprep.mubr.bf16.mxu0 0
        %3493 = vmatmul.mubr.bf16.gmra.mxu0 %v3355
        %v3494 = vpop.f32.mrf.mxu0
        %v3495 = vadd.f32 0.0, %v3494
        %v3496 = vpop.f32.mrf.mxu0
        %v3497 = vpop.f32.mrf.mxu0
        %v3498 = vadd.f32 0.0, %v3497
        %v3499 = vpop.f32.mrf.mxu0
        %3500 = vmatprep.mubr.bf16.mxu0 0
        %3501 = vmatmul.mubr.bf16.gmra.mxu0 %v3358
        %v3502 = vpop.f32.mrf.mxu0
        %v3503 = vadd.f32 0.0, %v3502
        %v3504 = vpop.f32.mrf.mxu0
        %v3505 = vpop.f32.mrf.mxu0
        %v3506 = vadd.f32 0.0, %v3505
        %v3507 = vpop.f32.mrf.mxu0
        %3508 = vmatprep.mubr.bf16.mxu0 0
        %3509 = vmatmul.mubr.bf16.gmra.mxu0 %v3361
        %v3510 = vpop.f32.mrf.mxu0
        %v3511 = vadd.f32 0.0, %v3510
        %v3512 = vpop.f32.mrf.mxu0
        %v3513 = vpop.f32.mrf.mxu0
        %v3514 = vadd.f32 0.0, %v3513
        %v3515 = vpop.f32.mrf.mxu0
        %3516 = vmatprep.mubr.bf16.mxu0 0
        %3517 = vmatmul.mubr.bf16.gmra.mxu0 %v3364
        %v3518 = vpop.f32.mrf.mxu0
        %v3519 = vadd.f32 0.0, %v3518
        %v3520 = vpop.f32.mrf.mxu0
        %v3521 = vpop.f32.mrf.mxu0
        %v3522 = vadd.f32 0.0, %v3521
        %v3523 = vpop.f32.mrf.mxu0
        %3524 = vmatprep.mubr.bf16.mxu0 0
        %3525 = vmatmul.mubr.bf16.gmra.mxu0 %v3367
        %v3526 = vpop.f32.mrf.mxu0
        %v3527 = vadd.f32 0.0, %v3526
        %v3528 = vpop.f32.mrf.mxu0
        %v3529 = vpop.f32.mrf.mxu0
        %v3530 = vadd.f32 0.0, %v3529
        %v3531 = vpop.f32.mrf.mxu0
        %3532 = vdwg.mxu0
        %v3533 = vadd.f32 %v3228, %v3407
        %v3534 = vadd.f32 %v3229, %v3410
        %v3535 = vadd.f32 %v3230, %v3415
        %v3536 = vadd.f32 %v3231, %v3418
        %v3537 = vadd.f32 %v3232, %v3423
        %v3538 = vadd.f32 %v3233, %v3426
        %v3539 = vadd.f32 %v3234, %v3431
        %v3540 = vadd.f32 %v3235, %v3434
        %v3541 = vadd.f32 %v3236, %v3439
        %v3542 = vadd.f32 %v3237, %v3442
        %v3543 = vadd.f32 %v3238, %v3447
        %v3544 = vadd.f32 %v3239, %v3450
        %v3545 = vadd.f32 %v3240, %v3455
        %v3546 = vadd.f32 %v3241, %v3458
        %v3547 = vadd.f32 %v3242, %v3463
        %v3548 = vadd.f32 %v3243, %v3466
        %v3549 = vadd.f32 %v3244, %v3471
        %v3550 = vadd.f32 %v3245, %v3474
        %v3551 = vadd.f32 %v3246, %v3479
        %v3552 = vadd.f32 %v3247, %v3482
        %v3553 = vadd.f32 %v3248, %v3487
        %v3554 = vadd.f32 %v3249, %v3490
        %v3555 = vadd.f32 %v3250, %v3495
        %v3556 = vadd.f32 %v3251, %v3498
        %v3557 = vadd.f32 %v3252, %v3503
        %v3558 = vadd.f32 %v3253, %v3506
        %v3559 = vadd.f32 %v3254, %v3511
        %v3560 = vadd.f32 %v3255, %v3514
        %v3561 = vadd.f32 %v3256, %v3519
        %v3562 = vadd.f32 %v3257, %v3522
        %v3563 = vadd.f32 %v3258, %v3527
        %v3564 = vadd.f32 %v3259, %v3530
        %v3565 = vld [vmem:[%s2954 + $0x2] sm:$0xff]
        %v3566 = vld [vmem:[%s2954 + $0xa] sm:$0xff]
        %v3567 = vld [vmem:[%s2954 + $0x1a] sm:$0xff]
        %v3568 = vld [vmem:[%s2954 + $0x22] sm:$0xff]
        %v3569 = vld [vmem:[%s2954 + $0x32] sm:$0xff]
        %v3570 = vld [vmem:[%s2954 + $0x3a] sm:$0xff]
        %v3571 = vld [vmem:[%s2954 + $0x4a] sm:$0xff]
        %v3572 = vld [vmem:[%s2954 + $0x52] sm:$0xff]
        %v3573 = vld [vmem:[%s2954 + $0x62] sm:$0xff]
        %v3574 = vld [vmem:[%s2954 + $0x6a] sm:$0xff]
        %v3575 = vld [vmem:[%s2954 + $0x7a] sm:$0xff]
        %v3576 = vld [vmem:[%s2954 + $0x82] sm:$0xff]
        %v3577 = vld [vmem:[%s2954 + $0x92] sm:$0xff]
        %v3578 = vld [vmem:[%s2954 + $0x9a] sm:$0xff]
        %v3579 = vld [vmem:[%s2954 + $0xaa] sm:$0xff]
        %v3580 = vld [vmem:[%s2954 + $0xb2] sm:$0xff]
        %v3581 = vld [vmem:[%s2954 + $0xc2] sm:$0xff]
        %v3582 = vld [vmem:[%s2954 + $0xca] sm:$0xff]
        %v3583 = vld [vmem:[%s2954 + $0xda] sm:$0xff]
        %v3584 = vld [vmem:[%s2954 + $0xe2] sm:$0xff]
        %v3585 = vld [vmem:[%s2954 + $0xf2] sm:$0xff]
        %v3586 = vld [vmem:[%s2954 + $0xfa] sm:$0xff]
        %v3587 = vld [vmem:[%s2954 + $0x10a] sm:$0xff]
        %v3588 = vld [vmem:[%s2954 + $0x112] sm:$0xff]
        %v3589 = vld [vmem:[%s2954 + $0x122] sm:$0xff]
        %v3590 = vld [vmem:[%s2954 + $0x12a] sm:$0xff]
        %v3591 = vld [vmem:[%s2954 + $0x13a] sm:$0xff]
        %v3592 = vld [vmem:[%s2954 + $0x142] sm:$0xff]
        %v3593 = vld [vmem:[%s2954 + $0x152] sm:$0xff]
        %v3594 = vld [vmem:[%s2954 + $0x15a] sm:$0xff]
        %v3595 = vld [vmem:[%s2954 + $0x16a] sm:$0xff]
        %v3596 = vld [vmem:[%s2954 + $0x172] sm:$0xff]
        %v3597 = vpack.c.bf16 %v3566, %v3565
        %v3598 = vpack.c.bf16 %v3568, %v3567
        %v3599 = vpack.c.bf16 %v3570, %v3569
        %v3600 = vpack.c.bf16 %v3572, %v3571
        %v3601 = vpack.c.bf16 %v3574, %v3573
        %v3602 = vpack.c.bf16 %v3576, %v3575
        %v3603 = vpack.c.bf16 %v3578, %v3577
        %v3604 = vpack.c.bf16 %v3580, %v3579
        %v3605 = vpack.c.bf16 %v3582, %v3581
        %v3606 = vpack.c.bf16 %v3584, %v3583
        %v3607 = vpack.c.bf16 %v3586, %v3585
        %v3608 = vpack.c.bf16 %v3588, %v3587
        %v3609 = vpack.c.bf16 %v3590, %v3589
        %v3610 = vpack.c.bf16 %v3592, %v3591
        %v3611 = vpack.c.bf16 %v3594, %v3593
        %v3612 = vpack.c.bf16 %v3596, %v3595
        %s3613 = scalar_lea.vmem %s4, 96
        %v3614 = vld [vmem:[%s3613] sm:$0xf]
        %v3615 = vld [vmem:[%s3613 + $0x4] sm:$0xf]
        %v3616 = vld [vmem:[%s3613 + $0x8] sm:$0xf]
        %v3620 = vunpack.c.l.b16 %v3614
        %v3621 = vunpack.c.l.b16 %v3615
        %v3622 = vunpack.c.l.b16 %v3616
        %v3623 = vpack.c.b16 %v3621, %v3620
        %v3624 = vpack.c.b16 %v3622, %v3622
        %v3627 = vsel %vm379, %v3597, 0
        %v3630 = vsel %vm379, %v3598, 0
        %v3633 = vsel %vm379, %v3599, 0
        %v3636 = vsel %vm379, %v3600, 0
        %v3639 = vsel %vm379, %v3601, 0
        %v3642 = vsel %vm379, %v3602, 0
        %v3645 = vsel %vm379, %v3603, 0
        %v3648 = vsel %vm379, %v3604, 0
        %v3651 = vsel %vm379, %v3605, 0
        %v3654 = vsel %vm379, %v3606, 0
        %v3657 = vsel %vm379, %v3607, 0
        %v3660 = vsel %vm379, %v3608, 0
        %v3663 = vsel %vm379, %v3609, 0
        %v3666 = vsel %vm379, %v3610, 0
        %v3669 = vsel %vm379, %v3611, 0
        %v3672 = vsel %vm379, %v3612, 0
        %v3675 = vsel %vm1348, %v3624, 0
        %3677 = vmatprep.subr.bf16.mxu0 0
        %3678 = vmatpush1.bf16.msra.mxu0 0
        %3679 = vmatprep.subr.bf16.mxu0 0
        %3680 = vmatpush1.bf16.msra.mxu0 0
        %3681 = vmatprep.subr.bf16.mxu0 0
        %3682 = vmatpush1.bf16.msra.mxu0 0
        %3683 = vmatprep.subr.bf16.mxu0 0
        %3684 = vmatpush1.bf16.msra.mxu0 0
        %3685 = vmatprep.subr.bf16.mxu0 0
        %3686 = vmatpush1.bf16.msra.mxu0 0
        %3687 = vmatprep.subr.bf16.mxu0 0
        %3688 = vmatpush1.bf16.msra.mxu0 0
        %3689 = vmatprep.subr.bf16.mxu0 0
        %3690 = vmatpush1.bf16.msra.mxu0 %v3675
        %3691 = vmatprep.subr.bf16.mxu0 0
        %3692 = vmatpush1.bf16.msra.mxu0 %v3623
        %3693 = vmatprep.subr.bf16.mxu0 0
        %3694 = vmatpush2.bf16.msra.mxu0 0
        %3695 = vmatprep.subr.bf16.mxu0 0
        %3696 = vmatpush2.bf16.msra.mxu0 0
        %3697 = vmatprep.subr.bf16.mxu0 0
        %3698 = vmatpush2.bf16.msra.mxu0 0
        %3699 = vmatprep.subr.bf16.mxu0 0
        %3700 = vmatpush2.bf16.msra.mxu0 0
        %3701 = vmatprep.subr.bf16.mxu0 0
        %3702 = vmatpush2.bf16.msra.mxu0 0
        %3703 = vmatprep.subr.bf16.mxu0 0
        %3704 = vmatpush2.bf16.msra.mxu0 0
        %3705 = vmatprep.subr.bf16.mxu0 0
        %3706 = vmatpush2.bf16.msra.mxu0 0
        %3707 = vmatprep.subr.bf16.mxu0 0
        %3708 = vmatpush2.bf16.msra.mxu0 0
        %3709 = vmatprep.mubr.bf16.mxu0 0
        %3710 = vmatmul.mubr.bf16.gmra.mxu0 %v3627
        %v3711 = vpop.f32.mrf.mxu0
        %v3712 = vadd.f32 0.0, %v3711
        %v3713 = vpop.f32.mrf.mxu0
        %v3714 = vpop.f32.mrf.mxu0
        %v3715 = vadd.f32 0.0, %v3714
        %v3716 = vpop.f32.mrf.mxu0
        %3717 = vmatprep.mubr.bf16.mxu0 0
        %3718 = vmatmul.mubr.bf16.gmra.mxu0 %v3630
        %v3719 = vpop.f32.mrf.mxu0
        %v3720 = vadd.f32 0.0, %v3719
        %v3721 = vpop.f32.mrf.mxu0
        %v3722 = vpop.f32.mrf.mxu0
        %v3723 = vadd.f32 0.0, %v3722
        %v3724 = vpop.f32.mrf.mxu0
        %3725 = vmatprep.mubr.bf16.mxu0 0
        %3726 = vmatmul.mubr.bf16.gmra.mxu0 %v3633
        %v3727 = vpop.f32.mrf.mxu0
        %v3728 = vadd.f32 0.0, %v3727
        %v3729 = vpop.f32.mrf.mxu0
        %v3730 = vpop.f32.mrf.mxu0
        %v3731 = vadd.f32 0.0, %v3730
        %v3732 = vpop.f32.mrf.mxu0
        %3733 = vmatprep.mubr.bf16.mxu0 0
        %3734 = vmatmul.mubr.bf16.gmra.mxu0 %v3636
        %v3735 = vpop.f32.mrf.mxu0
        %v3736 = vadd.f32 0.0, %v3735
        %v3737 = vpop.f32.mrf.mxu0
        %v3738 = vpop.f32.mrf.mxu0
        %v3739 = vadd.f32 0.0, %v3738
        %v3740 = vpop.f32.mrf.mxu0
        %3741 = vmatprep.mubr.bf16.mxu0 0
        %3742 = vmatmul.mubr.bf16.gmra.mxu0 %v3639
        %v3743 = vpop.f32.mrf.mxu0
        %v3744 = vadd.f32 0.0, %v3743
        %v3745 = vpop.f32.mrf.mxu0
        %v3746 = vpop.f32.mrf.mxu0
        %v3747 = vadd.f32 0.0, %v3746
        %v3748 = vpop.f32.mrf.mxu0
        %3749 = vmatprep.mubr.bf16.mxu0 0
        %3750 = vmatmul.mubr.bf16.gmra.mxu0 %v3642
        %v3751 = vpop.f32.mrf.mxu0
        %v3752 = vadd.f32 0.0, %v3751
        %v3753 = vpop.f32.mrf.mxu0
        %v3754 = vpop.f32.mrf.mxu0
        %v3755 = vadd.f32 0.0, %v3754
        %v3756 = vpop.f32.mrf.mxu0
        %3757 = vmatprep.mubr.bf16.mxu0 0
        %3758 = vmatmul.mubr.bf16.gmra.mxu0 %v3645
        %v3759 = vpop.f32.mrf.mxu0
        %v3760 = vadd.f32 0.0, %v3759
        %v3761 = vpop.f32.mrf.mxu0
        %v3762 = vpop.f32.mrf.mxu0
        %v3763 = vadd.f32 0.0, %v3762
        %v3764 = vpop.f32.mrf.mxu0
        %3765 = vmatprep.mubr.bf16.mxu0 0
        %3766 = vmatmul.mubr.bf16.gmra.mxu0 %v3648
        %v3767 = vpop.f32.mrf.mxu0
        %v3768 = vadd.f32 0.0, %v3767
        %v3769 = vpop.f32.mrf.mxu0
        %v3770 = vpop.f32.mrf.mxu0
        %v3771 = vadd.f32 0.0, %v3770
        %v3772 = vpop.f32.mrf.mxu0
        %3773 = vmatprep.mubr.bf16.mxu0 0
        %3774 = vmatmul.mubr.bf16.gmra.mxu0 %v3651
        %v3775 = vpop.f32.mrf.mxu0
        %v3776 = vadd.f32 0.0, %v3775
        %v3777 = vpop.f32.mrf.mxu0
        %v3778 = vpop.f32.mrf.mxu0
        %v3779 = vadd.f32 0.0, %v3778
        %v3780 = vpop.f32.mrf.mxu0
        %3781 = vmatprep.mubr.bf16.mxu0 0
        %3782 = vmatmul.mubr.bf16.gmra.mxu0 %v3654
        %v3783 = vpop.f32.mrf.mxu0
        %v3784 = vadd.f32 0.0, %v3783
        %v3785 = vpop.f32.mrf.mxu0
        %v3786 = vpop.f32.mrf.mxu0
        %v3787 = vadd.f32 0.0, %v3786
        %v3788 = vpop.f32.mrf.mxu0
        %3789 = vmatprep.mubr.bf16.mxu0 0
        %3790 = vmatmul.mubr.bf16.gmra.mxu0 %v3657
        %v3791 = vpop.f32.mrf.mxu0
        %v3792 = vadd.f32 0.0, %v3791
        %v3793 = vpop.f32.mrf.mxu0
        %v3794 = vpop.f32.mrf.mxu0
        %v3795 = vadd.f32 0.0, %v3794
        %v3796 = vpop.f32.mrf.mxu0
        %3797 = vmatprep.mubr.bf16.mxu0 0
        %3798 = vmatmul.mubr.bf16.gmra.mxu0 %v3660
        %v3799 = vpop.f32.mrf.mxu0
        %v3800 = vadd.f32 0.0, %v3799
        %v3801 = vpop.f32.mrf.mxu0
        %v3802 = vpop.f32.mrf.mxu0
        %v3803 = vadd.f32 0.0, %v3802
        %v3804 = vpop.f32.mrf.mxu0
        %3805 = vmatprep.mubr.bf16.mxu0 0
        %3806 = vmatmul.mubr.bf16.gmra.mxu0 %v3663
        %v3807 = vpop.f32.mrf.mxu0
        %v3808 = vadd.f32 0.0, %v3807
        %v3809 = vpop.f32.mrf.mxu0
        %v3810 = vpop.f32.mrf.mxu0
        %v3811 = vadd.f32 0.0, %v3810
        %v3812 = vpop.f32.mrf.mxu0
        %3813 = vmatprep.mubr.bf16.mxu0 0
        %3814 = vmatmul.mubr.bf16.gmra.mxu0 %v3666
        %v3815 = vpop.f32.mrf.mxu0
        %v3816 = vadd.f32 0.0, %v3815
        %v3817 = vpop.f32.mrf.mxu0
        %v3818 = vpop.f32.mrf.mxu0
        %v3819 = vadd.f32 0.0, %v3818
        %v3820 = vpop.f32.mrf.mxu0
        %3821 = vmatprep.mubr.bf16.mxu0 0
        %3822 = vmatmul.mubr.bf16.gmra.mxu0 %v3669
        %v3823 = vpop.f32.mrf.mxu0
        %v3824 = vadd.f32 0.0, %v3823
        %v3825 = vpop.f32.mrf.mxu0
        %v3826 = vpop.f32.mrf.mxu0
        %v3827 = vadd.f32 0.0, %v3826
        %v3828 = vpop.f32.mrf.mxu0
        %3829 = vmatprep.mubr.bf16.mxu0 0
        %3830 = vmatmul.mubr.bf16.gmra.mxu0 %v3672
        %v3831 = vpop.f32.mrf.mxu0
        %v3832 = vadd.f32 0.0, %v3831
        %v3833 = vpop.f32.mrf.mxu0
        %v3834 = vpop.f32.mrf.mxu0
        %v3835 = vadd.f32 0.0, %v3834
        %v3836 = vpop.f32.mrf.mxu0
        %3837 = vdwg.mxu0
        %v3838 = vadd.f32 %v3533, %v3712
        %v3839 = vadd.f32 %v3534, %v3715
        %v3840 = vadd.f32 %v3535, %v3720
        %v3841 = vadd.f32 %v3536, %v3723
        %v3842 = vadd.f32 %v3537, %v3728
        %v3843 = vadd.f32 %v3538, %v3731
        %v3844 = vadd.f32 %v3539, %v3736
        %v3845 = vadd.f32 %v3540, %v3739
        %v3846 = vadd.f32 %v3541, %v3744
        %v3847 = vadd.f32 %v3542, %v3747
        %v3848 = vadd.f32 %v3543, %v3752
        %v3849 = vadd.f32 %v3544, %v3755
        %v3850 = vadd.f32 %v3545, %v3760
        %v3851 = vadd.f32 %v3546, %v3763
        %v3852 = vadd.f32 %v3547, %v3768
        %v3853 = vadd.f32 %v3548, %v3771
        %v3854 = vadd.f32 %v3549, %v3776
        %v3855 = vadd.f32 %v3550, %v3779
        %v3856 = vadd.f32 %v3551, %v3784
        %v3857 = vadd.f32 %v3552, %v3787
        %v3858 = vadd.f32 %v3553, %v3792
        %v3859 = vadd.f32 %v3554, %v3795
        %v3860 = vadd.f32 %v3555, %v3800
        %v3861 = vadd.f32 %v3556, %v3803
        %v3862 = vadd.f32 %v3557, %v3808
        %v3863 = vadd.f32 %v3558, %v3811
        %v3864 = vadd.f32 %v3559, %v3816
        %v3865 = vadd.f32 %v3560, %v3819
        %v3866 = vadd.f32 %v3561, %v3824
        %v3867 = vadd.f32 %v3562, %v3827
        %v3868 = vadd.f32 %v3563, %v3832
        %v3869 = vadd.f32 %v3564, %v3835
        %v3870 = vld [vmem:[%s5] sm:$0x1]
        %v3872 = vlaneseq
        %v3873 = vshrl.u32 %v3872, 7
        %v3874 = vsub.s32 0, %v3873
        %v3875 = vrot.slane %v3870, %v3874
        %v3877 = vadd.f32 %v3838, %v3875
        %v3878 = vadd.f32 %v3839, %v3875
        %v3879 = vadd.f32 %v3840, %v3875
        %v3880 = vadd.f32 %v3841, %v3875
        %v3881 = vadd.f32 %v3842, %v3875
        %v3882 = vadd.f32 %v3843, %v3875
        %v3883 = vadd.f32 %v3844, %v3875
        %v3884 = vadd.f32 %v3845, %v3875
        %v3885 = vadd.f32 %v3846, %v3875
        %v3886 = vadd.f32 %v3847, %v3875
        %v3887 = vadd.f32 %v3848, %v3875
        %v3888 = vadd.f32 %v3849, %v3875
        %v3889 = vadd.f32 %v3850, %v3875
        %v3890 = vadd.f32 %v3851, %v3875
        %v3891 = vadd.f32 %v3852, %v3875
        %v3892 = vadd.f32 %v3853, %v3875
        %v3893 = vadd.f32 %v3854, %v3875
        %v3894 = vadd.f32 %v3855, %v3875
        %v3895 = vadd.f32 %v3856, %v3875
        %v3896 = vadd.f32 %v3857, %v3875
        %v3897 = vadd.f32 %v3858, %v3875
        %v3898 = vadd.f32 %v3859, %v3875
        %v3899 = vadd.f32 %v3860, %v3875
        %v3900 = vadd.f32 %v3861, %v3875
        %v3901 = vadd.f32 %v3862, %v3875
        %v3902 = vadd.f32 %v3863, %v3875
        %v3903 = vadd.f32 %v3864, %v3875
        %v3904 = vadd.f32 %v3865, %v3875
        %v3905 = vadd.f32 %v3866, %v3875
        %v3906 = vadd.f32 %v3867, %v3875
        %v3907 = vadd.f32 %v3868, %v3875
        %v3908 = vadd.f32 %v3869, %v3875
        %3941 = vrot.lane.b32.xlu0 %v3877, 64
        %v3942 = vpop.permute.xlu0 %3941
        %3943 = vrot.lane.b32.xlu0 %v3878, 64
        %v3944 = vpop.permute.xlu0 %3943
        %3945 = vrot.lane.b32.xlu0 %v3879, 64
        %v3946 = vpop.permute.xlu0 %3945
        %3947 = vrot.lane.b32.xlu0 %v3880, 64
        %v3948 = vpop.permute.xlu0 %3947
        %3949 = vrot.lane.b32.xlu0 %v3881, 64
        %v3950 = vpop.permute.xlu0 %3949
        %3951 = vrot.lane.b32.xlu0 %v3882, 64
        %v3952 = vpop.permute.xlu0 %3951
        %3953 = vrot.lane.b32.xlu0 %v3883, 64
        %v3954 = vpop.permute.xlu0 %3953
        %3955 = vrot.lane.b32.xlu0 %v3884, 64
        %v3956 = vpop.permute.xlu0 %3955
        %3957 = vrot.lane.b32.xlu0 %v3885, 64
        %v3958 = vpop.permute.xlu0 %3957
        %3959 = vrot.lane.b32.xlu0 %v3886, 64
        %v3960 = vpop.permute.xlu0 %3959
        %3961 = vrot.lane.b32.xlu0 %v3887, 64
        %v3962 = vpop.permute.xlu0 %3961
        %3963 = vrot.lane.b32.xlu0 %v3888, 64
        %v3964 = vpop.permute.xlu0 %3963
        %3965 = vrot.lane.b32.xlu0 %v3889, 64
        %v3966 = vpop.permute.xlu0 %3965
        %3967 = vrot.lane.b32.xlu0 %v3890, 64
        %v3968 = vpop.permute.xlu0 %3967
        %3969 = vrot.lane.b32.xlu0 %v3891, 64
        %v3970 = vpop.permute.xlu0 %3969
        %3971 = vrot.lane.b32.xlu0 %v3892, 64
        %v3972 = vpop.permute.xlu0 %3971
        %3973 = vrot.lane.b32.xlu0 %v3893, 64
        %v3974 = vpop.permute.xlu0 %3973
        %3975 = vrot.lane.b32.xlu0 %v3894, 64
        %v3976 = vpop.permute.xlu0 %3975
        %3977 = vrot.lane.b32.xlu0 %v3895, 64
        %v3978 = vpop.permute.xlu0 %3977
        %3979 = vrot.lane.b32.xlu0 %v3896, 64
        %v3980 = vpop.permute.xlu0 %3979
        %3981 = vrot.lane.b32.xlu0 %v3897, 64
        %v3982 = vpop.permute.xlu0 %3981
        %3983 = vrot.lane.b32.xlu0 %v3898, 64
        %v3984 = vpop.permute.xlu0 %3983
        %3985 = vrot.lane.b32.xlu0 %v3899, 64
        %v3986 = vpop.permute.xlu0 %3985
        %3987 = vrot.lane.b32.xlu0 %v3900, 64
        %v3988 = vpop.permute.xlu0 %3987
        %3989 = vrot.lane.b32.xlu0 %v3901, 64
        %v3990 = vpop.permute.xlu0 %3989
        %3991 = vrot.lane.b32.xlu0 %v3902, 64
        %v3992 = vpop.permute.xlu0 %3991
        %3993 = vrot.lane.b32.xlu0 %v3903, 64
        %v3994 = vpop.permute.xlu0 %3993
        %3995 = vrot.lane.b32.xlu0 %v3904, 64
        %v3996 = vpop.permute.xlu0 %3995
        %3997 = vrot.lane.b32.xlu0 %v3905, 64
        %v3998 = vpop.permute.xlu0 %3997
        %3999 = vrot.lane.b32.xlu0 %v3906, 64
        %v4000 = vpop.permute.xlu0 %3999
        %4001 = vrot.lane.b32.xlu0 %v3907, 64
        %v4002 = vpop.permute.xlu0 %4001
        %4003 = vrot.lane.b32.xlu0 %v3908, 64
        %v4004 = vpop.permute.xlu0 %4003
        %s4037 = scalar_lea.vmem [#allocation3], 160
        %4038 = vst.msk [vmem:[%s4037 + $0x5] sm:$0xff] %vm425, %v3942
        %4039 = vst.msk [vmem:[%s4037 + $0xd] sm:$0xff] %vm425, %v3944
        %4040 = vst.msk [vmem:[%s4037 + $0x25] sm:$0xff] %vm425, %v3946
        %4041 = vst.msk [vmem:[%s4037 + $0x2d] sm:$0xff] %vm425, %v3948
        %4042 = vst.msk [vmem:[%s4037 + $0x45] sm:$0xff] %vm425, %v3950
        %4043 = vst.msk [vmem:[%s4037 + $0x4d] sm:$0xff] %vm425, %v3952
        %4044 = vst.msk [vmem:[%s4037 + $0x65] sm:$0xff] %vm425, %v3954
        %4045 = vst.msk [vmem:[%s4037 + $0x6d] sm:$0xff] %vm425, %v3956
        %4046 = vst.msk [vmem:[%s4037 + $0x85] sm:$0xff] %vm425, %v3958
        %4047 = vst.msk [vmem:[%s4037 + $0x8d] sm:$0xff] %vm425, %v3960
        %4048 = vst.msk [vmem:[%s4037 + $0xa5] sm:$0xff] %vm425, %v3962
        %4049 = vst.msk [vmem:[%s4037 + $0xad] sm:$0xff] %vm425, %v3964
        %4050 = vst.msk [vmem:[%s4037 + $0xc5] sm:$0xff] %vm425, %v3966
        %4051 = vst.msk [vmem:[%s4037 + $0xcd] sm:$0xff] %vm425, %v3968
        %4052 = vst.msk [vmem:[%s4037 + $0xe5] sm:$0xff] %vm425, %v3970
        %4053 = vst.msk [vmem:[%s4037 + $0xed] sm:$0xff] %vm425, %v3972
        %4054 = vst.msk [vmem:[%s4037 + $0x105] sm:$0xff] %vm425, %v3974
        %4055 = vst.msk [vmem:[%s4037 + $0x10d] sm:$0xff] %vm425, %v3976
        %4056 = vst.msk [vmem:[%s4037 + $0x125] sm:$0xff] %vm425, %v3978
        %4057 = vst.msk [vmem:[%s4037 + $0x12d] sm:$0xff] %vm425, %v3980
        %4058 = vst.msk [vmem:[%s4037 + $0x145] sm:$0xff] %vm425, %v3982
        %4059 = vst.msk [vmem:[%s4037 + $0x14d] sm:$0xff] %vm425, %v3984
        %4060 = vst.msk [vmem:[%s4037 + $0x165] sm:$0xff] %vm425, %v3986
        %4061 = vst.msk [vmem:[%s4037 + $0x16d] sm:$0xff] %vm425, %v3988
        %4062 = vst.msk [vmem:[%s4037 + $0x185] sm:$0xff] %vm425, %v3990
        %4063 = vst.msk [vmem:[%s4037 + $0x18d] sm:$0xff] %vm425, %v3992
        %4064 = vst.msk [vmem:[%s4037 + $0x1a5] sm:$0xff] %vm425, %v3994
        %4065 = vst.msk [vmem:[%s4037 + $0x1ad] sm:$0xff] %vm425, %v3996
        %4066 = vst.msk [vmem:[%s4037 + $0x1c5] sm:$0xff] %vm425, %v3998
        %4067 = vst.msk [vmem:[%s4037 + $0x1cd] sm:$0xff] %vm425, %v4000
        %4068 = vst.msk [vmem:[%s4037 + $0x1e5] sm:$0xff] %vm425, %v4002
        %4069 = vst.msk [vmem:[%s4037 + $0x1ed] sm:$0xff] %vm425, %v4004
        %v4070 = vld [vmem:[#allocation3 + $0x5] sm:$0xff]
        %v4071 = vld [vmem:[#allocation3 + $0xd] sm:$0xff]
        %v4072 = vld [vmem:[#allocation3 + $0x25] sm:$0xff]
        %v4073 = vld [vmem:[#allocation3 + $0x2d] sm:$0xff]
        %v4074 = vld [vmem:[#allocation3 + $0x45] sm:$0xff]
        %v4075 = vld [vmem:[#allocation3 + $0x4d] sm:$0xff]
        %v4076 = vld [vmem:[#allocation3 + $0x65] sm:$0xff]
        %v4077 = vld [vmem:[#allocation3 + $0x6d] sm:$0xff]
        %v4078 = vld [vmem:[#allocation3 + $0x85] sm:$0xff]
        %v4079 = vld [vmem:[#allocation3 + $0x8d] sm:$0xff]
        %v4080 = vld [vmem:[#allocation3 + $0xa5] sm:$0xff]
        %v4081 = vld [vmem:[#allocation3 + $0xad] sm:$0xff]
        %v4082 = vld [vmem:[#allocation3 + $0xc5] sm:$0xff]
        %v4083 = vld [vmem:[#allocation3 + $0xcd] sm:$0xff]
        %v4084 = vld [vmem:[#allocation3 + $0xe5] sm:$0xff]
        %v4085 = vld [vmem:[#allocation3 + $0xed] sm:$0xff]
        %v4086 = vld [vmem:[#allocation3 + $0x105] sm:$0xff]
        %v4087 = vld [vmem:[#allocation3 + $0x10d] sm:$0xff]
        %v4088 = vld [vmem:[#allocation3 + $0x125] sm:$0xff]
        %v4089 = vld [vmem:[#allocation3 + $0x12d] sm:$0xff]
        %v4090 = vld [vmem:[#allocation3 + $0x145] sm:$0xff]
        %v4091 = vld [vmem:[#allocation3 + $0x14d] sm:$0xff]
        %v4092 = vld [vmem:[#allocation3 + $0x165] sm:$0xff]
        %v4093 = vld [vmem:[#allocation3 + $0x16d] sm:$0xff]
        %v4094 = vld [vmem:[#allocation3 + $0x185] sm:$0xff]
        %v4095 = vld [vmem:[#allocation3 + $0x18d] sm:$0xff]
        %v4096 = vld [vmem:[#allocation3 + $0x1a5] sm:$0xff]
        %v4097 = vld [vmem:[#allocation3 + $0x1ad] sm:$0xff]
        %v4098 = vld [vmem:[#allocation3 + $0x1c5] sm:$0xff]
        %v4099 = vld [vmem:[#allocation3 + $0x1cd] sm:$0xff]
        %v4100 = vld [vmem:[#allocation3 + $0x1e5] sm:$0xff]
        %v4101 = vld [vmem:[#allocation3 + $0x1ed] sm:$0xff]
        %v4102 = vld [vmem:[%s6] sm:$0x1]
        %v4103 = vlaneseq
        %v4104 = vshrl.u32 %v4103, 7
        %v4105 = vsub.s32 0, %v4104
        %v4106 = vrot.slane %v4102, %v4105
        %v4107 = vmul.f32 %v4070, %v4106
        %v4108 = vmul.f32 %v4071, %v4106
        %v4109 = vmul.f32 %v4072, %v4106
        %v4110 = vmul.f32 %v4073, %v4106
        %v4111 = vmul.f32 %v4074, %v4106
        %v4112 = vmul.f32 %v4075, %v4106
        %v4113 = vmul.f32 %v4076, %v4106
        %v4114 = vmul.f32 %v4077, %v4106
        %v4115 = vmul.f32 %v4078, %v4106
        %v4116 = vmul.f32 %v4079, %v4106
        %v4117 = vmul.f32 %v4080, %v4106
        %v4118 = vmul.f32 %v4081, %v4106
        %v4119 = vmul.f32 %v4082, %v4106
        %v4120 = vmul.f32 %v4083, %v4106
        %v4121 = vmul.f32 %v4084, %v4106
        %v4122 = vmul.f32 %v4085, %v4106
        %v4123 = vmul.f32 %v4086, %v4106
        %v4124 = vmul.f32 %v4087, %v4106
        %v4125 = vmul.f32 %v4088, %v4106
        %v4126 = vmul.f32 %v4089, %v4106
        %v4127 = vmul.f32 %v4090, %v4106
        %v4128 = vmul.f32 %v4091, %v4106
        %v4129 = vmul.f32 %v4092, %v4106
        %v4130 = vmul.f32 %v4093, %v4106
        %v4131 = vmul.f32 %v4094, %v4106
        %v4132 = vmul.f32 %v4095, %v4106
        %v4133 = vmul.f32 %v4096, %v4106
        %v4134 = vmul.f32 %v4097, %v4106
        %v4135 = vmul.f32 %v4098, %v4106
        %v4136 = vmul.f32 %v4099, %v4106
        %v4137 = vmul.f32 %v4100, %v4106
        %v4138 = vmul.f32 %v4101, %v4106
        %v4139 = vadd.f32 %v4107, 0.0
        %v4140 = vadd.f32 %v4108, 0.0
        %v4141 = vadd.f32 %v4109, 0.0
        %v4142 = vadd.f32 %v4110, 0.0
        %v4143 = vadd.f32 %v4111, 0.0
        %v4144 = vadd.f32 %v4112, 0.0
        %v4145 = vadd.f32 %v4113, 0.0
        %v4146 = vadd.f32 %v4114, 0.0
        %v4147 = vadd.f32 %v4115, 0.0
        %v4148 = vadd.f32 %v4116, 0.0
        %v4149 = vadd.f32 %v4117, 0.0
        %v4150 = vadd.f32 %v4118, 0.0
        %v4151 = vadd.f32 %v4119, 0.0
        %v4152 = vadd.f32 %v4120, 0.0
        %v4153 = vadd.f32 %v4121, 0.0
        %v4154 = vadd.f32 %v4122, 0.0
        %v4155 = vadd.f32 %v4123, 0.0
        %v4156 = vadd.f32 %v4124, 0.0
        %v4157 = vadd.f32 %v4125, 0.0
        %v4158 = vadd.f32 %v4126, 0.0
        %v4159 = vadd.f32 %v4127, 0.0
        %v4160 = vadd.f32 %v4128, 0.0
        %v4161 = vadd.f32 %v4129, 0.0
        %v4162 = vadd.f32 %v4130, 0.0
        %v4163 = vadd.f32 %v4131, 0.0
        %v4164 = vadd.f32 %v4132, 0.0
        %v4165 = vadd.f32 %v4133, 0.0
        %v4166 = vadd.f32 %v4134, 0.0
        %v4167 = vadd.f32 %v4135, 0.0
        %v4168 = vadd.f32 %v4136, 0.0
        %v4169 = vadd.f32 %v4137, 0.0
        %v4170 = vadd.f32 %v4138, 0.0
        %s4171 = scalar_lea.vmem [#allocation3], 32
        %v4172 = vld [vmem:[%s4171 + $0x5] sm:$0xff]
        %v4173 = vld [vmem:[%s4171 + $0xd] sm:$0xff]
        %v4174 = vld [vmem:[%s4171 + $0x25] sm:$0xff]
        %v4175 = vld [vmem:[%s4171 + $0x2d] sm:$0xff]
        %v4176 = vld [vmem:[%s4171 + $0x45] sm:$0xff]
        %v4177 = vld [vmem:[%s4171 + $0x4d] sm:$0xff]
        %v4178 = vld [vmem:[%s4171 + $0x65] sm:$0xff]
        %v4179 = vld [vmem:[%s4171 + $0x6d] sm:$0xff]
        %v4180 = vld [vmem:[%s4171 + $0x85] sm:$0xff]
        %v4181 = vld [vmem:[%s4171 + $0x8d] sm:$0xff]
        %v4182 = vld [vmem:[%s4171 + $0xa5] sm:$0xff]
        %v4183 = vld [vmem:[%s4171 + $0xad] sm:$0xff]
        %v4184 = vld [vmem:[%s4171 + $0xc5] sm:$0xff]
        %v4185 = vld [vmem:[%s4171 + $0xcd] sm:$0xff]
        %v4186 = vld [vmem:[%s4171 + $0xe5] sm:$0xff]
        %v4187 = vld [vmem:[%s4171 + $0xed] sm:$0xff]
        %v4188 = vld [vmem:[%s4171 + $0x105] sm:$0xff]
        %v4189 = vld [vmem:[%s4171 + $0x10d] sm:$0xff]
        %v4190 = vld [vmem:[%s4171 + $0x125] sm:$0xff]
        %v4191 = vld [vmem:[%s4171 + $0x12d] sm:$0xff]
        %v4192 = vld [vmem:[%s4171 + $0x145] sm:$0xff]
        %v4193 = vld [vmem:[%s4171 + $0x14d] sm:$0xff]
        %v4194 = vld [vmem:[%s4171 + $0x165] sm:$0xff]
        %v4195 = vld [vmem:[%s4171 + $0x16d] sm:$0xff]
        %v4196 = vld [vmem:[%s4171 + $0x185] sm:$0xff]
        %v4197 = vld [vmem:[%s4171 + $0x18d] sm:$0xff]
        %v4198 = vld [vmem:[%s4171 + $0x1a5] sm:$0xff]
        %v4199 = vld [vmem:[%s4171 + $0x1ad] sm:$0xff]
        %v4200 = vld [vmem:[%s4171 + $0x1c5] sm:$0xff]
        %v4201 = vld [vmem:[%s4171 + $0x1cd] sm:$0xff]
        %v4202 = vld [vmem:[%s4171 + $0x1e5] sm:$0xff]
        %v4203 = vld [vmem:[%s4171 + $0x1ed] sm:$0xff]
        %v4204 = vld [vmem:[%s6 + $0x1] sm:$0x1]
        %v4205 = vlaneseq
        %v4206 = vshrl.u32 %v4205, 7
        %v4207 = vsub.s32 0, %v4206
        %v4208 = vrot.slane %v4204, %v4207
        %v4209 = vmul.f32 %v4172, %v4208
        %v4210 = vmul.f32 %v4173, %v4208
        %v4211 = vmul.f32 %v4174, %v4208
        %v4212 = vmul.f32 %v4175, %v4208
        %v4213 = vmul.f32 %v4176, %v4208
        %v4214 = vmul.f32 %v4177, %v4208
        %v4215 = vmul.f32 %v4178, %v4208
        %v4216 = vmul.f32 %v4179, %v4208
        %v4217 = vmul.f32 %v4180, %v4208
        %v4218 = vmul.f32 %v4181, %v4208
        %v4219 = vmul.f32 %v4182, %v4208
        %v4220 = vmul.f32 %v4183, %v4208
        %v4221 = vmul.f32 %v4184, %v4208
        %v4222 = vmul.f32 %v4185, %v4208
        %v4223 = vmul.f32 %v4186, %v4208
        %v4224 = vmul.f32 %v4187, %v4208
        %v4225 = vmul.f32 %v4188, %v4208
        %v4226 = vmul.f32 %v4189, %v4208
        %v4227 = vmul.f32 %v4190, %v4208
        %v4228 = vmul.f32 %v4191, %v4208
        %v4229 = vmul.f32 %v4192, %v4208
        %v4230 = vmul.f32 %v4193, %v4208
        %v4231 = vmul.f32 %v4194, %v4208
        %v4232 = vmul.f32 %v4195, %v4208
        %v4233 = vmul.f32 %v4196, %v4208
        %v4234 = vmul.f32 %v4197, %v4208
        %v4235 = vmul.f32 %v4198, %v4208
        %v4236 = vmul.f32 %v4199, %v4208
        %v4237 = vmul.f32 %v4200, %v4208
        %v4238 = vmul.f32 %v4201, %v4208
        %v4239 = vmul.f32 %v4202, %v4208
        %v4240 = vmul.f32 %v4203, %v4208
        %v4241 = vadd.f32 %v4139, %v4209
        %v4242 = vadd.f32 %v4140, %v4210
        %v4243 = vadd.f32 %v4141, %v4211
        %v4244 = vadd.f32 %v4142, %v4212
        %v4245 = vadd.f32 %v4143, %v4213
        %v4246 = vadd.f32 %v4144, %v4214
        %v4247 = vadd.f32 %v4145, %v4215
        %v4248 = vadd.f32 %v4146, %v4216
        %v4249 = vadd.f32 %v4147, %v4217
        %v4250 = vadd.f32 %v4148, %v4218
        %v4251 = vadd.f32 %v4149, %v4219
        %v4252 = vadd.f32 %v4150, %v4220
        %v4253 = vadd.f32 %v4151, %v4221
        %v4254 = vadd.f32 %v4152, %v4222
        %v4255 = vadd.f32 %v4153, %v4223
        %v4256 = vadd.f32 %v4154, %v4224
        %v4257 = vadd.f32 %v4155, %v4225
        %v4258 = vadd.f32 %v4156, %v4226
        %v4259 = vadd.f32 %v4157, %v4227
        %v4260 = vadd.f32 %v4158, %v4228
        %v4261 = vadd.f32 %v4159, %v4229
        %v4262 = vadd.f32 %v4160, %v4230
        %v4263 = vadd.f32 %v4161, %v4231
        %v4264 = vadd.f32 %v4162, %v4232
        %v4265 = vadd.f32 %v4163, %v4233
        %v4266 = vadd.f32 %v4164, %v4234
        %v4267 = vadd.f32 %v4165, %v4235
        %v4268 = vadd.f32 %v4166, %v4236
        %v4269 = vadd.f32 %v4167, %v4237
        %v4270 = vadd.f32 %v4168, %v4238
        %v4271 = vadd.f32 %v4169, %v4239
        %v4272 = vadd.f32 %v4170, %v4240
        %s4273 = scalar_lea.vmem [#allocation3], 64
        %v4274 = vld [vmem:[%s4273 + $0x5] sm:$0xff]
        %v4275 = vld [vmem:[%s4273 + $0xd] sm:$0xff]
        %v4276 = vld [vmem:[%s4273 + $0x25] sm:$0xff]
        %v4277 = vld [vmem:[%s4273 + $0x2d] sm:$0xff]
        %v4278 = vld [vmem:[%s4273 + $0x45] sm:$0xff]
        %v4279 = vld [vmem:[%s4273 + $0x4d] sm:$0xff]
        %v4280 = vld [vmem:[%s4273 + $0x65] sm:$0xff]
        %v4281 = vld [vmem:[%s4273 + $0x6d] sm:$0xff]
        %v4282 = vld [vmem:[%s4273 + $0x85] sm:$0xff]
        %v4283 = vld [vmem:[%s4273 + $0x8d] sm:$0xff]
        %v4284 = vld [vmem:[%s4273 + $0xa5] sm:$0xff]
        %v4285 = vld [vmem:[%s4273 + $0xad] sm:$0xff]
        %v4286 = vld [vmem:[%s4273 + $0xc5] sm:$0xff]
        %v4287 = vld [vmem:[%s4273 + $0xcd] sm:$0xff]
        %v4288 = vld [vmem:[%s4273 + $0xe5] sm:$0xff]
        %v4289 = vld [vmem:[%s4273 + $0xed] sm:$0xff]
        %v4290 = vld [vmem:[%s4273 + $0x105] sm:$0xff]
        %v4291 = vld [vmem:[%s4273 + $0x10d] sm:$0xff]
        %v4292 = vld [vmem:[%s4273 + $0x125] sm:$0xff]
        %v4293 = vld [vmem:[%s4273 + $0x12d] sm:$0xff]
        %v4294 = vld [vmem:[%s4273 + $0x145] sm:$0xff]
        %v4295 = vld [vmem:[%s4273 + $0x14d] sm:$0xff]
        %v4296 = vld [vmem:[%s4273 + $0x165] sm:$0xff]
        %v4297 = vld [vmem:[%s4273 + $0x16d] sm:$0xff]
        %v4298 = vld [vmem:[%s4273 + $0x185] sm:$0xff]
        %v4299 = vld [vmem:[%s4273 + $0x18d] sm:$0xff]
        %v4300 = vld [vmem:[%s4273 + $0x1a5] sm:$0xff]
        %v4301 = vld [vmem:[%s4273 + $0x1ad] sm:$0xff]
        %v4302 = vld [vmem:[%s4273 + $0x1c5] sm:$0xff]
        %v4303 = vld [vmem:[%s4273 + $0x1cd] sm:$0xff]
        %v4304 = vld [vmem:[%s4273 + $0x1e5] sm:$0xff]
        %v4305 = vld [vmem:[%s4273 + $0x1ed] sm:$0xff]
        %v4306 = vld [vmem:[%s6 + $0x2] sm:$0x1]
        %v4307 = vlaneseq
        %v4308 = vshrl.u32 %v4307, 7
        %v4309 = vsub.s32 0, %v4308
        %v4310 = vrot.slane %v4306, %v4309
        %v4311 = vmul.f32 %v4274, %v4310
        %v4312 = vmul.f32 %v4275, %v4310
        %v4313 = vmul.f32 %v4276, %v4310
        %v4314 = vmul.f32 %v4277, %v4310
        %v4315 = vmul.f32 %v4278, %v4310
        %v4316 = vmul.f32 %v4279, %v4310
        %v4317 = vmul.f32 %v4280, %v4310
        %v4318 = vmul.f32 %v4281, %v4310
        %v4319 = vmul.f32 %v4282, %v4310
        %v4320 = vmul.f32 %v4283, %v4310
        %v4321 = vmul.f32 %v4284, %v4310
        %v4322 = vmul.f32 %v4285, %v4310
        %v4323 = vmul.f32 %v4286, %v4310
        %v4324 = vmul.f32 %v4287, %v4310
        %v4325 = vmul.f32 %v4288, %v4310
        %v4326 = vmul.f32 %v4289, %v4310
        %v4327 = vmul.f32 %v4290, %v4310
        %v4328 = vmul.f32 %v4291, %v4310
        %v4329 = vmul.f32 %v4292, %v4310
        %v4330 = vmul.f32 %v4293, %v4310
        %v4331 = vmul.f32 %v4294, %v4310
        %v4332 = vmul.f32 %v4295, %v4310
        %v4333 = vmul.f32 %v4296, %v4310
        %v4334 = vmul.f32 %v4297, %v4310
        %v4335 = vmul.f32 %v4298, %v4310
        %v4336 = vmul.f32 %v4299, %v4310
        %v4337 = vmul.f32 %v4300, %v4310
        %v4338 = vmul.f32 %v4301, %v4310
        %v4339 = vmul.f32 %v4302, %v4310
        %v4340 = vmul.f32 %v4303, %v4310
        %v4341 = vmul.f32 %v4304, %v4310
        %v4342 = vmul.f32 %v4305, %v4310
        %v4343 = vadd.f32 %v4241, %v4311
        %v4344 = vadd.f32 %v4242, %v4312
        %v4345 = vadd.f32 %v4243, %v4313
        %v4346 = vadd.f32 %v4244, %v4314
        %v4347 = vadd.f32 %v4245, %v4315
        %v4348 = vadd.f32 %v4246, %v4316
        %v4349 = vadd.f32 %v4247, %v4317
        %v4350 = vadd.f32 %v4248, %v4318
        %v4351 = vadd.f32 %v4249, %v4319
        %v4352 = vadd.f32 %v4250, %v4320
        %v4353 = vadd.f32 %v4251, %v4321
        %v4354 = vadd.f32 %v4252, %v4322
        %v4355 = vadd.f32 %v4253, %v4323
        %v4356 = vadd.f32 %v4254, %v4324
        %v4357 = vadd.f32 %v4255, %v4325
        %v4358 = vadd.f32 %v4256, %v4326
        %v4359 = vadd.f32 %v4257, %v4327
        %v4360 = vadd.f32 %v4258, %v4328
        %v4361 = vadd.f32 %v4259, %v4329
        %v4362 = vadd.f32 %v4260, %v4330
        %v4363 = vadd.f32 %v4261, %v4331
        %v4364 = vadd.f32 %v4262, %v4332
        %v4365 = vadd.f32 %v4263, %v4333
        %v4366 = vadd.f32 %v4264, %v4334
        %v4367 = vadd.f32 %v4265, %v4335
        %v4368 = vadd.f32 %v4266, %v4336
        %v4369 = vadd.f32 %v4267, %v4337
        %v4370 = vadd.f32 %v4268, %v4338
        %v4371 = vadd.f32 %v4269, %v4339
        %v4372 = vadd.f32 %v4270, %v4340
        %v4373 = vadd.f32 %v4271, %v4341
        %v4374 = vadd.f32 %v4272, %v4342
        %s4375 = scalar_lea.vmem [#allocation3], 96
        %v4376 = vld [vmem:[%s4375 + $0x5] sm:$0xff]
        %v4377 = vld [vmem:[%s4375 + $0xd] sm:$0xff]
        %v4378 = vld [vmem:[%s4375 + $0x25] sm:$0xff]
        %v4379 = vld [vmem:[%s4375 + $0x2d] sm:$0xff]
        %v4380 = vld [vmem:[%s4375 + $0x45] sm:$0xff]
        %v4381 = vld [vmem:[%s4375 + $0x4d] sm:$0xff]
        %v4382 = vld [vmem:[%s4375 + $0x65] sm:$0xff]
        %v4383 = vld [vmem:[%s4375 + $0x6d] sm:$0xff]
        %v4384 = vld [vmem:[%s4375 + $0x85] sm:$0xff]
        %v4385 = vld [vmem:[%s4375 + $0x8d] sm:$0xff]
        %v4386 = vld [vmem:[%s4375 + $0xa5] sm:$0xff]
        %v4387 = vld [vmem:[%s4375 + $0xad] sm:$0xff]
        %v4388 = vld [vmem:[%s4375 + $0xc5] sm:$0xff]
        %v4389 = vld [vmem:[%s4375 + $0xcd] sm:$0xff]
        %v4390 = vld [vmem:[%s4375 + $0xe5] sm:$0xff]
        %v4391 = vld [vmem:[%s4375 + $0xed] sm:$0xff]
        %v4392 = vld [vmem:[%s4375 + $0x105] sm:$0xff]
        %v4393 = vld [vmem:[%s4375 + $0x10d] sm:$0xff]
        %v4394 = vld [vmem:[%s4375 + $0x125] sm:$0xff]
        %v4395 = vld [vmem:[%s4375 + $0x12d] sm:$0xff]
        %v4396 = vld [vmem:[%s4375 + $0x145] sm:$0xff]
        %v4397 = vld [vmem:[%s4375 + $0x14d] sm:$0xff]
        %v4398 = vld [vmem:[%s4375 + $0x165] sm:$0xff]
        %v4399 = vld [vmem:[%s4375 + $0x16d] sm:$0xff]
        %v4400 = vld [vmem:[%s4375 + $0x185] sm:$0xff]
        %v4401 = vld [vmem:[%s4375 + $0x18d] sm:$0xff]
        %v4402 = vld [vmem:[%s4375 + $0x1a5] sm:$0xff]
        %v4403 = vld [vmem:[%s4375 + $0x1ad] sm:$0xff]
        %v4404 = vld [vmem:[%s4375 + $0x1c5] sm:$0xff]
        %v4405 = vld [vmem:[%s4375 + $0x1cd] sm:$0xff]
        %v4406 = vld [vmem:[%s4375 + $0x1e5] sm:$0xff]
        %v4407 = vld [vmem:[%s4375 + $0x1ed] sm:$0xff]
        %v4408 = vld [vmem:[%s6 + $0x3] sm:$0x1]
        %v4409 = vlaneseq
        %v4410 = vshrl.u32 %v4409, 7
        %v4411 = vsub.s32 0, %v4410
        %v4412 = vrot.slane %v4408, %v4411
        %v4413 = vmul.f32 %v4376, %v4412
        %v4414 = vmul.f32 %v4377, %v4412
        %v4415 = vmul.f32 %v4378, %v4412
        %v4416 = vmul.f32 %v4379, %v4412
        %v4417 = vmul.f32 %v4380, %v4412
        %v4418 = vmul.f32 %v4381, %v4412
        %v4419 = vmul.f32 %v4382, %v4412
        %v4420 = vmul.f32 %v4383, %v4412
        %v4421 = vmul.f32 %v4384, %v4412
        %v4422 = vmul.f32 %v4385, %v4412
        %v4423 = vmul.f32 %v4386, %v4412
        %v4424 = vmul.f32 %v4387, %v4412
        %v4425 = vmul.f32 %v4388, %v4412
        %v4426 = vmul.f32 %v4389, %v4412
        %v4427 = vmul.f32 %v4390, %v4412
        %v4428 = vmul.f32 %v4391, %v4412
        %v4429 = vmul.f32 %v4392, %v4412
        %v4430 = vmul.f32 %v4393, %v4412
        %v4431 = vmul.f32 %v4394, %v4412
        %v4432 = vmul.f32 %v4395, %v4412
        %v4433 = vmul.f32 %v4396, %v4412
        %v4434 = vmul.f32 %v4397, %v4412
        %v4435 = vmul.f32 %v4398, %v4412
        %v4436 = vmul.f32 %v4399, %v4412
        %v4437 = vmul.f32 %v4400, %v4412
        %v4438 = vmul.f32 %v4401, %v4412
        %v4439 = vmul.f32 %v4402, %v4412
        %v4440 = vmul.f32 %v4403, %v4412
        %v4441 = vmul.f32 %v4404, %v4412
        %v4442 = vmul.f32 %v4405, %v4412
        %v4443 = vmul.f32 %v4406, %v4412
        %v4444 = vmul.f32 %v4407, %v4412
        %v4445 = vadd.f32 %v4343, %v4413
        %v4446 = vadd.f32 %v4344, %v4414
        %v4447 = vadd.f32 %v4345, %v4415
        %v4448 = vadd.f32 %v4346, %v4416
        %v4449 = vadd.f32 %v4347, %v4417
        %v4450 = vadd.f32 %v4348, %v4418
        %v4451 = vadd.f32 %v4349, %v4419
        %v4452 = vadd.f32 %v4350, %v4420
        %v4453 = vadd.f32 %v4351, %v4421
        %v4454 = vadd.f32 %v4352, %v4422
        %v4455 = vadd.f32 %v4353, %v4423
        %v4456 = vadd.f32 %v4354, %v4424
        %v4457 = vadd.f32 %v4355, %v4425
        %v4458 = vadd.f32 %v4356, %v4426
        %v4459 = vadd.f32 %v4357, %v4427
        %v4460 = vadd.f32 %v4358, %v4428
        %v4461 = vadd.f32 %v4359, %v4429
        %v4462 = vadd.f32 %v4360, %v4430
        %v4463 = vadd.f32 %v4361, %v4431
        %v4464 = vadd.f32 %v4362, %v4432
        %v4465 = vadd.f32 %v4363, %v4433
        %v4466 = vadd.f32 %v4364, %v4434
        %v4467 = vadd.f32 %v4365, %v4435
        %v4468 = vadd.f32 %v4366, %v4436
        %v4469 = vadd.f32 %v4367, %v4437
        %v4470 = vadd.f32 %v4368, %v4438
        %v4471 = vadd.f32 %v4369, %v4439
        %v4472 = vadd.f32 %v4370, %v4440
        %v4473 = vadd.f32 %v4371, %v4441
        %v4474 = vadd.f32 %v4372, %v4442
        %v4475 = vadd.f32 %v4373, %v4443
        %v4476 = vadd.f32 %v4374, %v4444
        %s4477 = scalar_lea.vmem [#allocation3], 128
        %v4478 = vld [vmem:[%s4477 + $0x4] sm:$0xff]
        %v4479 = vld [vmem:[%s4477 + $0xc] sm:$0xff]
        %v4480 = vld [vmem:[%s4477 + $0x24] sm:$0xff]
        %v4481 = vld [vmem:[%s4477 + $0x2c] sm:$0xff]
        %v4482 = vld [vmem:[%s4477 + $0x44] sm:$0xff]
        %v4483 = vld [vmem:[%s4477 + $0x4c] sm:$0xff]
        %v4484 = vld [vmem:[%s4477 + $0x64] sm:$0xff]
        %v4485 = vld [vmem:[%s4477 + $0x6c] sm:$0xff]
        %v4486 = vld [vmem:[%s4477 + $0x84] sm:$0xff]
        %v4487 = vld [vmem:[%s4477 + $0x8c] sm:$0xff]
        %v4488 = vld [vmem:[%s4477 + $0xa4] sm:$0xff]
        %v4489 = vld [vmem:[%s4477 + $0xac] sm:$0xff]
        %v4490 = vld [vmem:[%s4477 + $0xc4] sm:$0xff]
        %v4491 = vld [vmem:[%s4477 + $0xcc] sm:$0xff]
        %v4492 = vld [vmem:[%s4477 + $0xe4] sm:$0xff]
        %v4493 = vld [vmem:[%s4477 + $0xec] sm:$0xff]
        %v4494 = vld [vmem:[%s4477 + $0x104] sm:$0xff]
        %v4495 = vld [vmem:[%s4477 + $0x10c] sm:$0xff]
        %v4496 = vld [vmem:[%s4477 + $0x124] sm:$0xff]
        %v4497 = vld [vmem:[%s4477 + $0x12c] sm:$0xff]
        %v4498 = vld [vmem:[%s4477 + $0x144] sm:$0xff]
        %v4499 = vld [vmem:[%s4477 + $0x14c] sm:$0xff]
        %v4500 = vld [vmem:[%s4477 + $0x164] sm:$0xff]
        %v4501 = vld [vmem:[%s4477 + $0x16c] sm:$0xff]
        %v4502 = vld [vmem:[%s4477 + $0x184] sm:$0xff]
        %v4503 = vld [vmem:[%s4477 + $0x18c] sm:$0xff]
        %v4504 = vld [vmem:[%s4477 + $0x1a4] sm:$0xff]
        %v4505 = vld [vmem:[%s4477 + $0x1ac] sm:$0xff]
        %v4506 = vld [vmem:[%s4477 + $0x1c4] sm:$0xff]
        %v4507 = vld [vmem:[%s4477 + $0x1cc] sm:$0xff]
        %v4508 = vld [vmem:[%s4477 + $0x1e4] sm:$0xff]
        %v4509 = vld [vmem:[%s4477 + $0x1ec] sm:$0xff]
        %v4510 = vld [vmem:[%s6 + $0x4] sm:$0x1]
        %v4511 = vlaneseq
        %v4512 = vshrl.u32 %v4511, 7
        %v4513 = vsub.s32 0, %v4512
        %v4514 = vrot.slane %v4510, %v4513
        %v4515 = vmul.f32 %v4478, %v4514
        %v4516 = vmul.f32 %v4479, %v4514
        %v4517 = vmul.f32 %v4480, %v4514
        %v4518 = vmul.f32 %v4481, %v4514
        %v4519 = vmul.f32 %v4482, %v4514
        %v4520 = vmul.f32 %v4483, %v4514
        %v4521 = vmul.f32 %v4484, %v4514
        %v4522 = vmul.f32 %v4485, %v4514
        %v4523 = vmul.f32 %v4486, %v4514
        %v4524 = vmul.f32 %v4487, %v4514
        %v4525 = vmul.f32 %v4488, %v4514
        %v4526 = vmul.f32 %v4489, %v4514
        %v4527 = vmul.f32 %v4490, %v4514
        %v4528 = vmul.f32 %v4491, %v4514
        %v4529 = vmul.f32 %v4492, %v4514
        %v4530 = vmul.f32 %v4493, %v4514
        %v4531 = vmul.f32 %v4494, %v4514
        %v4532 = vmul.f32 %v4495, %v4514
        %v4533 = vmul.f32 %v4496, %v4514
        %v4534 = vmul.f32 %v4497, %v4514
        %v4535 = vmul.f32 %v4498, %v4514
        %v4536 = vmul.f32 %v4499, %v4514
        %v4537 = vmul.f32 %v4500, %v4514
        %v4538 = vmul.f32 %v4501, %v4514
        %v4539 = vmul.f32 %v4502, %v4514
        %v4540 = vmul.f32 %v4503, %v4514
        %v4541 = vmul.f32 %v4504, %v4514
        %v4542 = vmul.f32 %v4505, %v4514
        %v4543 = vmul.f32 %v4506, %v4514
        %v4544 = vmul.f32 %v4507, %v4514
        %v4545 = vmul.f32 %v4508, %v4514
        %v4546 = vmul.f32 %v4509, %v4514
        %v4547 = vadd.f32 %v4445, %v4515
        %v4548 = vadd.f32 %v4446, %v4516
        %v4549 = vadd.f32 %v4447, %v4517
        %v4550 = vadd.f32 %v4448, %v4518
        %v4551 = vadd.f32 %v4449, %v4519
        %v4552 = vadd.f32 %v4450, %v4520
        %v4553 = vadd.f32 %v4451, %v4521
        %v4554 = vadd.f32 %v4452, %v4522
        %v4555 = vadd.f32 %v4453, %v4523
        %v4556 = vadd.f32 %v4454, %v4524
        %v4557 = vadd.f32 %v4455, %v4525
        %v4558 = vadd.f32 %v4456, %v4526
        %v4559 = vadd.f32 %v4457, %v4527
        %v4560 = vadd.f32 %v4458, %v4528
        %v4561 = vadd.f32 %v4459, %v4529
        %v4562 = vadd.f32 %v4460, %v4530
        %v4563 = vadd.f32 %v4461, %v4531
        %v4564 = vadd.f32 %v4462, %v4532
        %v4565 = vadd.f32 %v4463, %v4533
        %v4566 = vadd.f32 %v4464, %v4534
        %v4567 = vadd.f32 %v4465, %v4535
        %v4568 = vadd.f32 %v4466, %v4536
        %v4569 = vadd.f32 %v4467, %v4537
        %v4570 = vadd.f32 %v4468, %v4538
        %v4571 = vadd.f32 %v4469, %v4539
        %v4572 = vadd.f32 %v4470, %v4540
        %v4573 = vadd.f32 %v4471, %v4541
        %v4574 = vadd.f32 %v4472, %v4542
        %v4575 = vadd.f32 %v4473, %v4543
        %v4576 = vadd.f32 %v4474, %v4544
        %v4577 = vadd.f32 %v4475, %v4545
        %v4578 = vadd.f32 %v4476, %v4546
        %v4579 = vld [vmem:[%s4477 + $0x5] sm:$0xff]
        %v4580 = vld [vmem:[%s4477 + $0xd] sm:$0xff]
        %v4581 = vld [vmem:[%s4477 + $0x25] sm:$0xff]
        %v4582 = vld [vmem:[%s4477 + $0x2d] sm:$0xff]
        %v4583 = vld [vmem:[%s4477 + $0x45] sm:$0xff]
        %v4584 = vld [vmem:[%s4477 + $0x4d] sm:$0xff]
        %v4585 = vld [vmem:[%s4477 + $0x65] sm:$0xff]
        %v4586 = vld [vmem:[%s4477 + $0x6d] sm:$0xff]
        %v4587 = vld [vmem:[%s4477 + $0x85] sm:$0xff]
        %v4588 = vld [vmem:[%s4477 + $0x8d] sm:$0xff]
        %v4589 = vld [vmem:[%s4477 + $0xa5] sm:$0xff]
        %v4590 = vld [vmem:[%s4477 + $0xad] sm:$0xff]
        %v4591 = vld [vmem:[%s4477 + $0xc5] sm:$0xff]
        %v4592 = vld [vmem:[%s4477 + $0xcd] sm:$0xff]
        %v4593 = vld [vmem:[%s4477 + $0xe5] sm:$0xff]
        %v4594 = vld [vmem:[%s4477 + $0xed] sm:$0xff]
        %v4595 = vld [vmem:[%s4477 + $0x105] sm:$0xff]
        %v4596 = vld [vmem:[%s4477 + $0x10d] sm:$0xff]
        %v4597 = vld [vmem:[%s4477 + $0x125] sm:$0xff]
        %v4598 = vld [vmem:[%s4477 + $0x12d] sm:$0xff]
        %v4599 = vld [vmem:[%s4477 + $0x145] sm:$0xff]
        %v4600 = vld [vmem:[%s4477 + $0x14d] sm:$0xff]
        %v4601 = vld [vmem:[%s4477 + $0x165] sm:$0xff]
        %v4602 = vld [vmem:[%s4477 + $0x16d] sm:$0xff]
        %v4603 = vld [vmem:[%s4477 + $0x185] sm:$0xff]
        %v4604 = vld [vmem:[%s4477 + $0x18d] sm:$0xff]
        %v4605 = vld [vmem:[%s4477 + $0x1a5] sm:$0xff]
        %v4606 = vld [vmem:[%s4477 + $0x1ad] sm:$0xff]
        %v4607 = vld [vmem:[%s4477 + $0x1c5] sm:$0xff]
        %v4608 = vld [vmem:[%s4477 + $0x1cd] sm:$0xff]
        %v4609 = vld [vmem:[%s4477 + $0x1e5] sm:$0xff]
        %v4610 = vld [vmem:[%s4477 + $0x1ed] sm:$0xff]
        %v4611 = vld [vmem:[%s6 + $0x5] sm:$0x1]
        %v4612 = vlaneseq
        %v4613 = vshrl.u32 %v4612, 7
        %v4614 = vsub.s32 0, %v4613
        %v4615 = vrot.slane %v4611, %v4614
        %v4616 = vmul.f32 %v4579, %v4615
        %v4617 = vmul.f32 %v4580, %v4615
        %v4618 = vmul.f32 %v4581, %v4615
        %v4619 = vmul.f32 %v4582, %v4615
        %v4620 = vmul.f32 %v4583, %v4615
        %v4621 = vmul.f32 %v4584, %v4615
        %v4622 = vmul.f32 %v4585, %v4615
        %v4623 = vmul.f32 %v4586, %v4615
        %v4624 = vmul.f32 %v4587, %v4615
        %v4625 = vmul.f32 %v4588, %v4615
        %v4626 = vmul.f32 %v4589, %v4615
        %v4627 = vmul.f32 %v4590, %v4615
        %v4628 = vmul.f32 %v4591, %v4615
        %v4629 = vmul.f32 %v4592, %v4615
        %v4630 = vmul.f32 %v4593, %v4615
        %v4631 = vmul.f32 %v4594, %v4615
        %v4632 = vmul.f32 %v4595, %v4615
        %v4633 = vmul.f32 %v4596, %v4615
        %v4634 = vmul.f32 %v4597, %v4615
        %v4635 = vmul.f32 %v4598, %v4615
        %v4636 = vmul.f32 %v4599, %v4615
        %v4637 = vmul.f32 %v4600, %v4615
        %v4638 = vmul.f32 %v4601, %v4615
        %v4639 = vmul.f32 %v4602, %v4615
        %v4640 = vmul.f32 %v4603, %v4615
        %v4641 = vmul.f32 %v4604, %v4615
        %v4642 = vmul.f32 %v4605, %v4615
        %v4643 = vmul.f32 %v4606, %v4615
        %v4644 = vmul.f32 %v4607, %v4615
        %v4645 = vmul.f32 %v4608, %v4615
        %v4646 = vmul.f32 %v4609, %v4615
        %v4647 = vmul.f32 %v4610, %v4615
        %v4648 = vadd.f32 %v4547, %v4616
        %v4649 = vadd.f32 %v4548, %v4617
        %v4650 = vadd.f32 %v4549, %v4618
        %v4651 = vadd.f32 %v4550, %v4619
        %v4652 = vadd.f32 %v4551, %v4620
        %v4653 = vadd.f32 %v4552, %v4621
        %v4654 = vadd.f32 %v4553, %v4622
        %v4655 = vadd.f32 %v4554, %v4623
        %v4656 = vadd.f32 %v4555, %v4624
        %v4657 = vadd.f32 %v4556, %v4625
        %v4658 = vadd.f32 %v4557, %v4626
        %v4659 = vadd.f32 %v4558, %v4627
        %v4660 = vadd.f32 %v4559, %v4628
        %v4661 = vadd.f32 %v4560, %v4629
        %v4662 = vadd.f32 %v4561, %v4630
        %v4663 = vadd.f32 %v4562, %v4631
        %v4664 = vadd.f32 %v4563, %v4632
        %v4665 = vadd.f32 %v4564, %v4633
        %v4666 = vadd.f32 %v4565, %v4634
        %v4667 = vadd.f32 %v4566, %v4635
        %v4668 = vadd.f32 %v4567, %v4636
        %v4669 = vadd.f32 %v4568, %v4637
        %v4670 = vadd.f32 %v4569, %v4638
        %v4671 = vadd.f32 %v4570, %v4639
        %v4672 = vadd.f32 %v4571, %v4640
        %v4673 = vadd.f32 %v4572, %v4641
        %v4674 = vadd.f32 %v4573, %v4642
        %v4675 = vadd.f32 %v4574, %v4643
        %v4676 = vadd.f32 %v4575, %v4644
        %v4677 = vadd.f32 %v4576, %v4645
        %v4678 = vadd.f32 %v4577, %v4646
        %v4679 = vadd.f32 %v4578, %v4647
        %v4680 = vld [vmem:[%s4477 + $0x6] sm:$0xff]
        %v4681 = vld [vmem:[%s4477 + $0xe] sm:$0xff]
        %v4682 = vld [vmem:[%s4477 + $0x26] sm:$0xff]
        %v4683 = vld [vmem:[%s4477 + $0x2e] sm:$0xff]
        %v4684 = vld [vmem:[%s4477 + $0x46] sm:$0xff]
        %v4685 = vld [vmem:[%s4477 + $0x4e] sm:$0xff]
        %v4686 = vld [vmem:[%s4477 + $0x66] sm:$0xff]
        %v4687 = vld [vmem:[%s4477 + $0x6e] sm:$0xff]
        %v4688 = vld [vmem:[%s4477 + $0x86] sm:$0xff]
        %v4689 = vld [vmem:[%s4477 + $0x8e] sm:$0xff]
        %v4690 = vld [vmem:[%s4477 + $0xa6] sm:$0xff]
        %v4691 = vld [vmem:[%s4477 + $0xae] sm:$0xff]
        %v4692 = vld [vmem:[%s4477 + $0xc6] sm:$0xff]
        %v4693 = vld [vmem:[%s4477 + $0xce] sm:$0xff]
        %v4694 = vld [vmem:[%s4477 + $0xe6] sm:$0xff]
        %v4695 = vld [vmem:[%s4477 + $0xee] sm:$0xff]
        %v4696 = vld [vmem:[%s4477 + $0x106] sm:$0xff]
        %v4697 = vld [vmem:[%s4477 + $0x10e] sm:$0xff]
        %v4698 = vld [vmem:[%s4477 + $0x126] sm:$0xff]
        %v4699 = vld [vmem:[%s4477 + $0x12e] sm:$0xff]
        %v4700 = vld [vmem:[%s4477 + $0x146] sm:$0xff]
        %v4701 = vld [vmem:[%s4477 + $0x14e] sm:$0xff]
        %v4702 = vld [vmem:[%s4477 + $0x166] sm:$0xff]
        %v4703 = vld [vmem:[%s4477 + $0x16e] sm:$0xff]
        %v4704 = vld [vmem:[%s4477 + $0x186] sm:$0xff]
        %v4705 = vld [vmem:[%s4477 + $0x18e] sm:$0xff]
        %v4706 = vld [vmem:[%s4477 + $0x1a6] sm:$0xff]
        %v4707 = vld [vmem:[%s4477 + $0x1ae] sm:$0xff]
        %v4708 = vld [vmem:[%s4477 + $0x1c6] sm:$0xff]
        %v4709 = vld [vmem:[%s4477 + $0x1ce] sm:$0xff]
        %v4710 = vld [vmem:[%s4477 + $0x1e6] sm:$0xff]
        %v4711 = vld [vmem:[%s4477 + $0x1ee] sm:$0xff]
        %v4712 = vld [vmem:[%s6 + $0x6] sm:$0x1]
        %v4713 = vlaneseq
        %v4714 = vshrl.u32 %v4713, 7
        %v4715 = vsub.s32 0, %v4714
        %v4716 = vrot.slane %v4712, %v4715
        %v4717 = vmul.f32 %v4680, %v4716
        %v4718 = vmul.f32 %v4681, %v4716
        %v4719 = vmul.f32 %v4682, %v4716
        %v4720 = vmul.f32 %v4683, %v4716
        %v4721 = vmul.f32 %v4684, %v4716
        %v4722 = vmul.f32 %v4685, %v4716
        %v4723 = vmul.f32 %v4686, %v4716
        %v4724 = vmul.f32 %v4687, %v4716
        %v4725 = vmul.f32 %v4688, %v4716
        %v4726 = vmul.f32 %v4689, %v4716
        %v4727 = vmul.f32 %v4690, %v4716
        %v4728 = vmul.f32 %v4691, %v4716
        %v4729 = vmul.f32 %v4692, %v4716
        %v4730 = vmul.f32 %v4693, %v4716
        %v4731 = vmul.f32 %v4694, %v4716
        %v4732 = vmul.f32 %v4695, %v4716
        %v4733 = vmul.f32 %v4696, %v4716
        %v4734 = vmul.f32 %v4697, %v4716
        %v4735 = vmul.f32 %v4698, %v4716
        %v4736 = vmul.f32 %v4699, %v4716
        %v4737 = vmul.f32 %v4700, %v4716
        %v4738 = vmul.f32 %v4701, %v4716
        %v4739 = vmul.f32 %v4702, %v4716
        %v4740 = vmul.f32 %v4703, %v4716
        %v4741 = vmul.f32 %v4704, %v4716
        %v4742 = vmul.f32 %v4705, %v4716
        %v4743 = vmul.f32 %v4706, %v4716
        %v4744 = vmul.f32 %v4707, %v4716
        %v4745 = vmul.f32 %v4708, %v4716
        %v4746 = vmul.f32 %v4709, %v4716
        %v4747 = vmul.f32 %v4710, %v4716
        %v4748 = vmul.f32 %v4711, %v4716
        %v4749 = vadd.f32 %v4648, %v4717
        %v4750 = vadd.f32 %v4649, %v4718
        %v4751 = vadd.f32 %v4650, %v4719
        %v4752 = vadd.f32 %v4651, %v4720
        %v4753 = vadd.f32 %v4652, %v4721
        %v4754 = vadd.f32 %v4653, %v4722
        %v4755 = vadd.f32 %v4654, %v4723
        %v4756 = vadd.f32 %v4655, %v4724
        %v4757 = vadd.f32 %v4656, %v4725
        %v4758 = vadd.f32 %v4657, %v4726
        %v4759 = vadd.f32 %v4658, %v4727
        %v4760 = vadd.f32 %v4659, %v4728
        %v4761 = vadd.f32 %v4660, %v4729
        %v4762 = vadd.f32 %v4661, %v4730
        %v4763 = vadd.f32 %v4662, %v4731
        %v4764 = vadd.f32 %v4663, %v4732
        %v4765 = vadd.f32 %v4664, %v4733
        %v4766 = vadd.f32 %v4665, %v4734
        %v4767 = vadd.f32 %v4666, %v4735
        %v4768 = vadd.f32 %v4667, %v4736
        %v4769 = vadd.f32 %v4668, %v4737
        %v4770 = vadd.f32 %v4669, %v4738
        %v4771 = vadd.f32 %v4670, %v4739
        %v4772 = vadd.f32 %v4671, %v4740
        %v4773 = vadd.f32 %v4672, %v4741
        %v4774 = vadd.f32 %v4673, %v4742
        %v4775 = vadd.f32 %v4674, %v4743
        %v4776 = vadd.f32 %v4675, %v4744
        %v4777 = vadd.f32 %v4676, %v4745
        %v4778 = vadd.f32 %v4677, %v4746
        %v4779 = vadd.f32 %v4678, %v4747
        %v4780 = vadd.f32 %v4679, %v4748
        %v4781 = vld [vmem:[%s4037] sm:$0xff]
        %v4782 = vld [vmem:[%s4037 + $0x8] sm:$0xff]
        %v4783 = vld [vmem:[%s4037 + $0x20] sm:$0xff]
        %v4784 = vld [vmem:[%s4037 + $0x28] sm:$0xff]
        %v4785 = vld [vmem:[%s4037 + $0x40] sm:$0xff]
        %v4786 = vld [vmem:[%s4037 + $0x48] sm:$0xff]
        %v4787 = vld [vmem:[%s4037 + $0x60] sm:$0xff]
        %v4788 = vld [vmem:[%s4037 + $0x68] sm:$0xff]
        %v4789 = vld [vmem:[%s4037 + $0x80] sm:$0xff]
        %v4790 = vld [vmem:[%s4037 + $0x88] sm:$0xff]
        %v4791 = vld [vmem:[%s4037 + $0xa0] sm:$0xff]
        %v4792 = vld [vmem:[%s4037 + $0xa8] sm:$0xff]
        %v4793 = vld [vmem:[%s4037 + $0xc0] sm:$0xff]
        %v4794 = vld [vmem:[%s4037 + $0xc8] sm:$0xff]
        %v4795 = vld [vmem:[%s4037 + $0xe0] sm:$0xff]
        %v4796 = vld [vmem:[%s4037 + $0xe8] sm:$0xff]
        %v4797 = vld [vmem:[%s4037 + $0x100] sm:$0xff]
        %v4798 = vld [vmem:[%s4037 + $0x108] sm:$0xff]
        %v4799 = vld [vmem:[%s4037 + $0x120] sm:$0xff]
        %v4800 = vld [vmem:[%s4037 + $0x128] sm:$0xff]
        %v4801 = vld [vmem:[%s4037 + $0x140] sm:$0xff]
        %v4802 = vld [vmem:[%s4037 + $0x148] sm:$0xff]
        %v4803 = vld [vmem:[%s4037 + $0x160] sm:$0xff]
        %v4804 = vld [vmem:[%s4037 + $0x168] sm:$0xff]
        %v4805 = vld [vmem:[%s4037 + $0x180] sm:$0xff]
        %v4806 = vld [vmem:[%s4037 + $0x188] sm:$0xff]
        %v4807 = vld [vmem:[%s4037 + $0x1a0] sm:$0xff]
        %v4808 = vld [vmem:[%s4037 + $0x1a8] sm:$0xff]
        %v4809 = vld [vmem:[%s4037 + $0x1c0] sm:$0xff]
        %v4810 = vld [vmem:[%s4037 + $0x1c8] sm:$0xff]
        %v4811 = vld [vmem:[%s4037 + $0x1e0] sm:$0xff]
        %v4812 = vld [vmem:[%s4037 + $0x1e8] sm:$0xff]
        %v4813 = vld [vmem:[%s6 + $0x7] sm:$0x1]
        %v4814 = vlaneseq
        %v4815 = vshrl.u32 %v4814, 7
        %v4816 = vsub.s32 0, %v4815
        %v4817 = vrot.slane %v4813, %v4816
        %v4818 = vmul.f32 %v4781, %v4817
        %v4819 = vmul.f32 %v4782, %v4817
        %v4820 = vmul.f32 %v4783, %v4817
        %v4821 = vmul.f32 %v4784, %v4817
        %v4822 = vmul.f32 %v4785, %v4817
        %v4823 = vmul.f32 %v4786, %v4817
        %v4824 = vmul.f32 %v4787, %v4817
        %v4825 = vmul.f32 %v4788, %v4817
        %v4826 = vmul.f32 %v4789, %v4817
        %v4827 = vmul.f32 %v4790, %v4817
        %v4828 = vmul.f32 %v4791, %v4817
        %v4829 = vmul.f32 %v4792, %v4817
        %v4830 = vmul.f32 %v4793, %v4817
        %v4831 = vmul.f32 %v4794, %v4817
        %v4832 = vmul.f32 %v4795, %v4817
        %v4833 = vmul.f32 %v4796, %v4817
        %v4834 = vmul.f32 %v4797, %v4817
        %v4835 = vmul.f32 %v4798, %v4817
        %v4836 = vmul.f32 %v4799, %v4817
        %v4837 = vmul.f32 %v4800, %v4817
        %v4838 = vmul.f32 %v4801, %v4817
        %v4839 = vmul.f32 %v4802, %v4817
        %v4840 = vmul.f32 %v4803, %v4817
        %v4841 = vmul.f32 %v4804, %v4817
        %v4842 = vmul.f32 %v4805, %v4817
        %v4843 = vmul.f32 %v4806, %v4817
        %v4844 = vmul.f32 %v4807, %v4817
        %v4845 = vmul.f32 %v4808, %v4817
        %v4846 = vmul.f32 %v4809, %v4817
        %v4847 = vmul.f32 %v4810, %v4817
        %v4848 = vmul.f32 %v4811, %v4817
        %v4849 = vmul.f32 %v4812, %v4817
        %v4850 = vadd.f32 %v4749, %v4818
        %v4851 = vadd.f32 %v4750, %v4819
        %v4852 = vadd.f32 %v4751, %v4820
        %v4853 = vadd.f32 %v4752, %v4821
        %v4854 = vadd.f32 %v4753, %v4822
        %v4855 = vadd.f32 %v4754, %v4823
        %v4856 = vadd.f32 %v4755, %v4824
        %v4857 = vadd.f32 %v4756, %v4825
        %v4858 = vadd.f32 %v4757, %v4826
        %v4859 = vadd.f32 %v4758, %v4827
        %v4860 = vadd.f32 %v4759, %v4828
        %v4861 = vadd.f32 %v4760, %v4829
        %v4862 = vadd.f32 %v4761, %v4830
        %v4863 = vadd.f32 %v4762, %v4831
        %v4864 = vadd.f32 %v4763, %v4832
        %v4865 = vadd.f32 %v4764, %v4833
        %v4866 = vadd.f32 %v4765, %v4834
        %v4867 = vadd.f32 %v4766, %v4835
        %v4868 = vadd.f32 %v4767, %v4836
        %v4869 = vadd.f32 %v4768, %v4837
        %v4870 = vadd.f32 %v4769, %v4838
        %v4871 = vadd.f32 %v4770, %v4839
        %v4872 = vadd.f32 %v4771, %v4840
        %v4873 = vadd.f32 %v4772, %v4841
        %v4874 = vadd.f32 %v4773, %v4842
        %v4875 = vadd.f32 %v4774, %v4843
        %v4876 = vadd.f32 %v4775, %v4844
        %v4877 = vadd.f32 %v4776, %v4845
        %v4878 = vadd.f32 %v4777, %v4846
        %v4879 = vadd.f32 %v4778, %v4847
        %v4880 = vadd.f32 %v4779, %v4848
        %v4881 = vadd.f32 %v4780, %v4849
        %v4882 = vld [vmem:[%s4037 + $0x1] sm:$0xff]
        %v4883 = vld [vmem:[%s4037 + $0x9] sm:$0xff]
        %v4884 = vld [vmem:[%s4037 + $0x21] sm:$0xff]
        %v4885 = vld [vmem:[%s4037 + $0x29] sm:$0xff]
        %v4886 = vld [vmem:[%s4037 + $0x41] sm:$0xff]
        %v4887 = vld [vmem:[%s4037 + $0x49] sm:$0xff]
        %v4888 = vld [vmem:[%s4037 + $0x61] sm:$0xff]
        %v4889 = vld [vmem:[%s4037 + $0x69] sm:$0xff]
        %v4890 = vld [vmem:[%s4037 + $0x81] sm:$0xff]
        %v4891 = vld [vmem:[%s4037 + $0x89] sm:$0xff]
        %v4892 = vld [vmem:[%s4037 + $0xa1] sm:$0xff]
        %v4893 = vld [vmem:[%s4037 + $0xa9] sm:$0xff]
        %v4894 = vld [vmem:[%s4037 + $0xc1] sm:$0xff]
        %v4895 = vld [vmem:[%s4037 + $0xc9] sm:$0xff]
        %v4896 = vld [vmem:[%s4037 + $0xe1] sm:$0xff]
        %v4897 = vld [vmem:[%s4037 + $0xe9] sm:$0xff]
        %v4898 = vld [vmem:[%s4037 + $0x101] sm:$0xff]
        %v4899 = vld [vmem:[%s4037 + $0x109] sm:$0xff]
        %v4900 = vld [vmem:[%s4037 + $0x121] sm:$0xff]
        %v4901 = vld [vmem:[%s4037 + $0x129] sm:$0xff]
        %v4902 = vld [vmem:[%s4037 + $0x141] sm:$0xff]
        %v4903 = vld [vmem:[%s4037 + $0x149] sm:$0xff]
        %v4904 = vld [vmem:[%s4037 + $0x161] sm:$0xff]
        %v4905 = vld [vmem:[%s4037 + $0x169] sm:$0xff]
        %v4906 = vld [vmem:[%s4037 + $0x181] sm:$0xff]
        %v4907 = vld [vmem:[%s4037 + $0x189] sm:$0xff]
        %v4908 = vld [vmem:[%s4037 + $0x1a1] sm:$0xff]
        %v4909 = vld [vmem:[%s4037 + $0x1a9] sm:$0xff]
        %v4910 = vld [vmem:[%s4037 + $0x1c1] sm:$0xff]
        %v4911 = vld [vmem:[%s4037 + $0x1c9] sm:$0xff]
        %v4912 = vld [vmem:[%s4037 + $0x1e1] sm:$0xff]
        %v4913 = vld [vmem:[%s4037 + $0x1e9] sm:$0xff]
        %v4914 = vld [vmem:[%s6 + $0x8] sm:$0x1]
        %v4915 = vlaneseq
        %v4916 = vshrl.u32 %v4915, 7
        %v4917 = vsub.s32 0, %v4916
        %v4918 = vrot.slane %v4914, %v4917
        %v4919 = vmul.f32 %v4882, %v4918
        %v4920 = vmul.f32 %v4883, %v4918
        %v4921 = vmul.f32 %v4884, %v4918
        %v4922 = vmul.f32 %v4885, %v4918
        %v4923 = vmul.f32 %v4886, %v4918
        %v4924 = vmul.f32 %v4887, %v4918
        %v4925 = vmul.f32 %v4888, %v4918
        %v4926 = vmul.f32 %v4889, %v4918
        %v4927 = vmul.f32 %v4890, %v4918
        %v4928 = vmul.f32 %v4891, %v4918
        %v4929 = vmul.f32 %v4892, %v4918
        %v4930 = vmul.f32 %v4893, %v4918
        %v4931 = vmul.f32 %v4894, %v4918
        %v4932 = vmul.f32 %v4895, %v4918
        %v4933 = vmul.f32 %v4896, %v4918
        %v4934 = vmul.f32 %v4897, %v4918
        %v4935 = vmul.f32 %v4898, %v4918
        %v4936 = vmul.f32 %v4899, %v4918
        %v4937 = vmul.f32 %v4900, %v4918
        %v4938 = vmul.f32 %v4901, %v4918
        %v4939 = vmul.f32 %v4902, %v4918
        %v4940 = vmul.f32 %v4903, %v4918
        %v4941 = vmul.f32 %v4904, %v4918
        %v4942 = vmul.f32 %v4905, %v4918
        %v4943 = vmul.f32 %v4906, %v4918
        %v4944 = vmul.f32 %v4907, %v4918
        %v4945 = vmul.f32 %v4908, %v4918
        %v4946 = vmul.f32 %v4909, %v4918
        %v4947 = vmul.f32 %v4910, %v4918
        %v4948 = vmul.f32 %v4911, %v4918
        %v4949 = vmul.f32 %v4912, %v4918
        %v4950 = vmul.f32 %v4913, %v4918
        %v4951 = vadd.f32 %v4850, %v4919
        %v4952 = vadd.f32 %v4851, %v4920
        %v4953 = vadd.f32 %v4852, %v4921
        %v4954 = vadd.f32 %v4853, %v4922
        %v4955 = vadd.f32 %v4854, %v4923
        %v4956 = vadd.f32 %v4855, %v4924
        %v4957 = vadd.f32 %v4856, %v4925
        %v4958 = vadd.f32 %v4857, %v4926
        %v4959 = vadd.f32 %v4858, %v4927
        %v4960 = vadd.f32 %v4859, %v4928
        %v4961 = vadd.f32 %v4860, %v4929
        %v4962 = vadd.f32 %v4861, %v4930
        %v4963 = vadd.f32 %v4862, %v4931
        %v4964 = vadd.f32 %v4863, %v4932
        %v4965 = vadd.f32 %v4864, %v4933
        %v4966 = vadd.f32 %v4865, %v4934
        %v4967 = vadd.f32 %v4866, %v4935
        %v4968 = vadd.f32 %v4867, %v4936
        %v4969 = vadd.f32 %v4868, %v4937
        %v4970 = vadd.f32 %v4869, %v4938
        %v4971 = vadd.f32 %v4870, %v4939
        %v4972 = vadd.f32 %v4871, %v4940
        %v4973 = vadd.f32 %v4872, %v4941
        %v4974 = vadd.f32 %v4873, %v4942
        %v4975 = vadd.f32 %v4874, %v4943
        %v4976 = vadd.f32 %v4875, %v4944
        %v4977 = vadd.f32 %v4876, %v4945
        %v4978 = vadd.f32 %v4877, %v4946
        %v4979 = vadd.f32 %v4878, %v4947
        %v4980 = vadd.f32 %v4879, %v4948
        %v4981 = vadd.f32 %v4880, %v4949
        %v4982 = vadd.f32 %v4881, %v4950
        %v4983 = vld [vmem:[%s4037 + $0x2] sm:$0xff]
        %v4984 = vld [vmem:[%s4037 + $0xa] sm:$0xff]
        %v4985 = vld [vmem:[%s4037 + $0x22] sm:$0xff]
        %v4986 = vld [vmem:[%s4037 + $0x2a] sm:$0xff]
        %v4987 = vld [vmem:[%s4037 + $0x42] sm:$0xff]
        %v4988 = vld [vmem:[%s4037 + $0x4a] sm:$0xff]
        %v4989 = vld [vmem:[%s4037 + $0x62] sm:$0xff]
        %v4990 = vld [vmem:[%s4037 + $0x6a] sm:$0xff]
        %v4991 = vld [vmem:[%s4037 + $0x82] sm:$0xff]
        %v4992 = vld [vmem:[%s4037 + $0x8a] sm:$0xff]
        %v4993 = vld [vmem:[%s4037 + $0xa2] sm:$0xff]
        %v4994 = vld [vmem:[%s4037 + $0xaa] sm:$0xff]
        %v4995 = vld [vmem:[%s4037 + $0xc2] sm:$0xff]
        %v4996 = vld [vmem:[%s4037 + $0xca] sm:$0xff]
        %v4997 = vld [vmem:[%s4037 + $0xe2] sm:$0xff]
        %v4998 = vld [vmem:[%s4037 + $0xea] sm:$0xff]
        %v4999 = vld [vmem:[%s4037 + $0x102] sm:$0xff]
        %v5000 = vld [vmem:[%s4037 + $0x10a] sm:$0xff]
        %v5001 = vld [vmem:[%s4037 + $0x122] sm:$0xff]
        %v5002 = vld [vmem:[%s4037 + $0x12a] sm:$0xff]
        %v5003 = vld [vmem:[%s4037 + $0x142] sm:$0xff]
        %v5004 = vld [vmem:[%s4037 + $0x14a] sm:$0xff]
        %v5005 = vld [vmem:[%s4037 + $0x162] sm:$0xff]
        %v5006 = vld [vmem:[%s4037 + $0x16a] sm:$0xff]
        %v5007 = vld [vmem:[%s4037 + $0x182] sm:$0xff]
        %v5008 = vld [vmem:[%s4037 + $0x18a] sm:$0xff]
        %v5009 = vld [vmem:[%s4037 + $0x1a2] sm:$0xff]
        %v5010 = vld [vmem:[%s4037 + $0x1aa] sm:$0xff]
        %v5011 = vld [vmem:[%s4037 + $0x1c2] sm:$0xff]
        %v5012 = vld [vmem:[%s4037 + $0x1ca] sm:$0xff]
        %v5013 = vld [vmem:[%s4037 + $0x1e2] sm:$0xff]
        %v5014 = vld [vmem:[%s4037 + $0x1ea] sm:$0xff]
        %v5015 = vld [vmem:[%s6 + $0x9] sm:$0x1]
        %v5016 = vlaneseq
        %v5017 = vshrl.u32 %v5016, 7
        %v5018 = vsub.s32 0, %v5017
        %v5019 = vrot.slane %v5015, %v5018
        %v5020 = vmul.f32 %v4983, %v5019
        %v5021 = vmul.f32 %v4984, %v5019
        %v5022 = vmul.f32 %v4985, %v5019
        %v5023 = vmul.f32 %v4986, %v5019
        %v5024 = vmul.f32 %v4987, %v5019
        %v5025 = vmul.f32 %v4988, %v5019
        %v5026 = vmul.f32 %v4989, %v5019
        %v5027 = vmul.f32 %v4990, %v5019
        %v5028 = vmul.f32 %v4991, %v5019
        %v5029 = vmul.f32 %v4992, %v5019
        %v5030 = vmul.f32 %v4993, %v5019
        %v5031 = vmul.f32 %v4994, %v5019
        %v5032 = vmul.f32 %v4995, %v5019
        %v5033 = vmul.f32 %v4996, %v5019
        %v5034 = vmul.f32 %v4997, %v5019
        %v5035 = vmul.f32 %v4998, %v5019
        %v5036 = vmul.f32 %v4999, %v5019
        %v5037 = vmul.f32 %v5000, %v5019
        %v5038 = vmul.f32 %v5001, %v5019
        %v5039 = vmul.f32 %v5002, %v5019
        %v5040 = vmul.f32 %v5003, %v5019
        %v5041 = vmul.f32 %v5004, %v5019
        %v5042 = vmul.f32 %v5005, %v5019
        %v5043 = vmul.f32 %v5006, %v5019
        %v5044 = vmul.f32 %v5007, %v5019
        %v5045 = vmul.f32 %v5008, %v5019
        %v5046 = vmul.f32 %v5009, %v5019
        %v5047 = vmul.f32 %v5010, %v5019
        %v5048 = vmul.f32 %v5011, %v5019
        %v5049 = vmul.f32 %v5012, %v5019
        %v5050 = vmul.f32 %v5013, %v5019
        %v5051 = vmul.f32 %v5014, %v5019
        %v5052 = vadd.f32 %v4951, %v5020
        %v5053 = vadd.f32 %v4952, %v5021
        %v5054 = vadd.f32 %v4953, %v5022
        %v5055 = vadd.f32 %v4954, %v5023
        %v5056 = vadd.f32 %v4955, %v5024
        %v5057 = vadd.f32 %v4956, %v5025
        %v5058 = vadd.f32 %v4957, %v5026
        %v5059 = vadd.f32 %v4958, %v5027
        %v5060 = vadd.f32 %v4959, %v5028
        %v5061 = vadd.f32 %v4960, %v5029
        %v5062 = vadd.f32 %v4961, %v5030
        %v5063 = vadd.f32 %v4962, %v5031
        %v5064 = vadd.f32 %v4963, %v5032
        %v5065 = vadd.f32 %v4964, %v5033
        %v5066 = vadd.f32 %v4965, %v5034
        %v5067 = vadd.f32 %v4966, %v5035
        %v5068 = vadd.f32 %v4967, %v5036
        %v5069 = vadd.f32 %v4968, %v5037
        %v5070 = vadd.f32 %v4969, %v5038
        %v5071 = vadd.f32 %v4970, %v5039
        %v5072 = vadd.f32 %v4971, %v5040
        %v5073 = vadd.f32 %v4972, %v5041
        %v5074 = vadd.f32 %v4973, %v5042
        %v5075 = vadd.f32 %v4974, %v5043
        %v5076 = vadd.f32 %v4975, %v5044
        %v5077 = vadd.f32 %v4976, %v5045
        %v5078 = vadd.f32 %v4977, %v5046
        %v5079 = vadd.f32 %v4978, %v5047
        %v5080 = vadd.f32 %v4979, %v5048
        %v5081 = vadd.f32 %v4980, %v5049
        %v5082 = vadd.f32 %v4981, %v5050
        %v5083 = vadd.f32 %v4982, %v5051
        %v5084 = vld [vmem:[%s4037 + $0x3] sm:$0xff]
        %v5085 = vld [vmem:[%s4037 + $0xb] sm:$0xff]
        %v5086 = vld [vmem:[%s4037 + $0x23] sm:$0xff]
        %v5087 = vld [vmem:[%s4037 + $0x2b] sm:$0xff]
        %v5088 = vld [vmem:[%s4037 + $0x43] sm:$0xff]
        %v5089 = vld [vmem:[%s4037 + $0x4b] sm:$0xff]
        %v5090 = vld [vmem:[%s4037 + $0x63] sm:$0xff]
        %v5091 = vld [vmem:[%s4037 + $0x6b] sm:$0xff]
        %v5092 = vld [vmem:[%s4037 + $0x83] sm:$0xff]
        %v5093 = vld [vmem:[%s4037 + $0x8b] sm:$0xff]
        %v5094 = vld [vmem:[%s4037 + $0xa3] sm:$0xff]
        %v5095 = vld [vmem:[%s4037 + $0xab] sm:$0xff]
        %v5096 = vld [vmem:[%s4037 + $0xc3] sm:$0xff]
        %v5097 = vld [vmem:[%s4037 + $0xcb] sm:$0xff]
        %v5098 = vld [vmem:[%s4037 + $0xe3] sm:$0xff]
        %v5099 = vld [vmem:[%s4037 + $0xeb] sm:$0xff]
        %v5100 = vld [vmem:[%s4037 + $0x103] sm:$0xff]
        %v5101 = vld [vmem:[%s4037 + $0x10b] sm:$0xff]
        %v5102 = vld [vmem:[%s4037 + $0x123] sm:$0xff]
        %v5103 = vld [vmem:[%s4037 + $0x12b] sm:$0xff]
        %v5104 = vld [vmem:[%s4037 + $0x143] sm:$0xff]
        %v5105 = vld [vmem:[%s4037 + $0x14b] sm:$0xff]
        %v5106 = vld [vmem:[%s4037 + $0x163] sm:$0xff]
        %v5107 = vld [vmem:[%s4037 + $0x16b] sm:$0xff]
        %v5108 = vld [vmem:[%s4037 + $0x183] sm:$0xff]
        %v5109 = vld [vmem:[%s4037 + $0x18b] sm:$0xff]
        %v5110 = vld [vmem:[%s4037 + $0x1a3] sm:$0xff]
        %v5111 = vld [vmem:[%s4037 + $0x1ab] sm:$0xff]
        %v5112 = vld [vmem:[%s4037 + $0x1c3] sm:$0xff]
        %v5113 = vld [vmem:[%s4037 + $0x1cb] sm:$0xff]
        %v5114 = vld [vmem:[%s4037 + $0x1e3] sm:$0xff]
        %v5115 = vld [vmem:[%s4037 + $0x1eb] sm:$0xff]
        %v5116 = vld [vmem:[%s6 + $0xa] sm:$0x1]
        %v5117 = vlaneseq
        %v5118 = vshrl.u32 %v5117, 7
        %v5119 = vsub.s32 0, %v5118
        %v5120 = vrot.slane %v5116, %v5119
        %v5121 = vmul.f32 %v5084, %v5120
        %v5122 = vmul.f32 %v5085, %v5120
        %v5123 = vmul.f32 %v5086, %v5120
        %v5124 = vmul.f32 %v5087, %v5120
        %v5125 = vmul.f32 %v5088, %v5120
        %v5126 = vmul.f32 %v5089, %v5120
        %v5127 = vmul.f32 %v5090, %v5120
        %v5128 = vmul.f32 %v5091, %v5120
        %v5129 = vmul.f32 %v5092, %v5120
        %v5130 = vmul.f32 %v5093, %v5120
        %v5131 = vmul.f32 %v5094, %v5120
        %v5132 = vmul.f32 %v5095, %v5120
        %v5133 = vmul.f32 %v5096, %v5120
        %v5134 = vmul.f32 %v5097, %v5120
        %v5135 = vmul.f32 %v5098, %v5120
        %v5136 = vmul.f32 %v5099, %v5120
        %v5137 = vmul.f32 %v5100, %v5120
        %v5138 = vmul.f32 %v5101, %v5120
        %v5139 = vmul.f32 %v5102, %v5120
        %v5140 = vmul.f32 %v5103, %v5120
        %v5141 = vmul.f32 %v5104, %v5120
        %v5142 = vmul.f32 %v5105, %v5120
        %v5143 = vmul.f32 %v5106, %v5120
        %v5144 = vmul.f32 %v5107, %v5120
        %v5145 = vmul.f32 %v5108, %v5120
        %v5146 = vmul.f32 %v5109, %v5120
        %v5147 = vmul.f32 %v5110, %v5120
        %v5148 = vmul.f32 %v5111, %v5120
        %v5149 = vmul.f32 %v5112, %v5120
        %v5150 = vmul.f32 %v5113, %v5120
        %v5151 = vmul.f32 %v5114, %v5120
        %v5152 = vmul.f32 %v5115, %v5120
        %v5153 = vadd.f32 %v5052, %v5121
        %v5154 = vadd.f32 %v5053, %v5122
        %v5155 = vadd.f32 %v5054, %v5123
        %v5156 = vadd.f32 %v5055, %v5124
        %v5157 = vadd.f32 %v5056, %v5125
        %v5158 = vadd.f32 %v5057, %v5126
        %v5159 = vadd.f32 %v5058, %v5127
        %v5160 = vadd.f32 %v5059, %v5128
        %v5161 = vadd.f32 %v5060, %v5129
        %v5162 = vadd.f32 %v5061, %v5130
        %v5163 = vadd.f32 %v5062, %v5131
        %v5164 = vadd.f32 %v5063, %v5132
        %v5165 = vadd.f32 %v5064, %v5133
        %v5166 = vadd.f32 %v5065, %v5134
        %v5167 = vadd.f32 %v5066, %v5135
        %v5168 = vadd.f32 %v5067, %v5136
        %v5169 = vadd.f32 %v5068, %v5137
        %v5170 = vadd.f32 %v5069, %v5138
        %v5171 = vadd.f32 %v5070, %v5139
        %v5172 = vadd.f32 %v5071, %v5140
        %v5173 = vadd.f32 %v5072, %v5141
        %v5174 = vadd.f32 %v5073, %v5142
        %v5175 = vadd.f32 %v5074, %v5143
        %v5176 = vadd.f32 %v5075, %v5144
        %v5177 = vadd.f32 %v5076, %v5145
        %v5178 = vadd.f32 %v5077, %v5146
        %v5179 = vadd.f32 %v5078, %v5147
        %v5180 = vadd.f32 %v5079, %v5148
        %v5181 = vadd.f32 %v5080, %v5149
        %v5182 = vadd.f32 %v5081, %v5150
        %v5183 = vadd.f32 %v5082, %v5151
        %v5184 = vadd.f32 %v5083, %v5152
        %v5185 = vld [vmem:[%s4037 + $0x4] sm:$0xff]
        %v5186 = vld [vmem:[%s4037 + $0xc] sm:$0xff]
        %v5187 = vld [vmem:[%s4037 + $0x24] sm:$0xff]
        %v5188 = vld [vmem:[%s4037 + $0x2c] sm:$0xff]
        %v5189 = vld [vmem:[%s4037 + $0x44] sm:$0xff]
        %v5190 = vld [vmem:[%s4037 + $0x4c] sm:$0xff]
        %v5191 = vld [vmem:[%s4037 + $0x64] sm:$0xff]
        %v5192 = vld [vmem:[%s4037 + $0x6c] sm:$0xff]
        %v5193 = vld [vmem:[%s4037 + $0x84] sm:$0xff]
        %v5194 = vld [vmem:[%s4037 + $0x8c] sm:$0xff]
        %v5195 = vld [vmem:[%s4037 + $0xa4] sm:$0xff]
        %v5196 = vld [vmem:[%s4037 + $0xac] sm:$0xff]
        %v5197 = vld [vmem:[%s4037 + $0xc4] sm:$0xff]
        %v5198 = vld [vmem:[%s4037 + $0xcc] sm:$0xff]
        %v5199 = vld [vmem:[%s4037 + $0xe4] sm:$0xff]
        %v5200 = vld [vmem:[%s4037 + $0xec] sm:$0xff]
        %v5201 = vld [vmem:[%s4037 + $0x104] sm:$0xff]
        %v5202 = vld [vmem:[%s4037 + $0x10c] sm:$0xff]
        %v5203 = vld [vmem:[%s4037 + $0x124] sm:$0xff]
        %v5204 = vld [vmem:[%s4037 + $0x12c] sm:$0xff]
        %v5205 = vld [vmem:[%s4037 + $0x144] sm:$0xff]
        %v5206 = vld [vmem:[%s4037 + $0x14c] sm:$0xff]
        %v5207 = vld [vmem:[%s4037 + $0x164] sm:$0xff]
        %v5208 = vld [vmem:[%s4037 + $0x16c] sm:$0xff]
        %v5209 = vld [vmem:[%s4037 + $0x184] sm:$0xff]
        %v5210 = vld [vmem:[%s4037 + $0x18c] sm:$0xff]
        %v5211 = vld [vmem:[%s4037 + $0x1a4] sm:$0xff]
        %v5212 = vld [vmem:[%s4037 + $0x1ac] sm:$0xff]
        %v5213 = vld [vmem:[%s4037 + $0x1c4] sm:$0xff]
        %v5214 = vld [vmem:[%s4037 + $0x1cc] sm:$0xff]
        %v5215 = vld [vmem:[%s4037 + $0x1e4] sm:$0xff]
        %v5216 = vld [vmem:[%s4037 + $0x1ec] sm:$0xff]
        %v5217 = vld [vmem:[%s6 + $0xb] sm:$0x1]
        %v5218 = vlaneseq
        %v5219 = vshrl.u32 %v5218, 7
        %v5220 = vsub.s32 0, %v5219
        %v5221 = vrot.slane %v5217, %v5220
        %v5222 = vmul.f32 %v5185, %v5221
        %v5223 = vmul.f32 %v5186, %v5221
        %v5224 = vmul.f32 %v5187, %v5221
        %v5225 = vmul.f32 %v5188, %v5221
        %v5226 = vmul.f32 %v5189, %v5221
        %v5227 = vmul.f32 %v5190, %v5221
        %v5228 = vmul.f32 %v5191, %v5221
        %v5229 = vmul.f32 %v5192, %v5221
        %v5230 = vmul.f32 %v5193, %v5221
        %v5231 = vmul.f32 %v5194, %v5221
        %v5232 = vmul.f32 %v5195, %v5221
        %v5233 = vmul.f32 %v5196, %v5221
        %v5234 = vmul.f32 %v5197, %v5221
        %v5235 = vmul.f32 %v5198, %v5221
        %v5236 = vmul.f32 %v5199, %v5221
        %v5237 = vmul.f32 %v5200, %v5221
        %v5238 = vmul.f32 %v5201, %v5221
        %v5239 = vmul.f32 %v5202, %v5221
        %v5240 = vmul.f32 %v5203, %v5221
        %v5241 = vmul.f32 %v5204, %v5221
        %v5242 = vmul.f32 %v5205, %v5221
        %v5243 = vmul.f32 %v5206, %v5221
        %v5244 = vmul.f32 %v5207, %v5221
        %v5245 = vmul.f32 %v5208, %v5221
        %v5246 = vmul.f32 %v5209, %v5221
        %v5247 = vmul.f32 %v5210, %v5221
        %v5248 = vmul.f32 %v5211, %v5221
        %v5249 = vmul.f32 %v5212, %v5221
        %v5250 = vmul.f32 %v5213, %v5221
        %v5251 = vmul.f32 %v5214, %v5221
        %v5252 = vmul.f32 %v5215, %v5221
        %v5253 = vmul.f32 %v5216, %v5221
        %v5254 = vadd.f32 %v5153, %v5222
        %v5255 = vadd.f32 %v5154, %v5223
        %v5256 = vadd.f32 %v5155, %v5224
        %v5257 = vadd.f32 %v5156, %v5225
        %v5258 = vadd.f32 %v5157, %v5226
        %v5259 = vadd.f32 %v5158, %v5227
        %v5260 = vadd.f32 %v5159, %v5228
        %v5261 = vadd.f32 %v5160, %v5229
        %v5262 = vadd.f32 %v5161, %v5230
        %v5263 = vadd.f32 %v5162, %v5231
        %v5264 = vadd.f32 %v5163, %v5232
        %v5265 = vadd.f32 %v5164, %v5233
        %v5266 = vadd.f32 %v5165, %v5234
        %v5267 = vadd.f32 %v5166, %v5235
        %v5268 = vadd.f32 %v5167, %v5236
        %v5269 = vadd.f32 %v5168, %v5237
        %v5270 = vadd.f32 %v5169, %v5238
        %v5271 = vadd.f32 %v5170, %v5239
        %v5272 = vadd.f32 %v5171, %v5240
        %v5273 = vadd.f32 %v5172, %v5241
        %v5274 = vadd.f32 %v5173, %v5242
        %v5275 = vadd.f32 %v5174, %v5243
        %v5276 = vadd.f32 %v5175, %v5244
        %v5277 = vadd.f32 %v5176, %v5245
        %v5278 = vadd.f32 %v5177, %v5246
        %v5279 = vadd.f32 %v5178, %v5247
        %v5280 = vadd.f32 %v5179, %v5248
        %v5281 = vadd.f32 %v5180, %v5249
        %v5282 = vadd.f32 %v5181, %v5250
        %v5283 = vadd.f32 %v5182, %v5251
        %v5284 = vadd.f32 %v5183, %v5252
        %v5285 = vadd.f32 %v5184, %v5253
        %v5286 = vld [vmem:[%s4037 + $0x5] sm:$0xff]
        %v5287 = vld [vmem:[%s4037 + $0xd] sm:$0xff]
        %v5288 = vld [vmem:[%s4037 + $0x25] sm:$0xff]
        %v5289 = vld [vmem:[%s4037 + $0x2d] sm:$0xff]
        %v5290 = vld [vmem:[%s4037 + $0x45] sm:$0xff]
        %v5291 = vld [vmem:[%s4037 + $0x4d] sm:$0xff]
        %v5292 = vld [vmem:[%s4037 + $0x65] sm:$0xff]
        %v5293 = vld [vmem:[%s4037 + $0x6d] sm:$0xff]
        %v5294 = vld [vmem:[%s4037 + $0x85] sm:$0xff]
        %v5295 = vld [vmem:[%s4037 + $0x8d] sm:$0xff]
        %v5296 = vld [vmem:[%s4037 + $0xa5] sm:$0xff]
        %v5297 = vld [vmem:[%s4037 + $0xad] sm:$0xff]
        %v5298 = vld [vmem:[%s4037 + $0xc5] sm:$0xff]
        %v5299 = vld [vmem:[%s4037 + $0xcd] sm:$0xff]
        %v5300 = vld [vmem:[%s4037 + $0xe5] sm:$0xff]
        %v5301 = vld [vmem:[%s4037 + $0xed] sm:$0xff]
        %v5302 = vld [vmem:[%s4037 + $0x105] sm:$0xff]
        %v5303 = vld [vmem:[%s4037 + $0x10d] sm:$0xff]
        %v5304 = vld [vmem:[%s4037 + $0x125] sm:$0xff]
        %v5305 = vld [vmem:[%s4037 + $0x12d] sm:$0xff]
        %v5306 = vld [vmem:[%s4037 + $0x145] sm:$0xff]
        %v5307 = vld [vmem:[%s4037 + $0x14d] sm:$0xff]
        %v5308 = vld [vmem:[%s4037 + $0x165] sm:$0xff]
        %v5309 = vld [vmem:[%s4037 + $0x16d] sm:$0xff]
        %v5310 = vld [vmem:[%s4037 + $0x185] sm:$0xff]
        %v5311 = vld [vmem:[%s4037 + $0x18d] sm:$0xff]
        %v5312 = vld [vmem:[%s4037 + $0x1a5] sm:$0xff]
        %v5313 = vld [vmem:[%s4037 + $0x1ad] sm:$0xff]
        %v5314 = vld [vmem:[%s4037 + $0x1c5] sm:$0xff]
        %v5315 = vld [vmem:[%s4037 + $0x1cd] sm:$0xff]
        %v5316 = vld [vmem:[%s4037 + $0x1e5] sm:$0xff]
        %v5317 = vld [vmem:[%s4037 + $0x1ed] sm:$0xff]
        %v5318 = vld [vmem:[%s6 + $0xc] sm:$0x1]
        %v5319 = vlaneseq
        %v5320 = vshrl.u32 %v5319, 7
        %v5321 = vsub.s32 0, %v5320
        %v5322 = vrot.slane %v5318, %v5321
        %v5323 = vmul.f32 %v5286, %v5322
        %v5324 = vmul.f32 %v5287, %v5322
        %v5325 = vmul.f32 %v5288, %v5322
        %v5326 = vmul.f32 %v5289, %v5322
        %v5327 = vmul.f32 %v5290, %v5322
        %v5328 = vmul.f32 %v5291, %v5322
        %v5329 = vmul.f32 %v5292, %v5322
        %v5330 = vmul.f32 %v5293, %v5322
        %v5331 = vmul.f32 %v5294, %v5322
        %v5332 = vmul.f32 %v5295, %v5322
        %v5333 = vmul.f32 %v5296, %v5322
        %v5334 = vmul.f32 %v5297, %v5322
        %v5335 = vmul.f32 %v5298, %v5322
        %v5336 = vmul.f32 %v5299, %v5322
        %v5337 = vmul.f32 %v5300, %v5322
        %v5338 = vmul.f32 %v5301, %v5322
        %v5339 = vmul.f32 %v5302, %v5322
        %v5340 = vmul.f32 %v5303, %v5322
        %v5341 = vmul.f32 %v5304, %v5322
        %v5342 = vmul.f32 %v5305, %v5322
        %v5343 = vmul.f32 %v5306, %v5322
        %v5344 = vmul.f32 %v5307, %v5322
        %v5345 = vmul.f32 %v5308, %v5322
        %v5346 = vmul.f32 %v5309, %v5322
        %v5347 = vmul.f32 %v5310, %v5322
        %v5348 = vmul.f32 %v5311, %v5322
        %v5349 = vmul.f32 %v5312, %v5322
        %v5350 = vmul.f32 %v5313, %v5322
        %v5351 = vmul.f32 %v5314, %v5322
        %v5352 = vmul.f32 %v5315, %v5322
        %v5353 = vmul.f32 %v5316, %v5322
        %v5354 = vmul.f32 %v5317, %v5322
        %v5355 = vadd.f32 %v5254, %v5323
        %v5356 = vadd.f32 %v5255, %v5324
        %v5357 = vadd.f32 %v5256, %v5325
        %v5358 = vadd.f32 %v5257, %v5326
        %v5359 = vadd.f32 %v5258, %v5327
        %v5360 = vadd.f32 %v5259, %v5328
        %v5361 = vadd.f32 %v5260, %v5329
        %v5362 = vadd.f32 %v5261, %v5330
        %v5363 = vadd.f32 %v5262, %v5331
        %v5364 = vadd.f32 %v5263, %v5332
        %v5365 = vadd.f32 %v5264, %v5333
        %v5366 = vadd.f32 %v5265, %v5334
        %v5367 = vadd.f32 %v5266, %v5335
        %v5368 = vadd.f32 %v5267, %v5336
        %v5369 = vadd.f32 %v5268, %v5337
        %v5370 = vadd.f32 %v5269, %v5338
        %v5371 = vadd.f32 %v5270, %v5339
        %v5372 = vadd.f32 %v5271, %v5340
        %v5373 = vadd.f32 %v5272, %v5341
        %v5374 = vadd.f32 %v5273, %v5342
        %v5375 = vadd.f32 %v5274, %v5343
        %v5376 = vadd.f32 %v5275, %v5344
        %v5377 = vadd.f32 %v5276, %v5345
        %v5378 = vadd.f32 %v5277, %v5346
        %v5379 = vadd.f32 %v5278, %v5347
        %v5380 = vadd.f32 %v5279, %v5348
        %v5381 = vadd.f32 %v5280, %v5349
        %v5382 = vadd.f32 %v5281, %v5350
        %v5383 = vadd.f32 %v5282, %v5351
        %v5384 = vadd.f32 %v5283, %v5352
        %v5385 = vadd.f32 %v5284, %v5353
        %v5386 = vadd.f32 %v5285, %v5354
        %v5387 = vld [vmem:[%s4037 + $0x6] sm:$0xff]
        %v5388 = vld [vmem:[%s4037 + $0xe] sm:$0xff]
        %v5389 = vld [vmem:[%s4037 + $0x26] sm:$0xff]
        %v5390 = vld [vmem:[%s4037 + $0x2e] sm:$0xff]
        %v5391 = vld [vmem:[%s4037 + $0x46] sm:$0xff]
        %v5392 = vld [vmem:[%s4037 + $0x4e] sm:$0xff]
        %v5393 = vld [vmem:[%s4037 + $0x66] sm:$0xff]
        %v5394 = vld [vmem:[%s4037 + $0x6e] sm:$0xff]
        %v5395 = vld [vmem:[%s4037 + $0x86] sm:$0xff]
        %v5396 = vld [vmem:[%s4037 + $0x8e] sm:$0xff]
        %v5397 = vld [vmem:[%s4037 + $0xa6] sm:$0xff]
        %v5398 = vld [vmem:[%s4037 + $0xae] sm:$0xff]
        %v5399 = vld [vmem:[%s4037 + $0xc6] sm:$0xff]
        %v5400 = vld [vmem:[%s4037 + $0xce] sm:$0xff]
        %v5401 = vld [vmem:[%s4037 + $0xe6] sm:$0xff]
        %v5402 = vld [vmem:[%s4037 + $0xee] sm:$0xff]
        %v5403 = vld [vmem:[%s4037 + $0x106] sm:$0xff]
        %v5404 = vld [vmem:[%s4037 + $0x10e] sm:$0xff]
        %v5405 = vld [vmem:[%s4037 + $0x126] sm:$0xff]
        %v5406 = vld [vmem:[%s4037 + $0x12e] sm:$0xff]
        %v5407 = vld [vmem:[%s4037 + $0x146] sm:$0xff]
        %v5408 = vld [vmem:[%s4037 + $0x14e] sm:$0xff]
        %v5409 = vld [vmem:[%s4037 + $0x166] sm:$0xff]
        %v5410 = vld [vmem:[%s4037 + $0x16e] sm:$0xff]
        %v5411 = vld [vmem:[%s4037 + $0x186] sm:$0xff]
        %v5412 = vld [vmem:[%s4037 + $0x18e] sm:$0xff]
        %v5413 = vld [vmem:[%s4037 + $0x1a6] sm:$0xff]
        %v5414 = vld [vmem:[%s4037 + $0x1ae] sm:$0xff]
        %v5415 = vld [vmem:[%s4037 + $0x1c6] sm:$0xff]
        %v5416 = vld [vmem:[%s4037 + $0x1ce] sm:$0xff]
        %v5417 = vld [vmem:[%s4037 + $0x1e6] sm:$0xff]
        %v5418 = vld [vmem:[%s4037 + $0x1ee] sm:$0xff]
        %v5419 = vld [vmem:[%s6 + $0xd] sm:$0x1]
        %v5420 = vlaneseq
        %v5421 = vshrl.u32 %v5420, 7
        %v5422 = vsub.s32 0, %v5421
        %v5423 = vrot.slane %v5419, %v5422
        %v5424 = vmul.f32 %v5387, %v5423
        %v5425 = vmul.f32 %v5388, %v5423
        %v5426 = vmul.f32 %v5389, %v5423
        %v5427 = vmul.f32 %v5390, %v5423
        %v5428 = vmul.f32 %v5391, %v5423
        %v5429 = vmul.f32 %v5392, %v5423
        %v5430 = vmul.f32 %v5393, %v5423
        %v5431 = vmul.f32 %v5394, %v5423
        %v5432 = vmul.f32 %v5395, %v5423
        %v5433 = vmul.f32 %v5396, %v5423
        %v5434 = vmul.f32 %v5397, %v5423
        %v5435 = vmul.f32 %v5398, %v5423
        %v5436 = vmul.f32 %v5399, %v5423
        %v5437 = vmul.f32 %v5400, %v5423
        %v5438 = vmul.f32 %v5401, %v5423
        %v5439 = vmul.f32 %v5402, %v5423
        %v5440 = vmul.f32 %v5403, %v5423
        %v5441 = vmul.f32 %v5404, %v5423
        %v5442 = vmul.f32 %v5405, %v5423
        %v5443 = vmul.f32 %v5406, %v5423
        %v5444 = vmul.f32 %v5407, %v5423
        %v5445 = vmul.f32 %v5408, %v5423
        %v5446 = vmul.f32 %v5409, %v5423
        %v5447 = vmul.f32 %v5410, %v5423
        %v5448 = vmul.f32 %v5411, %v5423
        %v5449 = vmul.f32 %v5412, %v5423
        %v5450 = vmul.f32 %v5413, %v5423
        %v5451 = vmul.f32 %v5414, %v5423
        %v5452 = vmul.f32 %v5415, %v5423
        %v5453 = vmul.f32 %v5416, %v5423
        %v5454 = vmul.f32 %v5417, %v5423
        %v5455 = vmul.f32 %v5418, %v5423
        %v5456 = vadd.f32 %v5355, %v5424
        %v5457 = vadd.f32 %v5356, %v5425
        %v5458 = vadd.f32 %v5357, %v5426
        %v5459 = vadd.f32 %v5358, %v5427
        %v5460 = vadd.f32 %v5359, %v5428
        %v5461 = vadd.f32 %v5360, %v5429
        %v5462 = vadd.f32 %v5361, %v5430
        %v5463 = vadd.f32 %v5362, %v5431
        %v5464 = vadd.f32 %v5363, %v5432
        %v5465 = vadd.f32 %v5364, %v5433
        %v5466 = vadd.f32 %v5365, %v5434
        %v5467 = vadd.f32 %v5366, %v5435
        %v5468 = vadd.f32 %v5367, %v5436
        %v5469 = vadd.f32 %v5368, %v5437
        %v5470 = vadd.f32 %v5369, %v5438
        %v5471 = vadd.f32 %v5370, %v5439
        %v5472 = vadd.f32 %v5371, %v5440
        %v5473 = vadd.f32 %v5372, %v5441
        %v5474 = vadd.f32 %v5373, %v5442
        %v5475 = vadd.f32 %v5374, %v5443
        %v5476 = vadd.f32 %v5375, %v5444
        %v5477 = vadd.f32 %v5376, %v5445
        %v5478 = vadd.f32 %v5377, %v5446
        %v5479 = vadd.f32 %v5378, %v5447
        %v5480 = vadd.f32 %v5379, %v5448
        %v5481 = vadd.f32 %v5380, %v5449
        %v5482 = vadd.f32 %v5381, %v5450
        %v5483 = vadd.f32 %v5382, %v5451
        %v5484 = vadd.f32 %v5383, %v5452
        %v5485 = vadd.f32 %v5384, %v5453
        %v5486 = vadd.f32 %v5385, %v5454
        %v5487 = vadd.f32 %v5386, %v5455
        %v5488 = vld [vmem:[%s4037 + $0x7] sm:$0xff]
        %v5489 = vld [vmem:[%s4037 + $0xf] sm:$0xff]
        %v5490 = vld [vmem:[%s4037 + $0x27] sm:$0xff]
        %v5491 = vld [vmem:[%s4037 + $0x2f] sm:$0xff]
        %v5492 = vld [vmem:[%s4037 + $0x47] sm:$0xff]
        %v5493 = vld [vmem:[%s4037 + $0x4f] sm:$0xff]
        %v5494 = vld [vmem:[%s4037 + $0x67] sm:$0xff]
        %v5495 = vld [vmem:[%s4037 + $0x6f] sm:$0xff]
        %v5496 = vld [vmem:[%s4037 + $0x87] sm:$0xff]
        %v5497 = vld [vmem:[%s4037 + $0x8f] sm:$0xff]
        %v5498 = vld [vmem:[%s4037 + $0xa7] sm:$0xff]
        %v5499 = vld [vmem:[%s4037 + $0xaf] sm:$0xff]
        %v5500 = vld [vmem:[%s4037 + $0xc7] sm:$0xff]
        %v5501 = vld [vmem:[%s4037 + $0xcf] sm:$0xff]
        %v5502 = vld [vmem:[%s4037 + $0xe7] sm:$0xff]
        %v5503 = vld [vmem:[%s4037 + $0xef] sm:$0xff]
        %v5504 = vld [vmem:[%s4037 + $0x107] sm:$0xff]
        %v5505 = vld [vmem:[%s4037 + $0x10f] sm:$0xff]
        %v5506 = vld [vmem:[%s4037 + $0x127] sm:$0xff]
        %v5507 = vld [vmem:[%s4037 + $0x12f] sm:$0xff]
        %v5508 = vld [vmem:[%s4037 + $0x147] sm:$0xff]
        %v5509 = vld [vmem:[%s4037 + $0x14f] sm:$0xff]
        %v5510 = vld [vmem:[%s4037 + $0x167] sm:$0xff]
        %v5511 = vld [vmem:[%s4037 + $0x16f] sm:$0xff]
        %v5512 = vld [vmem:[%s4037 + $0x187] sm:$0xff]
        %v5513 = vld [vmem:[%s4037 + $0x18f] sm:$0xff]
        %v5514 = vld [vmem:[%s4037 + $0x1a7] sm:$0xff]
        %v5515 = vld [vmem:[%s4037 + $0x1af] sm:$0xff]
        %v5516 = vld [vmem:[%s4037 + $0x1c7] sm:$0xff]
        %v5517 = vld [vmem:[%s4037 + $0x1cf] sm:$0xff]
        %v5518 = vld [vmem:[%s4037 + $0x1e7] sm:$0xff]
        %v5519 = vld [vmem:[%s4037 + $0x1ef] sm:$0xff]
        %v5520 = vld [vmem:[%s6 + $0xe] sm:$0x1]
        %v5521 = vlaneseq
        %v5522 = vshrl.u32 %v5521, 7
        %v5523 = vsub.s32 0, %v5522
        %v5524 = vrot.slane %v5520, %v5523
        %v5525 = vmul.f32 %v5488, %v5524
        %v5526 = vmul.f32 %v5489, %v5524
        %v5527 = vmul.f32 %v5490, %v5524
        %v5528 = vmul.f32 %v5491, %v5524
        %v5529 = vmul.f32 %v5492, %v5524
        %v5530 = vmul.f32 %v5493, %v5524
        %v5531 = vmul.f32 %v5494, %v5524
        %v5532 = vmul.f32 %v5495, %v5524
        %v5533 = vmul.f32 %v5496, %v5524
        %v5534 = vmul.f32 %v5497, %v5524
        %v5535 = vmul.f32 %v5498, %v5524
        %v5536 = vmul.f32 %v5499, %v5524
        %v5537 = vmul.f32 %v5500, %v5524
        %v5538 = vmul.f32 %v5501, %v5524
        %v5539 = vmul.f32 %v5502, %v5524
        %v5540 = vmul.f32 %v5503, %v5524
        %v5541 = vmul.f32 %v5504, %v5524
        %v5542 = vmul.f32 %v5505, %v5524
        %v5543 = vmul.f32 %v5506, %v5524
        %v5544 = vmul.f32 %v5507, %v5524
        %v5545 = vmul.f32 %v5508, %v5524
        %v5546 = vmul.f32 %v5509, %v5524
        %v5547 = vmul.f32 %v5510, %v5524
        %v5548 = vmul.f32 %v5511, %v5524
        %v5549 = vmul.f32 %v5512, %v5524
        %v5550 = vmul.f32 %v5513, %v5524
        %v5551 = vmul.f32 %v5514, %v5524
        %v5552 = vmul.f32 %v5515, %v5524
        %v5553 = vmul.f32 %v5516, %v5524
        %v5554 = vmul.f32 %v5517, %v5524
        %v5555 = vmul.f32 %v5518, %v5524
        %v5556 = vmul.f32 %v5519, %v5524
        %v5557 = vadd.f32 %v5456, %v5525
        %v5558 = vadd.f32 %v5457, %v5526
        %v5559 = vadd.f32 %v5458, %v5527
        %v5560 = vadd.f32 %v5459, %v5528
        %v5561 = vadd.f32 %v5460, %v5529
        %v5562 = vadd.f32 %v5461, %v5530
        %v5563 = vadd.f32 %v5462, %v5531
        %v5564 = vadd.f32 %v5463, %v5532
        %v5565 = vadd.f32 %v5464, %v5533
        %v5566 = vadd.f32 %v5465, %v5534
        %v5567 = vadd.f32 %v5466, %v5535
        %v5568 = vadd.f32 %v5467, %v5536
        %v5569 = vadd.f32 %v5468, %v5537
        %v5570 = vadd.f32 %v5469, %v5538
        %v5571 = vadd.f32 %v5470, %v5539
        %v5572 = vadd.f32 %v5471, %v5540
        %v5573 = vadd.f32 %v5472, %v5541
        %v5574 = vadd.f32 %v5473, %v5542
        %v5575 = vadd.f32 %v5474, %v5543
        %v5576 = vadd.f32 %v5475, %v5544
        %v5577 = vadd.f32 %v5476, %v5545
        %v5578 = vadd.f32 %v5477, %v5546
        %v5579 = vadd.f32 %v5478, %v5547
        %v5580 = vadd.f32 %v5479, %v5548
        %v5581 = vadd.f32 %v5480, %v5549
        %v5582 = vadd.f32 %v5481, %v5550
        %v5583 = vadd.f32 %v5482, %v5551
        %v5584 = vadd.f32 %v5483, %v5552
        %v5585 = vadd.f32 %v5484, %v5553
        %v5586 = vadd.f32 %v5485, %v5554
        %v5587 = vadd.f32 %v5486, %v5555
        %v5588 = vadd.f32 %v5487, %v5556
        %v5589 = vld [vmem:[%s4037 + $0x10] sm:$0xff]
        %v5590 = vld [vmem:[%s4037 + $0x30] sm:$0xff]
        %v5591 = vld [vmem:[%s4037 + $0x50] sm:$0xff]
        %v5592 = vld [vmem:[%s4037 + $0x70] sm:$0xff]
        %v5593 = vld [vmem:[%s4037 + $0x90] sm:$0xff]
        %v5594 = vld [vmem:[%s4037 + $0xb0] sm:$0xff]
        %v5595 = vld [vmem:[%s4037 + $0xd0] sm:$0xff]
        %v5596 = vld [vmem:[%s4037 + $0xf0] sm:$0xff]
        %v5597 = vld [vmem:[%s4037 + $0x110] sm:$0xff]
        %v5598 = vld [vmem:[%s4037 + $0x130] sm:$0xff]
        %v5599 = vld [vmem:[%s4037 + $0x150] sm:$0xff]
        %v5600 = vld [vmem:[%s4037 + $0x170] sm:$0xff]
        %v5601 = vld [vmem:[%s4037 + $0x190] sm:$0xff]
        %v5602 = vld [vmem:[%s4037 + $0x1b0] sm:$0xff]
        %v5603 = vld [vmem:[%s4037 + $0x1d0] sm:$0xff]
        %v5604 = vld [vmem:[%s4037 + $0x1f0] sm:$0xff]
        %v5605 = vld [vmem:[%s6 + $0xf] sm:$0x1]
        %v5606 = vlaneseq
        %v5607 = vshrl.u32 %v5606, 7
        %v5608 = vsub.s32 0, %v5607
        %v5609 = vrot.slane %v5605, %v5608
        %v5610 = vmul.f32 %v4782, %v5609
        %v5611 = vmul.f32 %v5589, %v5609
        %v5612 = vmul.f32 %v4784, %v5609
        %v5613 = vmul.f32 %v5590, %v5609
        %v5614 = vmul.f32 %v4786, %v5609
        %v5615 = vmul.f32 %v5591, %v5609
        %v5616 = vmul.f32 %v4788, %v5609
        %v5617 = vmul.f32 %v5592, %v5609
        %v5618 = vmul.f32 %v4790, %v5609
        %v5619 = vmul.f32 %v5593, %v5609
        %v5620 = vmul.f32 %v4792, %v5609
        %v5621 = vmul.f32 %v5594, %v5609
        %v5622 = vmul.f32 %v4794, %v5609
        %v5623 = vmul.f32 %v5595, %v5609
        %v5624 = vmul.f32 %v4796, %v5609
        %v5625 = vmul.f32 %v5596, %v5609
        %v5626 = vmul.f32 %v4798, %v5609
        %v5627 = vmul.f32 %v5597, %v5609
        %v5628 = vmul.f32 %v4800, %v5609
        %v5629 = vmul.f32 %v5598, %v5609
        %v5630 = vmul.f32 %v4802, %v5609
        %v5631 = vmul.f32 %v5599, %v5609
        %v5632 = vmul.f32 %v4804, %v5609
        %v5633 = vmul.f32 %v5600, %v5609
        %v5634 = vmul.f32 %v4806, %v5609
        %v5635 = vmul.f32 %v5601, %v5609
        %v5636 = vmul.f32 %v4808, %v5609
        %v5637 = vmul.f32 %v5602, %v5609
        %v5638 = vmul.f32 %v4810, %v5609
        %v5639 = vmul.f32 %v5603, %v5609
        %v5640 = vmul.f32 %v4812, %v5609
        %v5641 = vmul.f32 %v5604, %v5609
        %v5642 = vadd.f32 %v5557, %v5610
        %v5643 = vadd.f32 %v5558, %v5611
        %v5644 = vadd.f32 %v5559, %v5612
        %v5645 = vadd.f32 %v5560, %v5613
        %v5646 = vadd.f32 %v5561, %v5614
        %v5647 = vadd.f32 %v5562, %v5615
        %v5648 = vadd.f32 %v5563, %v5616
        %v5649 = vadd.f32 %v5564, %v5617
        %v5650 = vadd.f32 %v5565, %v5618
        %v5651 = vadd.f32 %v5566, %v5619
        %v5652 = vadd.f32 %v5567, %v5620
        %v5653 = vadd.f32 %v5568, %v5621
        %v5654 = vadd.f32 %v5569, %v5622
        %v5655 = vadd.f32 %v5570, %v5623
        %v5656 = vadd.f32 %v5571, %v5624
        %v5657 = vadd.f32 %v5572, %v5625
        %v5658 = vadd.f32 %v5573, %v5626
        %v5659 = vadd.f32 %v5574, %v5627
        %v5660 = vadd.f32 %v5575, %v5628
        %v5661 = vadd.f32 %v5576, %v5629
        %v5662 = vadd.f32 %v5577, %v5630
        %v5663 = vadd.f32 %v5578, %v5631
        %v5664 = vadd.f32 %v5579, %v5632
        %v5665 = vadd.f32 %v5580, %v5633
        %v5666 = vadd.f32 %v5581, %v5634
        %v5667 = vadd.f32 %v5582, %v5635
        %v5668 = vadd.f32 %v5583, %v5636
        %v5669 = vadd.f32 %v5584, %v5637
        %v5670 = vadd.f32 %v5585, %v5638
        %v5671 = vadd.f32 %v5586, %v5639
        %v5672 = vadd.f32 %v5587, %v5640
        %v5673 = vadd.f32 %v5588, %v5641
        %v5674 = vld [vmem:[%s4037 + $0x11] sm:$0xff]
        %v5675 = vld [vmem:[%s4037 + $0x31] sm:$0xff]
        %v5676 = vld [vmem:[%s4037 + $0x51] sm:$0xff]
        %v5677 = vld [vmem:[%s4037 + $0x71] sm:$0xff]
        %v5678 = vld [vmem:[%s4037 + $0x91] sm:$0xff]
        %v5679 = vld [vmem:[%s4037 + $0xb1] sm:$0xff]
        %v5680 = vld [vmem:[%s4037 + $0xd1] sm:$0xff]
        %v5681 = vld [vmem:[%s4037 + $0xf1] sm:$0xff]
        %v5682 = vld [vmem:[%s4037 + $0x111] sm:$0xff]
        %v5683 = vld [vmem:[%s4037 + $0x131] sm:$0xff]
        %v5684 = vld [vmem:[%s4037 + $0x151] sm:$0xff]
        %v5685 = vld [vmem:[%s4037 + $0x171] sm:$0xff]
        %v5686 = vld [vmem:[%s4037 + $0x191] sm:$0xff]
        %v5687 = vld [vmem:[%s4037 + $0x1b1] sm:$0xff]
        %v5688 = vld [vmem:[%s4037 + $0x1d1] sm:$0xff]
        %v5689 = vld [vmem:[%s4037 + $0x1f1] sm:$0xff]
        %v5690 = vld [vmem:[%s6 + $0x10] sm:$0x1]
        %v5691 = vlaneseq
        %v5692 = vshrl.u32 %v5691, 7
        %v5693 = vsub.s32 0, %v5692
        %v5694 = vrot.slane %v5690, %v5693
        %v5695 = vmul.f32 %v4883, %v5694
        %v5696 = vmul.f32 %v5674, %v5694
        %v5697 = vmul.f32 %v4885, %v5694
        %v5698 = vmul.f32 %v5675, %v5694
        %v5699 = vmul.f32 %v4887, %v5694
        %v5700 = vmul.f32 %v5676, %v5694
        %v5701 = vmul.f32 %v4889, %v5694
        %v5702 = vmul.f32 %v5677, %v5694
        %v5703 = vmul.f32 %v4891, %v5694
        %v5704 = vmul.f32 %v5678, %v5694
        %v5705 = vmul.f32 %v4893, %v5694
        %v5706 = vmul.f32 %v5679, %v5694
        %v5707 = vmul.f32 %v4895, %v5694
        %v5708 = vmul.f32 %v5680, %v5694
        %v5709 = vmul.f32 %v4897, %v5694
        %v5710 = vmul.f32 %v5681, %v5694
        %v5711 = vmul.f32 %v4899, %v5694
        %v5712 = vmul.f32 %v5682, %v5694
        %v5713 = vmul.f32 %v4901, %v5694
        %v5714 = vmul.f32 %v5683, %v5694
        %v5715 = vmul.f32 %v4903, %v5694
        %v5716 = vmul.f32 %v5684, %v5694
        %v5717 = vmul.f32 %v4905, %v5694
        %v5718 = vmul.f32 %v5685, %v5694
        %v5719 = vmul.f32 %v4907, %v5694
        %v5720 = vmul.f32 %v5686, %v5694
        %v5721 = vmul.f32 %v4909, %v5694
        %v5722 = vmul.f32 %v5687, %v5694
        %v5723 = vmul.f32 %v4911, %v5694
        %v5724 = vmul.f32 %v5688, %v5694
        %v5725 = vmul.f32 %v4913, %v5694
        %v5726 = vmul.f32 %v5689, %v5694
        %v5727 = vadd.f32 %v5642, %v5695
        %v5728 = vadd.f32 %v5643, %v5696
        %v5729 = vadd.f32 %v5644, %v5697
        %v5730 = vadd.f32 %v5645, %v5698
        %v5731 = vadd.f32 %v5646, %v5699
        %v5732 = vadd.f32 %v5647, %v5700
        %v5733 = vadd.f32 %v5648, %v5701
        %v5734 = vadd.f32 %v5649, %v5702
        %v5735 = vadd.f32 %v5650, %v5703
        %v5736 = vadd.f32 %v5651, %v5704
        %v5737 = vadd.f32 %v5652, %v5705
        %v5738 = vadd.f32 %v5653, %v5706
        %v5739 = vadd.f32 %v5654, %v5707
        %v5740 = vadd.f32 %v5655, %v5708
        %v5741 = vadd.f32 %v5656, %v5709
        %v5742 = vadd.f32 %v5657, %v5710
        %v5743 = vadd.f32 %v5658, %v5711
        %v5744 = vadd.f32 %v5659, %v5712
        %v5745 = vadd.f32 %v5660, %v5713
        %v5746 = vadd.f32 %v5661, %v5714
        %v5747 = vadd.f32 %v5662, %v5715
        %v5748 = vadd.f32 %v5663, %v5716
        %v5749 = vadd.f32 %v5664, %v5717
        %v5750 = vadd.f32 %v5665, %v5718
        %v5751 = vadd.f32 %v5666, %v5719
        %v5752 = vadd.f32 %v5667, %v5720
        %v5753 = vadd.f32 %v5668, %v5721
        %v5754 = vadd.f32 %v5669, %v5722
        %v5755 = vadd.f32 %v5670, %v5723
        %v5756 = vadd.f32 %v5671, %v5724
        %v5757 = vadd.f32 %v5672, %v5725
        %v5758 = vadd.f32 %v5673, %v5726
        %v5759 = vld [vmem:[%s4037 + $0x12] sm:$0xff]
        %v5760 = vld [vmem:[%s4037 + $0x32] sm:$0xff]
        %v5761 = vld [vmem:[%s4037 + $0x52] sm:$0xff]
        %v5762 = vld [vmem:[%s4037 + $0x72] sm:$0xff]
        %v5763 = vld [vmem:[%s4037 + $0x92] sm:$0xff]
        %v5764 = vld [vmem:[%s4037 + $0xb2] sm:$0xff]
        %v5765 = vld [vmem:[%s4037 + $0xd2] sm:$0xff]
        %v5766 = vld [vmem:[%s4037 + $0xf2] sm:$0xff]
        %v5767 = vld [vmem:[%s4037 + $0x112] sm:$0xff]
        %v5768 = vld [vmem:[%s4037 + $0x132] sm:$0xff]
        %v5769 = vld [vmem:[%s4037 + $0x152] sm:$0xff]
        %v5770 = vld [vmem:[%s4037 + $0x172] sm:$0xff]
        %v5771 = vld [vmem:[%s4037 + $0x192] sm:$0xff]
        %v5772 = vld [vmem:[%s4037 + $0x1b2] sm:$0xff]
        %v5773 = vld [vmem:[%s4037 + $0x1d2] sm:$0xff]
        %v5774 = vld [vmem:[%s4037 + $0x1f2] sm:$0xff]
        %v5775 = vld [vmem:[%s6 + $0x11] sm:$0x1]
        %v5776 = vlaneseq
        %v5777 = vshrl.u32 %v5776, 7
        %v5778 = vsub.s32 0, %v5777
        %v5779 = vrot.slane %v5775, %v5778
        %v5780 = vmul.f32 %v4984, %v5779
        %v5781 = vmul.f32 %v5759, %v5779
        %v5782 = vmul.f32 %v4986, %v5779
        %v5783 = vmul.f32 %v5760, %v5779
        %v5784 = vmul.f32 %v4988, %v5779
        %v5785 = vmul.f32 %v5761, %v5779
        %v5786 = vmul.f32 %v4990, %v5779
        %v5787 = vmul.f32 %v5762, %v5779
        %v5788 = vmul.f32 %v4992, %v5779
        %v5789 = vmul.f32 %v5763, %v5779
        %v5790 = vmul.f32 %v4994, %v5779
        %v5791 = vmul.f32 %v5764, %v5779
        %v5792 = vmul.f32 %v4996, %v5779
        %v5793 = vmul.f32 %v5765, %v5779
        %v5794 = vmul.f32 %v4998, %v5779
        %v5795 = vmul.f32 %v5766, %v5779
        %v5796 = vmul.f32 %v5000, %v5779
        %v5797 = vmul.f32 %v5767, %v5779
        %v5798 = vmul.f32 %v5002, %v5779
        %v5799 = vmul.f32 %v5768, %v5779
        %v5800 = vmul.f32 %v5004, %v5779
        %v5801 = vmul.f32 %v5769, %v5779
        %v5802 = vmul.f32 %v5006, %v5779
        %v5803 = vmul.f32 %v5770, %v5779
        %v5804 = vmul.f32 %v5008, %v5779
        %v5805 = vmul.f32 %v5771, %v5779
        %v5806 = vmul.f32 %v5010, %v5779
        %v5807 = vmul.f32 %v5772, %v5779
        %v5808 = vmul.f32 %v5012, %v5779
        %v5809 = vmul.f32 %v5773, %v5779
        %v5810 = vmul.f32 %v5014, %v5779
        %v5811 = vmul.f32 %v5774, %v5779
        %v5812 = vadd.f32 %v5727, %v5780
        %v5813 = vadd.f32 %v5728, %v5781
        %v5814 = vadd.f32 %v5729, %v5782
        %v5815 = vadd.f32 %v5730, %v5783
        %v5816 = vadd.f32 %v5731, %v5784
        %v5817 = vadd.f32 %v5732, %v5785
        %v5818 = vadd.f32 %v5733, %v5786
        %v5819 = vadd.f32 %v5734, %v5787
        %v5820 = vadd.f32 %v5735, %v5788
        %v5821 = vadd.f32 %v5736, %v5789
        %v5822 = vadd.f32 %v5737, %v5790
        %v5823 = vadd.f32 %v5738, %v5791
        %v5824 = vadd.f32 %v5739, %v5792
        %v5825 = vadd.f32 %v5740, %v5793
        %v5826 = vadd.f32 %v5741, %v5794
        %v5827 = vadd.f32 %v5742, %v5795
        %v5828 = vadd.f32 %v5743, %v5796
        %v5829 = vadd.f32 %v5744, %v5797
        %v5830 = vadd.f32 %v5745, %v5798
        %v5831 = vadd.f32 %v5746, %v5799
        %v5832 = vadd.f32 %v5747, %v5800
        %v5833 = vadd.f32 %v5748, %v5801
        %v5834 = vadd.f32 %v5749, %v5802
        %v5835 = vadd.f32 %v5750, %v5803
        %v5836 = vadd.f32 %v5751, %v5804
        %v5837 = vadd.f32 %v5752, %v5805
        %v5838 = vadd.f32 %v5753, %v5806
        %v5839 = vadd.f32 %v5754, %v5807
        %v5840 = vadd.f32 %v5755, %v5808
        %v5841 = vadd.f32 %v5756, %v5809
        %v5842 = vadd.f32 %v5757, %v5810
        %v5843 = vadd.f32 %v5758, %v5811
        %s5844 = scalar_lea.vmem [#allocation3], 192
        %v5845 = vld [vmem:[%s5844 + $0x4] sm:$0xff]
        %v5846 = vld [vmem:[%s5844 + $0xc] sm:$0xff]
        %v5847 = vld [vmem:[%s5844 + $0x24] sm:$0xff]
        %v5848 = vld [vmem:[%s5844 + $0x2c] sm:$0xff]
        %v5849 = vld [vmem:[%s5844 + $0x44] sm:$0xff]
        %v5850 = vld [vmem:[%s5844 + $0x4c] sm:$0xff]
        %v5851 = vld [vmem:[%s5844 + $0x64] sm:$0xff]
        %v5852 = vld [vmem:[%s5844 + $0x6c] sm:$0xff]
        %v5853 = vld [vmem:[%s5844 + $0x84] sm:$0xff]
        %v5854 = vld [vmem:[%s5844 + $0x8c] sm:$0xff]
        %v5855 = vld [vmem:[%s5844 + $0xa4] sm:$0xff]
        %v5856 = vld [vmem:[%s5844 + $0xac] sm:$0xff]
        %v5857 = vld [vmem:[%s5844 + $0xc4] sm:$0xff]
        %v5858 = vld [vmem:[%s5844 + $0xcc] sm:$0xff]
        %v5859 = vld [vmem:[%s5844 + $0xe4] sm:$0xff]
        %v5860 = vld [vmem:[%s5844 + $0xec] sm:$0xff]
        %v5861 = vld [vmem:[%s5844 + $0x104] sm:$0xff]
        %v5862 = vld [vmem:[%s5844 + $0x10c] sm:$0xff]
        %v5863 = vld [vmem:[%s5844 + $0x124] sm:$0xff]
        %v5864 = vld [vmem:[%s5844 + $0x12c] sm:$0xff]
        %v5865 = vld [vmem:[%s5844 + $0x144] sm:$0xff]
        %v5866 = vld [vmem:[%s5844 + $0x14c] sm:$0xff]
        %v5867 = vld [vmem:[%s5844 + $0x164] sm:$0xff]
        %v5868 = vld [vmem:[%s5844 + $0x16c] sm:$0xff]
        %v5869 = vld [vmem:[%s5844 + $0x184] sm:$0xff]
        %v5870 = vld [vmem:[%s5844 + $0x18c] sm:$0xff]
        %v5871 = vld [vmem:[%s5844 + $0x1a4] sm:$0xff]
        %v5872 = vld [vmem:[%s5844 + $0x1ac] sm:$0xff]
        %v5873 = vld [vmem:[%s5844 + $0x1c4] sm:$0xff]
        %v5874 = vld [vmem:[%s5844 + $0x1cc] sm:$0xff]
        %v5875 = vld [vmem:[%s5844 + $0x1e4] sm:$0xff]
        %v5876 = vld [vmem:[%s5844 + $0x1ec] sm:$0xff]
        %v5877 = vld [vmem:[%s6 + $0x12] sm:$0x1]
        %v5878 = vlaneseq
        %v5879 = vshrl.u32 %v5878, 7
        %v5880 = vsub.s32 0, %v5879
        %v5881 = vrot.slane %v5877, %v5880
        %v5882 = vmul.f32 %v5845, %v5881
        %v5883 = vmul.f32 %v5846, %v5881
        %v5884 = vmul.f32 %v5847, %v5881
        %v5885 = vmul.f32 %v5848, %v5881
        %v5886 = vmul.f32 %v5849, %v5881
        %v5887 = vmul.f32 %v5850, %v5881
        %v5888 = vmul.f32 %v5851, %v5881
        %v5889 = vmul.f32 %v5852, %v5881
        %v5890 = vmul.f32 %v5853, %v5881
        %v5891 = vmul.f32 %v5854, %v5881
        %v5892 = vmul.f32 %v5855, %v5881
        %v5893 = vmul.f32 %v5856, %v5881
        %v5894 = vmul.f32 %v5857, %v5881
        %v5895 = vmul.f32 %v5858, %v5881
        %v5896 = vmul.f32 %v5859, %v5881
        %v5897 = vmul.f32 %v5860, %v5881
        %v5898 = vmul.f32 %v5861, %v5881
        %v5899 = vmul.f32 %v5862, %v5881
        %v5900 = vmul.f32 %v5863, %v5881
        %v5901 = vmul.f32 %v5864, %v5881
        %v5902 = vmul.f32 %v5865, %v5881
        %v5903 = vmul.f32 %v5866, %v5881
        %v5904 = vmul.f32 %v5867, %v5881
        %v5905 = vmul.f32 %v5868, %v5881
        %v5906 = vmul.f32 %v5869, %v5881
        %v5907 = vmul.f32 %v5870, %v5881
        %v5908 = vmul.f32 %v5871, %v5881
        %v5909 = vmul.f32 %v5872, %v5881
        %v5910 = vmul.f32 %v5873, %v5881
        %v5911 = vmul.f32 %v5874, %v5881
        %v5912 = vmul.f32 %v5875, %v5881
        %v5913 = vmul.f32 %v5876, %v5881
        %v5914 = vadd.f32 %v5812, %v5882
        %v5915 = vadd.f32 %v5813, %v5883
        %v5916 = vadd.f32 %v5814, %v5884
        %v5917 = vadd.f32 %v5815, %v5885
        %v5918 = vadd.f32 %v5816, %v5886
        %v5919 = vadd.f32 %v5817, %v5887
        %v5920 = vadd.f32 %v5818, %v5888
        %v5921 = vadd.f32 %v5819, %v5889
        %v5922 = vadd.f32 %v5820, %v5890
        %v5923 = vadd.f32 %v5821, %v5891
        %v5924 = vadd.f32 %v5822, %v5892
        %v5925 = vadd.f32 %v5823, %v5893
        %v5926 = vadd.f32 %v5824, %v5894
        %v5927 = vadd.f32 %v5825, %v5895
        %v5928 = vadd.f32 %v5826, %v5896
        %v5929 = vadd.f32 %v5827, %v5897
        %v5930 = vadd.f32 %v5828, %v5898
        %v5931 = vadd.f32 %v5829, %v5899
        %v5932 = vadd.f32 %v5830, %v5900
        %v5933 = vadd.f32 %v5831, %v5901
        %v5934 = vadd.f32 %v5832, %v5902
        %v5935 = vadd.f32 %v5833, %v5903
        %v5936 = vadd.f32 %v5834, %v5904
        %v5937 = vadd.f32 %v5835, %v5905
        %v5938 = vadd.f32 %v5836, %v5906
        %v5939 = vadd.f32 %v5837, %v5907
        %v5940 = vadd.f32 %v5838, %v5908
        %v5941 = vadd.f32 %v5839, %v5909
        %v5942 = vadd.f32 %v5840, %v5910
        %v5943 = vadd.f32 %v5841, %v5911
        %v5944 = vadd.f32 %v5842, %v5912
        %v5945 = vadd.f32 %v5843, %v5913
        %v5946 = vld [vmem:[%s5844 + $0x5] sm:$0xff]
        %v5947 = vld [vmem:[%s5844 + $0xd] sm:$0xff]
        %v5948 = vld [vmem:[%s5844 + $0x25] sm:$0xff]
        %v5949 = vld [vmem:[%s5844 + $0x2d] sm:$0xff]
        %v5950 = vld [vmem:[%s5844 + $0x45] sm:$0xff]
        %v5951 = vld [vmem:[%s5844 + $0x4d] sm:$0xff]
        %v5952 = vld [vmem:[%s5844 + $0x65] sm:$0xff]
        %v5953 = vld [vmem:[%s5844 + $0x6d] sm:$0xff]
        %v5954 = vld [vmem:[%s5844 + $0x85] sm:$0xff]
        %v5955 = vld [vmem:[%s5844 + $0x8d] sm:$0xff]
        %v5956 = vld [vmem:[%s5844 + $0xa5] sm:$0xff]
        %v5957 = vld [vmem:[%s5844 + $0xad] sm:$0xff]
        %v5958 = vld [vmem:[%s5844 + $0xc5] sm:$0xff]
        %v5959 = vld [vmem:[%s5844 + $0xcd] sm:$0xff]
        %v5960 = vld [vmem:[%s5844 + $0xe5] sm:$0xff]
        %v5961 = vld [vmem:[%s5844 + $0xed] sm:$0xff]
        %v5962 = vld [vmem:[%s5844 + $0x105] sm:$0xff]
        %v5963 = vld [vmem:[%s5844 + $0x10d] sm:$0xff]
        %v5964 = vld [vmem:[%s5844 + $0x125] sm:$0xff]
        %v5965 = vld [vmem:[%s5844 + $0x12d] sm:$0xff]
        %v5966 = vld [vmem:[%s5844 + $0x145] sm:$0xff]
        %v5967 = vld [vmem:[%s5844 + $0x14d] sm:$0xff]
        %v5968 = vld [vmem:[%s5844 + $0x165] sm:$0xff]
        %v5969 = vld [vmem:[%s5844 + $0x16d] sm:$0xff]
        %v5970 = vld [vmem:[%s5844 + $0x185] sm:$0xff]
        %v5971 = vld [vmem:[%s5844 + $0x18d] sm:$0xff]
        %v5972 = vld [vmem:[%s5844 + $0x1a5] sm:$0xff]
        %v5973 = vld [vmem:[%s5844 + $0x1ad] sm:$0xff]
        %v5974 = vld [vmem:[%s5844 + $0x1c5] sm:$0xff]
        %v5975 = vld [vmem:[%s5844 + $0x1cd] sm:$0xff]
        %v5976 = vld [vmem:[%s5844 + $0x1e5] sm:$0xff]
        %v5977 = vld [vmem:[%s5844 + $0x1ed] sm:$0xff]
        %v5978 = vld [vmem:[%s6 + $0x13] sm:$0x1]
        %v5979 = vlaneseq
        %v5980 = vshrl.u32 %v5979, 7
        %v5981 = vsub.s32 0, %v5980
        %v5982 = vrot.slane %v5978, %v5981
        %v5983 = vmul.f32 %v5946, %v5982
        %v5984 = vmul.f32 %v5947, %v5982
        %v5985 = vmul.f32 %v5948, %v5982
        %v5986 = vmul.f32 %v5949, %v5982
        %v5987 = vmul.f32 %v5950, %v5982
        %v5988 = vmul.f32 %v5951, %v5982
        %v5989 = vmul.f32 %v5952, %v5982
        %v5990 = vmul.f32 %v5953, %v5982
        %v5991 = vmul.f32 %v5954, %v5982
        %v5992 = vmul.f32 %v5955, %v5982
        %v5993 = vmul.f32 %v5956, %v5982
        %v5994 = vmul.f32 %v5957, %v5982
        %v5995 = vmul.f32 %v5958, %v5982
        %v5996 = vmul.f32 %v5959, %v5982
        %v5997 = vmul.f32 %v5960, %v5982
        %v5998 = vmul.f32 %v5961, %v5982
        %v5999 = vmul.f32 %v5962, %v5982
        %v6000 = vmul.f32 %v5963, %v5982
        %v6001 = vmul.f32 %v5964, %v5982
        %v6002 = vmul.f32 %v5965, %v5982
        %v6003 = vmul.f32 %v5966, %v5982
        %v6004 = vmul.f32 %v5967, %v5982
        %v6005 = vmul.f32 %v5968, %v5982
        %v6006 = vmul.f32 %v5969, %v5982
        %v6007 = vmul.f32 %v5970, %v5982
        %v6008 = vmul.f32 %v5971, %v5982
        %v6009 = vmul.f32 %v5972, %v5982
        %v6010 = vmul.f32 %v5973, %v5982
        %v6011 = vmul.f32 %v5974, %v5982
        %v6012 = vmul.f32 %v5975, %v5982
        %v6013 = vmul.f32 %v5976, %v5982
        %v6014 = vmul.f32 %v5977, %v5982
        %v6015 = vadd.f32 %v5914, %v5983
        %v6016 = vadd.f32 %v5915, %v5984
        %v6017 = vadd.f32 %v5916, %v5985
        %v6018 = vadd.f32 %v5917, %v5986
        %v6019 = vadd.f32 %v5918, %v5987
        %v6020 = vadd.f32 %v5919, %v5988
        %v6021 = vadd.f32 %v5920, %v5989
        %v6022 = vadd.f32 %v5921, %v5990
        %v6023 = vadd.f32 %v5922, %v5991
        %v6024 = vadd.f32 %v5923, %v5992
        %v6025 = vadd.f32 %v5924, %v5993
        %v6026 = vadd.f32 %v5925, %v5994
        %v6027 = vadd.f32 %v5926, %v5995
        %v6028 = vadd.f32 %v5927, %v5996
        %v6029 = vadd.f32 %v5928, %v5997
        %v6030 = vadd.f32 %v5929, %v5998
        %v6031 = vadd.f32 %v5930, %v5999
        %v6032 = vadd.f32 %v5931, %v6000
        %v6033 = vadd.f32 %v5932, %v6001
        %v6034 = vadd.f32 %v5933, %v6002
        %v6035 = vadd.f32 %v5934, %v6003
        %v6036 = vadd.f32 %v5935, %v6004
        %v6037 = vadd.f32 %v5936, %v6005
        %v6038 = vadd.f32 %v5937, %v6006
        %v6039 = vadd.f32 %v5938, %v6007
        %v6040 = vadd.f32 %v5939, %v6008
        %v6041 = vadd.f32 %v5940, %v6009
        %v6042 = vadd.f32 %v5941, %v6010
        %v6043 = vadd.f32 %v5942, %v6011
        %v6044 = vadd.f32 %v5943, %v6012
        %v6045 = vadd.f32 %v5944, %v6013
        %v6046 = vadd.f32 %v5945, %v6014
        %v6047 = vld [vmem:[%s5844 + $0x6] sm:$0xff]
        %v6048 = vld [vmem:[%s5844 + $0xe] sm:$0xff]
        %v6049 = vld [vmem:[%s5844 + $0x26] sm:$0xff]
        %v6050 = vld [vmem:[%s5844 + $0x2e] sm:$0xff]
        %v6051 = vld [vmem:[%s5844 + $0x46] sm:$0xff]
        %v6052 = vld [vmem:[%s5844 + $0x4e] sm:$0xff]
        %v6053 = vld [vmem:[%s5844 + $0x66] sm:$0xff]
        %v6054 = vld [vmem:[%s5844 + $0x6e] sm:$0xff]
        %v6055 = vld [vmem:[%s5844 + $0x86] sm:$0xff]
        %v6056 = vld [vmem:[%s5844 + $0x8e] sm:$0xff]
        %v6057 = vld [vmem:[%s5844 + $0xa6] sm:$0xff]
        %v6058 = vld [vmem:[%s5844 + $0xae] sm:$0xff]
        %v6059 = vld [vmem:[%s5844 + $0xc6] sm:$0xff]
        %v6060 = vld [vmem:[%s5844 + $0xce] sm:$0xff]
        %v6061 = vld [vmem:[%s5844 + $0xe6] sm:$0xff]
        %v6062 = vld [vmem:[%s5844 + $0xee] sm:$0xff]
        %v6063 = vld [vmem:[%s5844 + $0x106] sm:$0xff]
        %v6064 = vld [vmem:[%s5844 + $0x10e] sm:$0xff]
        %v6065 = vld [vmem:[%s5844 + $0x126] sm:$0xff]
        %v6066 = vld [vmem:[%s5844 + $0x12e] sm:$0xff]
        %v6067 = vld [vmem:[%s5844 + $0x146] sm:$0xff]
        %v6068 = vld [vmem:[%s5844 + $0x14e] sm:$0xff]
        %v6069 = vld [vmem:[%s5844 + $0x166] sm:$0xff]
        %v6070 = vld [vmem:[%s5844 + $0x16e] sm:$0xff]
        %v6071 = vld [vmem:[%s5844 + $0x186] sm:$0xff]
        %v6072 = vld [vmem:[%s5844 + $0x18e] sm:$0xff]
        %v6073 = vld [vmem:[%s5844 + $0x1a6] sm:$0xff]
        %v6074 = vld [vmem:[%s5844 + $0x1ae] sm:$0xff]
        %v6075 = vld [vmem:[%s5844 + $0x1c6] sm:$0xff]
        %v6076 = vld [vmem:[%s5844 + $0x1ce] sm:$0xff]
        %v6077 = vld [vmem:[%s5844 + $0x1e6] sm:$0xff]
        %v6078 = vld [vmem:[%s5844 + $0x1ee] sm:$0xff]
        %v6079 = vld [vmem:[%s6 + $0x14] sm:$0x1]
        %v6080 = vlaneseq
        %v6081 = vshrl.u32 %v6080, 7
        %v6082 = vsub.s32 0, %v6081
        %v6083 = vrot.slane %v6079, %v6082
        %v6084 = vmul.f32 %v6047, %v6083
        %v6085 = vmul.f32 %v6048, %v6083
        %v6086 = vmul.f32 %v6049, %v6083
        %v6087 = vmul.f32 %v6050, %v6083
        %v6088 = vmul.f32 %v6051, %v6083
        %v6089 = vmul.f32 %v6052, %v6083
        %v6090 = vmul.f32 %v6053, %v6083
        %v6091 = vmul.f32 %v6054, %v6083
        %v6092 = vmul.f32 %v6055, %v6083
        %v6093 = vmul.f32 %v6056, %v6083
        %v6094 = vmul.f32 %v6057, %v6083
        %v6095 = vmul.f32 %v6058, %v6083
        %v6096 = vmul.f32 %v6059, %v6083
        %v6097 = vmul.f32 %v6060, %v6083
        %v6098 = vmul.f32 %v6061, %v6083
        %v6099 = vmul.f32 %v6062, %v6083
        %v6100 = vmul.f32 %v6063, %v6083
        %v6101 = vmul.f32 %v6064, %v6083
        %v6102 = vmul.f32 %v6065, %v6083
        %v6103 = vmul.f32 %v6066, %v6083
        %v6104 = vmul.f32 %v6067, %v6083
        %v6105 = vmul.f32 %v6068, %v6083
        %v6106 = vmul.f32 %v6069, %v6083
        %v6107 = vmul.f32 %v6070, %v6083
        %v6108 = vmul.f32 %v6071, %v6083
        %v6109 = vmul.f32 %v6072, %v6083
        %v6110 = vmul.f32 %v6073, %v6083
        %v6111 = vmul.f32 %v6074, %v6083
        %v6112 = vmul.f32 %v6075, %v6083
        %v6113 = vmul.f32 %v6076, %v6083
        %v6114 = vmul.f32 %v6077, %v6083
        %v6115 = vmul.f32 %v6078, %v6083
        %v6116 = vadd.f32 %v6015, %v6084
        %v6117 = vadd.f32 %v6016, %v6085
        %v6118 = vadd.f32 %v6017, %v6086
        %v6119 = vadd.f32 %v6018, %v6087
        %v6120 = vadd.f32 %v6019, %v6088
        %v6121 = vadd.f32 %v6020, %v6089
        %v6122 = vadd.f32 %v6021, %v6090
        %v6123 = vadd.f32 %v6022, %v6091
        %v6124 = vadd.f32 %v6023, %v6092
        %v6125 = vadd.f32 %v6024, %v6093
        %v6126 = vadd.f32 %v6025, %v6094
        %v6127 = vadd.f32 %v6026, %v6095
        %v6128 = vadd.f32 %v6027, %v6096
        %v6129 = vadd.f32 %v6028, %v6097
        %v6130 = vadd.f32 %v6029, %v6098
        %v6131 = vadd.f32 %v6030, %v6099
        %v6132 = vadd.f32 %v6031, %v6100
        %v6133 = vadd.f32 %v6032, %v6101
        %v6134 = vadd.f32 %v6033, %v6102
        %v6135 = vadd.f32 %v6034, %v6103
        %v6136 = vadd.f32 %v6035, %v6104
        %v6137 = vadd.f32 %v6036, %v6105
        %v6138 = vadd.f32 %v6037, %v6106
        %v6139 = vadd.f32 %v6038, %v6107
        %v6140 = vadd.f32 %v6039, %v6108
        %v6141 = vadd.f32 %v6040, %v6109
        %v6142 = vadd.f32 %v6041, %v6110
        %v6143 = vadd.f32 %v6042, %v6111
        %v6144 = vadd.f32 %v6043, %v6112
        %v6145 = vadd.f32 %v6044, %v6113
        %v6146 = vadd.f32 %v6045, %v6114
        %v6147 = vadd.f32 %v6046, %v6115
        %s6148 = scalar_lea.vmem [#allocation3], 224
        %v6149 = vld [vmem:[%s6148 + $0x5] sm:$0xff]
        %v6150 = vld [vmem:[%s6148 + $0xd] sm:$0xff]
        %v6151 = vld [vmem:[%s6148 + $0x25] sm:$0xff]
        %v6152 = vld [vmem:[%s6148 + $0x2d] sm:$0xff]
        %v6153 = vld [vmem:[%s6148 + $0x45] sm:$0xff]
        %v6154 = vld [vmem:[%s6148 + $0x4d] sm:$0xff]
        %v6155 = vld [vmem:[%s6148 + $0x65] sm:$0xff]
        %v6156 = vld [vmem:[%s6148 + $0x6d] sm:$0xff]
        %v6157 = vld [vmem:[%s6148 + $0x85] sm:$0xff]
        %v6158 = vld [vmem:[%s6148 + $0x8d] sm:$0xff]
        %v6159 = vld [vmem:[%s6148 + $0xa5] sm:$0xff]
        %v6160 = vld [vmem:[%s6148 + $0xad] sm:$0xff]
        %v6161 = vld [vmem:[%s6148 + $0xc5] sm:$0xff]
        %v6162 = vld [vmem:[%s6148 + $0xcd] sm:$0xff]
        %v6163 = vld [vmem:[%s6148 + $0xe5] sm:$0xff]
        %v6164 = vld [vmem:[%s6148 + $0xed] sm:$0xff]
        %v6165 = vld [vmem:[%s6148 + $0x105] sm:$0xff]
        %v6166 = vld [vmem:[%s6148 + $0x10d] sm:$0xff]
        %v6167 = vld [vmem:[%s6148 + $0x125] sm:$0xff]
        %v6168 = vld [vmem:[%s6148 + $0x12d] sm:$0xff]
        %v6169 = vld [vmem:[%s6148 + $0x145] sm:$0xff]
        %v6170 = vld [vmem:[%s6148 + $0x14d] sm:$0xff]
        %v6171 = vld [vmem:[%s6148 + $0x165] sm:$0xff]
        %v6172 = vld [vmem:[%s6148 + $0x16d] sm:$0xff]
        %v6173 = vld [vmem:[%s6148 + $0x185] sm:$0xff]
        %v6174 = vld [vmem:[%s6148 + $0x18d] sm:$0xff]
        %v6175 = vld [vmem:[%s6148 + $0x1a5] sm:$0xff]
        %v6176 = vld [vmem:[%s6148 + $0x1ad] sm:$0xff]
        %v6177 = vld [vmem:[%s6148 + $0x1c5] sm:$0xff]
        %v6178 = vld [vmem:[%s6148 + $0x1cd] sm:$0xff]
        %v6179 = vld [vmem:[%s6148 + $0x1e5] sm:$0xff]
        %v6180 = vld [vmem:[%s6148 + $0x1ed] sm:$0xff]
        %v6181 = vld [vmem:[%s6 + $0x15] sm:$0x1]
        %v6182 = vlaneseq
        %v6183 = vshrl.u32 %v6182, 7
        %v6184 = vsub.s32 0, %v6183
        %v6185 = vrot.slane %v6181, %v6184
        %v6186 = vmul.f32 %v6149, %v6185
        %v6187 = vmul.f32 %v6150, %v6185
        %v6188 = vmul.f32 %v6151, %v6185
        %v6189 = vmul.f32 %v6152, %v6185
        %v6190 = vmul.f32 %v6153, %v6185
        %v6191 = vmul.f32 %v6154, %v6185
        %v6192 = vmul.f32 %v6155, %v6185
        %v6193 = vmul.f32 %v6156, %v6185
        %v6194 = vmul.f32 %v6157, %v6185
        %v6195 = vmul.f32 %v6158, %v6185
        %v6196 = vmul.f32 %v6159, %v6185
        %v6197 = vmul.f32 %v6160, %v6185
        %v6198 = vmul.f32 %v6161, %v6185
        %v6199 = vmul.f32 %v6162, %v6185
        %v6200 = vmul.f32 %v6163, %v6185
        %v6201 = vmul.f32 %v6164, %v6185
        %v6202 = vmul.f32 %v6165, %v6185
        %v6203 = vmul.f32 %v6166, %v6185
        %v6204 = vmul.f32 %v6167, %v6185
        %v6205 = vmul.f32 %v6168, %v6185
        %v6206 = vmul.f32 %v6169, %v6185
        %v6207 = vmul.f32 %v6170, %v6185
        %v6208 = vmul.f32 %v6171, %v6185
        %v6209 = vmul.f32 %v6172, %v6185
        %v6210 = vmul.f32 %v6173, %v6185
        %v6211 = vmul.f32 %v6174, %v6185
        %v6212 = vmul.f32 %v6175, %v6185
        %v6213 = vmul.f32 %v6176, %v6185
        %v6214 = vmul.f32 %v6177, %v6185
        %v6215 = vmul.f32 %v6178, %v6185
        %v6216 = vmul.f32 %v6179, %v6185
        %v6217 = vmul.f32 %v6180, %v6185
        %v6218 = vadd.f32 %v6116, %v6186
        %v6219 = vadd.f32 %v6117, %v6187
        %v6220 = vadd.f32 %v6118, %v6188
        %v6221 = vadd.f32 %v6119, %v6189
        %v6222 = vadd.f32 %v6120, %v6190
        %v6223 = vadd.f32 %v6121, %v6191
        %v6224 = vadd.f32 %v6122, %v6192
        %v6225 = vadd.f32 %v6123, %v6193
        %v6226 = vadd.f32 %v6124, %v6194
        %v6227 = vadd.f32 %v6125, %v6195
        %v6228 = vadd.f32 %v6126, %v6196
        %v6229 = vadd.f32 %v6127, %v6197
        %v6230 = vadd.f32 %v6128, %v6198
        %v6231 = vadd.f32 %v6129, %v6199
        %v6232 = vadd.f32 %v6130, %v6200
        %v6233 = vadd.f32 %v6131, %v6201
        %v6234 = vadd.f32 %v6132, %v6202
        %v6235 = vadd.f32 %v6133, %v6203
        %v6236 = vadd.f32 %v6134, %v6204
        %v6237 = vadd.f32 %v6135, %v6205
        %v6238 = vadd.f32 %v6136, %v6206
        %v6239 = vadd.f32 %v6137, %v6207
        %v6240 = vadd.f32 %v6138, %v6208
        %v6241 = vadd.f32 %v6139, %v6209
        %v6242 = vadd.f32 %v6140, %v6210
        %v6243 = vadd.f32 %v6141, %v6211
        %v6244 = vadd.f32 %v6142, %v6212
        %v6245 = vadd.f32 %v6143, %v6213
        %v6246 = vadd.f32 %v6144, %v6214
        %v6247 = vadd.f32 %v6145, %v6215
        %v6248 = vadd.f32 %v6146, %v6216
        %v6249 = vadd.f32 %v6147, %v6217
        %s6250 = scalar_lea.vmem [#allocation3], 256
        %v6251 = vld [vmem:[%s6250 + $0x5] sm:$0xff]
        %v6252 = vld [vmem:[%s6250 + $0xd] sm:$0xff]
        %v6253 = vld [vmem:[%s6250 + $0x25] sm:$0xff]
        %v6254 = vld [vmem:[%s6250 + $0x2d] sm:$0xff]
        %v6255 = vld [vmem:[%s6250 + $0x45] sm:$0xff]
        %v6256 = vld [vmem:[%s6250 + $0x4d] sm:$0xff]
        %v6257 = vld [vmem:[%s6250 + $0x65] sm:$0xff]
        %v6258 = vld [vmem:[%s6250 + $0x6d] sm:$0xff]
        %v6259 = vld [vmem:[%s6250 + $0x85] sm:$0xff]
        %v6260 = vld [vmem:[%s6250 + $0x8d] sm:$0xff]
        %v6261 = vld [vmem:[%s6250 + $0xa5] sm:$0xff]
        %v6262 = vld [vmem:[%s6250 + $0xad] sm:$0xff]
        %v6263 = vld [vmem:[%s6250 + $0xc5] sm:$0xff]
        %v6264 = vld [vmem:[%s6250 + $0xcd] sm:$0xff]
        %v6265 = vld [vmem:[%s6250 + $0xe5] sm:$0xff]
        %v6266 = vld [vmem:[%s6250 + $0xed] sm:$0xff]
        %v6267 = vld [vmem:[%s6250 + $0x105] sm:$0xff]
        %v6268 = vld [vmem:[%s6250 + $0x10d] sm:$0xff]
        %v6269 = vld [vmem:[%s6250 + $0x125] sm:$0xff]
        %v6270 = vld [vmem:[%s6250 + $0x12d] sm:$0xff]
        %v6271 = vld [vmem:[%s6250 + $0x145] sm:$0xff]
        %v6272 = vld [vmem:[%s6250 + $0x14d] sm:$0xff]
        %v6273 = vld [vmem:[%s6250 + $0x165] sm:$0xff]
        %v6274 = vld [vmem:[%s6250 + $0x16d] sm:$0xff]
        %v6275 = vld [vmem:[%s6250 + $0x185] sm:$0xff]
        %v6276 = vld [vmem:[%s6250 + $0x18d] sm:$0xff]
        %v6277 = vld [vmem:[%s6250 + $0x1a5] sm:$0xff]
        %v6278 = vld [vmem:[%s6250 + $0x1ad] sm:$0xff]
        %v6279 = vld [vmem:[%s6250 + $0x1c5] sm:$0xff]
        %v6280 = vld [vmem:[%s6250 + $0x1cd] sm:$0xff]
        %v6281 = vld [vmem:[%s6250 + $0x1e5] sm:$0xff]
        %v6282 = vld [vmem:[%s6250 + $0x1ed] sm:$0xff]
        %v6283 = vld [vmem:[%s6 + $0x16] sm:$0x1]
        %v6284 = vlaneseq
        %v6285 = vshrl.u32 %v6284, 7
        %v6286 = vsub.s32 0, %v6285
        %v6287 = vrot.slane %v6283, %v6286
        %v6288 = vmul.f32 %v6251, %v6287
        %v6289 = vmul.f32 %v6252, %v6287
        %v6290 = vmul.f32 %v6253, %v6287
        %v6291 = vmul.f32 %v6254, %v6287
        %v6292 = vmul.f32 %v6255, %v6287
        %v6293 = vmul.f32 %v6256, %v6287
        %v6294 = vmul.f32 %v6257, %v6287
        %v6295 = vmul.f32 %v6258, %v6287
        %v6296 = vmul.f32 %v6259, %v6287
        %v6297 = vmul.f32 %v6260, %v6287
        %v6298 = vmul.f32 %v6261, %v6287
        %v6299 = vmul.f32 %v6262, %v6287
        %v6300 = vmul.f32 %v6263, %v6287
        %v6301 = vmul.f32 %v6264, %v6287
        %v6302 = vmul.f32 %v6265, %v6287
        %v6303 = vmul.f32 %v6266, %v6287
        %v6304 = vmul.f32 %v6267, %v6287
        %v6305 = vmul.f32 %v6268, %v6287
        %v6306 = vmul.f32 %v6269, %v6287
        %v6307 = vmul.f32 %v6270, %v6287
        %v6308 = vmul.f32 %v6271, %v6287
        %v6309 = vmul.f32 %v6272, %v6287
        %v6310 = vmul.f32 %v6273, %v6287
        %v6311 = vmul.f32 %v6274, %v6287
        %v6312 = vmul.f32 %v6275, %v6287
        %v6313 = vmul.f32 %v6276, %v6287
        %v6314 = vmul.f32 %v6277, %v6287
        %v6315 = vmul.f32 %v6278, %v6287
        %v6316 = vmul.f32 %v6279, %v6287
        %v6317 = vmul.f32 %v6280, %v6287
        %v6318 = vmul.f32 %v6281, %v6287
        %v6319 = vmul.f32 %v6282, %v6287
        %v6320 = vadd.f32 %v6218, %v6288
        %v6321 = vadd.f32 %v6219, %v6289
        %v6322 = vadd.f32 %v6220, %v6290
        %v6323 = vadd.f32 %v6221, %v6291
        %v6324 = vadd.f32 %v6222, %v6292
        %v6325 = vadd.f32 %v6223, %v6293
        %v6326 = vadd.f32 %v6224, %v6294
        %v6327 = vadd.f32 %v6225, %v6295
        %v6328 = vadd.f32 %v6226, %v6296
        %v6329 = vadd.f32 %v6227, %v6297
        %v6330 = vadd.f32 %v6228, %v6298
        %v6331 = vadd.f32 %v6229, %v6299
        %v6332 = vadd.f32 %v6230, %v6300
        %v6333 = vadd.f32 %v6231, %v6301
        %v6334 = vadd.f32 %v6232, %v6302
        %v6335 = vadd.f32 %v6233, %v6303
        %v6336 = vadd.f32 %v6234, %v6304
        %v6337 = vadd.f32 %v6235, %v6305
        %v6338 = vadd.f32 %v6236, %v6306
        %v6339 = vadd.f32 %v6237, %v6307
        %v6340 = vadd.f32 %v6238, %v6308
        %v6341 = vadd.f32 %v6239, %v6309
        %v6342 = vadd.f32 %v6240, %v6310
        %v6343 = vadd.f32 %v6241, %v6311
        %v6344 = vadd.f32 %v6242, %v6312
        %v6345 = vadd.f32 %v6243, %v6313
        %v6346 = vadd.f32 %v6244, %v6314
        %v6347 = vadd.f32 %v6245, %v6315
        %v6348 = vadd.f32 %v6246, %v6316
        %v6349 = vadd.f32 %v6247, %v6317
        %v6350 = vadd.f32 %v6248, %v6318
        %v6351 = vadd.f32 %v6249, %v6319
        %s6352 = scalar_lea.vmem [#allocation3], 288
        %v6353 = vld [vmem:[%s6352 + $0x5] sm:$0xff]
        %v6354 = vld [vmem:[%s6352 + $0xd] sm:$0xff]
        %v6355 = vld [vmem:[%s6352 + $0x25] sm:$0xff]
        %v6356 = vld [vmem:[%s6352 + $0x2d] sm:$0xff]
        %v6357 = vld [vmem:[%s6352 + $0x45] sm:$0xff]
        %v6358 = vld [vmem:[%s6352 + $0x4d] sm:$0xff]
        %v6359 = vld [vmem:[%s6352 + $0x65] sm:$0xff]
        %v6360 = vld [vmem:[%s6352 + $0x6d] sm:$0xff]
        %v6361 = vld [vmem:[%s6352 + $0x85] sm:$0xff]
        %v6362 = vld [vmem:[%s6352 + $0x8d] sm:$0xff]
        %v6363 = vld [vmem:[%s6352 + $0xa5] sm:$0xff]
        %v6364 = vld [vmem:[%s6352 + $0xad] sm:$0xff]
        %v6365 = vld [vmem:[%s6352 + $0xc5] sm:$0xff]
        %v6366 = vld [vmem:[%s6352 + $0xcd] sm:$0xff]
        %v6367 = vld [vmem:[%s6352 + $0xe5] sm:$0xff]
        %v6368 = vld [vmem:[%s6352 + $0xed] sm:$0xff]
        %v6369 = vld [vmem:[%s6352 + $0x105] sm:$0xff]
        %v6370 = vld [vmem:[%s6352 + $0x10d] sm:$0xff]
        %v6371 = vld [vmem:[%s6352 + $0x125] sm:$0xff]
        %v6372 = vld [vmem:[%s6352 + $0x12d] sm:$0xff]
        %v6373 = vld [vmem:[%s6352 + $0x145] sm:$0xff]
        %v6374 = vld [vmem:[%s6352 + $0x14d] sm:$0xff]
        %v6375 = vld [vmem:[%s6352 + $0x165] sm:$0xff]
        %v6376 = vld [vmem:[%s6352 + $0x16d] sm:$0xff]
        %v6377 = vld [vmem:[%s6352 + $0x185] sm:$0xff]
        %v6378 = vld [vmem:[%s6352 + $0x18d] sm:$0xff]
        %v6379 = vld [vmem:[%s6352 + $0x1a5] sm:$0xff]
        %v6380 = vld [vmem:[%s6352 + $0x1ad] sm:$0xff]
        %v6381 = vld [vmem:[%s6352 + $0x1c5] sm:$0xff]
        %v6382 = vld [vmem:[%s6352 + $0x1cd] sm:$0xff]
        %v6383 = vld [vmem:[%s6352 + $0x1e5] sm:$0xff]
        %v6384 = vld [vmem:[%s6352 + $0x1ed] sm:$0xff]
        %v6385 = vld [vmem:[%s6 + $0x17] sm:$0x1]
        %v6386 = vlaneseq
        %v6387 = vshrl.u32 %v6386, 7
        %v6388 = vsub.s32 0, %v6387
        %v6389 = vrot.slane %v6385, %v6388
        %v6390 = vmul.f32 %v6353, %v6389
        %v6391 = vmul.f32 %v6354, %v6389
        %v6392 = vmul.f32 %v6355, %v6389
        %v6393 = vmul.f32 %v6356, %v6389
        %v6394 = vmul.f32 %v6357, %v6389
        %v6395 = vmul.f32 %v6358, %v6389
        %v6396 = vmul.f32 %v6359, %v6389
        %v6397 = vmul.f32 %v6360, %v6389
        %v6398 = vmul.f32 %v6361, %v6389
        %v6399 = vmul.f32 %v6362, %v6389
        %v6400 = vmul.f32 %v6363, %v6389
        %v6401 = vmul.f32 %v6364, %v6389
        %v6402 = vmul.f32 %v6365, %v6389
        %v6403 = vmul.f32 %v6366, %v6389
        %v6404 = vmul.f32 %v6367, %v6389
        %v6405 = vmul.f32 %v6368, %v6389
        %v6406 = vmul.f32 %v6369, %v6389
        %v6407 = vmul.f32 %v6370, %v6389
        %v6408 = vmul.f32 %v6371, %v6389
        %v6409 = vmul.f32 %v6372, %v6389
        %v6410 = vmul.f32 %v6373, %v6389
        %v6411 = vmul.f32 %v6374, %v6389
        %v6412 = vmul.f32 %v6375, %v6389
        %v6413 = vmul.f32 %v6376, %v6389
        %v6414 = vmul.f32 %v6377, %v6389
        %v6415 = vmul.f32 %v6378, %v6389
        %v6416 = vmul.f32 %v6379, %v6389
        %v6417 = vmul.f32 %v6380, %v6389
        %v6418 = vmul.f32 %v6381, %v6389
        %v6419 = vmul.f32 %v6382, %v6389
        %v6420 = vmul.f32 %v6383, %v6389
        %v6421 = vmul.f32 %v6384, %v6389
        %v6422 = vadd.f32 %v6320, %v6390
        %v6423 = vadd.f32 %v6321, %v6391
        %v6424 = vadd.f32 %v6322, %v6392
        %v6425 = vadd.f32 %v6323, %v6393
        %v6426 = vadd.f32 %v6324, %v6394
        %v6427 = vadd.f32 %v6325, %v6395
        %v6428 = vadd.f32 %v6326, %v6396
        %v6429 = vadd.f32 %v6327, %v6397
        %v6430 = vadd.f32 %v6328, %v6398
        %v6431 = vadd.f32 %v6329, %v6399
        %v6432 = vadd.f32 %v6330, %v6400
        %v6433 = vadd.f32 %v6331, %v6401
        %v6434 = vadd.f32 %v6332, %v6402
        %v6435 = vadd.f32 %v6333, %v6403
        %v6436 = vadd.f32 %v6334, %v6404
        %v6437 = vadd.f32 %v6335, %v6405
        %v6438 = vadd.f32 %v6336, %v6406
        %v6439 = vadd.f32 %v6337, %v6407
        %v6440 = vadd.f32 %v6338, %v6408
        %v6441 = vadd.f32 %v6339, %v6409
        %v6442 = vadd.f32 %v6340, %v6410
        %v6443 = vadd.f32 %v6341, %v6411
        %v6444 = vadd.f32 %v6342, %v6412
        %v6445 = vadd.f32 %v6343, %v6413
        %v6446 = vadd.f32 %v6344, %v6414
        %v6447 = vadd.f32 %v6345, %v6415
        %v6448 = vadd.f32 %v6346, %v6416
        %v6449 = vadd.f32 %v6347, %v6417
        %v6450 = vadd.f32 %v6348, %v6418
        %v6451 = vadd.f32 %v6349, %v6419
        %v6452 = vadd.f32 %v6350, %v6420
        %v6453 = vadd.f32 %v6351, %v6421
        %s6454 = scalar_lea.vmem [#allocation3], 320
        %v6455 = vld [vmem:[%s6454 + $0x5] sm:$0xff]
        %v6456 = vld [vmem:[%s6454 + $0xd] sm:$0xff]
        %v6457 = vld [vmem:[%s6454 + $0x25] sm:$0xff]
        %v6458 = vld [vmem:[%s6454 + $0x2d] sm:$0xff]
        %v6459 = vld [vmem:[%s6454 + $0x45] sm:$0xff]
        %v6460 = vld [vmem:[%s6454 + $0x4d] sm:$0xff]
        %v6461 = vld [vmem:[%s6454 + $0x65] sm:$0xff]
        %v6462 = vld [vmem:[%s6454 + $0x6d] sm:$0xff]
        %v6463 = vld [vmem:[%s6454 + $0x85] sm:$0xff]
        %v6464 = vld [vmem:[%s6454 + $0x8d] sm:$0xff]
        %v6465 = vld [vmem:[%s6454 + $0xa5] sm:$0xff]
        %v6466 = vld [vmem:[%s6454 + $0xad] sm:$0xff]
        %v6467 = vld [vmem:[%s6454 + $0xc5] sm:$0xff]
        %v6468 = vld [vmem:[%s6454 + $0xcd] sm:$0xff]
        %v6469 = vld [vmem:[%s6454 + $0xe5] sm:$0xff]
        %v6470 = vld [vmem:[%s6454 + $0xed] sm:$0xff]
        %v6471 = vld [vmem:[%s6454 + $0x105] sm:$0xff]
        %v6472 = vld [vmem:[%s6454 + $0x10d] sm:$0xff]
        %v6473 = vld [vmem:[%s6454 + $0x125] sm:$0xff]
        %v6474 = vld [vmem:[%s6454 + $0x12d] sm:$0xff]
        %v6475 = vld [vmem:[%s6454 + $0x145] sm:$0xff]
        %v6476 = vld [vmem:[%s6454 + $0x14d] sm:$0xff]
        %v6477 = vld [vmem:[%s6454 + $0x165] sm:$0xff]
        %v6478 = vld [vmem:[%s6454 + $0x16d] sm:$0xff]
        %v6479 = vld [vmem:[%s6454 + $0x185] sm:$0xff]
        %v6480 = vld [vmem:[%s6454 + $0x18d] sm:$0xff]
        %v6481 = vld [vmem:[%s6454 + $0x1a5] sm:$0xff]
        %v6482 = vld [vmem:[%s6454 + $0x1ad] sm:$0xff]
        %v6483 = vld [vmem:[%s6454 + $0x1c5] sm:$0xff]
        %v6484 = vld [vmem:[%s6454 + $0x1cd] sm:$0xff]
        %v6485 = vld [vmem:[%s6454 + $0x1e5] sm:$0xff]
        %v6486 = vld [vmem:[%s6454 + $0x1ed] sm:$0xff]
        %v6487 = vld [vmem:[%s6 + $0x18] sm:$0x1]
        %v6488 = vlaneseq
        %v6489 = vshrl.u32 %v6488, 7
        %v6490 = vsub.s32 0, %v6489
        %v6491 = vrot.slane %v6487, %v6490
        %v6492 = vmul.f32 %v6455, %v6491
        %v6493 = vmul.f32 %v6456, %v6491
        %v6494 = vmul.f32 %v6457, %v6491
        %v6495 = vmul.f32 %v6458, %v6491
        %v6496 = vmul.f32 %v6459, %v6491
        %v6497 = vmul.f32 %v6460, %v6491
        %v6498 = vmul.f32 %v6461, %v6491
        %v6499 = vmul.f32 %v6462, %v6491
        %v6500 = vmul.f32 %v6463, %v6491
        %v6501 = vmul.f32 %v6464, %v6491
        %v6502 = vmul.f32 %v6465, %v6491
        %v6503 = vmul.f32 %v6466, %v6491
        %v6504 = vmul.f32 %v6467, %v6491
        %v6505 = vmul.f32 %v6468, %v6491
        %v6506 = vmul.f32 %v6469, %v6491
        %v6507 = vmul.f32 %v6470, %v6491
        %v6508 = vmul.f32 %v6471, %v6491
        %v6509 = vmul.f32 %v6472, %v6491
        %v6510 = vmul.f32 %v6473, %v6491
        %v6511 = vmul.f32 %v6474, %v6491
        %v6512 = vmul.f32 %v6475, %v6491
        %v6513 = vmul.f32 %v6476, %v6491
        %v6514 = vmul.f32 %v6477, %v6491
        %v6515 = vmul.f32 %v6478, %v6491
        %v6516 = vmul.f32 %v6479, %v6491
        %v6517 = vmul.f32 %v6480, %v6491
        %v6518 = vmul.f32 %v6481, %v6491
        %v6519 = vmul.f32 %v6482, %v6491
        %v6520 = vmul.f32 %v6483, %v6491
        %v6521 = vmul.f32 %v6484, %v6491
        %v6522 = vmul.f32 %v6485, %v6491
        %v6523 = vmul.f32 %v6486, %v6491
        %v6524 = vadd.f32 %v6422, %v6492
        %v6525 = vadd.f32 %v6423, %v6493
        %v6526 = vadd.f32 %v6424, %v6494
        %v6527 = vadd.f32 %v6425, %v6495
        %v6528 = vadd.f32 %v6426, %v6496
        %v6529 = vadd.f32 %v6427, %v6497
        %v6530 = vadd.f32 %v6428, %v6498
        %v6531 = vadd.f32 %v6429, %v6499
        %v6532 = vadd.f32 %v6430, %v6500
        %v6533 = vadd.f32 %v6431, %v6501
        %v6534 = vadd.f32 %v6432, %v6502
        %v6535 = vadd.f32 %v6433, %v6503
        %v6536 = vadd.f32 %v6434, %v6504
        %v6537 = vadd.f32 %v6435, %v6505
        %v6538 = vadd.f32 %v6436, %v6506
        %v6539 = vadd.f32 %v6437, %v6507
        %v6540 = vadd.f32 %v6438, %v6508
        %v6541 = vadd.f32 %v6439, %v6509
        %v6542 = vadd.f32 %v6440, %v6510
        %v6543 = vadd.f32 %v6441, %v6511
        %v6544 = vadd.f32 %v6442, %v6512
        %v6545 = vadd.f32 %v6443, %v6513
        %v6546 = vadd.f32 %v6444, %v6514
        %v6547 = vadd.f32 %v6445, %v6515
        %v6548 = vadd.f32 %v6446, %v6516
        %v6549 = vadd.f32 %v6447, %v6517
        %v6550 = vadd.f32 %v6448, %v6518
        %v6551 = vadd.f32 %v6449, %v6519
        %v6552 = vadd.f32 %v6450, %v6520
        %v6553 = vadd.f32 %v6451, %v6521
        %v6554 = vadd.f32 %v6452, %v6522
        %v6555 = vadd.f32 %v6453, %v6523
        %v6556 = vld [vmem:[%s7] sm:$0x1]
        %v6558 = vlaneseq
        %v6559 = vshrl.u32 %v6558, 7
        %v6560 = vsub.s32 0, %v6559
        %v6561 = vrot.slane %v6556, %v6560
        %v6563 = vadd.f32 %v6524, %v6561
        %v6564 = vadd.f32 %v6525, %v6561
        %v6565 = vadd.f32 %v6526, %v6561
        %v6566 = vadd.f32 %v6527, %v6561
        %v6567 = vadd.f32 %v6528, %v6561
        %v6568 = vadd.f32 %v6529, %v6561
        %v6569 = vadd.f32 %v6530, %v6561
        %v6570 = vadd.f32 %v6531, %v6561
        %v6571 = vadd.f32 %v6532, %v6561
        %v6572 = vadd.f32 %v6533, %v6561
        %v6573 = vadd.f32 %v6534, %v6561
        %v6574 = vadd.f32 %v6535, %v6561
        %v6575 = vadd.f32 %v6536, %v6561
        %v6576 = vadd.f32 %v6537, %v6561
        %v6577 = vadd.f32 %v6538, %v6561
        %v6578 = vadd.f32 %v6539, %v6561
        %v6579 = vadd.f32 %v6540, %v6561
        %v6580 = vadd.f32 %v6541, %v6561
        %v6581 = vadd.f32 %v6542, %v6561
        %v6582 = vadd.f32 %v6543, %v6561
        %v6583 = vadd.f32 %v6544, %v6561
        %v6584 = vadd.f32 %v6545, %v6561
        %v6585 = vadd.f32 %v6546, %v6561
        %v6586 = vadd.f32 %v6547, %v6561
        %v6587 = vadd.f32 %v6548, %v6561
        %v6588 = vadd.f32 %v6549, %v6561
        %v6589 = vadd.f32 %v6550, %v6561
        %v6590 = vadd.f32 %v6551, %v6561
        %v6591 = vadd.f32 %v6552, %v6561
        %v6592 = vadd.f32 %v6553, %v6561
        %v6593 = vadd.f32 %v6554, %v6561
        %v6594 = vadd.f32 %v6555, %v6561
        %v6595 = vmin.f32 %v3877, 20.0
        %v6596 = vmin.f32 %v3878, 20.0
        %v6597 = vmin.f32 %v3879, 20.0
        %v6598 = vmin.f32 %v3880, 20.0
        %v6599 = vmin.f32 %v3881, 20.0
        %v6600 = vmin.f32 %v3882, 20.0
        %v6601 = vmin.f32 %v3883, 20.0
        %v6602 = vmin.f32 %v3884, 20.0
        %v6603 = vmin.f32 %v3885, 20.0
        %v6604 = vmin.f32 %v3886, 20.0
        %v6605 = vmin.f32 %v3887, 20.0
        %v6606 = vmin.f32 %v3888, 20.0
        %v6607 = vmin.f32 %v3889, 20.0
        %v6608 = vmin.f32 %v3890, 20.0
        %v6609 = vmin.f32 %v3891, 20.0
        %v6610 = vmin.f32 %v3892, 20.0
        %v6611 = vmin.f32 %v3893, 20.0
        %v6612 = vmin.f32 %v3894, 20.0
        %v6613 = vmin.f32 %v3895, 20.0
        %v6614 = vmin.f32 %v3896, 20.0
        %v6615 = vmin.f32 %v3897, 20.0
        %v6616 = vmin.f32 %v3898, 20.0
        %v6617 = vmin.f32 %v3899, 20.0
        %v6618 = vmin.f32 %v3900, 20.0
        %v6619 = vmin.f32 %v3901, 20.0
        %v6620 = vmin.f32 %v3902, 20.0
        %v6621 = vmin.f32 %v3903, 20.0
        %v6622 = vmin.f32 %v3904, 20.0
        %v6623 = vmin.f32 %v3905, 20.0
        %v6624 = vmin.f32 %v3906, 20.0
        %v6625 = vmin.f32 %v3907, 20.0
        %v6626 = vmin.f32 %v3908, 20.0
        %v6627 = vmul.f32 %v6595, 1.442695
        %v6628 = vpow.pop %v6627
        %v6629 = vmul.f32 %v6596, 1.442695
        %v6630 = vpow.pop %v6629
        %v6631 = vmul.f32 %v6597, 1.442695
        %v6632 = vpow.pop %v6631
        %v6633 = vmul.f32 %v6598, 1.442695
        %v6634 = vpow.pop %v6633
        %v6635 = vmul.f32 %v6599, 1.442695
        %v6636 = vpow.pop %v6635
        %v6637 = vmul.f32 %v6600, 1.442695
        %v6638 = vpow.pop %v6637
        %v6639 = vmul.f32 %v6601, 1.442695
        %v6640 = vpow.pop %v6639
        %v6641 = vmul.f32 %v6602, 1.442695
        %v6642 = vpow.pop %v6641
        %v6643 = vmul.f32 %v6603, 1.442695
        %v6644 = vpow.pop %v6643
        %v6645 = vmul.f32 %v6604, 1.442695
        %v6646 = vpow.pop %v6645
        %v6647 = vmul.f32 %v6605, 1.442695
        %v6648 = vpow.pop %v6647
        %v6649 = vmul.f32 %v6606, 1.442695
        %v6650 = vpow.pop %v6649
        %v6651 = vmul.f32 %v6607, 1.442695
        %v6652 = vpow.pop %v6651
        %v6653 = vmul.f32 %v6608, 1.442695
        %v6654 = vpow.pop %v6653
        %v6655 = vmul.f32 %v6609, 1.442695
        %v6656 = vpow.pop %v6655
        %v6657 = vmul.f32 %v6610, 1.442695
        %v6658 = vpow.pop %v6657
        %v6659 = vmul.f32 %v6611, 1.442695
        %v6660 = vpow.pop %v6659
        %v6661 = vmul.f32 %v6612, 1.442695
        %v6662 = vpow.pop %v6661
        %v6663 = vmul.f32 %v6613, 1.442695
        %v6664 = vpow.pop %v6663
        %v6665 = vmul.f32 %v6614, 1.442695
        %v6666 = vpow.pop %v6665
        %v6667 = vmul.f32 %v6615, 1.442695
        %v6668 = vpow.pop %v6667
        %v6669 = vmul.f32 %v6616, 1.442695
        %v6670 = vpow.pop %v6669
        %v6671 = vmul.f32 %v6617, 1.442695
        %v6672 = vpow.pop %v6671
        %v6673 = vmul.f32 %v6618, 1.442695
        %v6674 = vpow.pop %v6673
        %v6675 = vmul.f32 %v6619, 1.442695
        %v6676 = vpow.pop %v6675
        %v6677 = vmul.f32 %v6620, 1.442695
        %v6678 = vpow.pop %v6677
        %v6679 = vmul.f32 %v6621, 1.442695
        %v6680 = vpow.pop %v6679
        %v6681 = vmul.f32 %v6622, 1.442695
        %v6682 = vpow.pop %v6681
        %v6683 = vmul.f32 %v6623, 1.442695
        %v6684 = vpow.pop %v6683
        %v6685 = vmul.f32 %v6624, 1.442695
        %v6686 = vpow.pop %v6685
        %v6687 = vmul.f32 %v6625, 1.442695
        %v6688 = vpow.pop %v6687
        %v6689 = vmul.f32 %v6626, 1.442695
        %v6690 = vpow.pop %v6689
        %v6691 = vadd.f32 %v6628, 2.0
        %v6692 = vadd.f32 %v6630, 2.0
        %v6693 = vadd.f32 %v6632, 2.0
        %v6694 = vadd.f32 %v6634, 2.0
        %v6695 = vadd.f32 %v6636, 2.0
        %v6696 = vadd.f32 %v6638, 2.0
        %v6697 = vadd.f32 %v6640, 2.0
        %v6698 = vadd.f32 %v6642, 2.0
        %v6699 = vadd.f32 %v6644, 2.0
        %v6700 = vadd.f32 %v6646, 2.0
        %v6701 = vadd.f32 %v6648, 2.0
        %v6702 = vadd.f32 %v6650, 2.0
        %v6703 = vadd.f32 %v6652, 2.0
        %v6704 = vadd.f32 %v6654, 2.0
        %v6705 = vadd.f32 %v6656, 2.0
        %v6706 = vadd.f32 %v6658, 2.0
        %v6707 = vadd.f32 %v6660, 2.0
        %v6708 = vadd.f32 %v6662, 2.0
        %v6709 = vadd.f32 %v6664, 2.0
        %v6710 = vadd.f32 %v6666, 2.0
        %v6711 = vadd.f32 %v6668, 2.0
        %v6712 = vadd.f32 %v6670, 2.0
        %v6713 = vadd.f32 %v6672, 2.0
        %v6714 = vadd.f32 %v6674, 2.0
        %v6715 = vadd.f32 %v6676, 2.0
        %v6716 = vadd.f32 %v6678, 2.0
        %v6717 = vadd.f32 %v6680, 2.0
        %v6718 = vadd.f32 %v6682, 2.0
        %v6719 = vadd.f32 %v6684, 2.0
        %v6720 = vadd.f32 %v6686, 2.0
        %v6721 = vadd.f32 %v6688, 2.0
        %v6722 = vadd.f32 %v6690, 2.0
        %v6723 = vmul.f32 %v6628, %v6691
        %v6724 = vmul.f32 %v6630, %v6692
        %v6725 = vmul.f32 %v6632, %v6693
        %v6726 = vmul.f32 %v6634, %v6694
        %v6727 = vmul.f32 %v6636, %v6695
        %v6728 = vmul.f32 %v6638, %v6696
        %v6729 = vmul.f32 %v6640, %v6697
        %v6730 = vmul.f32 %v6642, %v6698
        %v6731 = vmul.f32 %v6644, %v6699
        %v6732 = vmul.f32 %v6646, %v6700
        %v6733 = vmul.f32 %v6648, %v6701
        %v6734 = vmul.f32 %v6650, %v6702
        %v6735 = vmul.f32 %v6652, %v6703
        %v6736 = vmul.f32 %v6654, %v6704
        %v6737 = vmul.f32 %v6656, %v6705
        %v6738 = vmul.f32 %v6658, %v6706
        %v6739 = vmul.f32 %v6660, %v6707
        %v6740 = vmul.f32 %v6662, %v6708
        %v6741 = vmul.f32 %v6664, %v6709
        %v6742 = vmul.f32 %v6666, %v6710
        %v6743 = vmul.f32 %v6668, %v6711
        %v6744 = vmul.f32 %v6670, %v6712
        %v6745 = vmul.f32 %v6672, %v6713
        %v6746 = vmul.f32 %v6674, %v6714
        %v6747 = vmul.f32 %v6676, %v6715
        %v6748 = vmul.f32 %v6678, %v6716
        %v6749 = vmul.f32 %v6680, %v6717
        %v6750 = vmul.f32 %v6682, %v6718
        %v6751 = vmul.f32 %v6684, %v6719
        %v6752 = vmul.f32 %v6686, %v6720
        %v6753 = vmul.f32 %v6688, %v6721
        %v6754 = vmul.f32 %v6690, %v6722
        %v6755 = vmul.f32 %v3877, %v6723
        %v6756 = vmul.f32 %v3878, %v6724
        %v6757 = vmul.f32 %v3879, %v6725
        %v6758 = vmul.f32 %v3880, %v6726
        %v6759 = vmul.f32 %v3881, %v6727
        %v6760 = vmul.f32 %v3882, %v6728
        %v6761 = vmul.f32 %v3883, %v6729
        %v6762 = vmul.f32 %v3884, %v6730
        %v6763 = vmul.f32 %v3885, %v6731
        %v6764 = vmul.f32 %v3886, %v6732
        %v6765 = vmul.f32 %v3887, %v6733
        %v6766 = vmul.f32 %v3888, %v6734
        %v6767 = vmul.f32 %v3889, %v6735
        %v6768 = vmul.f32 %v3890, %v6736
        %v6769 = vmul.f32 %v3891, %v6737
        %v6770 = vmul.f32 %v3892, %v6738
        %v6771 = vmul.f32 %v3893, %v6739
        %v6772 = vmul.f32 %v3894, %v6740
        %v6773 = vmul.f32 %v3895, %v6741
        %v6774 = vmul.f32 %v3896, %v6742
        %v6775 = vmul.f32 %v3897, %v6743
        %v6776 = vmul.f32 %v3898, %v6744
        %v6777 = vmul.f32 %v3899, %v6745
        %v6778 = vmul.f32 %v3900, %v6746
        %v6779 = vmul.f32 %v3901, %v6747
        %v6780 = vmul.f32 %v3902, %v6748
        %v6781 = vmul.f32 %v3903, %v6749
        %v6782 = vmul.f32 %v3904, %v6750
        %v6783 = vmul.f32 %v3905, %v6751
        %v6784 = vmul.f32 %v3906, %v6752
        %v6785 = vmul.f32 %v3907, %v6753
        %v6786 = vmul.f32 %v3908, %v6754
        %v6787 = vadd.f32 %v6723, 2.0
        %v6788 = vadd.f32 %v6724, 2.0
        %v6789 = vadd.f32 %v6725, 2.0
        %v6790 = vadd.f32 %v6726, 2.0
        %v6791 = vadd.f32 %v6727, 2.0
        %v6792 = vadd.f32 %v6728, 2.0
        %v6793 = vadd.f32 %v6729, 2.0
        %v6794 = vadd.f32 %v6730, 2.0
        %v6795 = vadd.f32 %v6731, 2.0
        %v6796 = vadd.f32 %v6732, 2.0
        %v6797 = vadd.f32 %v6733, 2.0
        %v6798 = vadd.f32 %v6734, 2.0
        %v6799 = vadd.f32 %v6735, 2.0
        %v6800 = vadd.f32 %v6736, 2.0
        %v6801 = vadd.f32 %v6737, 2.0
        %v6802 = vadd.f32 %v6738, 2.0
        %v6803 = vadd.f32 %v6739, 2.0
        %v6804 = vadd.f32 %v6740, 2.0
        %v6805 = vadd.f32 %v6741, 2.0
        %v6806 = vadd.f32 %v6742, 2.0
        %v6807 = vadd.f32 %v6743, 2.0
        %v6808 = vadd.f32 %v6744, 2.0
        %v6809 = vadd.f32 %v6745, 2.0
        %v6810 = vadd.f32 %v6746, 2.0
        %v6811 = vadd.f32 %v6747, 2.0
        %v6812 = vadd.f32 %v6748, 2.0
        %v6813 = vadd.f32 %v6749, 2.0
        %v6814 = vadd.f32 %v6750, 2.0
        %v6815 = vadd.f32 %v6751, 2.0
        %v6816 = vadd.f32 %v6752, 2.0
        %v6817 = vadd.f32 %v6753, 2.0
        %v6818 = vadd.f32 %v6754, 2.0
        %v6819 = vrcp.pop %v6787
        %v6820 = vrcp.pop %v6788
        %v6821 = vrcp.pop %v6789
        %v6822 = vrcp.pop %v6790
        %v6823 = vrcp.pop %v6791
        %v6824 = vrcp.pop %v6792
        %v6825 = vrcp.pop %v6793
        %v6826 = vrcp.pop %v6794
        %v6827 = vrcp.pop %v6795
        %v6828 = vrcp.pop %v6796
        %v6829 = vrcp.pop %v6797
        %v6830 = vrcp.pop %v6798
        %v6831 = vrcp.pop %v6799
        %v6832 = vrcp.pop %v6800
        %v6833 = vrcp.pop %v6801
        %v6834 = vrcp.pop %v6802
        %v6835 = vrcp.pop %v6803
        %v6836 = vrcp.pop %v6804
        %v6837 = vrcp.pop %v6805
        %v6838 = vrcp.pop %v6806
        %v6839 = vrcp.pop %v6807
        %v6840 = vrcp.pop %v6808
        %v6841 = vrcp.pop %v6809
        %v6842 = vrcp.pop %v6810
        %v6843 = vrcp.pop %v6811
        %v6844 = vrcp.pop %v6812
        %v6845 = vrcp.pop %v6813
        %v6846 = vrcp.pop %v6814
        %v6847 = vrcp.pop %v6815
        %v6848 = vrcp.pop %v6816
        %v6849 = vrcp.pop %v6817
        %v6850 = vrcp.pop %v6818
        %v6851 = vmul.f32 %v6755, %v6819
        %v6852 = vmul.f32 %v6756, %v6820
        %v6853 = vmul.f32 %v6757, %v6821
        %v6854 = vmul.f32 %v6758, %v6822
        %v6855 = vmul.f32 %v6759, %v6823
        %v6856 = vmul.f32 %v6760, %v6824
        %v6857 = vmul.f32 %v6761, %v6825
        %v6858 = vmul.f32 %v6762, %v6826
        %v6859 = vmul.f32 %v6763, %v6827
        %v6860 = vmul.f32 %v6764, %v6828
        %v6861 = vmul.f32 %v6765, %v6829
        %v6862 = vmul.f32 %v6766, %v6830
        %v6863 = vmul.f32 %v6767, %v6831
        %v6864 = vmul.f32 %v6768, %v6832
        %v6865 = vmul.f32 %v6769, %v6833
        %v6866 = vmul.f32 %v6770, %v6834
        %v6867 = vmul.f32 %v6771, %v6835
        %v6868 = vmul.f32 %v6772, %v6836
        %v6869 = vmul.f32 %v6773, %v6837
        %v6870 = vmul.f32 %v6774, %v6838
        %v6871 = vmul.f32 %v6775, %v6839
        %v6872 = vmul.f32 %v6776, %v6840
        %v6873 = vmul.f32 %v6777, %v6841
        %v6874 = vmul.f32 %v6778, %v6842
        %v6875 = vmul.f32 %v6779, %v6843
        %v6876 = vmul.f32 %v6780, %v6844
        %v6877 = vmul.f32 %v6781, %v6845
        %v6878 = vmul.f32 %v6782, %v6846
        %v6879 = vmul.f32 %v6783, %v6847
        %v6880 = vmul.f32 %v6784, %v6848
        %v6881 = vmul.f32 %v6785, %v6849
        %v6882 = vmul.f32 %v6786, %v6850
        %v6883 = vmul.f32 %v6851, %v6563
        %v6884 = vmul.f32 %v6852, %v6564
        %v6885 = vmul.f32 %v6853, %v6565
        %v6886 = vmul.f32 %v6854, %v6566
        %v6887 = vmul.f32 %v6855, %v6567
        %v6888 = vmul.f32 %v6856, %v6568
        %v6889 = vmul.f32 %v6857, %v6569
        %v6890 = vmul.f32 %v6858, %v6570
        %v6891 = vmul.f32 %v6859, %v6571
        %v6892 = vmul.f32 %v6860, %v6572
        %v6893 = vmul.f32 %v6861, %v6573
        %v6894 = vmul.f32 %v6862, %v6574
        %v6895 = vmul.f32 %v6863, %v6575
        %v6896 = vmul.f32 %v6864, %v6576
        %v6897 = vmul.f32 %v6865, %v6577
        %v6898 = vmul.f32 %v6866, %v6578
        %v6899 = vmul.f32 %v6867, %v6579
        %v6900 = vmul.f32 %v6868, %v6580
        %v6901 = vmul.f32 %v6869, %v6581
        %v6902 = vmul.f32 %v6870, %v6582
        %v6903 = vmul.f32 %v6871, %v6583
        %v6904 = vmul.f32 %v6872, %v6584
        %v6905 = vmul.f32 %v6873, %v6585
        %v6906 = vmul.f32 %v6874, %v6586
        %v6907 = vmul.f32 %v6875, %v6587
        %v6908 = vmul.f32 %v6876, %v6588
        %v6909 = vmul.f32 %v6877, %v6589
        %v6910 = vmul.f32 %v6878, %v6590
        %v6911 = vmul.f32 %v6879, %v6591
        %v6912 = vmul.f32 %v6880, %v6592
        %v6913 = vmul.f32 %v6881, %v6593
        %v6914 = vmul.f32 %v6882, %v6594
        %s6915 = scalar_lea.vmem [#allocation4], 24
        %6916 = vst.msk [vmem:[%s6915 + $0x1] sm:$0xff] %vm425, %v6883
        %6917 = vst.msk [vmem:[%s6915 + $0x9] sm:$0xff] %vm425, %v6884
        %6918 = vst.msk [vmem:[%s6915 + $0x19] sm:$0xff] %vm425, %v6885
        %6919 = vst.msk [vmem:[%s6915 + $0x21] sm:$0xff] %vm425, %v6886
        %6920 = vst.msk [vmem:[%s6915 + $0x31] sm:$0xff] %vm425, %v6887
        %6921 = vst.msk [vmem:[%s6915 + $0x39] sm:$0xff] %vm425, %v6888
        %6922 = vst.msk [vmem:[%s6915 + $0x49] sm:$0xff] %vm425, %v6889
        %6923 = vst.msk [vmem:[%s6915 + $0x51] sm:$0xff] %vm425, %v6890
        %6924 = vst.msk [vmem:[%s6915 + $0x61] sm:$0xff] %vm425, %v6891
        %6925 = vst.msk [vmem:[%s6915 + $0x69] sm:$0xff] %vm425, %v6892
        %6926 = vst.msk [vmem:[%s6915 + $0x79] sm:$0xff] %vm425, %v6893
        %6927 = vst.msk [vmem:[%s6915 + $0x81] sm:$0xff] %vm425, %v6894
        %6928 = vst.msk [vmem:[%s6915 + $0x91] sm:$0xff] %vm425, %v6895
        %6929 = vst.msk [vmem:[%s6915 + $0x99] sm:$0xff] %vm425, %v6896
        %6930 = vst.msk [vmem:[%s6915 + $0xa9] sm:$0xff] %vm425, %v6897
        %6931 = vst.msk [vmem:[%s6915 + $0xb1] sm:$0xff] %vm425, %v6898
        %6932 = vst.msk [vmem:[%s6915 + $0xc1] sm:$0xff] %vm425, %v6899
        %6933 = vst.msk [vmem:[%s6915 + $0xc9] sm:$0xff] %vm425, %v6900
        %6934 = vst.msk [vmem:[%s6915 + $0xd9] sm:$0xff] %vm425, %v6901
        %6935 = vst.msk [vmem:[%s6915 + $0xe1] sm:$0xff] %vm425, %v6902
        %6936 = vst.msk [vmem:[%s6915 + $0xf1] sm:$0xff] %vm425, %v6903
        %6937 = vst.msk [vmem:[%s6915 + $0xf9] sm:$0xff] %vm425, %v6904
        %6938 = vst.msk [vmem:[%s6915 + $0x109] sm:$0xff] %vm425, %v6905
        %6939 = vst.msk [vmem:[%s6915 + $0x111] sm:$0xff] %vm425, %v6906
        %6940 = vst.msk [vmem:[%s6915 + $0x121] sm:$0xff] %vm425, %v6907
        %6941 = vst.msk [vmem:[%s6915 + $0x129] sm:$0xff] %vm425, %v6908
        %6942 = vst.msk [vmem:[%s6915 + $0x139] sm:$0xff] %vm425, %v6909
        %6943 = vst.msk [vmem:[%s6915 + $0x141] sm:$0xff] %vm425, %v6910
        %6944 = vst.msk [vmem:[%s6915 + $0x151] sm:$0xff] %vm425, %v6911
        %6945 = vst.msk [vmem:[%s6915 + $0x159] sm:$0xff] %vm425, %v6912
        %6946 = vst.msk [vmem:[%s6915 + $0x169] sm:$0xff] %vm425, %v6913
        %6947 = vst.msk [vmem:[%s6915 + $0x171] sm:$0xff] %vm425, %v6914
        %v6948 = vld [vmem:[#allocation4] sm:$0xff]
        %v6949 = vld [vmem:[#allocation4 + $0x8] sm:$0xff]
        %v6950 = vld [vmem:[#allocation4 + $0x18] sm:$0xff]
        %v6951 = vld [vmem:[#allocation4 + $0x20] sm:$0xff]
        %v6952 = vld [vmem:[#allocation4 + $0x30] sm:$0xff]
        %v6953 = vld [vmem:[#allocation4 + $0x38] sm:$0xff]
        %v6954 = vld [vmem:[#allocation4 + $0x48] sm:$0xff]
        %v6955 = vld [vmem:[#allocation4 + $0x50] sm:$0xff]
        %v6956 = vld [vmem:[#allocation4 + $0x60] sm:$0xff]
        %v6957 = vld [vmem:[#allocation4 + $0x68] sm:$0xff]
        %v6958 = vld [vmem:[#allocation4 + $0x78] sm:$0xff]
        %v6959 = vld [vmem:[#allocation4 + $0x80] sm:$0xff]
        %v6960 = vld [vmem:[#allocation4 + $0x90] sm:$0xff]
        %v6961 = vld [vmem:[#allocation4 + $0x98] sm:$0xff]
        %v6962 = vld [vmem:[#allocation4 + $0xa8] sm:$0xff]
        %v6963 = vld [vmem:[#allocation4 + $0xb0] sm:$0xff]
        %v6964 = vld [vmem:[#allocation4 + $0xc0] sm:$0xff]
        %v6965 = vld [vmem:[#allocation4 + $0xc8] sm:$0xff]
        %v6966 = vld [vmem:[#allocation4 + $0xd8] sm:$0xff]
        %v6967 = vld [vmem:[#allocation4 + $0xe0] sm:$0xff]
        %v6968 = vld [vmem:[#allocation4 + $0xf0] sm:$0xff]
        %v6969 = vld [vmem:[#allocation4 + $0xf8] sm:$0xff]
        %v6970 = vld [vmem:[#allocation4 + $0x108] sm:$0xff]
        %v6971 = vld [vmem:[#allocation4 + $0x110] sm:$0xff]
        %v6972 = vld [vmem:[#allocation4 + $0x120] sm:$0xff]
        %v6973 = vld [vmem:[#allocation4 + $0x128] sm:$0xff]
        %v6974 = vld [vmem:[#allocation4 + $0x138] sm:$0xff]
        %v6975 = vld [vmem:[#allocation4 + $0x140] sm:$0xff]
        %v6976 = vld [vmem:[#allocation4 + $0x150] sm:$0xff]
        %v6977 = vld [vmem:[#allocation4 + $0x158] sm:$0xff]
        %v6978 = vld [vmem:[#allocation4 + $0x168] sm:$0xff]
        %v6979 = vld [vmem:[#allocation4 + $0x170] sm:$0xff]
        %v6980 = vpack.c.bf16 %v6949, %v6948
        %v6981 = vpack.c.bf16 %v6951, %v6950
        %v6982 = vpack.c.bf16 %v6953, %v6952
        %v6983 = vpack.c.bf16 %v6955, %v6954
        %v6984 = vpack.c.bf16 %v6957, %v6956
        %v6985 = vpack.c.bf16 %v6959, %v6958
        %v6986 = vpack.c.bf16 %v6961, %v6960
        %v6987 = vpack.c.bf16 %v6963, %v6962
        %v6988 = vpack.c.bf16 %v6965, %v6964
        %v6989 = vpack.c.bf16 %v6967, %v6966
        %v6990 = vpack.c.bf16 %v6969, %v6968
        %v6991 = vpack.c.bf16 %v6971, %v6970
        %v6992 = vpack.c.bf16 %v6973, %v6972
        %v6993 = vpack.c.bf16 %v6975, %v6974
        %v6994 = vpack.c.bf16 %v6977, %v6976
        %v6995 = vpack.c.bf16 %v6979, %v6978
        %v6996 = vld [vmem:[%s8] sm:$0xf]
        %v6997 = vld [vmem:[%s8 + $0x4] sm:$0xf]
        %v6998 = vld [vmem:[%s8 + $0x8] sm:$0xf]
        %v6999 = vld [vmem:[%s8 + $0xc] sm:$0xf]
        %v7000 = vld [vmem:[%s8 + $0x10] sm:$0xf]
        %v7001 = vld [vmem:[%s8 + $0x14] sm:$0xf]
        %v7002 = vld [vmem:[%s8 + $0x18] sm:$0xf]
        %v7003 = vld [vmem:[%s8 + $0x1c] sm:$0xf]
        %v7004 = vld [vmem:[#allocation4 + $0x1] sm:$0xff]
        %v7005 = vld [vmem:[#allocation4 + $0x9] sm:$0xff]
        %v7006 = vld [vmem:[#allocation4 + $0x19] sm:$0xff]
        %v7007 = vld [vmem:[#allocation4 + $0x21] sm:$0xff]
        %v7008 = vld [vmem:[#allocation4 + $0x31] sm:$0xff]
        %v7009 = vld [vmem:[#allocation4 + $0x39] sm:$0xff]
        %v7010 = vld [vmem:[#allocation4 + $0x49] sm:$0xff]
        %v7011 = vld [vmem:[#allocation4 + $0x51] sm:$0xff]
        %v7012 = vld [vmem:[#allocation4 + $0x61] sm:$0xff]
        %v7013 = vld [vmem:[#allocation4 + $0x69] sm:$0xff]
        %v7014 = vld [vmem:[#allocation4 + $0x79] sm:$0xff]
        %v7015 = vld [vmem:[#allocation4 + $0x81] sm:$0xff]
        %v7016 = vld [vmem:[#allocation4 + $0x91] sm:$0xff]
        %v7017 = vld [vmem:[#allocation4 + $0x99] sm:$0xff]
        %v7018 = vld [vmem:[#allocation4 + $0xa9] sm:$0xff]
        %v7019 = vld [vmem:[#allocation4 + $0xb1] sm:$0xff]
        %v7020 = vld [vmem:[#allocation4 + $0xc1] sm:$0xff]
        %v7021 = vld [vmem:[#allocation4 + $0xc9] sm:$0xff]
        %v7022 = vld [vmem:[#allocation4 + $0xd9] sm:$0xff]
        %v7023 = vld [vmem:[#allocation4 + $0xe1] sm:$0xff]
        %v7024 = vld [vmem:[#allocation4 + $0xf1] sm:$0xff]
        %v7025 = vld [vmem:[#allocation4 + $0xf9] sm:$0xff]
        %v7026 = vld [vmem:[#allocation4 + $0x109] sm:$0xff]
        %v7027 = vld [vmem:[#allocation4 + $0x111] sm:$0xff]
        %v7028 = vld [vmem:[#allocation4 + $0x121] sm:$0xff]
        %v7029 = vld [vmem:[#allocation4 + $0x129] sm:$0xff]
        %v7030 = vld [vmem:[#allocation4 + $0x139] sm:$0xff]
        %v7031 = vld [vmem:[#allocation4 + $0x141] sm:$0xff]
        %v7032 = vld [vmem:[#allocation4 + $0x151] sm:$0xff]
        %v7033 = vld [vmem:[#allocation4 + $0x159] sm:$0xff]
        %v7034 = vld [vmem:[#allocation4 + $0x169] sm:$0xff]
        %v7035 = vld [vmem:[#allocation4 + $0x171] sm:$0xff]
        %v7036 = vpack.c.bf16 %v7005, %v7004
        %v7037 = vpack.c.bf16 %v7007, %v7006
        %v7038 = vpack.c.bf16 %v7009, %v7008
        %v7039 = vpack.c.bf16 %v7011, %v7010
        %v7040 = vpack.c.bf16 %v7013, %v7012
        %v7041 = vpack.c.bf16 %v7015, %v7014
        %v7042 = vpack.c.bf16 %v7017, %v7016
        %v7043 = vpack.c.bf16 %v7019, %v7018
        %v7044 = vpack.c.bf16 %v7021, %v7020
        %v7045 = vpack.c.bf16 %v7023, %v7022
        %v7046 = vpack.c.bf16 %v7025, %v7024
        %v7047 = vpack.c.bf16 %v7027, %v7026
        %v7048 = vpack.c.bf16 %v7029, %v7028
        %v7049 = vpack.c.bf16 %v7031, %v7030
        %v7050 = vpack.c.bf16 %v7033, %v7032
        %v7051 = vpack.c.bf16 %v7035, %v7034
        %s7052 = scalar_lea.vmem %s8, 32
        %v7053 = vld [vmem:[%s7052] sm:$0xf]
        %v7054 = vld [vmem:[%s7052 + $0x4] sm:$0xf]
        %v7055 = vld [vmem:[%s7052 + $0x8] sm:$0xf]
        %v7056 = vld [vmem:[%s7052 + $0xc] sm:$0xf]
        %v7057 = vld [vmem:[%s7052 + $0x10] sm:$0xf]
        %v7058 = vld [vmem:[%s7052 + $0x14] sm:$0xf]
        %v7059 = vld [vmem:[%s7052 + $0x18] sm:$0xf]
        %v7060 = vld [vmem:[%s7052 + $0x1c] sm:$0xf]
        %v7069 = vunpack.c.l.b16 %v7053
        %v7070 = vunpack.c.l.b16 %v7054
        %v7071 = vunpack.c.l.b16 %v7055
        %v7072 = vunpack.c.l.b16 %v7056
        %v7073 = vunpack.c.l.b16 %v7057
        %v7074 = vunpack.c.l.b16 %v7058
        %v7075 = vunpack.c.l.b16 %v7059
        %v7076 = vunpack.c.l.b16 %v7060
        %v7077 = vpack.c.b16 %v7070, %v7069
        %v7078 = vpack.c.b16 %v7072, %v7071
        %v7079 = vpack.c.b16 %v7074, %v7073
        %v7080 = vpack.c.b16 %v7076, %v7075
        %v7086 = vsel %vm425, %v7036, 0
        %v7089 = vsel %vm425, %v7037, 0
        %v7092 = vsel %vm425, %v7038, 0
        %v7095 = vsel %vm425, %v7039, 0
        %v7098 = vsel %vm425, %v7040, 0
        %v7101 = vsel %vm425, %v7041, 0
        %v7104 = vsel %vm425, %v7042, 0
        %v7107 = vsel %vm425, %v7043, 0
        %v7110 = vsel %vm425, %v7044, 0
        %v7113 = vsel %vm425, %v7045, 0
        %v7116 = vsel %vm425, %v7046, 0
        %v7119 = vsel %vm425, %v7047, 0
        %v7122 = vsel %vm425, %v7048, 0
        %v7125 = vsel %vm425, %v7049, 0
        %v7128 = vsel %vm425, %v7050, 0
        %v7131 = vsel %vm425, %v7051, 0
        %7133 = vmatprep.subr.bf16.mxu0 0
        %7134 = vmatpush1.bf16.msra.mxu0 0
        %7135 = vmatprep.subr.bf16.mxu0 0
        %7136 = vmatpush1.bf16.msra.mxu0 0
        %7137 = vmatprep.subr.bf16.mxu0 0
        %7138 = vmatpush1.bf16.msra.mxu0 0
        %7139 = vmatprep.subr.bf16.mxu0 0
        %7140 = vmatpush1.bf16.msra.mxu0 0
        %7141 = vmatprep.subr.bf16.mxu0 0
        %7142 = vmatpush1.bf16.msra.mxu0 %v7080
        %7143 = vmatprep.subr.bf16.mxu0 0
        %7144 = vmatpush1.bf16.msra.mxu0 %v7079
        %7145 = vmatprep.subr.bf16.mxu0 0
        %7146 = vmatpush1.bf16.msra.mxu0 %v7078
        %7147 = vmatprep.subr.bf16.mxu0 0
        %7148 = vmatpush1.bf16.msra.mxu0 %v7077
        %7149 = vmatprep.subr.bf16.mxu0 0
        %7150 = vmatpush2.bf16.msra.mxu0 0
        %7151 = vmatprep.subr.bf16.mxu0 0
        %7152 = vmatpush2.bf16.msra.mxu0 0
        %7153 = vmatprep.subr.bf16.mxu0 0
        %7154 = vmatpush2.bf16.msra.mxu0 0
        %7155 = vmatprep.subr.bf16.mxu0 0
        %7156 = vmatpush2.bf16.msra.mxu0 0
        %7157 = vmatprep.subr.bf16.mxu0 0
        %7158 = vmatpush2.bf16.msra.mxu0 0
        %7159 = vmatprep.subr.bf16.mxu0 0
        %7160 = vmatpush2.bf16.msra.mxu0 0
        %7161 = vmatprep.subr.bf16.mxu0 0
        %7162 = vmatpush2.bf16.msra.mxu0 0
        %7163 = vmatprep.subr.bf16.mxu0 0
        %7164 = vmatpush2.bf16.msra.mxu0 0
        %7165 = vmatprep.mubr.bf16.mxu0 0
        %7166 = vmatmul.mubr.bf16.gmra.mxu0 %v7086
        %v7167 = vpop.f32.mrf.mxu0
        %v7168 = vadd.f32 0.0, %v7167
        %v7169 = vpop.f32.mrf.mxu0
        %v7170 = vpop.f32.mrf.mxu0
        %v7171 = vadd.f32 0.0, %v7170
        %v7172 = vpop.f32.mrf.mxu0
        %7173 = vmatprep.mubr.bf16.mxu0 0
        %7174 = vmatmul.mubr.bf16.gmra.mxu0 %v7089
        %v7175 = vpop.f32.mrf.mxu0
        %v7176 = vadd.f32 0.0, %v7175
        %v7177 = vpop.f32.mrf.mxu0
        %v7178 = vpop.f32.mrf.mxu0
        %v7179 = vadd.f32 0.0, %v7178
        %v7180 = vpop.f32.mrf.mxu0
        %7181 = vmatprep.mubr.bf16.mxu0 0
        %7182 = vmatmul.mubr.bf16.gmra.mxu0 %v7092
        %v7183 = vpop.f32.mrf.mxu0
        %v7184 = vadd.f32 0.0, %v7183
        %v7185 = vpop.f32.mrf.mxu0
        %v7186 = vpop.f32.mrf.mxu0
        %v7187 = vadd.f32 0.0, %v7186
        %v7188 = vpop.f32.mrf.mxu0
        %7189 = vmatprep.mubr.bf16.mxu0 0
        %7190 = vmatmul.mubr.bf16.gmra.mxu0 %v7095
        %v7191 = vpop.f32.mrf.mxu0
        %v7192 = vadd.f32 0.0, %v7191
        %v7193 = vpop.f32.mrf.mxu0
        %v7194 = vpop.f32.mrf.mxu0
        %v7195 = vadd.f32 0.0, %v7194
        %v7196 = vpop.f32.mrf.mxu0
        %7197 = vmatprep.mubr.bf16.mxu0 0
        %7198 = vmatmul.mubr.bf16.gmra.mxu0 %v7098
        %v7199 = vpop.f32.mrf.mxu0
        %v7200 = vadd.f32 0.0, %v7199
        %v7201 = vpop.f32.mrf.mxu0
        %v7202 = vpop.f32.mrf.mxu0
        %v7203 = vadd.f32 0.0, %v7202
        %v7204 = vpop.f32.mrf.mxu0
        %7205 = vmatprep.mubr.bf16.mxu0 0
        %7206 = vmatmul.mubr.bf16.gmra.mxu0 %v7101
        %v7207 = vpop.f32.mrf.mxu0
        %v7208 = vadd.f32 0.0, %v7207
        %v7209 = vpop.f32.mrf.mxu0
        %v7210 = vpop.f32.mrf.mxu0
        %v7211 = vadd.f32 0.0, %v7210
        %v7212 = vpop.f32.mrf.mxu0
        %7213 = vmatprep.mubr.bf16.mxu0 0
        %7214 = vmatmul.mubr.bf16.gmra.mxu0 %v7104
        %v7215 = vpop.f32.mrf.mxu0
        %v7216 = vadd.f32 0.0, %v7215
        %v7217 = vpop.f32.mrf.mxu0
        %v7218 = vpop.f32.mrf.mxu0
        %v7219 = vadd.f32 0.0, %v7218
        %v7220 = vpop.f32.mrf.mxu0
        %7221 = vmatprep.mubr.bf16.mxu0 0
        %7222 = vmatmul.mubr.bf16.gmra.mxu0 %v7107
        %v7223 = vpop.f32.mrf.mxu0
        %v7224 = vadd.f32 0.0, %v7223
        %v7225 = vpop.f32.mrf.mxu0
        %v7226 = vpop.f32.mrf.mxu0
        %v7227 = vadd.f32 0.0, %v7226
        %v7228 = vpop.f32.mrf.mxu0
        %7229 = vmatprep.mubr.bf16.mxu0 0
        %7230 = vmatmul.mubr.bf16.gmra.mxu0 %v7110
        %v7231 = vpop.f32.mrf.mxu0
        %v7232 = vadd.f32 0.0, %v7231
        %v7233 = vpop.f32.mrf.mxu0
        %v7234 = vpop.f32.mrf.mxu0
        %v7235 = vadd.f32 0.0, %v7234
        %v7236 = vpop.f32.mrf.mxu0
        %7237 = vmatprep.mubr.bf16.mxu0 0
        %7238 = vmatmul.mubr.bf16.gmra.mxu0 %v7113
        %v7239 = vpop.f32.mrf.mxu0
        %v7240 = vadd.f32 0.0, %v7239
        %v7241 = vpop.f32.mrf.mxu0
        %v7242 = vpop.f32.mrf.mxu0
        %v7243 = vadd.f32 0.0, %v7242
        %v7244 = vpop.f32.mrf.mxu0
        %7245 = vmatprep.mubr.bf16.mxu0 0
        %7246 = vmatmul.mubr.bf16.gmra.mxu0 %v7116
        %v7247 = vpop.f32.mrf.mxu0
        %v7248 = vadd.f32 0.0, %v7247
        %v7249 = vpop.f32.mrf.mxu0
        %v7250 = vpop.f32.mrf.mxu0
        %v7251 = vadd.f32 0.0, %v7250
        %v7252 = vpop.f32.mrf.mxu0
        %7253 = vmatprep.mubr.bf16.mxu0 0
        %7254 = vmatmul.mubr.bf16.gmra.mxu0 %v7119
        %v7255 = vpop.f32.mrf.mxu0
        %v7256 = vadd.f32 0.0, %v7255
        %v7257 = vpop.f32.mrf.mxu0
        %v7258 = vpop.f32.mrf.mxu0
        %v7259 = vadd.f32 0.0, %v7258
        %v7260 = vpop.f32.mrf.mxu0
        %7261 = vmatprep.mubr.bf16.mxu0 0
        %7262 = vmatmul.mubr.bf16.gmra.mxu0 %v7122
        %v7263 = vpop.f32.mrf.mxu0
        %v7264 = vadd.f32 0.0, %v7263
        %v7265 = vpop.f32.mrf.mxu0
        %v7266 = vpop.f32.mrf.mxu0
        %v7267 = vadd.f32 0.0, %v7266
        %v7268 = vpop.f32.mrf.mxu0
        %7269 = vmatprep.mubr.bf16.mxu0 0
        %7270 = vmatmul.mubr.bf16.gmra.mxu0 %v7125
        %v7271 = vpop.f32.mrf.mxu0
        %v7272 = vadd.f32 0.0, %v7271
        %v7273 = vpop.f32.mrf.mxu0
        %v7274 = vpop.f32.mrf.mxu0
        %v7275 = vadd.f32 0.0, %v7274
        %v7276 = vpop.f32.mrf.mxu0
        %7277 = vmatprep.mubr.bf16.mxu0 0
        %7278 = vmatmul.mubr.bf16.gmra.mxu0 %v7128
        %v7279 = vpop.f32.mrf.mxu0
        %v7280 = vadd.f32 0.0, %v7279
        %v7281 = vpop.f32.mrf.mxu0
        %v7282 = vpop.f32.mrf.mxu0
        %v7283 = vadd.f32 0.0, %v7282
        %v7284 = vpop.f32.mrf.mxu0
        %7285 = vmatprep.mubr.bf16.mxu0 0
        %7286 = vmatmul.mubr.bf16.gmra.mxu0 %v7131
        %v7287 = vpop.f32.mrf.mxu0
        %v7288 = vadd.f32 0.0, %v7287
        %v7289 = vpop.f32.mrf.mxu0
        %v7290 = vpop.f32.mrf.mxu0
        %v7291 = vadd.f32 0.0, %v7290
        %v7292 = vpop.f32.mrf.mxu0
        %7293 = vdwg.mxu0
        %v7302 = vunpack.c.l.b16 %v6996
        %v7303 = vunpack.c.l.b16 %v6997
        %v7304 = vunpack.c.l.b16 %v6998
        %v7305 = vunpack.c.l.b16 %v6999
        %v7306 = vunpack.c.l.b16 %v7000
        %v7307 = vunpack.c.l.b16 %v7001
        %v7308 = vunpack.c.l.b16 %v7002
        %v7309 = vunpack.c.l.b16 %v7003
        %v7310 = vpack.c.b16 %v7303, %v7302
        %v7311 = vpack.c.b16 %v7305, %v7304
        %v7312 = vpack.c.b16 %v7307, %v7306
        %v7313 = vpack.c.b16 %v7309, %v7308
        %v7319 = vsel %vm425, %v6980, 0
        %v7322 = vsel %vm425, %v6981, 0
        %v7325 = vsel %vm425, %v6982, 0
        %v7328 = vsel %vm425, %v6983, 0
        %v7331 = vsel %vm425, %v6984, 0
        %v7334 = vsel %vm425, %v6985, 0
        %v7337 = vsel %vm425, %v6986, 0
        %v7340 = vsel %vm425, %v6987, 0
        %v7343 = vsel %vm425, %v6988, 0
        %v7346 = vsel %vm425, %v6989, 0
        %v7349 = vsel %vm425, %v6990, 0
        %v7352 = vsel %vm425, %v6991, 0
        %v7355 = vsel %vm425, %v6992, 0
        %v7358 = vsel %vm425, %v6993, 0
        %v7361 = vsel %vm425, %v6994, 0
        %v7364 = vsel %vm425, %v6995, 0
        %7366 = vmatprep.subr.bf16.mxu0 0
        %7367 = vmatpush1.bf16.msra.mxu0 0
        %7368 = vmatprep.subr.bf16.mxu0 0
        %7369 = vmatpush1.bf16.msra.mxu0 0
        %7370 = vmatprep.subr.bf16.mxu0 0
        %7371 = vmatpush1.bf16.msra.mxu0 0
        %7372 = vmatprep.subr.bf16.mxu0 0
        %7373 = vmatpush1.bf16.msra.mxu0 0
        %7374 = vmatprep.subr.bf16.mxu0 0
        %7375 = vmatpush1.bf16.msra.mxu0 %v7313
        %7376 = vmatprep.subr.bf16.mxu0 0
        %7377 = vmatpush1.bf16.msra.mxu0 %v7312
        %7378 = vmatprep.subr.bf16.mxu0 0
        %7379 = vmatpush1.bf16.msra.mxu0 %v7311
        %7380 = vmatprep.subr.bf16.mxu0 0
        %7381 = vmatpush1.bf16.msra.mxu0 %v7310
        %7382 = vmatprep.subr.bf16.mxu0 0
        %7383 = vmatpush2.bf16.msra.mxu0 0
        %7384 = vmatprep.subr.bf16.mxu0 0
        %7385 = vmatpush2.bf16.msra.mxu0 0
        %7386 = vmatprep.subr.bf16.mxu0 0
        %7387 = vmatpush2.bf16.msra.mxu0 0
        %7388 = vmatprep.subr.bf16.mxu0 0
        %7389 = vmatpush2.bf16.msra.mxu0 0
        %7390 = vmatprep.subr.bf16.mxu0 0
        %7391 = vmatpush2.bf16.msra.mxu0 0
        %7392 = vmatprep.subr.bf16.mxu0 0
        %7393 = vmatpush2.bf16.msra.mxu0 0
        %7394 = vmatprep.subr.bf16.mxu0 0
        %7395 = vmatpush2.bf16.msra.mxu0 0
        %7396 = vmatprep.subr.bf16.mxu0 0
        %7397 = vmatpush2.bf16.msra.mxu0 0
        %7398 = vmatprep.mubr.bf16.mxu0 0
        %7399 = vmatmul.mubr.bf16.gmra.mxu0 %v7319
        %v7400 = vpop.f32.mrf.mxu0
        %v7401 = vadd.f32 %v7168, %v7400
        %v7402 = vpop.f32.mrf.mxu0
        %v7403 = vpop.f32.mrf.mxu0
        %v7404 = vadd.f32 %v7171, %v7403
        %v7405 = vpop.f32.mrf.mxu0
        %7406 = vmatprep.mubr.bf16.mxu0 0
        %7407 = vmatmul.mubr.bf16.gmra.mxu0 %v7322
        %v7408 = vpop.f32.mrf.mxu0
        %v7409 = vadd.f32 %v7176, %v7408
        %v7410 = vpop.f32.mrf.mxu0
        %v7411 = vpop.f32.mrf.mxu0
        %v7412 = vadd.f32 %v7179, %v7411
        %v7413 = vpop.f32.mrf.mxu0
        %7414 = vmatprep.mubr.bf16.mxu0 0
        %7415 = vmatmul.mubr.bf16.gmra.mxu0 %v7325
        %v7416 = vpop.f32.mrf.mxu0
        %v7417 = vadd.f32 %v7184, %v7416
        %v7418 = vpop.f32.mrf.mxu0
        %v7419 = vpop.f32.mrf.mxu0
        %v7420 = vadd.f32 %v7187, %v7419
        %v7421 = vpop.f32.mrf.mxu0
        %7422 = vmatprep.mubr.bf16.mxu0 0
        %7423 = vmatmul.mubr.bf16.gmra.mxu0 %v7328
        %v7424 = vpop.f32.mrf.mxu0
        %v7425 = vadd.f32 %v7192, %v7424
        %v7426 = vpop.f32.mrf.mxu0
        %v7427 = vpop.f32.mrf.mxu0
        %v7428 = vadd.f32 %v7195, %v7427
        %v7429 = vpop.f32.mrf.mxu0
        %7430 = vmatprep.mubr.bf16.mxu0 0
        %7431 = vmatmul.mubr.bf16.gmra.mxu0 %v7331
        %v7432 = vpop.f32.mrf.mxu0
        %v7433 = vadd.f32 %v7200, %v7432
        %v7434 = vpop.f32.mrf.mxu0
        %v7435 = vpop.f32.mrf.mxu0
        %v7436 = vadd.f32 %v7203, %v7435
        %v7437 = vpop.f32.mrf.mxu0
        %7438 = vmatprep.mubr.bf16.mxu0 0
        %7439 = vmatmul.mubr.bf16.gmra.mxu0 %v7334
        %v7440 = vpop.f32.mrf.mxu0
        %v7441 = vadd.f32 %v7208, %v7440
        %v7442 = vpop.f32.mrf.mxu0
        %v7443 = vpop.f32.mrf.mxu0
        %v7444 = vadd.f32 %v7211, %v7443
        %v7445 = vpop.f32.mrf.mxu0
        %7446 = vmatprep.mubr.bf16.mxu0 0
        %7447 = vmatmul.mubr.bf16.gmra.mxu0 %v7337
        %v7448 = vpop.f32.mrf.mxu0
        %v7449 = vadd.f32 %v7216, %v7448
        %v7450 = vpop.f32.mrf.mxu0
        %v7451 = vpop.f32.mrf.mxu0
        %v7452 = vadd.f32 %v7219, %v7451
        %v7453 = vpop.f32.mrf.mxu0
        %7454 = vmatprep.mubr.bf16.mxu0 0
        %7455 = vmatmul.mubr.bf16.gmra.mxu0 %v7340
        %v7456 = vpop.f32.mrf.mxu0
        %v7457 = vadd.f32 %v7224, %v7456
        %v7458 = vpop.f32.mrf.mxu0
        %v7459 = vpop.f32.mrf.mxu0
        %v7460 = vadd.f32 %v7227, %v7459
        %v7461 = vpop.f32.mrf.mxu0
        %7462 = vmatprep.mubr.bf16.mxu0 0
        %7463 = vmatmul.mubr.bf16.gmra.mxu0 %v7343
        %v7464 = vpop.f32.mrf.mxu0
        %v7465 = vadd.f32 %v7232, %v7464
        %v7466 = vpop.f32.mrf.mxu0
        %v7467 = vpop.f32.mrf.mxu0
        %v7468 = vadd.f32 %v7235, %v7467
        %v7469 = vpop.f32.mrf.mxu0
        %7470 = vmatprep.mubr.bf16.mxu0 0
        %7471 = vmatmul.mubr.bf16.gmra.mxu0 %v7346
        %v7472 = vpop.f32.mrf.mxu0
        %v7473 = vadd.f32 %v7240, %v7472
        %v7474 = vpop.f32.mrf.mxu0
        %v7475 = vpop.f32.mrf.mxu0
        %v7476 = vadd.f32 %v7243, %v7475
        %v7477 = vpop.f32.mrf.mxu0
        %7478 = vmatprep.mubr.bf16.mxu0 0
        %7479 = vmatmul.mubr.bf16.gmra.mxu0 %v7349
        %v7480 = vpop.f32.mrf.mxu0
        %v7481 = vadd.f32 %v7248, %v7480
        %v7482 = vpop.f32.mrf.mxu0
        %v7483 = vpop.f32.mrf.mxu0
        %v7484 = vadd.f32 %v7251, %v7483
        %v7485 = vpop.f32.mrf.mxu0
        %7486 = vmatprep.mubr.bf16.mxu0 0
        %7487 = vmatmul.mubr.bf16.gmra.mxu0 %v7352
        %v7488 = vpop.f32.mrf.mxu0
        %v7489 = vadd.f32 %v7256, %v7488
        %v7490 = vpop.f32.mrf.mxu0
        %v7491 = vpop.f32.mrf.mxu0
        %v7492 = vadd.f32 %v7259, %v7491
        %v7493 = vpop.f32.mrf.mxu0
        %7494 = vmatprep.mubr.bf16.mxu0 0
        %7495 = vmatmul.mubr.bf16.gmra.mxu0 %v7355
        %v7496 = vpop.f32.mrf.mxu0
        %v7497 = vadd.f32 %v7264, %v7496
        %v7498 = vpop.f32.mrf.mxu0
        %v7499 = vpop.f32.mrf.mxu0
        %v7500 = vadd.f32 %v7267, %v7499
        %v7501 = vpop.f32.mrf.mxu0
        %7502 = vmatprep.mubr.bf16.mxu0 0
        %7503 = vmatmul.mubr.bf16.gmra.mxu0 %v7358
        %v7504 = vpop.f32.mrf.mxu0
        %v7505 = vadd.f32 %v7272, %v7504
        %v7506 = vpop.f32.mrf.mxu0
        %v7507 = vpop.f32.mrf.mxu0
        %v7508 = vadd.f32 %v7275, %v7507
        %v7509 = vpop.f32.mrf.mxu0
        %7510 = vmatprep.mubr.bf16.mxu0 0
        %7511 = vmatmul.mubr.bf16.gmra.mxu0 %v7361
        %v7512 = vpop.f32.mrf.mxu0
        %v7513 = vadd.f32 %v7280, %v7512
        %v7514 = vpop.f32.mrf.mxu0
        %v7515 = vpop.f32.mrf.mxu0
        %v7516 = vadd.f32 %v7283, %v7515
        %v7517 = vpop.f32.mrf.mxu0
        %7518 = vmatprep.mubr.bf16.mxu0 0
        %7519 = vmatmul.mubr.bf16.gmra.mxu0 %v7364
        %v7520 = vpop.f32.mrf.mxu0
        %v7521 = vadd.f32 %v7288, %v7520
        %v7522 = vpop.f32.mrf.mxu0
        %v7523 = vpop.f32.mrf.mxu0
        %v7524 = vadd.f32 %v7291, %v7523
        %v7525 = vpop.f32.mrf.mxu0
        %7526 = vdwg.mxu0
        %v7527 = vld [vmem:[#allocation4 + $0x2] sm:$0xff]
        %v7528 = vld [vmem:[#allocation4 + $0xa] sm:$0xff]
        %v7529 = vld [vmem:[#allocation4 + $0x1a] sm:$0xff]
        %v7530 = vld [vmem:[#allocation4 + $0x22] sm:$0xff]
        %v7531 = vld [vmem:[#allocation4 + $0x32] sm:$0xff]
        %v7532 = vld [vmem:[#allocation4 + $0x3a] sm:$0xff]
        %v7533 = vld [vmem:[#allocation4 + $0x4a] sm:$0xff]
        %v7534 = vld [vmem:[#allocation4 + $0x52] sm:$0xff]
        %v7535 = vld [vmem:[#allocation4 + $0x62] sm:$0xff]
        %v7536 = vld [vmem:[#allocation4 + $0x6a] sm:$0xff]
        %v7537 = vld [vmem:[#allocation4 + $0x7a] sm:$0xff]
        %v7538 = vld [vmem:[#allocation4 + $0x82] sm:$0xff]
        %v7539 = vld [vmem:[#allocation4 + $0x92] sm:$0xff]
        %v7540 = vld [vmem:[#allocation4 + $0x9a] sm:$0xff]
        %v7541 = vld [vmem:[#allocation4 + $0xaa] sm:$0xff]
        %v7542 = vld [vmem:[#allocation4 + $0xb2] sm:$0xff]
        %v7543 = vld [vmem:[#allocation4 + $0xc2] sm:$0xff]
        %v7544 = vld [vmem:[#allocation4 + $0xca] sm:$0xff]
        %v7545 = vld [vmem:[#allocation4 + $0xda] sm:$0xff]
        %v7546 = vld [vmem:[#allocation4 + $0xe2] sm:$0xff]
        %v7547 = vld [vmem:[#allocation4 + $0xf2] sm:$0xff]
        %v7548 = vld [vmem:[#allocation4 + $0xfa] sm:$0xff]
        %v7549 = vld [vmem:[#allocation4 + $0x10a] sm:$0xff]
        %v7550 = vld [vmem:[#allocation4 + $0x112] sm:$0xff]
        %v7551 = vld [vmem:[#allocation4 + $0x122] sm:$0xff]
        %v7552 = vld [vmem:[#allocation4 + $0x12a] sm:$0xff]
        %v7553 = vld [vmem:[#allocation4 + $0x13a] sm:$0xff]
        %v7554 = vld [vmem:[#allocation4 + $0x142] sm:$0xff]
        %v7555 = vld [vmem:[#allocation4 + $0x152] sm:$0xff]
        %v7556 = vld [vmem:[#allocation4 + $0x15a] sm:$0xff]
        %v7557 = vld [vmem:[#allocation4 + $0x16a] sm:$0xff]
        %v7558 = vld [vmem:[#allocation4 + $0x172] sm:$0xff]
        %v7559 = vpack.c.bf16 %v7528, %v7527
        %v7560 = vpack.c.bf16 %v7530, %v7529
        %v7561 = vpack.c.bf16 %v7532, %v7531
        %v7562 = vpack.c.bf16 %v7534, %v7533
        %v7563 = vpack.c.bf16 %v7536, %v7535
        %v7564 = vpack.c.bf16 %v7538, %v7537
        %v7565 = vpack.c.bf16 %v7540, %v7539
        %v7566 = vpack.c.bf16 %v7542, %v7541
        %v7567 = vpack.c.bf16 %v7544, %v7543
        %v7568 = vpack.c.bf16 %v7546, %v7545
        %v7569 = vpack.c.bf16 %v7548, %v7547
        %v7570 = vpack.c.bf16 %v7550, %v7549
        %v7571 = vpack.c.bf16 %v7552, %v7551
        %v7572 = vpack.c.bf16 %v7554, %v7553
        %v7573 = vpack.c.bf16 %v7556, %v7555
        %v7574 = vpack.c.bf16 %v7558, %v7557
        %s7575 = scalar_lea.vmem %s8, 64
        %v7576 = vld [vmem:[%s7575] sm:$0xf]
        %v7577 = vld [vmem:[%s7575 + $0x4] sm:$0xf]
        %v7578 = vld [vmem:[%s7575 + $0x8] sm:$0xf]
        %v7579 = vld [vmem:[%s7575 + $0xc] sm:$0xf]
        %v7580 = vld [vmem:[%s7575 + $0x10] sm:$0xf]
        %v7581 = vld [vmem:[%s7575 + $0x14] sm:$0xf]
        %v7582 = vld [vmem:[%s7575 + $0x18] sm:$0xf]
        %v7583 = vld [vmem:[%s7575 + $0x1c] sm:$0xf]
        %v7592 = vunpack.c.l.b16 %v7576
        %v7593 = vunpack.c.l.b16 %v7577
        %v7594 = vunpack.c.l.b16 %v7578
        %v7595 = vunpack.c.l.b16 %v7579
        %v7596 = vunpack.c.l.b16 %v7580
        %v7597 = vunpack.c.l.b16 %v7581
        %v7598 = vunpack.c.l.b16 %v7582
        %v7599 = vunpack.c.l.b16 %v7583
        %v7600 = vpack.c.b16 %v7593, %v7592
        %v7601 = vpack.c.b16 %v7595, %v7594
        %v7602 = vpack.c.b16 %v7597, %v7596
        %v7603 = vpack.c.b16 %v7599, %v7598
        %v7609 = vsel %vm425, %v7559, 0
        %v7612 = vsel %vm425, %v7560, 0
        %v7615 = vsel %vm425, %v7561, 0
        %v7618 = vsel %vm425, %v7562, 0
        %v7621 = vsel %vm425, %v7563, 0
        %v7624 = vsel %vm425, %v7564, 0
        %v7627 = vsel %vm425, %v7565, 0
        %v7630 = vsel %vm425, %v7566, 0
        %v7633 = vsel %vm425, %v7567, 0
        %v7636 = vsel %vm425, %v7568, 0
        %v7639 = vsel %vm425, %v7569, 0
        %v7642 = vsel %vm425, %v7570, 0
        %v7645 = vsel %vm425, %v7571, 0
        %v7648 = vsel %vm425, %v7572, 0
        %v7651 = vsel %vm425, %v7573, 0
        %v7654 = vsel %vm425, %v7574, 0
        %7656 = vmatprep.subr.bf16.mxu0 0
        %7657 = vmatpush1.bf16.msra.mxu0 0
        %7658 = vmatprep.subr.bf16.mxu0 0
        %7659 = vmatpush1.bf16.msra.mxu0 0
        %7660 = vmatprep.subr.bf16.mxu0 0
        %7661 = vmatpush1.bf16.msra.mxu0 0
        %7662 = vmatprep.subr.bf16.mxu0 0
        %7663 = vmatpush1.bf16.msra.mxu0 0
        %7664 = vmatprep.subr.bf16.mxu0 0
        %7665 = vmatpush1.bf16.msra.mxu0 %v7603
        %7666 = vmatprep.subr.bf16.mxu0 0
        %7667 = vmatpush1.bf16.msra.mxu0 %v7602
        %7668 = vmatprep.subr.bf16.mxu0 0
        %7669 = vmatpush1.bf16.msra.mxu0 %v7601
        %7670 = vmatprep.subr.bf16.mxu0 0
        %7671 = vmatpush1.bf16.msra.mxu0 %v7600
        %7672 = vmatprep.subr.bf16.mxu0 0
        %7673 = vmatpush2.bf16.msra.mxu0 0
        %7674 = vmatprep.subr.bf16.mxu0 0
        %7675 = vmatpush2.bf16.msra.mxu0 0
        %7676 = vmatprep.subr.bf16.mxu0 0
        %7677 = vmatpush2.bf16.msra.mxu0 0
        %7678 = vmatprep.subr.bf16.mxu0 0
        %7679 = vmatpush2.bf16.msra.mxu0 0
        %7680 = vmatprep.subr.bf16.mxu0 0
        %7681 = vmatpush2.bf16.msra.mxu0 0
        %7682 = vmatprep.subr.bf16.mxu0 0
        %7683 = vmatpush2.bf16.msra.mxu0 0
        %7684 = vmatprep.subr.bf16.mxu0 0
        %7685 = vmatpush2.bf16.msra.mxu0 0
        %7686 = vmatprep.subr.bf16.mxu0 0
        %7687 = vmatpush2.bf16.msra.mxu0 0
        %7688 = vmatprep.mubr.bf16.mxu0 0
        %7689 = vmatmul.mubr.bf16.gmra.mxu0 %v7609
        %v7690 = vpop.f32.mrf.mxu0
        %v7691 = vadd.f32 0.0, %v7690
        %v7692 = vpop.f32.mrf.mxu0
        %v7693 = vpop.f32.mrf.mxu0
        %v7694 = vadd.f32 0.0, %v7693
        %v7695 = vpop.f32.mrf.mxu0
        %7696 = vmatprep.mubr.bf16.mxu0 0
        %7697 = vmatmul.mubr.bf16.gmra.mxu0 %v7612
        %v7698 = vpop.f32.mrf.mxu0
        %v7699 = vadd.f32 0.0, %v7698
        %v7700 = vpop.f32.mrf.mxu0
        %v7701 = vpop.f32.mrf.mxu0
        %v7702 = vadd.f32 0.0, %v7701
        %v7703 = vpop.f32.mrf.mxu0
        %7704 = vmatprep.mubr.bf16.mxu0 0
        %7705 = vmatmul.mubr.bf16.gmra.mxu0 %v7615
        %v7706 = vpop.f32.mrf.mxu0
        %v7707 = vadd.f32 0.0, %v7706
        %v7708 = vpop.f32.mrf.mxu0
        %v7709 = vpop.f32.mrf.mxu0
        %v7710 = vadd.f32 0.0, %v7709
        %v7711 = vpop.f32.mrf.mxu0
        %7712 = vmatprep.mubr.bf16.mxu0 0
        %7713 = vmatmul.mubr.bf16.gmra.mxu0 %v7618
        %v7714 = vpop.f32.mrf.mxu0
        %v7715 = vadd.f32 0.0, %v7714
        %v7716 = vpop.f32.mrf.mxu0
        %v7717 = vpop.f32.mrf.mxu0
        %v7718 = vadd.f32 0.0, %v7717
        %v7719 = vpop.f32.mrf.mxu0
        %7720 = vmatprep.mubr.bf16.mxu0 0
        %7721 = vmatmul.mubr.bf16.gmra.mxu0 %v7621
        %v7722 = vpop.f32.mrf.mxu0
        %v7723 = vadd.f32 0.0, %v7722
        %v7724 = vpop.f32.mrf.mxu0
        %v7725 = vpop.f32.mrf.mxu0
        %v7726 = vadd.f32 0.0, %v7725
        %v7727 = vpop.f32.mrf.mxu0
        %7728 = vmatprep.mubr.bf16.mxu0 0
        %7729 = vmatmul.mubr.bf16.gmra.mxu0 %v7624
        %v7730 = vpop.f32.mrf.mxu0
        %v7731 = vadd.f32 0.0, %v7730
        %v7732 = vpop.f32.mrf.mxu0
        %v7733 = vpop.f32.mrf.mxu0
        %v7734 = vadd.f32 0.0, %v7733
        %v7735 = vpop.f32.mrf.mxu0
        %7736 = vmatprep.mubr.bf16.mxu0 0
        %7737 = vmatmul.mubr.bf16.gmra.mxu0 %v7627
        %v7738 = vpop.f32.mrf.mxu0
        %v7739 = vadd.f32 0.0, %v7738
        %v7740 = vpop.f32.mrf.mxu0
        %v7741 = vpop.f32.mrf.mxu0
        %v7742 = vadd.f32 0.0, %v7741
        %v7743 = vpop.f32.mrf.mxu0
        %7744 = vmatprep.mubr.bf16.mxu0 0
        %7745 = vmatmul.mubr.bf16.gmra.mxu0 %v7630
        %v7746 = vpop.f32.mrf.mxu0
        %v7747 = vadd.f32 0.0, %v7746
        %v7748 = vpop.f32.mrf.mxu0
        %v7749 = vpop.f32.mrf.mxu0
        %v7750 = vadd.f32 0.0, %v7749
        %v7751 = vpop.f32.mrf.mxu0
        %7752 = vmatprep.mubr.bf16.mxu0 0
        %7753 = vmatmul.mubr.bf16.gmra.mxu0 %v7633
        %v7754 = vpop.f32.mrf.mxu0
        %v7755 = vadd.f32 0.0, %v7754
        %v7756 = vpop.f32.mrf.mxu0
        %v7757 = vpop.f32.mrf.mxu0
        %v7758 = vadd.f32 0.0, %v7757
        %v7759 = vpop.f32.mrf.mxu0
        %7760 = vmatprep.mubr.bf16.mxu0 0
        %7761 = vmatmul.mubr.bf16.gmra.mxu0 %v7636
        %v7762 = vpop.f32.mrf.mxu0
        %v7763 = vadd.f32 0.0, %v7762
        %v7764 = vpop.f32.mrf.mxu0
        %v7765 = vpop.f32.mrf.mxu0
        %v7766 = vadd.f32 0.0, %v7765
        %v7767 = vpop.f32.mrf.mxu0
        %7768 = vmatprep.mubr.bf16.mxu0 0
        %7769 = vmatmul.mubr.bf16.gmra.mxu0 %v7639
        %v7770 = vpop.f32.mrf.mxu0
        %v7771 = vadd.f32 0.0, %v7770
        %v7772 = vpop.f32.mrf.mxu0
        %v7773 = vpop.f32.mrf.mxu0
        %v7774 = vadd.f32 0.0, %v7773
        %v7775 = vpop.f32.mrf.mxu0
        %7776 = vmatprep.mubr.bf16.mxu0 0
        %7777 = vmatmul.mubr.bf16.gmra.mxu0 %v7642
        %v7778 = vpop.f32.mrf.mxu0
        %v7779 = vadd.f32 0.0, %v7778
        %v7780 = vpop.f32.mrf.mxu0
        %v7781 = vpop.f32.mrf.mxu0
        %v7782 = vadd.f32 0.0, %v7781
        %v7783 = vpop.f32.mrf.mxu0
        %7784 = vmatprep.mubr.bf16.mxu0 0
        %7785 = vmatmul.mubr.bf16.gmra.mxu0 %v7645
        %v7786 = vpop.f32.mrf.mxu0
        %v7787 = vadd.f32 0.0, %v7786
        %v7788 = vpop.f32.mrf.mxu0
        %v7789 = vpop.f32.mrf.mxu0
        %v7790 = vadd.f32 0.0, %v7789
        %v7791 = vpop.f32.mrf.mxu0
        %7792 = vmatprep.mubr.bf16.mxu0 0
        %7793 = vmatmul.mubr.bf16.gmra.mxu0 %v7648
        %v7794 = vpop.f32.mrf.mxu0
        %v7795 = vadd.f32 0.0, %v7794
        %v7796 = vpop.f32.mrf.mxu0
        %v7797 = vpop.f32.mrf.mxu0
        %v7798 = vadd.f32 0.0, %v7797
        %v7799 = vpop.f32.mrf.mxu0
        %7800 = vmatprep.mubr.bf16.mxu0 0
        %7801 = vmatmul.mubr.bf16.gmra.mxu0 %v7651
        %v7802 = vpop.f32.mrf.mxu0
        %v7803 = vadd.f32 0.0, %v7802
        %v7804 = vpop.f32.mrf.mxu0
        %v7805 = vpop.f32.mrf.mxu0
        %v7806 = vadd.f32 0.0, %v7805
        %v7807 = vpop.f32.mrf.mxu0
        %7808 = vmatprep.mubr.bf16.mxu0 0
        %7809 = vmatmul.mubr.bf16.gmra.mxu0 %v7654
        %v7810 = vpop.f32.mrf.mxu0
        %v7811 = vadd.f32 0.0, %v7810
        %v7812 = vpop.f32.mrf.mxu0
        %v7813 = vpop.f32.mrf.mxu0
        %v7814 = vadd.f32 0.0, %v7813
        %v7815 = vpop.f32.mrf.mxu0
        %7816 = vdwg.mxu0
        %v7817 = vadd.f32 %v7401, %v7691
        %v7818 = vadd.f32 %v7404, %v7694
        %v7819 = vadd.f32 %v7409, %v7699
        %v7820 = vadd.f32 %v7412, %v7702
        %v7821 = vadd.f32 %v7417, %v7707
        %v7822 = vadd.f32 %v7420, %v7710
        %v7823 = vadd.f32 %v7425, %v7715
        %v7824 = vadd.f32 %v7428, %v7718
        %v7825 = vadd.f32 %v7433, %v7723
        %v7826 = vadd.f32 %v7436, %v7726
        %v7827 = vadd.f32 %v7441, %v7731
        %v7828 = vadd.f32 %v7444, %v7734
        %v7829 = vadd.f32 %v7449, %v7739
        %v7830 = vadd.f32 %v7452, %v7742
        %v7831 = vadd.f32 %v7457, %v7747
        %v7832 = vadd.f32 %v7460, %v7750
        %v7833 = vadd.f32 %v7465, %v7755
        %v7834 = vadd.f32 %v7468, %v7758
        %v7835 = vadd.f32 %v7473, %v7763
        %v7836 = vadd.f32 %v7476, %v7766
        %v7837 = vadd.f32 %v7481, %v7771
        %v7838 = vadd.f32 %v7484, %v7774
        %v7839 = vadd.f32 %v7489, %v7779
        %v7840 = vadd.f32 %v7492, %v7782
        %v7841 = vadd.f32 %v7497, %v7787
        %v7842 = vadd.f32 %v7500, %v7790
        %v7843 = vadd.f32 %v7505, %v7795
        %v7844 = vadd.f32 %v7508, %v7798
        %v7845 = vadd.f32 %v7513, %v7803
        %v7846 = vadd.f32 %v7516, %v7806
        %v7847 = vadd.f32 %v7521, %v7811
        %v7848 = vadd.f32 %v7524, %v7814
        %v7849 = vld [vmem:[%s6915] sm:$0xff]
        %v7850 = vld [vmem:[%s6915 + $0x8] sm:$0xff]
        %v7851 = vld [vmem:[%s6915 + $0x18] sm:$0xff]
        %v7852 = vld [vmem:[%s6915 + $0x20] sm:$0xff]
        %v7853 = vld [vmem:[%s6915 + $0x30] sm:$0xff]
        %v7854 = vld [vmem:[%s6915 + $0x38] sm:$0xff]
        %v7855 = vld [vmem:[%s6915 + $0x48] sm:$0xff]
        %v7856 = vld [vmem:[%s6915 + $0x50] sm:$0xff]
        %v7857 = vld [vmem:[%s6915 + $0x60] sm:$0xff]
        %v7858 = vld [vmem:[%s6915 + $0x68] sm:$0xff]
        %v7859 = vld [vmem:[%s6915 + $0x78] sm:$0xff]
        %v7860 = vld [vmem:[%s6915 + $0x80] sm:$0xff]
        %v7861 = vld [vmem:[%s6915 + $0x90] sm:$0xff]
        %v7862 = vld [vmem:[%s6915 + $0x98] sm:$0xff]
        %v7863 = vld [vmem:[%s6915 + $0xa8] sm:$0xff]
        %v7864 = vld [vmem:[%s6915 + $0xb0] sm:$0xff]
        %v7865 = vld [vmem:[%s6915 + $0xc0] sm:$0xff]
        %v7866 = vld [vmem:[%s6915 + $0xc8] sm:$0xff]
        %v7867 = vld [vmem:[%s6915 + $0xd8] sm:$0xff]
        %v7868 = vld [vmem:[%s6915 + $0xe0] sm:$0xff]
        %v7869 = vld [vmem:[%s6915 + $0xf0] sm:$0xff]
        %v7870 = vld [vmem:[%s6915 + $0xf8] sm:$0xff]
        %v7871 = vld [vmem:[%s6915 + $0x108] sm:$0xff]
        %v7872 = vld [vmem:[%s6915 + $0x110] sm:$0xff]
        %v7873 = vld [vmem:[%s6915 + $0x120] sm:$0xff]
        %v7874 = vld [vmem:[%s6915 + $0x128] sm:$0xff]
        %v7875 = vld [vmem:[%s6915 + $0x138] sm:$0xff]
        %v7876 = vld [vmem:[%s6915 + $0x140] sm:$0xff]
        %v7877 = vld [vmem:[%s6915 + $0x150] sm:$0xff]
        %v7878 = vld [vmem:[%s6915 + $0x158] sm:$0xff]
        %v7879 = vld [vmem:[%s6915 + $0x168] sm:$0xff]
        %v7880 = vld [vmem:[%s6915 + $0x170] sm:$0xff]
        %v7881 = vpack.c.bf16 %v7850, %v7849
        %v7882 = vpack.c.bf16 %v7852, %v7851
        %v7883 = vpack.c.bf16 %v7854, %v7853
        %v7884 = vpack.c.bf16 %v7856, %v7855
        %v7885 = vpack.c.bf16 %v7858, %v7857
        %v7886 = vpack.c.bf16 %v7860, %v7859
        %v7887 = vpack.c.bf16 %v7862, %v7861
        %v7888 = vpack.c.bf16 %v7864, %v7863
        %v7889 = vpack.c.bf16 %v7866, %v7865
        %v7890 = vpack.c.bf16 %v7868, %v7867
        %v7891 = vpack.c.bf16 %v7870, %v7869
        %v7892 = vpack.c.bf16 %v7872, %v7871
        %v7893 = vpack.c.bf16 %v7874, %v7873
        %v7894 = vpack.c.bf16 %v7876, %v7875
        %v7895 = vpack.c.bf16 %v7878, %v7877
        %v7896 = vpack.c.bf16 %v7880, %v7879
        %s7897 = scalar_lea.vmem %s8, 96
        %v7898 = vld [vmem:[%s7897] sm:$0xf]
        %v7899 = vld [vmem:[%s7897 + $0x4] sm:$0xf]
        %v7900 = vld [vmem:[%s7897 + $0x8] sm:$0xf]
        %v7901 = vld [vmem:[%s7897 + $0xc] sm:$0xf]
        %v7902 = vld [vmem:[%s7897 + $0x10] sm:$0xf]
        %v7903 = vld [vmem:[%s7897 + $0x14] sm:$0xf]
        %v7904 = vld [vmem:[%s7897 + $0x18] sm:$0xf]
        %v7905 = vld [vmem:[%s7897 + $0x1c] sm:$0xf]
        %v7914 = vunpack.c.l.b16 %v7898
        %v7915 = vunpack.c.l.b16 %v7899
        %v7916 = vunpack.c.l.b16 %v7900
        %v7917 = vunpack.c.l.b16 %v7901
        %v7918 = vunpack.c.l.b16 %v7902
        %v7919 = vunpack.c.l.b16 %v7903
        %v7920 = vunpack.c.l.b16 %v7904
        %v7921 = vunpack.c.l.b16 %v7905
        %v7922 = vpack.c.b16 %v7915, %v7914
        %v7923 = vpack.c.b16 %v7917, %v7916
        %v7924 = vpack.c.b16 %v7919, %v7918
        %v7925 = vpack.c.b16 %v7921, %v7920
        %v7931 = vsel %vm425, %v7881, 0
        %v7934 = vsel %vm425, %v7882, 0
        %v7937 = vsel %vm425, %v7883, 0
        %v7940 = vsel %vm425, %v7884, 0
        %v7943 = vsel %vm425, %v7885, 0
        %v7946 = vsel %vm425, %v7886, 0
        %v7949 = vsel %vm425, %v7887, 0
        %v7952 = vsel %vm425, %v7888, 0
        %v7955 = vsel %vm425, %v7889, 0
        %v7958 = vsel %vm425, %v7890, 0
        %v7961 = vsel %vm425, %v7891, 0
        %v7964 = vsel %vm425, %v7892, 0
        %v7967 = vsel %vm425, %v7893, 0
        %v7970 = vsel %vm425, %v7894, 0
        %v7973 = vsel %vm425, %v7895, 0
        %v7976 = vsel %vm425, %v7896, 0
        %7978 = vmatprep.subr.bf16.mxu0 0
        %7979 = vmatpush1.bf16.msra.mxu0 0
        %7980 = vmatprep.subr.bf16.mxu0 0
        %7981 = vmatpush1.bf16.msra.mxu0 0
        %7982 = vmatprep.subr.bf16.mxu0 0
        %7983 = vmatpush1.bf16.msra.mxu0 0
        %7984 = vmatprep.subr.bf16.mxu0 0
        %7985 = vmatpush1.bf16.msra.mxu0 0
        %7986 = vmatprep.subr.bf16.mxu0 0
        %7987 = vmatpush1.bf16.msra.mxu0 %v7925
        %7988 = vmatprep.subr.bf16.mxu0 0
        %7989 = vmatpush1.bf16.msra.mxu0 %v7924
        %7990 = vmatprep.subr.bf16.mxu0 0
        %7991 = vmatpush1.bf16.msra.mxu0 %v7923
        %7992 = vmatprep.subr.bf16.mxu0 0
        %7993 = vmatpush1.bf16.msra.mxu0 %v7922
        %7994 = vmatprep.subr.bf16.mxu0 0
        %7995 = vmatpush2.bf16.msra.mxu0 0
        %7996 = vmatprep.subr.bf16.mxu0 0
        %7997 = vmatpush2.bf16.msra.mxu0 0
        %7998 = vmatprep.subr.bf16.mxu0 0
        %7999 = vmatpush2.bf16.msra.mxu0 0
        %8000 = vmatprep.subr.bf16.mxu0 0
        %8001 = vmatpush2.bf16.msra.mxu0 0
        %8002 = vmatprep.subr.bf16.mxu0 0
        %8003 = vmatpush2.bf16.msra.mxu0 0
        %8004 = vmatprep.subr.bf16.mxu0 0
        %8005 = vmatpush2.bf16.msra.mxu0 0
        %8006 = vmatprep.subr.bf16.mxu0 0
        %8007 = vmatpush2.bf16.msra.mxu0 0
        %8008 = vmatprep.subr.bf16.mxu0 0
        %8009 = vmatpush2.bf16.msra.mxu0 0
        %8010 = vmatprep.mubr.bf16.mxu0 0
        %8011 = vmatmul.mubr.bf16.gmra.mxu0 %v7931
        %v8012 = vpop.f32.mrf.mxu0
        %v8013 = vadd.f32 0.0, %v8012
        %v8014 = vpop.f32.mrf.mxu0
        %v8015 = vpop.f32.mrf.mxu0
        %v8016 = vadd.f32 0.0, %v8015
        %v8017 = vpop.f32.mrf.mxu0
        %8018 = vmatprep.mubr.bf16.mxu0 0
        %8019 = vmatmul.mubr.bf16.gmra.mxu0 %v7934
        %v8020 = vpop.f32.mrf.mxu0
        %v8021 = vadd.f32 0.0, %v8020
        %v8022 = vpop.f32.mrf.mxu0
        %v8023 = vpop.f32.mrf.mxu0
        %v8024 = vadd.f32 0.0, %v8023
        %v8025 = vpop.f32.mrf.mxu0
        %8026 = vmatprep.mubr.bf16.mxu0 0
        %8027 = vmatmul.mubr.bf16.gmra.mxu0 %v7937
        %v8028 = vpop.f32.mrf.mxu0
        %v8029 = vadd.f32 0.0, %v8028
        %v8030 = vpop.f32.mrf.mxu0
        %v8031 = vpop.f32.mrf.mxu0
        %v8032 = vadd.f32 0.0, %v8031
        %v8033 = vpop.f32.mrf.mxu0
        %8034 = vmatprep.mubr.bf16.mxu0 0
        %8035 = vmatmul.mubr.bf16.gmra.mxu0 %v7940
        %v8036 = vpop.f32.mrf.mxu0
        %v8037 = vadd.f32 0.0, %v8036
        %v8038 = vpop.f32.mrf.mxu0
        %v8039 = vpop.f32.mrf.mxu0
        %v8040 = vadd.f32 0.0, %v8039
        %v8041 = vpop.f32.mrf.mxu0
        %8042 = vmatprep.mubr.bf16.mxu0 0
        %8043 = vmatmul.mubr.bf16.gmra.mxu0 %v7943
        %v8044 = vpop.f32.mrf.mxu0
        %v8045 = vadd.f32 0.0, %v8044
        %v8046 = vpop.f32.mrf.mxu0
        %v8047 = vpop.f32.mrf.mxu0
        %v8048 = vadd.f32 0.0, %v8047
        %v8049 = vpop.f32.mrf.mxu0
        %8050 = vmatprep.mubr.bf16.mxu0 0
        %8051 = vmatmul.mubr.bf16.gmra.mxu0 %v7946
        %v8052 = vpop.f32.mrf.mxu0
        %v8053 = vadd.f32 0.0, %v8052
        %v8054 = vpop.f32.mrf.mxu0
        %v8055 = vpop.f32.mrf.mxu0
        %v8056 = vadd.f32 0.0, %v8055
        %v8057 = vpop.f32.mrf.mxu0
        %8058 = vmatprep.mubr.bf16.mxu0 0
        %8059 = vmatmul.mubr.bf16.gmra.mxu0 %v7949
        %v8060 = vpop.f32.mrf.mxu0
        %v8061 = vadd.f32 0.0, %v8060
        %v8062 = vpop.f32.mrf.mxu0
        %v8063 = vpop.f32.mrf.mxu0
        %v8064 = vadd.f32 0.0, %v8063
        %v8065 = vpop.f32.mrf.mxu0
        %8066 = vmatprep.mubr.bf16.mxu0 0
        %8067 = vmatmul.mubr.bf16.gmra.mxu0 %v7952
        %v8068 = vpop.f32.mrf.mxu0
        %v8069 = vadd.f32 0.0, %v8068
        %v8070 = vpop.f32.mrf.mxu0
        %v8071 = vpop.f32.mrf.mxu0
        %v8072 = vadd.f32 0.0, %v8071
        %v8073 = vpop.f32.mrf.mxu0
        %8074 = vmatprep.mubr.bf16.mxu0 0
        %8075 = vmatmul.mubr.bf16.gmra.mxu0 %v7955
        %v8076 = vpop.f32.mrf.mxu0
        %v8077 = vadd.f32 0.0, %v8076
        %v8078 = vpop.f32.mrf.mxu0
        %v8079 = vpop.f32.mrf.mxu0
        %v8080 = vadd.f32 0.0, %v8079
        %v8081 = vpop.f32.mrf.mxu0
        %8082 = vmatprep.mubr.bf16.mxu0 0
        %8083 = vmatmul.mubr.bf16.gmra.mxu0 %v7958
        %v8084 = vpop.f32.mrf.mxu0
        %v8085 = vadd.f32 0.0, %v8084
        %v8086 = vpop.f32.mrf.mxu0
        %v8087 = vpop.f32.mrf.mxu0
        %v8088 = vadd.f32 0.0, %v8087
        %v8089 = vpop.f32.mrf.mxu0
        %8090 = vmatprep.mubr.bf16.mxu0 0
        %8091 = vmatmul.mubr.bf16.gmra.mxu0 %v7961
        %v8092 = vpop.f32.mrf.mxu0
        %v8093 = vadd.f32 0.0, %v8092
        %v8094 = vpop.f32.mrf.mxu0
        %v8095 = vpop.f32.mrf.mxu0
        %v8096 = vadd.f32 0.0, %v8095
        %v8097 = vpop.f32.mrf.mxu0
        %8098 = vmatprep.mubr.bf16.mxu0 0
        %8099 = vmatmul.mubr.bf16.gmra.mxu0 %v7964
        %v8100 = vpop.f32.mrf.mxu0
        %v8101 = vadd.f32 0.0, %v8100
        %v8102 = vpop.f32.mrf.mxu0
        %v8103 = vpop.f32.mrf.mxu0
        %v8104 = vadd.f32 0.0, %v8103
        %v8105 = vpop.f32.mrf.mxu0
        %8106 = vmatprep.mubr.bf16.mxu0 0
        %8107 = vmatmul.mubr.bf16.gmra.mxu0 %v7967
        %v8108 = vpop.f32.mrf.mxu0
        %v8109 = vadd.f32 0.0, %v8108
        %v8110 = vpop.f32.mrf.mxu0
        %v8111 = vpop.f32.mrf.mxu0
        %v8112 = vadd.f32 0.0, %v8111
        %v8113 = vpop.f32.mrf.mxu0
        %8114 = vmatprep.mubr.bf16.mxu0 0
        %8115 = vmatmul.mubr.bf16.gmra.mxu0 %v7970
        %v8116 = vpop.f32.mrf.mxu0
        %v8117 = vadd.f32 0.0, %v8116
        %v8118 = vpop.f32.mrf.mxu0
        %v8119 = vpop.f32.mrf.mxu0
        %v8120 = vadd.f32 0.0, %v8119
        %v8121 = vpop.f32.mrf.mxu0
        %8122 = vmatprep.mubr.bf16.mxu0 0
        %8123 = vmatmul.mubr.bf16.gmra.mxu0 %v7973
        %v8124 = vpop.f32.mrf.mxu0
        %v8125 = vadd.f32 0.0, %v8124
        %v8126 = vpop.f32.mrf.mxu0
        %v8127 = vpop.f32.mrf.mxu0
        %v8128 = vadd.f32 0.0, %v8127
        %v8129 = vpop.f32.mrf.mxu0
        %8130 = vmatprep.mubr.bf16.mxu0 0
        %8131 = vmatmul.mubr.bf16.gmra.mxu0 %v7976
        %v8132 = vpop.f32.mrf.mxu0
        %v8133 = vadd.f32 0.0, %v8132
        %v8134 = vpop.f32.mrf.mxu0
        %v8135 = vpop.f32.mrf.mxu0
        %v8136 = vadd.f32 0.0, %v8135
        %v8137 = vpop.f32.mrf.mxu0
        %8138 = vdwg.mxu0
        %v8139 = vadd.f32 %v7817, %v8013
        %v8140 = vadd.f32 %v7818, %v8016
        %v8141 = vadd.f32 %v7819, %v8021
        %v8142 = vadd.f32 %v7820, %v8024
        %v8143 = vadd.f32 %v7821, %v8029
        %v8144 = vadd.f32 %v7822, %v8032
        %v8145 = vadd.f32 %v7823, %v8037
        %v8146 = vadd.f32 %v7824, %v8040
        %v8147 = vadd.f32 %v7825, %v8045
        %v8148 = vadd.f32 %v7826, %v8048
        %v8149 = vadd.f32 %v7827, %v8053
        %v8150 = vadd.f32 %v7828, %v8056
        %v8151 = vadd.f32 %v7829, %v8061
        %v8152 = vadd.f32 %v7830, %v8064
        %v8153 = vadd.f32 %v7831, %v8069
        %v8154 = vadd.f32 %v7832, %v8072
        %v8155 = vadd.f32 %v7833, %v8077
        %v8156 = vadd.f32 %v7834, %v8080
        %v8157 = vadd.f32 %v7835, %v8085
        %v8158 = vadd.f32 %v7836, %v8088
        %v8159 = vadd.f32 %v7837, %v8093
        %v8160 = vadd.f32 %v7838, %v8096
        %v8161 = vadd.f32 %v7839, %v8101
        %v8162 = vadd.f32 %v7840, %v8104
        %v8163 = vadd.f32 %v7841, %v8109
        %v8164 = vadd.f32 %v7842, %v8112
        %v8165 = vadd.f32 %v7843, %v8117
        %v8166 = vadd.f32 %v7844, %v8120
        %v8167 = vadd.f32 %v7845, %v8125
        %v8168 = vadd.f32 %v7846, %v8128
        %v8169 = vadd.f32 %v7847, %v8133
        %v8170 = vadd.f32 %v7848, %v8136
        %v8171 = vld [vmem:[%s6915 + $0x1] sm:$0xff]
        %v8172 = vld [vmem:[%s6915 + $0x9] sm:$0xff]
        %v8173 = vld [vmem:[%s6915 + $0x19] sm:$0xff]
        %v8174 = vld [vmem:[%s6915 + $0x21] sm:$0xff]
        %v8175 = vld [vmem:[%s6915 + $0x31] sm:$0xff]
        %v8176 = vld [vmem:[%s6915 + $0x39] sm:$0xff]
        %v8177 = vld [vmem:[%s6915 + $0x49] sm:$0xff]
        %v8178 = vld [vmem:[%s6915 + $0x51] sm:$0xff]
        %v8179 = vld [vmem:[%s6915 + $0x61] sm:$0xff]
        %v8180 = vld [vmem:[%s6915 + $0x69] sm:$0xff]
        %v8181 = vld [vmem:[%s6915 + $0x79] sm:$0xff]
        %v8182 = vld [vmem:[%s6915 + $0x81] sm:$0xff]
        %v8183 = vld [vmem:[%s6915 + $0x91] sm:$0xff]
        %v8184 = vld [vmem:[%s6915 + $0x99] sm:$0xff]
        %v8185 = vld [vmem:[%s6915 + $0xa9] sm:$0xff]
        %v8186 = vld [vmem:[%s6915 + $0xb1] sm:$0xff]
        %v8187 = vld [vmem:[%s6915 + $0xc1] sm:$0xff]
        %v8188 = vld [vmem:[%s6915 + $0xc9] sm:$0xff]
        %v8189 = vld [vmem:[%s6915 + $0xd9] sm:$0xff]
        %v8190 = vld [vmem:[%s6915 + $0xe1] sm:$0xff]
        %v8191 = vld [vmem:[%s6915 + $0xf1] sm:$0xff]
        %v8192 = vld [vmem:[%s6915 + $0xf9] sm:$0xff]
        %v8193 = vld [vmem:[%s6915 + $0x109] sm:$0xff]
        %v8194 = vld [vmem:[%s6915 + $0x111] sm:$0xff]
        %v8195 = vld [vmem:[%s6915 + $0x121] sm:$0xff]
        %v8196 = vld [vmem:[%s6915 + $0x129] sm:$0xff]
        %v8197 = vld [vmem:[%s6915 + $0x139] sm:$0xff]
        %v8198 = vld [vmem:[%s6915 + $0x141] sm:$0xff]
        %v8199 = vld [vmem:[%s6915 + $0x151] sm:$0xff]
        %v8200 = vld [vmem:[%s6915 + $0x159] sm:$0xff]
        %v8201 = vld [vmem:[%s6915 + $0x169] sm:$0xff]
        %v8202 = vld [vmem:[%s6915 + $0x171] sm:$0xff]
        %v8203 = vpack.c.bf16 %v8172, %v8171
        %v8204 = vpack.c.bf16 %v8174, %v8173
        %v8205 = vpack.c.bf16 %v8176, %v8175
        %v8206 = vpack.c.bf16 %v8178, %v8177
        %v8207 = vpack.c.bf16 %v8180, %v8179
        %v8208 = vpack.c.bf16 %v8182, %v8181
        %v8209 = vpack.c.bf16 %v8184, %v8183
        %v8210 = vpack.c.bf16 %v8186, %v8185
        %v8211 = vpack.c.bf16 %v8188, %v8187
        %v8212 = vpack.c.bf16 %v8190, %v8189
        %v8213 = vpack.c.bf16 %v8192, %v8191
        %v8214 = vpack.c.bf16 %v8194, %v8193
        %v8215 = vpack.c.bf16 %v8196, %v8195
        %v8216 = vpack.c.bf16 %v8198, %v8197
        %v8217 = vpack.c.bf16 %v8200, %v8199
        %v8218 = vpack.c.bf16 %v8202, %v8201
        %s8219 = scalar_lea.vmem %s8, 128
        %v8220 = vld [vmem:[%s8219] sm:$0xf]
        %v8221 = vld [vmem:[%s8219 + $0x4] sm:$0xf]
        %v8222 = vld [vmem:[%s8219 + $0x8] sm:$0xf]
        %v8223 = vld [vmem:[%s8219 + $0xc] sm:$0xf]
        %v8224 = vld [vmem:[%s8219 + $0x10] sm:$0xf]
        %v8225 = vld [vmem:[%s8219 + $0x14] sm:$0xf]
        %v8226 = vld [vmem:[%s8219 + $0x18] sm:$0xf]
        %v8227 = vld [vmem:[%s8219 + $0x1c] sm:$0xf]
        %v8236 = vunpack.c.l.b16 %v8220
        %v8237 = vunpack.c.l.b16 %v8221
        %v8238 = vunpack.c.l.b16 %v8222
        %v8239 = vunpack.c.l.b16 %v8223
        %v8240 = vunpack.c.l.b16 %v8224
        %v8241 = vunpack.c.l.b16 %v8225
        %v8242 = vunpack.c.l.b16 %v8226
        %v8243 = vunpack.c.l.b16 %v8227
        %v8244 = vpack.c.b16 %v8237, %v8236
        %v8245 = vpack.c.b16 %v8239, %v8238
        %v8246 = vpack.c.b16 %v8241, %v8240
        %v8247 = vpack.c.b16 %v8243, %v8242
        %v8253 = vsel %vm425, %v8203, 0
        %v8256 = vsel %vm425, %v8204, 0
        %v8259 = vsel %vm425, %v8205, 0
        %v8262 = vsel %vm425, %v8206, 0
        %v8265 = vsel %vm425, %v8207, 0
        %v8268 = vsel %vm425, %v8208, 0
        %v8271 = vsel %vm425, %v8209, 0
        %v8274 = vsel %vm425, %v8210, 0
        %v8277 = vsel %vm425, %v8211, 0
        %v8280 = vsel %vm425, %v8212, 0
        %v8283 = vsel %vm425, %v8213, 0
        %v8286 = vsel %vm425, %v8214, 0
        %v8289 = vsel %vm425, %v8215, 0
        %v8292 = vsel %vm425, %v8216, 0
        %v8295 = vsel %vm425, %v8217, 0
        %v8298 = vsel %vm425, %v8218, 0
        %8300 = vmatprep.subr.bf16.mxu0 0
        %8301 = vmatpush1.bf16.msra.mxu0 0
        %8302 = vmatprep.subr.bf16.mxu0 0
        %8303 = vmatpush1.bf16.msra.mxu0 0
        %8304 = vmatprep.subr.bf16.mxu0 0
        %8305 = vmatpush1.bf16.msra.mxu0 0
        %8306 = vmatprep.subr.bf16.mxu0 0
        %8307 = vmatpush1.bf16.msra.mxu0 0
        %8308 = vmatprep.subr.bf16.mxu0 0
        %8309 = vmatpush1.bf16.msra.mxu0 %v8247
        %8310 = vmatprep.subr.bf16.mxu0 0
        %8311 = vmatpush1.bf16.msra.mxu0 %v8246
        %8312 = vmatprep.subr.bf16.mxu0 0
        %8313 = vmatpush1.bf16.msra.mxu0 %v8245
        %8314 = vmatprep.subr.bf16.mxu0 0
        %8315 = vmatpush1.bf16.msra.mxu0 %v8244
        %8316 = vmatprep.subr.bf16.mxu0 0
        %8317 = vmatpush2.bf16.msra.mxu0 0
        %8318 = vmatprep.subr.bf16.mxu0 0
        %8319 = vmatpush2.bf16.msra.mxu0 0
        %8320 = vmatprep.subr.bf16.mxu0 0
        %8321 = vmatpush2.bf16.msra.mxu0 0
        %8322 = vmatprep.subr.bf16.mxu0 0
        %8323 = vmatpush2.bf16.msra.mxu0 0
        %8324 = vmatprep.subr.bf16.mxu0 0
        %8325 = vmatpush2.bf16.msra.mxu0 0
        %8326 = vmatprep.subr.bf16.mxu0 0
        %8327 = vmatpush2.bf16.msra.mxu0 0
        %8328 = vmatprep.subr.bf16.mxu0 0
        %8329 = vmatpush2.bf16.msra.mxu0 0
        %8330 = vmatprep.subr.bf16.mxu0 0
        %8331 = vmatpush2.bf16.msra.mxu0 0
        %8332 = vmatprep.mubr.bf16.mxu0 0
        %8333 = vmatmul.mubr.bf16.gmra.mxu0 %v8253
        %v8334 = vpop.f32.mrf.mxu0
        %v8335 = vadd.f32 0.0, %v8334
        %v8336 = vpop.f32.mrf.mxu0
        %v8337 = vpop.f32.mrf.mxu0
        %v8338 = vadd.f32 0.0, %v8337
        %v8339 = vpop.f32.mrf.mxu0
        %8340 = vmatprep.mubr.bf16.mxu0 0
        %8341 = vmatmul.mubr.bf16.gmra.mxu0 %v8256
        %v8342 = vpop.f32.mrf.mxu0
        %v8343 = vadd.f32 0.0, %v8342
        %v8344 = vpop.f32.mrf.mxu0
        %v8345 = vpop.f32.mrf.mxu0
        %v8346 = vadd.f32 0.0, %v8345
        %v8347 = vpop.f32.mrf.mxu0
        %8348 = vmatprep.mubr.bf16.mxu0 0
        %8349 = vmatmul.mubr.bf16.gmra.mxu0 %v8259
        %v8350 = vpop.f32.mrf.mxu0
        %v8351 = vadd.f32 0.0, %v8350
        %v8352 = vpop.f32.mrf.mxu0
        %v8353 = vpop.f32.mrf.mxu0
        %v8354 = vadd.f32 0.0, %v8353
        %v8355 = vpop.f32.mrf.mxu0
        %8356 = vmatprep.mubr.bf16.mxu0 0
        %8357 = vmatmul.mubr.bf16.gmra.mxu0 %v8262
        %v8358 = vpop.f32.mrf.mxu0
        %v8359 = vadd.f32 0.0, %v8358
        %v8360 = vpop.f32.mrf.mxu0
        %v8361 = vpop.f32.mrf.mxu0
        %v8362 = vadd.f32 0.0, %v8361
        %v8363 = vpop.f32.mrf.mxu0
        %8364 = vmatprep.mubr.bf16.mxu0 0
        %8365 = vmatmul.mubr.bf16.gmra.mxu0 %v8265
        %v8366 = vpop.f32.mrf.mxu0
        %v8367 = vadd.f32 0.0, %v8366
        %v8368 = vpop.f32.mrf.mxu0
        %v8369 = vpop.f32.mrf.mxu0
        %v8370 = vadd.f32 0.0, %v8369
        %v8371 = vpop.f32.mrf.mxu0
        %8372 = vmatprep.mubr.bf16.mxu0 0
        %8373 = vmatmul.mubr.bf16.gmra.mxu0 %v8268
        %v8374 = vpop.f32.mrf.mxu0
        %v8375 = vadd.f32 0.0, %v8374
        %v8376 = vpop.f32.mrf.mxu0
        %v8377 = vpop.f32.mrf.mxu0
        %v8378 = vadd.f32 0.0, %v8377
        %v8379 = vpop.f32.mrf.mxu0
        %8380 = vmatprep.mubr.bf16.mxu0 0
        %8381 = vmatmul.mubr.bf16.gmra.mxu0 %v8271
        %v8382 = vpop.f32.mrf.mxu0
        %v8383 = vadd.f32 0.0, %v8382
        %v8384 = vpop.f32.mrf.mxu0
        %v8385 = vpop.f32.mrf.mxu0
        %v8386 = vadd.f32 0.0, %v8385
        %v8387 = vpop.f32.mrf.mxu0
        %8388 = vmatprep.mubr.bf16.mxu0 0
        %8389 = vmatmul.mubr.bf16.gmra.mxu0 %v8274
        %v8390 = vpop.f32.mrf.mxu0
        %v8391 = vadd.f32 0.0, %v8390
        %v8392 = vpop.f32.mrf.mxu0
        %v8393 = vpop.f32.mrf.mxu0
        %v8394 = vadd.f32 0.0, %v8393
        %v8395 = vpop.f32.mrf.mxu0
        %8396 = vmatprep.mubr.bf16.mxu0 0
        %8397 = vmatmul.mubr.bf16.gmra.mxu0 %v8277
        %v8398 = vpop.f32.mrf.mxu0
        %v8399 = vadd.f32 0.0, %v8398
        %v8400 = vpop.f32.mrf.mxu0
        %v8401 = vpop.f32.mrf.mxu0
        %v8402 = vadd.f32 0.0, %v8401
        %v8403 = vpop.f32.mrf.mxu0
        %8404 = vmatprep.mubr.bf16.mxu0 0
        %8405 = vmatmul.mubr.bf16.gmra.mxu0 %v8280
        %v8406 = vpop.f32.mrf.mxu0
        %v8407 = vadd.f32 0.0, %v8406
        %v8408 = vpop.f32.mrf.mxu0
        %v8409 = vpop.f32.mrf.mxu0
        %v8410 = vadd.f32 0.0, %v8409
        %v8411 = vpop.f32.mrf.mxu0
        %8412 = vmatprep.mubr.bf16.mxu0 0
        %8413 = vmatmul.mubr.bf16.gmra.mxu0 %v8283
        %v8414 = vpop.f32.mrf.mxu0
        %v8415 = vadd.f32 0.0, %v8414
        %v8416 = vpop.f32.mrf.mxu0
        %v8417 = vpop.f32.mrf.mxu0
        %v8418 = vadd.f32 0.0, %v8417
        %v8419 = vpop.f32.mrf.mxu0
        %8420 = vmatprep.mubr.bf16.mxu0 0
        %8421 = vmatmul.mubr.bf16.gmra.mxu0 %v8286
        %v8422 = vpop.f32.mrf.mxu0
        %v8423 = vadd.f32 0.0, %v8422
        %v8424 = vpop.f32.mrf.mxu0
        %v8425 = vpop.f32.mrf.mxu0
        %v8426 = vadd.f32 0.0, %v8425
        %v8427 = vpop.f32.mrf.mxu0
        %8428 = vmatprep.mubr.bf16.mxu0 0
        %8429 = vmatmul.mubr.bf16.gmra.mxu0 %v8289
        %v8430 = vpop.f32.mrf.mxu0
        %v8431 = vadd.f32 0.0, %v8430
        %v8432 = vpop.f32.mrf.mxu0
        %v8433 = vpop.f32.mrf.mxu0
        %v8434 = vadd.f32 0.0, %v8433
        %v8435 = vpop.f32.mrf.mxu0
        %8436 = vmatprep.mubr.bf16.mxu0 0
        %8437 = vmatmul.mubr.bf16.gmra.mxu0 %v8292
        %v8438 = vpop.f32.mrf.mxu0
        %v8439 = vadd.f32 0.0, %v8438
        %v8440 = vpop.f32.mrf.mxu0
        %v8441 = vpop.f32.mrf.mxu0
        %v8442 = vadd.f32 0.0, %v8441
        %v8443 = vpop.f32.mrf.mxu0
        %8444 = vmatprep.mubr.bf16.mxu0 0
        %8445 = vmatmul.mubr.bf16.gmra.mxu0 %v8295
        %v8446 = vpop.f32.mrf.mxu0
        %v8447 = vadd.f32 0.0, %v8446
        %v8448 = vpop.f32.mrf.mxu0
        %v8449 = vpop.f32.mrf.mxu0
        %v8450 = vadd.f32 0.0, %v8449
        %v8451 = vpop.f32.mrf.mxu0
        %8452 = vmatprep.mubr.bf16.mxu0 0
        %8453 = vmatmul.mubr.bf16.gmra.mxu0 %v8298
        %v8454 = vpop.f32.mrf.mxu0
        %v8455 = vadd.f32 0.0, %v8454
        %v8456 = vpop.f32.mrf.mxu0
        %v8457 = vpop.f32.mrf.mxu0
        %v8458 = vadd.f32 0.0, %v8457
        %v8459 = vpop.f32.mrf.mxu0
        %8460 = vdwg.mxu0
        %v8461 = vadd.f32 %v8139, %v8335
        %v8462 = vadd.f32 %v8140, %v8338
        %v8463 = vadd.f32 %v8141, %v8343
        %v8464 = vadd.f32 %v8142, %v8346
        %v8465 = vadd.f32 %v8143, %v8351
        %v8466 = vadd.f32 %v8144, %v8354
        %v8467 = vadd.f32 %v8145, %v8359
        %v8468 = vadd.f32 %v8146, %v8362
        %v8469 = vadd.f32 %v8147, %v8367
        %v8470 = vadd.f32 %v8148, %v8370
        %v8471 = vadd.f32 %v8149, %v8375
        %v8472 = vadd.f32 %v8150, %v8378
        %v8473 = vadd.f32 %v8151, %v8383
        %v8474 = vadd.f32 %v8152, %v8386
        %v8475 = vadd.f32 %v8153, %v8391
        %v8476 = vadd.f32 %v8154, %v8394
        %v8477 = vadd.f32 %v8155, %v8399
        %v8478 = vadd.f32 %v8156, %v8402
        %v8479 = vadd.f32 %v8157, %v8407
        %v8480 = vadd.f32 %v8158, %v8410
        %v8481 = vadd.f32 %v8159, %v8415
        %v8482 = vadd.f32 %v8160, %v8418
        %v8483 = vadd.f32 %v8161, %v8423
        %v8484 = vadd.f32 %v8162, %v8426
        %v8485 = vadd.f32 %v8163, %v8431
        %v8486 = vadd.f32 %v8164, %v8434
        %v8487 = vadd.f32 %v8165, %v8439
        %v8488 = vadd.f32 %v8166, %v8442
        %v8489 = vadd.f32 %v8167, %v8447
        %v8490 = vadd.f32 %v8168, %v8450
        %v8491 = vadd.f32 %v8169, %v8455
        %v8492 = vadd.f32 %v8170, %v8458
        %v8493 = vld [vmem:[%s6915 + $0x2] sm:$0xff]
        %v8494 = vld [vmem:[%s6915 + $0xa] sm:$0xff]
        %v8495 = vld [vmem:[%s6915 + $0x1a] sm:$0xff]
        %v8496 = vld [vmem:[%s6915 + $0x22] sm:$0xff]
        %v8497 = vld [vmem:[%s6915 + $0x32] sm:$0xff]
        %v8498 = vld [vmem:[%s6915 + $0x3a] sm:$0xff]
        %v8499 = vld [vmem:[%s6915 + $0x4a] sm:$0xff]
        %v8500 = vld [vmem:[%s6915 + $0x52] sm:$0xff]
        %v8501 = vld [vmem:[%s6915 + $0x62] sm:$0xff]
        %v8502 = vld [vmem:[%s6915 + $0x6a] sm:$0xff]
        %v8503 = vld [vmem:[%s6915 + $0x7a] sm:$0xff]
        %v8504 = vld [vmem:[%s6915 + $0x82] sm:$0xff]
        %v8505 = vld [vmem:[%s6915 + $0x92] sm:$0xff]
        %v8506 = vld [vmem:[%s6915 + $0x9a] sm:$0xff]
        %v8507 = vld [vmem:[%s6915 + $0xaa] sm:$0xff]
        %v8508 = vld [vmem:[%s6915 + $0xb2] sm:$0xff]
        %v8509 = vld [vmem:[%s6915 + $0xc2] sm:$0xff]
        %v8510 = vld [vmem:[%s6915 + $0xca] sm:$0xff]
        %v8511 = vld [vmem:[%s6915 + $0xda] sm:$0xff]
        %v8512 = vld [vmem:[%s6915 + $0xe2] sm:$0xff]
        %v8513 = vld [vmem:[%s6915 + $0xf2] sm:$0xff]
        %v8514 = vld [vmem:[%s6915 + $0xfa] sm:$0xff]
        %v8515 = vld [vmem:[%s6915 + $0x10a] sm:$0xff]
        %v8516 = vld [vmem:[%s6915 + $0x112] sm:$0xff]
        %v8517 = vld [vmem:[%s6915 + $0x122] sm:$0xff]
        %v8518 = vld [vmem:[%s6915 + $0x12a] sm:$0xff]
        %v8519 = vld [vmem:[%s6915 + $0x13a] sm:$0xff]
        %v8520 = vld [vmem:[%s6915 + $0x142] sm:$0xff]
        %v8521 = vld [vmem:[%s6915 + $0x152] sm:$0xff]
        %v8522 = vld [vmem:[%s6915 + $0x15a] sm:$0xff]
        %v8523 = vld [vmem:[%s6915 + $0x16a] sm:$0xff]
        %v8524 = vld [vmem:[%s6915 + $0x172] sm:$0xff]
        %v8525 = vpack.c.bf16 %v8494, %v8493
        %v8526 = vpack.c.bf16 %v8496, %v8495
        %v8527 = vpack.c.bf16 %v8498, %v8497
        %v8528 = vpack.c.bf16 %v8500, %v8499
        %v8529 = vpack.c.bf16 %v8502, %v8501
        %v8530 = vpack.c.bf16 %v8504, %v8503
        %v8531 = vpack.c.bf16 %v8506, %v8505
        %v8532 = vpack.c.bf16 %v8508, %v8507
        %v8533 = vpack.c.bf16 %v8510, %v8509
        %v8534 = vpack.c.bf16 %v8512, %v8511
        %v8535 = vpack.c.bf16 %v8514, %v8513
        %v8536 = vpack.c.bf16 %v8516, %v8515
        %v8537 = vpack.c.bf16 %v8518, %v8517
        %v8538 = vpack.c.bf16 %v8520, %v8519
        %v8539 = vpack.c.bf16 %v8522, %v8521
        %v8540 = vpack.c.bf16 %v8524, %v8523
        %s8541 = scalar_lea.vmem %s8, 160
        %v8542 = vld [vmem:[%s8541] sm:$0xf]
        %v8543 = vld [vmem:[%s8541 + $0x4] sm:$0xf]
        %v8544 = vld [vmem:[%s8541 + $0x8] sm:$0xf]
        %v8545 = vld [vmem:[%s8541 + $0xc] sm:$0xf]
        %v8546 = vld [vmem:[%s8541 + $0x10] sm:$0xf]
        %v8547 = vld [vmem:[%s8541 + $0x14] sm:$0xf]
        %v8548 = vld [vmem:[%s8541 + $0x18] sm:$0xf]
        %v8549 = vld [vmem:[%s8541 + $0x1c] sm:$0xf]
        %v8558 = vunpack.c.l.b16 %v8542
        %v8559 = vunpack.c.l.b16 %v8543
        %v8560 = vunpack.c.l.b16 %v8544
        %v8561 = vunpack.c.l.b16 %v8545
        %v8562 = vunpack.c.l.b16 %v8546
        %v8563 = vunpack.c.l.b16 %v8547
        %v8564 = vunpack.c.l.b16 %v8548
        %v8565 = vunpack.c.l.b16 %v8549
        %v8566 = vpack.c.b16 %v8559, %v8558
        %v8567 = vpack.c.b16 %v8561, %v8560
        %v8568 = vpack.c.b16 %v8563, %v8562
        %v8569 = vpack.c.b16 %v8565, %v8564
        %v8575 = vsel %vm425, %v8525, 0
        %v8578 = vsel %vm425, %v8526, 0
        %v8581 = vsel %vm425, %v8527, 0
        %v8584 = vsel %vm425, %v8528, 0
        %v8587 = vsel %vm425, %v8529, 0
        %v8590 = vsel %vm425, %v8530, 0
        %v8593 = vsel %vm425, %v8531, 0
        %v8596 = vsel %vm425, %v8532, 0
        %v8599 = vsel %vm425, %v8533, 0
        %v8602 = vsel %vm425, %v8534, 0
        %v8605 = vsel %vm425, %v8535, 0
        %v8608 = vsel %vm425, %v8536, 0
        %v8611 = vsel %vm425, %v8537, 0
        %v8614 = vsel %vm425, %v8538, 0
        %v8617 = vsel %vm425, %v8539, 0
        %v8620 = vsel %vm425, %v8540, 0
        %8622 = vmatprep.subr.bf16.mxu0 0
        %8623 = vmatpush1.bf16.msra.mxu0 0
        %8624 = vmatprep.subr.bf16.mxu0 0
        %8625 = vmatpush1.bf16.msra.mxu0 0
        %8626 = vmatprep.subr.bf16.mxu0 0
        %8627 = vmatpush1.bf16.msra.mxu0 0
        %8628 = vmatprep.subr.bf16.mxu0 0
        %8629 = vmatpush1.bf16.msra.mxu0 0
        %8630 = vmatprep.subr.bf16.mxu0 0
        %8631 = vmatpush1.bf16.msra.mxu0 %v8569
        %8632 = vmatprep.subr.bf16.mxu0 0
        %8633 = vmatpush1.bf16.msra.mxu0 %v8568
        %8634 = vmatprep.subr.bf16.mxu0 0
        %8635 = vmatpush1.bf16.msra.mxu0 %v8567
        %8636 = vmatprep.subr.bf16.mxu0 0
        %8637 = vmatpush1.bf16.msra.mxu0 %v8566
        %8638 = vmatprep.subr.bf16.mxu0 0
        %8639 = vmatpush2.bf16.msra.mxu0 0
        %8640 = vmatprep.subr.bf16.mxu0 0
        %8641 = vmatpush2.bf16.msra.mxu0 0
        %8642 = vmatprep.subr.bf16.mxu0 0
        %8643 = vmatpush2.bf16.msra.mxu0 0
        %8644 = vmatprep.subr.bf16.mxu0 0
        %8645 = vmatpush2.bf16.msra.mxu0 0
        %8646 = vmatprep.subr.bf16.mxu0 0
        %8647 = vmatpush2.bf16.msra.mxu0 0
        %8648 = vmatprep.subr.bf16.mxu0 0
        %8649 = vmatpush2.bf16.msra.mxu0 0
        %8650 = vmatprep.subr.bf16.mxu0 0
        %8651 = vmatpush2.bf16.msra.mxu0 0
        %8652 = vmatprep.subr.bf16.mxu0 0
        %8653 = vmatpush2.bf16.msra.mxu0 0
        %8654 = vmatprep.mubr.bf16.mxu0 0
        %8655 = vmatmul.mubr.bf16.gmra.mxu0 %v8575
        %v8656 = vpop.f32.mrf.mxu0
        %v8657 = vadd.f32 0.0, %v8656
        %v8658 = vpop.f32.mrf.mxu0
        %v8659 = vpop.f32.mrf.mxu0
        %v8660 = vadd.f32 0.0, %v8659
        %v8661 = vpop.f32.mrf.mxu0
        %8662 = vmatprep.mubr.bf16.mxu0 0
        %8663 = vmatmul.mubr.bf16.gmra.mxu0 %v8578
        %v8664 = vpop.f32.mrf.mxu0
        %v8665 = vadd.f32 0.0, %v8664
        %v8666 = vpop.f32.mrf.mxu0
        %v8667 = vpop.f32.mrf.mxu0
        %v8668 = vadd.f32 0.0, %v8667
        %v8669 = vpop.f32.mrf.mxu0
        %8670 = vmatprep.mubr.bf16.mxu0 0
        %8671 = vmatmul.mubr.bf16.gmra.mxu0 %v8581
        %v8672 = vpop.f32.mrf.mxu0
        %v8673 = vadd.f32 0.0, %v8672
        %v8674 = vpop.f32.mrf.mxu0
        %v8675 = vpop.f32.mrf.mxu0
        %v8676 = vadd.f32 0.0, %v8675
        %v8677 = vpop.f32.mrf.mxu0
        %8678 = vmatprep.mubr.bf16.mxu0 0
        %8679 = vmatmul.mubr.bf16.gmra.mxu0 %v8584
        %v8680 = vpop.f32.mrf.mxu0
        %v8681 = vadd.f32 0.0, %v8680
        %v8682 = vpop.f32.mrf.mxu0
        %v8683 = vpop.f32.mrf.mxu0
        %v8684 = vadd.f32 0.0, %v8683
        %v8685 = vpop.f32.mrf.mxu0
        %8686 = vmatprep.mubr.bf16.mxu0 0
        %8687 = vmatmul.mubr.bf16.gmra.mxu0 %v8587
        %v8688 = vpop.f32.mrf.mxu0
        %v8689 = vadd.f32 0.0, %v8688
        %v8690 = vpop.f32.mrf.mxu0
        %v8691 = vpop.f32.mrf.mxu0
        %v8692 = vadd.f32 0.0, %v8691
        %v8693 = vpop.f32.mrf.mxu0
        %8694 = vmatprep.mubr.bf16.mxu0 0
        %8695 = vmatmul.mubr.bf16.gmra.mxu0 %v8590
        %v8696 = vpop.f32.mrf.mxu0
        %v8697 = vadd.f32 0.0, %v8696
        %v8698 = vpop.f32.mrf.mxu0
        %v8699 = vpop.f32.mrf.mxu0
        %v8700 = vadd.f32 0.0, %v8699
        %v8701 = vpop.f32.mrf.mxu0
        %8702 = vmatprep.mubr.bf16.mxu0 0
        %8703 = vmatmul.mubr.bf16.gmra.mxu0 %v8593
        %v8704 = vpop.f32.mrf.mxu0
        %v8705 = vadd.f32 0.0, %v8704
        %v8706 = vpop.f32.mrf.mxu0
        %v8707 = vpop.f32.mrf.mxu0
        %v8708 = vadd.f32 0.0, %v8707
        %v8709 = vpop.f32.mrf.mxu0
        %8710 = vmatprep.mubr.bf16.mxu0 0
        %8711 = vmatmul.mubr.bf16.gmra.mxu0 %v8596
        %v8712 = vpop.f32.mrf.mxu0
        %v8713 = vadd.f32 0.0, %v8712
        %v8714 = vpop.f32.mrf.mxu0
        %v8715 = vpop.f32.mrf.mxu0
        %v8716 = vadd.f32 0.0, %v8715
        %v8717 = vpop.f32.mrf.mxu0
        %8718 = vmatprep.mubr.bf16.mxu0 0
        %8719 = vmatmul.mubr.bf16.gmra.mxu0 %v8599
        %v8720 = vpop.f32.mrf.mxu0
        %v8721 = vadd.f32 0.0, %v8720
        %v8722 = vpop.f32.mrf.mxu0
        %v8723 = vpop.f32.mrf.mxu0
        %v8724 = vadd.f32 0.0, %v8723
        %v8725 = vpop.f32.mrf.mxu0
        %8726 = vmatprep.mubr.bf16.mxu0 0
        %8727 = vmatmul.mubr.bf16.gmra.mxu0 %v8602
        %v8728 = vpop.f32.mrf.mxu0
        %v8729 = vadd.f32 0.0, %v8728
        %v8730 = vpop.f32.mrf.mxu0
        %v8731 = vpop.f32.mrf.mxu0
        %v8732 = vadd.f32 0.0, %v8731
        %v8733 = vpop.f32.mrf.mxu0
        %8734 = vmatprep.mubr.bf16.mxu0 0
        %8735 = vmatmul.mubr.bf16.gmra.mxu0 %v8605
        %v8736 = vpop.f32.mrf.mxu0
        %v8737 = vadd.f32 0.0, %v8736
        %v8738 = vpop.f32.mrf.mxu0
        %v8739 = vpop.f32.mrf.mxu0
        %v8740 = vadd.f32 0.0, %v8739
        %v8741 = vpop.f32.mrf.mxu0
        %8742 = vmatprep.mubr.bf16.mxu0 0
        %8743 = vmatmul.mubr.bf16.gmra.mxu0 %v8608
        %v8744 = vpop.f32.mrf.mxu0
        %v8745 = vadd.f32 0.0, %v8744
        %v8746 = vpop.f32.mrf.mxu0
        %v8747 = vpop.f32.mrf.mxu0
        %v8748 = vadd.f32 0.0, %v8747
        %v8749 = vpop.f32.mrf.mxu0
        %8750 = vmatprep.mubr.bf16.mxu0 0
        %8751 = vmatmul.mubr.bf16.gmra.mxu0 %v8611
        %v8752 = vpop.f32.mrf.mxu0
        %v8753 = vadd.f32 0.0, %v8752
        %v8754 = vpop.f32.mrf.mxu0
        %v8755 = vpop.f32.mrf.mxu0
        %v8756 = vadd.f32 0.0, %v8755
        %v8757 = vpop.f32.mrf.mxu0
        %8758 = vmatprep.mubr.bf16.mxu0 0
        %8759 = vmatmul.mubr.bf16.gmra.mxu0 %v8614
        %v8760 = vpop.f32.mrf.mxu0
        %v8761 = vadd.f32 0.0, %v8760
        %v8762 = vpop.f32.mrf.mxu0
        %v8763 = vpop.f32.mrf.mxu0
        %v8764 = vadd.f32 0.0, %v8763
        %v8765 = vpop.f32.mrf.mxu0
        %8766 = vmatprep.mubr.bf16.mxu0 0
        %8767 = vmatmul.mubr.bf16.gmra.mxu0 %v8617
        %v8768 = vpop.f32.mrf.mxu0
        %v8769 = vadd.f32 0.0, %v8768
        %v8770 = vpop.f32.mrf.mxu0
        %v8771 = vpop.f32.mrf.mxu0
        %v8772 = vadd.f32 0.0, %v8771
        %v8773 = vpop.f32.mrf.mxu0
        %8774 = vmatprep.mubr.bf16.mxu0 0
        %8775 = vmatmul.mubr.bf16.gmra.mxu0 %v8620
        %v8776 = vpop.f32.mrf.mxu0
        %v8777 = vadd.f32 0.0, %v8776
        %v8778 = vpop.f32.mrf.mxu0
        %v8779 = vpop.f32.mrf.mxu0
        %v8780 = vadd.f32 0.0, %v8779
        %v8781 = vpop.f32.mrf.mxu0
        %8782 = vdwg.mxu0
        %v8783 = vadd.f32 %v8461, %v8657
        %v8784 = vadd.f32 %v8462, %v8660
        %v8785 = vadd.f32 %v8463, %v8665
        %v8786 = vadd.f32 %v8464, %v8668
        %v8787 = vadd.f32 %v8465, %v8673
        %v8788 = vadd.f32 %v8466, %v8676
        %v8789 = vadd.f32 %v8467, %v8681
        %v8790 = vadd.f32 %v8468, %v8684
        %v8791 = vadd.f32 %v8469, %v8689
        %v8792 = vadd.f32 %v8470, %v8692
        %v8793 = vadd.f32 %v8471, %v8697
        %v8794 = vadd.f32 %v8472, %v8700
        %v8795 = vadd.f32 %v8473, %v8705
        %v8796 = vadd.f32 %v8474, %v8708
        %v8797 = vadd.f32 %v8475, %v8713
        %v8798 = vadd.f32 %v8476, %v8716
        %v8799 = vadd.f32 %v8477, %v8721
        %v8800 = vadd.f32 %v8478, %v8724
        %v8801 = vadd.f32 %v8479, %v8729
        %v8802 = vadd.f32 %v8480, %v8732
        %v8803 = vadd.f32 %v8481, %v8737
        %v8804 = vadd.f32 %v8482, %v8740
        %v8805 = vadd.f32 %v8483, %v8745
        %v8806 = vadd.f32 %v8484, %v8748
        %v8807 = vadd.f32 %v8485, %v8753
        %v8808 = vadd.f32 %v8486, %v8756
        %v8809 = vadd.f32 %v8487, %v8761
        %v8810 = vadd.f32 %v8488, %v8764
        %v8811 = vadd.f32 %v8489, %v8769
        %v8812 = vadd.f32 %v8490, %v8772
        %v8813 = vadd.f32 %v8491, %v8777
        %v8814 = vadd.f32 %v8492, %v8780
        %s8815 = scalar_lea.vmem [#allocation4], 48
        %v8816 = vld [vmem:[%s8815] sm:$0xff]
        %v8817 = vld [vmem:[%s8815 + $0x8] sm:$0xff]
        %v8818 = vld [vmem:[%s8815 + $0x18] sm:$0xff]
        %v8819 = vld [vmem:[%s8815 + $0x20] sm:$0xff]
        %v8820 = vld [vmem:[%s8815 + $0x30] sm:$0xff]
        %v8821 = vld [vmem:[%s8815 + $0x38] sm:$0xff]
        %v8822 = vld [vmem:[%s8815 + $0x48] sm:$0xff]
        %v8823 = vld [vmem:[%s8815 + $0x50] sm:$0xff]
        %v8824 = vld [vmem:[%s8815 + $0x60] sm:$0xff]
        %v8825 = vld [vmem:[%s8815 + $0x68] sm:$0xff]
        %v8826 = vld [vmem:[%s8815 + $0x78] sm:$0xff]
        %v8827 = vld [vmem:[%s8815 + $0x80] sm:$0xff]
        %v8828 = vld [vmem:[%s8815 + $0x90] sm:$0xff]
        %v8829 = vld [vmem:[%s8815 + $0x98] sm:$0xff]
        %v8830 = vld [vmem:[%s8815 + $0xa8] sm:$0xff]
        %v8831 = vld [vmem:[%s8815 + $0xb0] sm:$0xff]
        %v8832 = vld [vmem:[%s8815 + $0xc0] sm:$0xff]
        %v8833 = vld [vmem:[%s8815 + $0xc8] sm:$0xff]
        %v8834 = vld [vmem:[%s8815 + $0xd8] sm:$0xff]
        %v8835 = vld [vmem:[%s8815 + $0xe0] sm:$0xff]
        %v8836 = vld [vmem:[%s8815 + $0xf0] sm:$0xff]
        %v8837 = vld [vmem:[%s8815 + $0xf8] sm:$0xff]
        %v8838 = vld [vmem:[%s8815 + $0x108] sm:$0xff]
        %v8839 = vld [vmem:[%s8815 + $0x110] sm:$0xff]
        %v8840 = vld [vmem:[%s8815 + $0x120] sm:$0xff]
        %v8841 = vld [vmem:[%s8815 + $0x128] sm:$0xff]
        %v8842 = vld [vmem:[%s8815 + $0x138] sm:$0xff]
        %v8843 = vld [vmem:[%s8815 + $0x140] sm:$0xff]
        %v8844 = vld [vmem:[%s8815 + $0x150] sm:$0xff]
        %v8845 = vld [vmem:[%s8815 + $0x158] sm:$0xff]
        %v8846 = vld [vmem:[%s8815 + $0x168] sm:$0xff]
        %v8847 = vld [vmem:[%s8815 + $0x170] sm:$0xff]
        %v8848 = vpack.c.bf16 %v8817, %v8816
        %v8849 = vpack.c.bf16 %v8819, %v8818
        %v8850 = vpack.c.bf16 %v8821, %v8820
        %v8851 = vpack.c.bf16 %v8823, %v8822
        %v8852 = vpack.c.bf16 %v8825, %v8824
        %v8853 = vpack.c.bf16 %v8827, %v8826
        %v8854 = vpack.c.bf16 %v8829, %v8828
        %v8855 = vpack.c.bf16 %v8831, %v8830
        %v8856 = vpack.c.bf16 %v8833, %v8832
        %v8857 = vpack.c.bf16 %v8835, %v8834
        %v8858 = vpack.c.bf16 %v8837, %v8836
        %v8859 = vpack.c.bf16 %v8839, %v8838
        %v8860 = vpack.c.bf16 %v8841, %v8840
        %v8861 = vpack.c.bf16 %v8843, %v8842
        %v8862 = vpack.c.bf16 %v8845, %v8844
        %v8863 = vpack.c.bf16 %v8847, %v8846
        %s8864 = scalar_lea.vmem %s8, 192
        %v8865 = vld [vmem:[%s8864] sm:$0xf]
        %v8866 = vld [vmem:[%s8864 + $0x4] sm:$0xf]
        %v8867 = vld [vmem:[%s8864 + $0x8] sm:$0xf]
        %v8868 = vld [vmem:[%s8864 + $0xc] sm:$0xf]
        %v8869 = vld [vmem:[%s8864 + $0x10] sm:$0xf]
        %v8870 = vld [vmem:[%s8864 + $0x14] sm:$0xf]
        %v8871 = vld [vmem:[%s8864 + $0x18] sm:$0xf]
        %v8872 = vld [vmem:[%s8864 + $0x1c] sm:$0xf]
        %v8881 = vunpack.c.l.b16 %v8865
        %v8882 = vunpack.c.l.b16 %v8866
        %v8883 = vunpack.c.l.b16 %v8867
        %v8884 = vunpack.c.l.b16 %v8868
        %v8885 = vunpack.c.l.b16 %v8869
        %v8886 = vunpack.c.l.b16 %v8870
        %v8887 = vunpack.c.l.b16 %v8871
        %v8888 = vunpack.c.l.b16 %v8872
        %v8889 = vpack.c.b16 %v8882, %v8881
        %v8890 = vpack.c.b16 %v8884, %v8883
        %v8891 = vpack.c.b16 %v8886, %v8885
        %v8892 = vpack.c.b16 %v8888, %v8887
        %v8898 = vsel %vm425, %v8848, 0
        %v8901 = vsel %vm425, %v8849, 0
        %v8904 = vsel %vm425, %v8850, 0
        %v8907 = vsel %vm425, %v8851, 0
        %v8910 = vsel %vm425, %v8852, 0
        %v8913 = vsel %vm425, %v8853, 0
        %v8916 = vsel %vm425, %v8854, 0
        %v8919 = vsel %vm425, %v8855, 0
        %v8922 = vsel %vm425, %v8856, 0
        %v8925 = vsel %vm425, %v8857, 0
        %v8928 = vsel %vm425, %v8858, 0
        %v8931 = vsel %vm425, %v8859, 0
        %v8934 = vsel %vm425, %v8860, 0
        %v8937 = vsel %vm425, %v8861, 0
        %v8940 = vsel %vm425, %v8862, 0
        %v8943 = vsel %vm425, %v8863, 0
        %8945 = vmatprep.subr.bf16.mxu0 0
        %8946 = vmatpush1.bf16.msra.mxu0 0
        %8947 = vmatprep.subr.bf16.mxu0 0
        %8948 = vmatpush1.bf16.msra.mxu0 0
        %8949 = vmatprep.subr.bf16.mxu0 0
        %8950 = vmatpush1.bf16.msra.mxu0 0
        %8951 = vmatprep.subr.bf16.mxu0 0
        %8952 = vmatpush1.bf16.msra.mxu0 0
        %8953 = vmatprep.subr.bf16.mxu0 0
        %8954 = vmatpush1.bf16.msra.mxu0 %v8892
        %8955 = vmatprep.subr.bf16.mxu0 0
        %8956 = vmatpush1.bf16.msra.mxu0 %v8891
        %8957 = vmatprep.subr.bf16.mxu0 0
        %8958 = vmatpush1.bf16.msra.mxu0 %v8890
        %8959 = vmatprep.subr.bf16.mxu0 0
        %8960 = vmatpush1.bf16.msra.mxu0 %v8889
        %8961 = vmatprep.subr.bf16.mxu0 0
        %8962 = vmatpush2.bf16.msra.mxu0 0
        %8963 = vmatprep.subr.bf16.mxu0 0
        %8964 = vmatpush2.bf16.msra.mxu0 0
        %8965 = vmatprep.subr.bf16.mxu0 0
        %8966 = vmatpush2.bf16.msra.mxu0 0
        %8967 = vmatprep.subr.bf16.mxu0 0
        %8968 = vmatpush2.bf16.msra.mxu0 0
        %8969 = vmatprep.subr.bf16.mxu0 0
        %8970 = vmatpush2.bf16.msra.mxu0 0
        %8971 = vmatprep.subr.bf16.mxu0 0
        %8972 = vmatpush2.bf16.msra.mxu0 0
        %8973 = vmatprep.subr.bf16.mxu0 0
        %8974 = vmatpush2.bf16.msra.mxu0 0
        %8975 = vmatprep.subr.bf16.mxu0 0
        %8976 = vmatpush2.bf16.msra.mxu0 0
        %8977 = vmatprep.mubr.bf16.mxu0 0
        %8978 = vmatmul.mubr.bf16.gmra.mxu0 %v8898
        %v8979 = vpop.f32.mrf.mxu0
        %v8980 = vadd.f32 0.0, %v8979
        %v8981 = vpop.f32.mrf.mxu0
        %v8982 = vpop.f32.mrf.mxu0
        %v8983 = vadd.f32 0.0, %v8982
        %v8984 = vpop.f32.mrf.mxu0
        %8985 = vmatprep.mubr.bf16.mxu0 0
        %8986 = vmatmul.mubr.bf16.gmra.mxu0 %v8901
        %v8987 = vpop.f32.mrf.mxu0
        %v8988 = vadd.f32 0.0, %v8987
        %v8989 = vpop.f32.mrf.mxu0
        %v8990 = vpop.f32.mrf.mxu0
        %v8991 = vadd.f32 0.0, %v8990
        %v8992 = vpop.f32.mrf.mxu0
        %8993 = vmatprep.mubr.bf16.mxu0 0
        %8994 = vmatmul.mubr.bf16.gmra.mxu0 %v8904
        %v8995 = vpop.f32.mrf.mxu0
        %v8996 = vadd.f32 0.0, %v8995
        %v8997 = vpop.f32.mrf.mxu0
        %v8998 = vpop.f32.mrf.mxu0
        %v8999 = vadd.f32 0.0, %v8998
        %v9000 = vpop.f32.mrf.mxu0
        %9001 = vmatprep.mubr.bf16.mxu0 0
        %9002 = vmatmul.mubr.bf16.gmra.mxu0 %v8907
        %v9003 = vpop.f32.mrf.mxu0
        %v9004 = vadd.f32 0.0, %v9003
        %v9005 = vpop.f32.mrf.mxu0
        %v9006 = vpop.f32.mrf.mxu0
        %v9007 = vadd.f32 0.0, %v9006
        %v9008 = vpop.f32.mrf.mxu0
        %9009 = vmatprep.mubr.bf16.mxu0 0
        %9010 = vmatmul.mubr.bf16.gmra.mxu0 %v8910
        %v9011 = vpop.f32.mrf.mxu0
        %v9012 = vadd.f32 0.0, %v9011
        %v9013 = vpop.f32.mrf.mxu0
        %v9014 = vpop.f32.mrf.mxu0
        %v9015 = vadd.f32 0.0, %v9014
        %v9016 = vpop.f32.mrf.mxu0
        %9017 = vmatprep.mubr.bf16.mxu0 0
        %9018 = vmatmul.mubr.bf16.gmra.mxu0 %v8913
        %v9019 = vpop.f32.mrf.mxu0
        %v9020 = vadd.f32 0.0, %v9019
        %v9021 = vpop.f32.mrf.mxu0
        %v9022 = vpop.f32.mrf.mxu0
        %v9023 = vadd.f32 0.0, %v9022
        %v9024 = vpop.f32.mrf.mxu0
        %9025 = vmatprep.mubr.bf16.mxu0 0
        %9026 = vmatmul.mubr.bf16.gmra.mxu0 %v8916
        %v9027 = vpop.f32.mrf.mxu0
        %v9028 = vadd.f32 0.0, %v9027
        %v9029 = vpop.f32.mrf.mxu0
        %v9030 = vpop.f32.mrf.mxu0
        %v9031 = vadd.f32 0.0, %v9030
        %v9032 = vpop.f32.mrf.mxu0
        %9033 = vmatprep.mubr.bf16.mxu0 0
        %9034 = vmatmul.mubr.bf16.gmra.mxu0 %v8919
        %v9035 = vpop.f32.mrf.mxu0
        %v9036 = vadd.f32 0.0, %v9035
        %v9037 = vpop.f32.mrf.mxu0
        %v9038 = vpop.f32.mrf.mxu0
        %v9039 = vadd.f32 0.0, %v9038
        %v9040 = vpop.f32.mrf.mxu0
        %9041 = vmatprep.mubr.bf16.mxu0 0
        %9042 = vmatmul.mubr.bf16.gmra.mxu0 %v8922
        %v9043 = vpop.f32.mrf.mxu0
        %v9044 = vadd.f32 0.0, %v9043
        %v9045 = vpop.f32.mrf.mxu0
        %v9046 = vpop.f32.mrf.mxu0
        %v9047 = vadd.f32 0.0, %v9046
        %v9048 = vpop.f32.mrf.mxu0
        %9049 = vmatprep.mubr.bf16.mxu0 0
        %9050 = vmatmul.mubr.bf16.gmra.mxu0 %v8925
        %v9051 = vpop.f32.mrf.mxu0
        %v9052 = vadd.f32 0.0, %v9051
        %v9053 = vpop.f32.mrf.mxu0
        %v9054 = vpop.f32.mrf.mxu0
        %v9055 = vadd.f32 0.0, %v9054
        %v9056 = vpop.f32.mrf.mxu0
        %9057 = vmatprep.mubr.bf16.mxu0 0
        %9058 = vmatmul.mubr.bf16.gmra.mxu0 %v8928
        %v9059 = vpop.f32.mrf.mxu0
        %v9060 = vadd.f32 0.0, %v9059
        %v9061 = vpop.f32.mrf.mxu0
        %v9062 = vpop.f32.mrf.mxu0
        %v9063 = vadd.f32 0.0, %v9062
        %v9064 = vpop.f32.mrf.mxu0
        %9065 = vmatprep.mubr.bf16.mxu0 0
        %9066 = vmatmul.mubr.bf16.gmra.mxu0 %v8931
        %v9067 = vpop.f32.mrf.mxu0
        %v9068 = vadd.f32 0.0, %v9067
        %v9069 = vpop.f32.mrf.mxu0
        %v9070 = vpop.f32.mrf.mxu0
        %v9071 = vadd.f32 0.0, %v9070
        %v9072 = vpop.f32.mrf.mxu0
        %9073 = vmatprep.mubr.bf16.mxu0 0
        %9074 = vmatmul.mubr.bf16.gmra.mxu0 %v8934
        %v9075 = vpop.f32.mrf.mxu0
        %v9076 = vadd.f32 0.0, %v9075
        %v9077 = vpop.f32.mrf.mxu0
        %v9078 = vpop.f32.mrf.mxu0
        %v9079 = vadd.f32 0.0, %v9078
        %v9080 = vpop.f32.mrf.mxu0
        %9081 = vmatprep.mubr.bf16.mxu0 0
        %9082 = vmatmul.mubr.bf16.gmra.mxu0 %v8937
        %v9083 = vpop.f32.mrf.mxu0
        %v9084 = vadd.f32 0.0, %v9083
        %v9085 = vpop.f32.mrf.mxu0
        %v9086 = vpop.f32.mrf.mxu0
        %v9087 = vadd.f32 0.0, %v9086
        %v9088 = vpop.f32.mrf.mxu0
        %9089 = vmatprep.mubr.bf16.mxu0 0
        %9090 = vmatmul.mubr.bf16.gmra.mxu0 %v8940
        %v9091 = vpop.f32.mrf.mxu0
        %v9092 = vadd.f32 0.0, %v9091
        %v9093 = vpop.f32.mrf.mxu0
        %v9094 = vpop.f32.mrf.mxu0
        %v9095 = vadd.f32 0.0, %v9094
        %v9096 = vpop.f32.mrf.mxu0
        %9097 = vmatprep.mubr.bf16.mxu0 0
        %9098 = vmatmul.mubr.bf16.gmra.mxu0 %v8943
        %v9099 = vpop.f32.mrf.mxu0
        %v9100 = vadd.f32 0.0, %v9099
        %v9101 = vpop.f32.mrf.mxu0
        %v9102 = vpop.f32.mrf.mxu0
        %v9103 = vadd.f32 0.0, %v9102
        %v9104 = vpop.f32.mrf.mxu0
        %9105 = vdwg.mxu0
        %v9106 = vadd.f32 %v8783, %v8980
        %v9107 = vadd.f32 %v8784, %v8983
        %v9108 = vadd.f32 %v8785, %v8988
        %v9109 = vadd.f32 %v8786, %v8991
        %v9110 = vadd.f32 %v8787, %v8996
        %v9111 = vadd.f32 %v8788, %v8999
        %v9112 = vadd.f32 %v8789, %v9004
        %v9113 = vadd.f32 %v8790, %v9007
        %v9114 = vadd.f32 %v8791, %v9012
        %v9115 = vadd.f32 %v8792, %v9015
        %v9116 = vadd.f32 %v8793, %v9020
        %v9117 = vadd.f32 %v8794, %v9023
        %v9118 = vadd.f32 %v8795, %v9028
        %v9119 = vadd.f32 %v8796, %v9031
        %v9120 = vadd.f32 %v8797, %v9036
        %v9121 = vadd.f32 %v8798, %v9039
        %v9122 = vadd.f32 %v8799, %v9044
        %v9123 = vadd.f32 %v8800, %v9047
        %v9124 = vadd.f32 %v8801, %v9052
        %v9125 = vadd.f32 %v8802, %v9055
        %v9126 = vadd.f32 %v8803, %v9060
        %v9127 = vadd.f32 %v8804, %v9063
        %v9128 = vadd.f32 %v8805, %v9068
        %v9129 = vadd.f32 %v8806, %v9071
        %v9130 = vadd.f32 %v8807, %v9076
        %v9131 = vadd.f32 %v8808, %v9079
        %v9132 = vadd.f32 %v8809, %v9084
        %v9133 = vadd.f32 %v8810, %v9087
        %v9134 = vadd.f32 %v8811, %v9092
        %v9135 = vadd.f32 %v8812, %v9095
        %v9136 = vadd.f32 %v8813, %v9100
        %v9137 = vadd.f32 %v8814, %v9103
        %v9138 = vld [vmem:[%s8815 + $0x1] sm:$0xff]
        %v9139 = vld [vmem:[%s8815 + $0x9] sm:$0xff]
        %v9140 = vld [vmem:[%s8815 + $0x19] sm:$0xff]
        %v9141 = vld [vmem:[%s8815 + $0x21] sm:$0xff]
        %v9142 = vld [vmem:[%s8815 + $0x31] sm:$0xff]
        %v9143 = vld [vmem:[%s8815 + $0x39] sm:$0xff]
        %v9144 = vld [vmem:[%s8815 + $0x49] sm:$0xff]
        %v9145 = vld [vmem:[%s8815 + $0x51] sm:$0xff]
        %v9146 = vld [vmem:[%s8815 + $0x61] sm:$0xff]
        %v9147 = vld [vmem:[%s8815 + $0x69] sm:$0xff]
        %v9148 = vld [vmem:[%s8815 + $0x79] sm:$0xff]
        %v9149 = vld [vmem:[%s8815 + $0x81] sm:$0xff]
        %v9150 = vld [vmem:[%s8815 + $0x91] sm:$0xff]
        %v9151 = vld [vmem:[%s8815 + $0x99] sm:$0xff]
        %v9152 = vld [vmem:[%s8815 + $0xa9] sm:$0xff]
        %v9153 = vld [vmem:[%s8815 + $0xb1] sm:$0xff]
        %v9154 = vld [vmem:[%s8815 + $0xc1] sm:$0xff]
        %v9155 = vld [vmem:[%s8815 + $0xc9] sm:$0xff]
        %v9156 = vld [vmem:[%s8815 + $0xd9] sm:$0xff]
        %v9157 = vld [vmem:[%s8815 + $0xe1] sm:$0xff]
        %v9158 = vld [vmem:[%s8815 + $0xf1] sm:$0xff]
        %v9159 = vld [vmem:[%s8815 + $0xf9] sm:$0xff]
        %v9160 = vld [vmem:[%s8815 + $0x109] sm:$0xff]
        %v9161 = vld [vmem:[%s8815 + $0x111] sm:$0xff]
        %v9162 = vld [vmem:[%s8815 + $0x121] sm:$0xff]
        %v9163 = vld [vmem:[%s8815 + $0x129] sm:$0xff]
        %v9164 = vld [vmem:[%s8815 + $0x139] sm:$0xff]
        %v9165 = vld [vmem:[%s8815 + $0x141] sm:$0xff]
        %v9166 = vld [vmem:[%s8815 + $0x151] sm:$0xff]
        %v9167 = vld [vmem:[%s8815 + $0x159] sm:$0xff]
        %v9168 = vld [vmem:[%s8815 + $0x169] sm:$0xff]
        %v9169 = vld [vmem:[%s8815 + $0x171] sm:$0xff]
        %v9170 = vpack.c.bf16 %v9139, %v9138
        %v9171 = vpack.c.bf16 %v9141, %v9140
        %v9172 = vpack.c.bf16 %v9143, %v9142
        %v9173 = vpack.c.bf16 %v9145, %v9144
        %v9174 = vpack.c.bf16 %v9147, %v9146
        %v9175 = vpack.c.bf16 %v9149, %v9148
        %v9176 = vpack.c.bf16 %v9151, %v9150
        %v9177 = vpack.c.bf16 %v9153, %v9152
        %v9178 = vpack.c.bf16 %v9155, %v9154
        %v9179 = vpack.c.bf16 %v9157, %v9156
        %v9180 = vpack.c.bf16 %v9159, %v9158
        %v9181 = vpack.c.bf16 %v9161, %v9160
        %v9182 = vpack.c.bf16 %v9163, %v9162
        %v9183 = vpack.c.bf16 %v9165, %v9164
        %v9184 = vpack.c.bf16 %v9167, %v9166
        %v9185 = vpack.c.bf16 %v9169, %v9168
        %s9186 = scalar_lea.vmem %s8, 224
        %v9187 = vld [vmem:[%s9186] sm:$0xf]
        %v9188 = vld [vmem:[%s9186 + $0x4] sm:$0xf]
        %v9189 = vld [vmem:[%s9186 + $0x8] sm:$0xf]
        %v9190 = vld [vmem:[%s9186 + $0xc] sm:$0xf]
        %v9191 = vld [vmem:[%s9186 + $0x10] sm:$0xf]
        %v9192 = vld [vmem:[%s9186 + $0x14] sm:$0xf]
        %v9193 = vld [vmem:[%s9186 + $0x18] sm:$0xf]
        %v9194 = vld [vmem:[%s9186 + $0x1c] sm:$0xf]
        %v9203 = vunpack.c.l.b16 %v9187
        %v9204 = vunpack.c.l.b16 %v9188
        %v9205 = vunpack.c.l.b16 %v9189
        %v9206 = vunpack.c.l.b16 %v9190
        %v9207 = vunpack.c.l.b16 %v9191
        %v9208 = vunpack.c.l.b16 %v9192
        %v9209 = vunpack.c.l.b16 %v9193
        %v9210 = vunpack.c.l.b16 %v9194
        %v9211 = vpack.c.b16 %v9204, %v9203
        %v9212 = vpack.c.b16 %v9206, %v9205
        %v9213 = vpack.c.b16 %v9208, %v9207
        %v9214 = vpack.c.b16 %v9210, %v9209
        %v9220 = vsel %vm425, %v9170, 0
        %v9223 = vsel %vm425, %v9171, 0
        %v9226 = vsel %vm425, %v9172, 0
        %v9229 = vsel %vm425, %v9173, 0
        %v9232 = vsel %vm425, %v9174, 0
        %v9235 = vsel %vm425, %v9175, 0
        %v9238 = vsel %vm425, %v9176, 0
        %v9241 = vsel %vm425, %v9177, 0
        %v9244 = vsel %vm425, %v9178, 0
        %v9247 = vsel %vm425, %v9179, 0
        %v9250 = vsel %vm425, %v9180, 0
        %v9253 = vsel %vm425, %v9181, 0
        %v9256 = vsel %vm425, %v9182, 0
        %v9259 = vsel %vm425, %v9183, 0
        %v9262 = vsel %vm425, %v9184, 0
        %v9265 = vsel %vm425, %v9185, 0
        %9267 = vmatprep.subr.bf16.mxu0 0
        %9268 = vmatpush1.bf16.msra.mxu0 0
        %9269 = vmatprep.subr.bf16.mxu0 0
        %9270 = vmatpush1.bf16.msra.mxu0 0
        %9271 = vmatprep.subr.bf16.mxu0 0
        %9272 = vmatpush1.bf16.msra.mxu0 0
        %9273 = vmatprep.subr.bf16.mxu0 0
        %9274 = vmatpush1.bf16.msra.mxu0 0
        %9275 = vmatprep.subr.bf16.mxu0 0
        %9276 = vmatpush1.bf16.msra.mxu0 %v9214
        %9277 = vmatprep.subr.bf16.mxu0 0
        %9278 = vmatpush1.bf16.msra.mxu0 %v9213
        %9279 = vmatprep.subr.bf16.mxu0 0
        %9280 = vmatpush1.bf16.msra.mxu0 %v9212
        %9281 = vmatprep.subr.bf16.mxu0 0
        %9282 = vmatpush1.bf16.msra.mxu0 %v9211
        %9283 = vmatprep.subr.bf16.mxu0 0
        %9284 = vmatpush2.bf16.msra.mxu0 0
        %9285 = vmatprep.subr.bf16.mxu0 0
        %9286 = vmatpush2.bf16.msra.mxu0 0
        %9287 = vmatprep.subr.bf16.mxu0 0
        %9288 = vmatpush2.bf16.msra.mxu0 0
        %9289 = vmatprep.subr.bf16.mxu0 0
        %9290 = vmatpush2.bf16.msra.mxu0 0
        %9291 = vmatprep.subr.bf16.mxu0 0
        %9292 = vmatpush2.bf16.msra.mxu0 0
        %9293 = vmatprep.subr.bf16.mxu0 0
        %9294 = vmatpush2.bf16.msra.mxu0 0
        %9295 = vmatprep.subr.bf16.mxu0 0
        %9296 = vmatpush2.bf16.msra.mxu0 0
        %9297 = vmatprep.subr.bf16.mxu0 0
        %9298 = vmatpush2.bf16.msra.mxu0 0
        %9299 = vmatprep.mubr.bf16.mxu0 0
        %9300 = vmatmul.mubr.bf16.gmra.mxu0 %v9220
        %v9301 = vpop.f32.mrf.mxu0
        %v9302 = vadd.f32 0.0, %v9301
        %v9303 = vpop.f32.mrf.mxu0
        %v9304 = vpop.f32.mrf.mxu0
        %v9305 = vadd.f32 0.0, %v9304
        %v9306 = vpop.f32.mrf.mxu0
        %9307 = vmatprep.mubr.bf16.mxu0 0
        %9308 = vmatmul.mubr.bf16.gmra.mxu0 %v9223
        %v9309 = vpop.f32.mrf.mxu0
        %v9310 = vadd.f32 0.0, %v9309
        %v9311 = vpop.f32.mrf.mxu0
        %v9312 = vpop.f32.mrf.mxu0
        %v9313 = vadd.f32 0.0, %v9312
        %v9314 = vpop.f32.mrf.mxu0
        %9315 = vmatprep.mubr.bf16.mxu0 0
        %9316 = vmatmul.mubr.bf16.gmra.mxu0 %v9226
        %v9317 = vpop.f32.mrf.mxu0
        %v9318 = vadd.f32 0.0, %v9317
        %v9319 = vpop.f32.mrf.mxu0
        %v9320 = vpop.f32.mrf.mxu0
        %v9321 = vadd.f32 0.0, %v9320
        %v9322 = vpop.f32.mrf.mxu0
        %9323 = vmatprep.mubr.bf16.mxu0 0
        %9324 = vmatmul.mubr.bf16.gmra.mxu0 %v9229
        %v9325 = vpop.f32.mrf.mxu0
        %v9326 = vadd.f32 0.0, %v9325
        %v9327 = vpop.f32.mrf.mxu0
        %v9328 = vpop.f32.mrf.mxu0
        %v9329 = vadd.f32 0.0, %v9328
        %v9330 = vpop.f32.mrf.mxu0
        %9331 = vmatprep.mubr.bf16.mxu0 0
        %9332 = vmatmul.mubr.bf16.gmra.mxu0 %v9232
        %v9333 = vpop.f32.mrf.mxu0
        %v9334 = vadd.f32 0.0, %v9333
        %v9335 = vpop.f32.mrf.mxu0
        %v9336 = vpop.f32.mrf.mxu0
        %v9337 = vadd.f32 0.0, %v9336
        %v9338 = vpop.f32.mrf.mxu0
        %9339 = vmatprep.mubr.bf16.mxu0 0
        %9340 = vmatmul.mubr.bf16.gmra.mxu0 %v9235
        %v9341 = vpop.f32.mrf.mxu0
        %v9342 = vadd.f32 0.0, %v9341
        %v9343 = vpop.f32.mrf.mxu0
        %v9344 = vpop.f32.mrf.mxu0
        %v9345 = vadd.f32 0.0, %v9344
        %v9346 = vpop.f32.mrf.mxu0
        %9347 = vmatprep.mubr.bf16.mxu0 0
        %9348 = vmatmul.mubr.bf16.gmra.mxu0 %v9238
        %v9349 = vpop.f32.mrf.mxu0
        %v9350 = vadd.f32 0.0, %v9349
        %v9351 = vpop.f32.mrf.mxu0
        %v9352 = vpop.f32.mrf.mxu0
        %v9353 = vadd.f32 0.0, %v9352
        %v9354 = vpop.f32.mrf.mxu0
        %9355 = vmatprep.mubr.bf16.mxu0 0
        %9356 = vmatmul.mubr.bf16.gmra.mxu0 %v9241
        %v9357 = vpop.f32.mrf.mxu0
        %v9358 = vadd.f32 0.0, %v9357
        %v9359 = vpop.f32.mrf.mxu0
        %v9360 = vpop.f32.mrf.mxu0
        %v9361 = vadd.f32 0.0, %v9360
        %v9362 = vpop.f32.mrf.mxu0
        %9363 = vmatprep.mubr.bf16.mxu0 0
        %9364 = vmatmul.mubr.bf16.gmra.mxu0 %v9244
        %v9365 = vpop.f32.mrf.mxu0
        %v9366 = vadd.f32 0.0, %v9365
        %v9367 = vpop.f32.mrf.mxu0
        %v9368 = vpop.f32.mrf.mxu0
        %v9369 = vadd.f32 0.0, %v9368
        %v9370 = vpop.f32.mrf.mxu0
        %9371 = vmatprep.mubr.bf16.mxu0 0
        %9372 = vmatmul.mubr.bf16.gmra.mxu0 %v9247
        %v9373 = vpop.f32.mrf.mxu0
        %v9374 = vadd.f32 0.0, %v9373
        %v9375 = vpop.f32.mrf.mxu0
        %v9376 = vpop.f32.mrf.mxu0
        %v9377 = vadd.f32 0.0, %v9376
        %v9378 = vpop.f32.mrf.mxu0
        %9379 = vmatprep.mubr.bf16.mxu0 0
        %9380 = vmatmul.mubr.bf16.gmra.mxu0 %v9250
        %v9381 = vpop.f32.mrf.mxu0
        %v9382 = vadd.f32 0.0, %v9381
        %v9383 = vpop.f32.mrf.mxu0
        %v9384 = vpop.f32.mrf.mxu0
        %v9385 = vadd.f32 0.0, %v9384
        %v9386 = vpop.f32.mrf.mxu0
        %9387 = vmatprep.mubr.bf16.mxu0 0
        %9388 = vmatmul.mubr.bf16.gmra.mxu0 %v9253
        %v9389 = vpop.f32.mrf.mxu0
        %v9390 = vadd.f32 0.0, %v9389
        %v9391 = vpop.f32.mrf.mxu0
        %v9392 = vpop.f32.mrf.mxu0
        %v9393 = vadd.f32 0.0, %v9392
        %v9394 = vpop.f32.mrf.mxu0
        %9395 = vmatprep.mubr.bf16.mxu0 0
        %9396 = vmatmul.mubr.bf16.gmra.mxu0 %v9256
        %v9397 = vpop.f32.mrf.mxu0
        %v9398 = vadd.f32 0.0, %v9397
        %v9399 = vpop.f32.mrf.mxu0
        %v9400 = vpop.f32.mrf.mxu0
        %v9401 = vadd.f32 0.0, %v9400
        %v9402 = vpop.f32.mrf.mxu0
        %9403 = vmatprep.mubr.bf16.mxu0 0
        %9404 = vmatmul.mubr.bf16.gmra.mxu0 %v9259
        %v9405 = vpop.f32.mrf.mxu0
        %v9406 = vadd.f32 0.0, %v9405
        %v9407 = vpop.f32.mrf.mxu0
        %v9408 = vpop.f32.mrf.mxu0
        %v9409 = vadd.f32 0.0, %v9408
        %v9410 = vpop.f32.mrf.mxu0
        %9411 = vmatprep.mubr.bf16.mxu0 0
        %9412 = vmatmul.mubr.bf16.gmra.mxu0 %v9262
        %v9413 = vpop.f32.mrf.mxu0
        %v9414 = vadd.f32 0.0, %v9413
        %v9415 = vpop.f32.mrf.mxu0
        %v9416 = vpop.f32.mrf.mxu0
        %v9417 = vadd.f32 0.0, %v9416
        %v9418 = vpop.f32.mrf.mxu0
        %9419 = vmatprep.mubr.bf16.mxu0 0
        %9420 = vmatmul.mubr.bf16.gmra.mxu0 %v9265
        %v9421 = vpop.f32.mrf.mxu0
        %v9422 = vadd.f32 0.0, %v9421
        %v9423 = vpop.f32.mrf.mxu0
        %v9424 = vpop.f32.mrf.mxu0
        %v9425 = vadd.f32 0.0, %v9424
        %v9426 = vpop.f32.mrf.mxu0
        %9427 = vdwg.mxu0
        %v9428 = vadd.f32 %v9106, %v9302
        %v9429 = vadd.f32 %v9107, %v9305
        %v9430 = vadd.f32 %v9108, %v9310
        %v9431 = vadd.f32 %v9109, %v9313
        %v9432 = vadd.f32 %v9110, %v9318
        %v9433 = vadd.f32 %v9111, %v9321
        %v9434 = vadd.f32 %v9112, %v9326
        %v9435 = vadd.f32 %v9113, %v9329
        %v9436 = vadd.f32 %v9114, %v9334
        %v9437 = vadd.f32 %v9115, %v9337
        %v9438 = vadd.f32 %v9116, %v9342
        %v9439 = vadd.f32 %v9117, %v9345
        %v9440 = vadd.f32 %v9118, %v9350
        %v9441 = vadd.f32 %v9119, %v9353
        %v9442 = vadd.f32 %v9120, %v9358
        %v9443 = vadd.f32 %v9121, %v9361
        %v9444 = vadd.f32 %v9122, %v9366
        %v9445 = vadd.f32 %v9123, %v9369
        %v9446 = vadd.f32 %v9124, %v9374
        %v9447 = vadd.f32 %v9125, %v9377
        %v9448 = vadd.f32 %v9126, %v9382
        %v9449 = vadd.f32 %v9127, %v9385
        %v9450 = vadd.f32 %v9128, %v9390
        %v9451 = vadd.f32 %v9129, %v9393
        %v9452 = vadd.f32 %v9130, %v9398
        %v9453 = vadd.f32 %v9131, %v9401
        %v9454 = vadd.f32 %v9132, %v9406
        %v9455 = vadd.f32 %v9133, %v9409
        %v9456 = vadd.f32 %v9134, %v9414
        %v9457 = vadd.f32 %v9135, %v9417
        %v9458 = vadd.f32 %v9136, %v9422
        %v9459 = vadd.f32 %v9137, %v9425
        %v9460 = vld [vmem:[%s8815 + $0x2] sm:$0xff]
        %v9461 = vld [vmem:[%s8815 + $0xa] sm:$0xff]
        %v9462 = vld [vmem:[%s8815 + $0x1a] sm:$0xff]
        %v9463 = vld [vmem:[%s8815 + $0x22] sm:$0xff]
        %v9464 = vld [vmem:[%s8815 + $0x32] sm:$0xff]
        %v9465 = vld [vmem:[%s8815 + $0x3a] sm:$0xff]
        %v9466 = vld [vmem:[%s8815 + $0x4a] sm:$0xff]
        %v9467 = vld [vmem:[%s8815 + $0x52] sm:$0xff]
        %v9468 = vld [vmem:[%s8815 + $0x62] sm:$0xff]
        %v9469 = vld [vmem:[%s8815 + $0x6a] sm:$0xff]
        %v9470 = vld [vmem:[%s8815 + $0x7a] sm:$0xff]
        %v9471 = vld [vmem:[%s8815 + $0x82] sm:$0xff]
        %v9472 = vld [vmem:[%s8815 + $0x92] sm:$0xff]
        %v9473 = vld [vmem:[%s8815 + $0x9a] sm:$0xff]
        %v9474 = vld [vmem:[%s8815 + $0xaa] sm:$0xff]
        %v9475 = vld [vmem:[%s8815 + $0xb2] sm:$0xff]
        %v9476 = vld [vmem:[%s8815 + $0xc2] sm:$0xff]
        %v9477 = vld [vmem:[%s8815 + $0xca] sm:$0xff]
        %v9478 = vld [vmem:[%s8815 + $0xda] sm:$0xff]
        %v9479 = vld [vmem:[%s8815 + $0xe2] sm:$0xff]
        %v9480 = vld [vmem:[%s8815 + $0xf2] sm:$0xff]
        %v9481 = vld [vmem:[%s8815 + $0xfa] sm:$0xff]
        %v9482 = vld [vmem:[%s8815 + $0x10a] sm:$0xff]
        %v9483 = vld [vmem:[%s8815 + $0x112] sm:$0xff]
        %v9484 = vld [vmem:[%s8815 + $0x122] sm:$0xff]
        %v9485 = vld [vmem:[%s8815 + $0x12a] sm:$0xff]
        %v9486 = vld [vmem:[%s8815 + $0x13a] sm:$0xff]
        %v9487 = vld [vmem:[%s8815 + $0x142] sm:$0xff]
        %v9488 = vld [vmem:[%s8815 + $0x152] sm:$0xff]
        %v9489 = vld [vmem:[%s8815 + $0x15a] sm:$0xff]
        %v9490 = vld [vmem:[%s8815 + $0x16a] sm:$0xff]
        %v9491 = vld [vmem:[%s8815 + $0x172] sm:$0xff]
        %v9492 = vpack.c.bf16 %v9461, %v9460
        %v9493 = vpack.c.bf16 %v9463, %v9462
        %v9494 = vpack.c.bf16 %v9465, %v9464
        %v9495 = vpack.c.bf16 %v9467, %v9466
        %v9496 = vpack.c.bf16 %v9469, %v9468
        %v9497 = vpack.c.bf16 %v9471, %v9470
        %v9498 = vpack.c.bf16 %v9473, %v9472
        %v9499 = vpack.c.bf16 %v9475, %v9474
        %v9500 = vpack.c.bf16 %v9477, %v9476
        %v9501 = vpack.c.bf16 %v9479, %v9478
        %v9502 = vpack.c.bf16 %v9481, %v9480
        %v9503 = vpack.c.bf16 %v9483, %v9482
        %v9504 = vpack.c.bf16 %v9485, %v9484
        %v9505 = vpack.c.bf16 %v9487, %v9486
        %v9506 = vpack.c.bf16 %v9489, %v9488
        %v9507 = vpack.c.bf16 %v9491, %v9490
        %s9508 = scalar_lea.vmem %s8, 256
        %v9509 = vld [vmem:[%s9508] sm:$0xf]
        %v9510 = vld [vmem:[%s9508 + $0x4] sm:$0xf]
        %v9511 = vld [vmem:[%s9508 + $0x8] sm:$0xf]
        %v9512 = vld [vmem:[%s9508 + $0xc] sm:$0xf]
        %v9513 = vld [vmem:[%s9508 + $0x10] sm:$0xf]
        %v9514 = vld [vmem:[%s9508 + $0x14] sm:$0xf]
        %v9515 = vld [vmem:[%s9508 + $0x18] sm:$0xf]
        %v9516 = vld [vmem:[%s9508 + $0x1c] sm:$0xf]
        %v9525 = vunpack.c.l.b16 %v9509
        %v9526 = vunpack.c.l.b16 %v9510
        %v9527 = vunpack.c.l.b16 %v9511
        %v9528 = vunpack.c.l.b16 %v9512
        %v9529 = vunpack.c.l.b16 %v9513
        %v9530 = vunpack.c.l.b16 %v9514
        %v9531 = vunpack.c.l.b16 %v9515
        %v9532 = vunpack.c.l.b16 %v9516
        %v9533 = vpack.c.b16 %v9526, %v9525
        %v9534 = vpack.c.b16 %v9528, %v9527
        %v9535 = vpack.c.b16 %v9530, %v9529
        %v9536 = vpack.c.b16 %v9532, %v9531
        %v9542 = vsel %vm425, %v9492, 0
        %v9545 = vsel %vm425, %v9493, 0
        %v9548 = vsel %vm425, %v9494, 0
        %v9551 = vsel %vm425, %v9495, 0
        %v9554 = vsel %vm425, %v9496, 0
        %v9557 = vsel %vm425, %v9497, 0
        %v9560 = vsel %vm425, %v9498, 0
        %v9563 = vsel %vm425, %v9499, 0
        %v9566 = vsel %vm425, %v9500, 0
        %v9569 = vsel %vm425, %v9501, 0
        %v9572 = vsel %vm425, %v9502, 0
        %v9575 = vsel %vm425, %v9503, 0
        %v9578 = vsel %vm425, %v9504, 0
        %v9581 = vsel %vm425, %v9505, 0
        %v9584 = vsel %vm425, %v9506, 0
        %v9587 = vsel %vm425, %v9507, 0
        %9589 = vmatprep.subr.bf16.mxu0 0
        %9590 = vmatpush1.bf16.msra.mxu0 0
        %9591 = vmatprep.subr.bf16.mxu0 0
        %9592 = vmatpush1.bf16.msra.mxu0 0
        %9593 = vmatprep.subr.bf16.mxu0 0
        %9594 = vmatpush1.bf16.msra.mxu0 0
        %9595 = vmatprep.subr.bf16.mxu0 0
        %9596 = vmatpush1.bf16.msra.mxu0 0
        %9597 = vmatprep.subr.bf16.mxu0 0
        %9598 = vmatpush1.bf16.msra.mxu0 %v9536
        %9599 = vmatprep.subr.bf16.mxu0 0
        %9600 = vmatpush1.bf16.msra.mxu0 %v9535
        %9601 = vmatprep.subr.bf16.mxu0 0
        %9602 = vmatpush1.bf16.msra.mxu0 %v9534
        %9603 = vmatprep.subr.bf16.mxu0 0
        %9604 = vmatpush1.bf16.msra.mxu0 %v9533
        %9605 = vmatprep.subr.bf16.mxu0 0
        %9606 = vmatpush2.bf16.msra.mxu0 0
        %9607 = vmatprep.subr.bf16.mxu0 0
        %9608 = vmatpush2.bf16.msra.mxu0 0
        %9609 = vmatprep.subr.bf16.mxu0 0
        %9610 = vmatpush2.bf16.msra.mxu0 0
        %9611 = vmatprep.subr.bf16.mxu0 0
        %9612 = vmatpush2.bf16.msra.mxu0 0
        %9613 = vmatprep.subr.bf16.mxu0 0
        %9614 = vmatpush2.bf16.msra.mxu0 0
        %9615 = vmatprep.subr.bf16.mxu0 0
        %9616 = vmatpush2.bf16.msra.mxu0 0
        %9617 = vmatprep.subr.bf16.mxu0 0
        %9618 = vmatpush2.bf16.msra.mxu0 0
        %9619 = vmatprep.subr.bf16.mxu0 0
        %9620 = vmatpush2.bf16.msra.mxu0 0
        %9621 = vmatprep.mubr.bf16.mxu0 0
        %9622 = vmatmul.mubr.bf16.gmra.mxu0 %v9542
        %v9623 = vpop.f32.mrf.mxu0
        %v9624 = vadd.f32 0.0, %v9623
        %v9625 = vpop.f32.mrf.mxu0
        %v9626 = vpop.f32.mrf.mxu0
        %v9627 = vadd.f32 0.0, %v9626
        %v9628 = vpop.f32.mrf.mxu0
        %9629 = vmatprep.mubr.bf16.mxu0 0
        %9630 = vmatmul.mubr.bf16.gmra.mxu0 %v9545
        %v9631 = vpop.f32.mrf.mxu0
        %v9632 = vadd.f32 0.0, %v9631
        %v9633 = vpop.f32.mrf.mxu0
        %v9634 = vpop.f32.mrf.mxu0
        %v9635 = vadd.f32 0.0, %v9634
        %v9636 = vpop.f32.mrf.mxu0
        %9637 = vmatprep.mubr.bf16.mxu0 0
        %9638 = vmatmul.mubr.bf16.gmra.mxu0 %v9548
        %v9639 = vpop.f32.mrf.mxu0
        %v9640 = vadd.f32 0.0, %v9639
        %v9641 = vpop.f32.mrf.mxu0
        %v9642 = vpop.f32.mrf.mxu0
        %v9643 = vadd.f32 0.0, %v9642
        %v9644 = vpop.f32.mrf.mxu0
        %9645 = vmatprep.mubr.bf16.mxu0 0
        %9646 = vmatmul.mubr.bf16.gmra.mxu0 %v9551
        %v9647 = vpop.f32.mrf.mxu0
        %v9648 = vadd.f32 0.0, %v9647
        %v9649 = vpop.f32.mrf.mxu0
        %v9650 = vpop.f32.mrf.mxu0
        %v9651 = vadd.f32 0.0, %v9650
        %v9652 = vpop.f32.mrf.mxu0
        %9653 = vmatprep.mubr.bf16.mxu0 0
        %9654 = vmatmul.mubr.bf16.gmra.mxu0 %v9554
        %v9655 = vpop.f32.mrf.mxu0
        %v9656 = vadd.f32 0.0, %v9655
        %v9657 = vpop.f32.mrf.mxu0
        %v9658 = vpop.f32.mrf.mxu0
        %v9659 = vadd.f32 0.0, %v9658
        %v9660 = vpop.f32.mrf.mxu0
        %9661 = vmatprep.mubr.bf16.mxu0 0
        %9662 = vmatmul.mubr.bf16.gmra.mxu0 %v9557
        %v9663 = vpop.f32.mrf.mxu0
        %v9664 = vadd.f32 0.0, %v9663
        %v9665 = vpop.f32.mrf.mxu0
        %v9666 = vpop.f32.mrf.mxu0
        %v9667 = vadd.f32 0.0, %v9666
        %v9668 = vpop.f32.mrf.mxu0
        %9669 = vmatprep.mubr.bf16.mxu0 0
        %9670 = vmatmul.mubr.bf16.gmra.mxu0 %v9560
        %v9671 = vpop.f32.mrf.mxu0
        %v9672 = vadd.f32 0.0, %v9671
        %v9673 = vpop.f32.mrf.mxu0
        %v9674 = vpop.f32.mrf.mxu0
        %v9675 = vadd.f32 0.0, %v9674
        %v9676 = vpop.f32.mrf.mxu0
        %9677 = vmatprep.mubr.bf16.mxu0 0
        %9678 = vmatmul.mubr.bf16.gmra.mxu0 %v9563
        %v9679 = vpop.f32.mrf.mxu0
        %v9680 = vadd.f32 0.0, %v9679
        %v9681 = vpop.f32.mrf.mxu0
        %v9682 = vpop.f32.mrf.mxu0
        %v9683 = vadd.f32 0.0, %v9682
        %v9684 = vpop.f32.mrf.mxu0
        %9685 = vmatprep.mubr.bf16.mxu0 0
        %9686 = vmatmul.mubr.bf16.gmra.mxu0 %v9566
        %v9687 = vpop.f32.mrf.mxu0
        %v9688 = vadd.f32 0.0, %v9687
        %v9689 = vpop.f32.mrf.mxu0
        %v9690 = vpop.f32.mrf.mxu0
        %v9691 = vadd.f32 0.0, %v9690
        %v9692 = vpop.f32.mrf.mxu0
        %9693 = vmatprep.mubr.bf16.mxu0 0
        %9694 = vmatmul.mubr.bf16.gmra.mxu0 %v9569
        %v9695 = vpop.f32.mrf.mxu0
        %v9696 = vadd.f32 0.0, %v9695
        %v9697 = vpop.f32.mrf.mxu0
        %v9698 = vpop.f32.mrf.mxu0
        %v9699 = vadd.f32 0.0, %v9698
        %v9700 = vpop.f32.mrf.mxu0
        %9701 = vmatprep.mubr.bf16.mxu0 0
        %9702 = vmatmul.mubr.bf16.gmra.mxu0 %v9572
        %v9703 = vpop.f32.mrf.mxu0
        %v9704 = vadd.f32 0.0, %v9703
        %v9705 = vpop.f32.mrf.mxu0
        %v9706 = vpop.f32.mrf.mxu0
        %v9707 = vadd.f32 0.0, %v9706
        %v9708 = vpop.f32.mrf.mxu0
        %9709 = vmatprep.mubr.bf16.mxu0 0
        %9710 = vmatmul.mubr.bf16.gmra.mxu0 %v9575
        %v9711 = vpop.f32.mrf.mxu0
        %v9712 = vadd.f32 0.0, %v9711
        %v9713 = vpop.f32.mrf.mxu0
        %v9714 = vpop.f32.mrf.mxu0
        %v9715 = vadd.f32 0.0, %v9714
        %v9716 = vpop.f32.mrf.mxu0
        %9717 = vmatprep.mubr.bf16.mxu0 0
        %9718 = vmatmul.mubr.bf16.gmra.mxu0 %v9578
        %v9719 = vpop.f32.mrf.mxu0
        %v9720 = vadd.f32 0.0, %v9719
        %v9721 = vpop.f32.mrf.mxu0
        %v9722 = vpop.f32.mrf.mxu0
        %v9723 = vadd.f32 0.0, %v9722
        %v9724 = vpop.f32.mrf.mxu0
        %9725 = vmatprep.mubr.bf16.mxu0 0
        %9726 = vmatmul.mubr.bf16.gmra.mxu0 %v9581
        %v9727 = vpop.f32.mrf.mxu0
        %v9728 = vadd.f32 0.0, %v9727
        %v9729 = vpop.f32.mrf.mxu0
        %v9730 = vpop.f32.mrf.mxu0
        %v9731 = vadd.f32 0.0, %v9730
        %v9732 = vpop.f32.mrf.mxu0
        %9733 = vmatprep.mubr.bf16.mxu0 0
        %9734 = vmatmul.mubr.bf16.gmra.mxu0 %v9584
        %v9735 = vpop.f32.mrf.mxu0
        %v9736 = vadd.f32 0.0, %v9735
        %v9737 = vpop.f32.mrf.mxu0
        %v9738 = vpop.f32.mrf.mxu0
        %v9739 = vadd.f32 0.0, %v9738
        %v9740 = vpop.f32.mrf.mxu0
        %9741 = vmatprep.mubr.bf16.mxu0 0
        %9742 = vmatmul.mubr.bf16.gmra.mxu0 %v9587
        %v9743 = vpop.f32.mrf.mxu0
        %v9744 = vadd.f32 0.0, %v9743
        %v9745 = vpop.f32.mrf.mxu0
        %v9746 = vpop.f32.mrf.mxu0
        %v9747 = vadd.f32 0.0, %v9746
        %v9748 = vpop.f32.mrf.mxu0
        %9749 = vdwg.mxu0
        %v9750 = vadd.f32 %v9428, %v9624
        %v9751 = vadd.f32 %v9429, %v9627
        %v9752 = vadd.f32 %v9430, %v9632
        %v9753 = vadd.f32 %v9431, %v9635
        %v9754 = vadd.f32 %v9432, %v9640
        %v9755 = vadd.f32 %v9433, %v9643
        %v9756 = vadd.f32 %v9434, %v9648
        %v9757 = vadd.f32 %v9435, %v9651
        %v9758 = vadd.f32 %v9436, %v9656
        %v9759 = vadd.f32 %v9437, %v9659
        %v9760 = vadd.f32 %v9438, %v9664
        %v9761 = vadd.f32 %v9439, %v9667
        %v9762 = vadd.f32 %v9440, %v9672
        %v9763 = vadd.f32 %v9441, %v9675
        %v9764 = vadd.f32 %v9442, %v9680
        %v9765 = vadd.f32 %v9443, %v9683
        %v9766 = vadd.f32 %v9444, %v9688
        %v9767 = vadd.f32 %v9445, %v9691
        %v9768 = vadd.f32 %v9446, %v9696
        %v9769 = vadd.f32 %v9447, %v9699
        %v9770 = vadd.f32 %v9448, %v9704
        %v9771 = vadd.f32 %v9449, %v9707
        %v9772 = vadd.f32 %v9450, %v9712
        %v9773 = vadd.f32 %v9451, %v9715
        %v9774 = vadd.f32 %v9452, %v9720
        %v9775 = vadd.f32 %v9453, %v9723
        %v9776 = vadd.f32 %v9454, %v9728
        %v9777 = vadd.f32 %v9455, %v9731
        %v9778 = vadd.f32 %v9456, %v9736
        %v9779 = vadd.f32 %v9457, %v9739
        %v9780 = vadd.f32 %v9458, %v9744
        %v9781 = vadd.f32 %v9459, %v9747
        %v9782 = vld [vmem:[%s9] sm:$0x1]
        %v9784 = vlaneseq
        %v9785 = vshrl.u32 %v9784, 7
        %v9786 = vsub.s32 0, %v9785
        %v9787 = vrot.slane %v9782, %v9786
        %v9789 = vadd.f32 %v9750, %v9787
        %v9790 = vadd.f32 %v9751, %v9787
        %v9791 = vadd.f32 %v9752, %v9787
        %v9792 = vadd.f32 %v9753, %v9787
        %v9793 = vadd.f32 %v9754, %v9787
        %v9794 = vadd.f32 %v9755, %v9787
        %v9795 = vadd.f32 %v9756, %v9787
        %v9796 = vadd.f32 %v9757, %v9787
        %v9797 = vadd.f32 %v9758, %v9787
        %v9798 = vadd.f32 %v9759, %v9787
        %v9799 = vadd.f32 %v9760, %v9787
        %v9800 = vadd.f32 %v9761, %v9787
        %v9801 = vadd.f32 %v9762, %v9787
        %v9802 = vadd.f32 %v9763, %v9787
        %v9803 = vadd.f32 %v9764, %v9787
        %v9804 = vadd.f32 %v9765, %v9787
        %v9805 = vadd.f32 %v9766, %v9787
        %v9806 = vadd.f32 %v9767, %v9787
        %v9807 = vadd.f32 %v9768, %v9787
        %v9808 = vadd.f32 %v9769, %v9787
        %v9809 = vadd.f32 %v9770, %v9787
        %v9810 = vadd.f32 %v9771, %v9787
        %v9811 = vadd.f32 %v9772, %v9787
        %v9812 = vadd.f32 %v9773, %v9787
        %v9813 = vadd.f32 %v9774, %v9787
        %v9814 = vadd.f32 %v9775, %v9787
        %v9815 = vadd.f32 %v9776, %v9787
        %v9816 = vadd.f32 %v9777, %v9787
        %v9817 = vadd.f32 %v9778, %v9787
        %v9818 = vadd.f32 %v9779, %v9787
        %v9819 = vadd.f32 %v9780, %v9787
        %v9820 = vadd.f32 %v9781, %v9787
        %v9821 = vmin.f32 %v9789, 20.0
        %v9822 = vmin.f32 %v9790, 20.0
        %v9823 = vmin.f32 %v9791, 20.0
        %v9824 = vmin.f32 %v9792, 20.0
        %v9825 = vmin.f32 %v9793, 20.0
        %v9826 = vmin.f32 %v9794, 20.0
        %v9827 = vmin.f32 %v9795, 20.0
        %v9828 = vmin.f32 %v9796, 20.0
        %v9829 = vmin.f32 %v9797, 20.0
        %v9830 = vmin.f32 %v9798, 20.0
        %v9831 = vmin.f32 %v9799, 20.0
        %v9832 = vmin.f32 %v9800, 20.0
        %v9833 = vmin.f32 %v9801, 20.0
        %v9834 = vmin.f32 %v9802, 20.0
        %v9835 = vmin.f32 %v9803, 20.0
        %v9836 = vmin.f32 %v9804, 20.0
        %v9837 = vmin.f32 %v9805, 20.0
        %v9838 = vmin.f32 %v9806, 20.0
        %v9839 = vmin.f32 %v9807, 20.0
        %v9840 = vmin.f32 %v9808, 20.0
        %v9841 = vmin.f32 %v9809, 20.0
        %v9842 = vmin.f32 %v9810, 20.0
        %v9843 = vmin.f32 %v9811, 20.0
        %v9844 = vmin.f32 %v9812, 20.0
        %v9845 = vmin.f32 %v9813, 20.0
        %v9846 = vmin.f32 %v9814, 20.0
        %v9847 = vmin.f32 %v9815, 20.0
        %v9848 = vmin.f32 %v9816, 20.0
        %v9849 = vmin.f32 %v9817, 20.0
        %v9850 = vmin.f32 %v9818, 20.0
        %v9851 = vmin.f32 %v9819, 20.0
        %v9852 = vmin.f32 %v9820, 20.0
        %v9853 = vmul.f32 %v9821, 1.442695
        %v9854 = vpow.pop %v9853
        %v9855 = vmul.f32 %v9822, 1.442695
        %v9856 = vpow.pop %v9855
        %v9857 = vmul.f32 %v9823, 1.442695
        %v9858 = vpow.pop %v9857
        %v9859 = vmul.f32 %v9824, 1.442695
        %v9860 = vpow.pop %v9859
        %v9861 = vmul.f32 %v9825, 1.442695
        %v9862 = vpow.pop %v9861
        %v9863 = vmul.f32 %v9826, 1.442695
        %v9864 = vpow.pop %v9863
        %v9865 = vmul.f32 %v9827, 1.442695
        %v9866 = vpow.pop %v9865
        %v9867 = vmul.f32 %v9828, 1.442695
        %v9868 = vpow.pop %v9867
        %v9869 = vmul.f32 %v9829, 1.442695
        %v9870 = vpow.pop %v9869
        %v9871 = vmul.f32 %v9830, 1.442695
        %v9872 = vpow.pop %v9871
        %v9873 = vmul.f32 %v9831, 1.442695
        %v9874 = vpow.pop %v9873
        %v9875 = vmul.f32 %v9832, 1.442695
        %v9876 = vpow.pop %v9875
        %v9877 = vmul.f32 %v9833, 1.442695
        %v9878 = vpow.pop %v9877
        %v9879 = vmul.f32 %v9834, 1.442695
        %v9880 = vpow.pop %v9879
        %v9881 = vmul.f32 %v9835, 1.442695
        %v9882 = vpow.pop %v9881
        %v9883 = vmul.f32 %v9836, 1.442695
        %v9884 = vpow.pop %v9883
        %v9885 = vmul.f32 %v9837, 1.442695
        %v9886 = vpow.pop %v9885
        %v9887 = vmul.f32 %v9838, 1.442695
        %v9888 = vpow.pop %v9887
        %v9889 = vmul.f32 %v9839, 1.442695
        %v9890 = vpow.pop %v9889
        %v9891 = vmul.f32 %v9840, 1.442695
        %v9892 = vpow.pop %v9891
        %v9893 = vmul.f32 %v9841, 1.442695
        %v9894 = vpow.pop %v9893
        %v9895 = vmul.f32 %v9842, 1.442695
        %v9896 = vpow.pop %v9895
        %v9897 = vmul.f32 %v9843, 1.442695
        %v9898 = vpow.pop %v9897
        %v9899 = vmul.f32 %v9844, 1.442695
        %v9900 = vpow.pop %v9899
        %v9901 = vmul.f32 %v9845, 1.442695
        %v9902 = vpow.pop %v9901
        %v9903 = vmul.f32 %v9846, 1.442695
        %v9904 = vpow.pop %v9903
        %v9905 = vmul.f32 %v9847, 1.442695
        %v9906 = vpow.pop %v9905
        %v9907 = vmul.f32 %v9848, 1.442695
        %v9908 = vpow.pop %v9907
        %v9909 = vmul.f32 %v9849, 1.442695
        %v9910 = vpow.pop %v9909
        %v9911 = vmul.f32 %v9850, 1.442695
        %v9912 = vpow.pop %v9911
        %v9913 = vmul.f32 %v9851, 1.442695
        %v9914 = vpow.pop %v9913
        %v9915 = vmul.f32 %v9852, 1.442695
        %v9916 = vpow.pop %v9915
        %v9917 = vadd.f32 %v9854, 2.0
        %v9918 = vadd.f32 %v9856, 2.0
        %v9919 = vadd.f32 %v9858, 2.0
        %v9920 = vadd.f32 %v9860, 2.0
        %v9921 = vadd.f32 %v9862, 2.0
        %v9922 = vadd.f32 %v9864, 2.0
        %v9923 = vadd.f32 %v9866, 2.0
        %v9924 = vadd.f32 %v9868, 2.0
        %v9925 = vadd.f32 %v9870, 2.0
        %v9926 = vadd.f32 %v9872, 2.0
        %v9927 = vadd.f32 %v9874, 2.0
        %v9928 = vadd.f32 %v9876, 2.0
        %v9929 = vadd.f32 %v9878, 2.0
        %v9930 = vadd.f32 %v9880, 2.0
        %v9931 = vadd.f32 %v9882, 2.0
        %v9932 = vadd.f32 %v9884, 2.0
        %v9933 = vadd.f32 %v9886, 2.0
        %v9934 = vadd.f32 %v9888, 2.0
        %v9935 = vadd.f32 %v9890, 2.0
        %v9936 = vadd.f32 %v9892, 2.0
        %v9937 = vadd.f32 %v9894, 2.0
        %v9938 = vadd.f32 %v9896, 2.0
        %v9939 = vadd.f32 %v9898, 2.0
        %v9940 = vadd.f32 %v9900, 2.0
        %v9941 = vadd.f32 %v9902, 2.0
        %v9942 = vadd.f32 %v9904, 2.0
        %v9943 = vadd.f32 %v9906, 2.0
        %v9944 = vadd.f32 %v9908, 2.0
        %v9945 = vadd.f32 %v9910, 2.0
        %v9946 = vadd.f32 %v9912, 2.0
        %v9947 = vadd.f32 %v9914, 2.0
        %v9948 = vadd.f32 %v9916, 2.0
        %v9949 = vmul.f32 %v9854, %v9917
        %v9950 = vmul.f32 %v9856, %v9918
        %v9951 = vmul.f32 %v9858, %v9919
        %v9952 = vmul.f32 %v9860, %v9920
        %v9953 = vmul.f32 %v9862, %v9921
        %v9954 = vmul.f32 %v9864, %v9922
        %v9955 = vmul.f32 %v9866, %v9923
        %v9956 = vmul.f32 %v9868, %v9924
        %v9957 = vmul.f32 %v9870, %v9925
        %v9958 = vmul.f32 %v9872, %v9926
        %v9959 = vmul.f32 %v9874, %v9927
        %v9960 = vmul.f32 %v9876, %v9928
        %v9961 = vmul.f32 %v9878, %v9929
        %v9962 = vmul.f32 %v9880, %v9930
        %v9963 = vmul.f32 %v9882, %v9931
        %v9964 = vmul.f32 %v9884, %v9932
        %v9965 = vmul.f32 %v9886, %v9933
        %v9966 = vmul.f32 %v9888, %v9934
        %v9967 = vmul.f32 %v9890, %v9935
        %v9968 = vmul.f32 %v9892, %v9936
        %v9969 = vmul.f32 %v9894, %v9937
        %v9970 = vmul.f32 %v9896, %v9938
        %v9971 = vmul.f32 %v9898, %v9939
        %v9972 = vmul.f32 %v9900, %v9940
        %v9973 = vmul.f32 %v9902, %v9941
        %v9974 = vmul.f32 %v9904, %v9942
        %v9975 = vmul.f32 %v9906, %v9943
        %v9976 = vmul.f32 %v9908, %v9944
        %v9977 = vmul.f32 %v9910, %v9945
        %v9978 = vmul.f32 %v9912, %v9946
        %v9979 = vmul.f32 %v9914, %v9947
        %v9980 = vmul.f32 %v9916, %v9948
        %v9981 = vmul.f32 %v9789, %v9949
        %v9982 = vmul.f32 %v9790, %v9950
        %v9983 = vmul.f32 %v9791, %v9951
        %v9984 = vmul.f32 %v9792, %v9952
        %v9985 = vmul.f32 %v9793, %v9953
        %v9986 = vmul.f32 %v9794, %v9954
        %v9987 = vmul.f32 %v9795, %v9955
        %v9988 = vmul.f32 %v9796, %v9956
        %v9989 = vmul.f32 %v9797, %v9957
        %v9990 = vmul.f32 %v9798, %v9958
        %v9991 = vmul.f32 %v9799, %v9959
        %v9992 = vmul.f32 %v9800, %v9960
        %v9993 = vmul.f32 %v9801, %v9961
        %v9994 = vmul.f32 %v9802, %v9962
        %v9995 = vmul.f32 %v9803, %v9963
        %v9996 = vmul.f32 %v9804, %v9964
        %v9997 = vmul.f32 %v9805, %v9965
        %v9998 = vmul.f32 %v9806, %v9966
        %v9999 = vmul.f32 %v9807, %v9967
        %v10000 = vmul.f32 %v9808, %v9968
        %v10001 = vmul.f32 %v9809, %v9969
        %v10002 = vmul.f32 %v9810, %v9970
        %v10003 = vmul.f32 %v9811, %v9971
        %v10004 = vmul.f32 %v9812, %v9972
        %v10005 = vmul.f32 %v9813, %v9973
        %v10006 = vmul.f32 %v9814, %v9974
        %v10007 = vmul.f32 %v9815, %v9975
        %v10008 = vmul.f32 %v9816, %v9976
        %v10009 = vmul.f32 %v9817, %v9977
        %v10010 = vmul.f32 %v9818, %v9978
        %v10011 = vmul.f32 %v9819, %v9979
        %v10012 = vmul.f32 %v9820, %v9980
        %v10013 = vadd.f32 %v9949, 2.0
        %v10014 = vadd.f32 %v9950, 2.0
        %v10015 = vadd.f32 %v9951, 2.0
        %v10016 = vadd.f32 %v9952, 2.0
        %v10017 = vadd.f32 %v9953, 2.0
        %v10018 = vadd.f32 %v9954, 2.0
        %v10019 = vadd.f32 %v9955, 2.0
        %v10020 = vadd.f32 %v9956, 2.0
        %v10021 = vadd.f32 %v9957, 2.0
        %v10022 = vadd.f32 %v9958, 2.0
        %v10023 = vadd.f32 %v9959, 2.0
        %v10024 = vadd.f32 %v9960, 2.0
        %v10025 = vadd.f32 %v9961, 2.0
        %v10026 = vadd.f32 %v9962, 2.0
        %v10027 = vadd.f32 %v9963, 2.0
        %v10028 = vadd.f32 %v9964, 2.0
        %v10029 = vadd.f32 %v9965, 2.0
        %v10030 = vadd.f32 %v9966, 2.0
        %v10031 = vadd.f32 %v9967, 2.0
        %v10032 = vadd.f32 %v9968, 2.0
        %v10033 = vadd.f32 %v9969, 2.0
        %v10034 = vadd.f32 %v9970, 2.0
        %v10035 = vadd.f32 %v9971, 2.0
        %v10036 = vadd.f32 %v9972, 2.0
        %v10037 = vadd.f32 %v9973, 2.0
        %v10038 = vadd.f32 %v9974, 2.0
        %v10039 = vadd.f32 %v9975, 2.0
        %v10040 = vadd.f32 %v9976, 2.0
        %v10041 = vadd.f32 %v9977, 2.0
        %v10042 = vadd.f32 %v9978, 2.0
        %v10043 = vadd.f32 %v9979, 2.0
        %v10044 = vadd.f32 %v9980, 2.0
        %v10045 = vrcp.pop %v10013
        %v10046 = vrcp.pop %v10014
        %v10047 = vrcp.pop %v10015
        %v10048 = vrcp.pop %v10016
        %v10049 = vrcp.pop %v10017
        %v10050 = vrcp.pop %v10018
        %v10051 = vrcp.pop %v10019
        %v10052 = vrcp.pop %v10020
        %v10053 = vrcp.pop %v10021
        %v10054 = vrcp.pop %v10022
        %v10055 = vrcp.pop %v10023
        %v10056 = vrcp.pop %v10024
        %v10057 = vrcp.pop %v10025
        %v10058 = vrcp.pop %v10026
        %v10059 = vrcp.pop %v10027
        %v10060 = vrcp.pop %v10028
        %v10061 = vrcp.pop %v10029
        %v10062 = vrcp.pop %v10030
        %v10063 = vrcp.pop %v10031
        %v10064 = vrcp.pop %v10032
        %v10065 = vrcp.pop %v10033
        %v10066 = vrcp.pop %v10034
        %v10067 = vrcp.pop %v10035
        %v10068 = vrcp.pop %v10036
        %v10069 = vrcp.pop %v10037
        %v10070 = vrcp.pop %v10038
        %v10071 = vrcp.pop %v10039
        %v10072 = vrcp.pop %v10040
        %v10073 = vrcp.pop %v10041
        %v10074 = vrcp.pop %v10042
        %v10075 = vrcp.pop %v10043
        %v10076 = vrcp.pop %v10044
        %v10077 = vmul.f32 %v9981, %v10045
        %v10078 = vmul.f32 %v9982, %v10046
        %v10079 = vmul.f32 %v9983, %v10047
        %v10080 = vmul.f32 %v9984, %v10048
        %v10081 = vmul.f32 %v9985, %v10049
        %v10082 = vmul.f32 %v9986, %v10050
        %v10083 = vmul.f32 %v9987, %v10051
        %v10084 = vmul.f32 %v9988, %v10052
        %v10085 = vmul.f32 %v9989, %v10053
        %v10086 = vmul.f32 %v9990, %v10054
        %v10087 = vmul.f32 %v9991, %v10055
        %v10088 = vmul.f32 %v9992, %v10056
        %v10089 = vmul.f32 %v9993, %v10057
        %v10090 = vmul.f32 %v9994, %v10058
        %v10091 = vmul.f32 %v9995, %v10059
        %v10092 = vmul.f32 %v9996, %v10060
        %v10093 = vmul.f32 %v9997, %v10061
        %v10094 = vmul.f32 %v9998, %v10062
        %v10095 = vmul.f32 %v9999, %v10063
        %v10096 = vmul.f32 %v10000, %v10064
        %v10097 = vmul.f32 %v10001, %v10065
        %v10098 = vmul.f32 %v10002, %v10066
        %v10099 = vmul.f32 %v10003, %v10067
        %v10100 = vmul.f32 %v10004, %v10068
        %v10101 = vmul.f32 %v10005, %v10069
        %v10102 = vmul.f32 %v10006, %v10070
        %v10103 = vmul.f32 %v10007, %v10071
        %v10104 = vmul.f32 %v10008, %v10072
        %v10105 = vmul.f32 %v10009, %v10073
        %v10106 = vmul.f32 %v10010, %v10074
        %v10107 = vmul.f32 %v10011, %v10075
        %v10108 = vmul.f32 %v10012, %v10076
        %v10109 = vld [vmem:[%s3] sm:$0x1]
        %v10111 = vlaneseq
        %v10112 = vshrl.u32 %v10111, 7
        %v10113 = vsub.s32 0, %v10112
        %v10114 = vrot.slane %v10109, %v10113
        %v10116 = vmul.f32 %v10077, %v10114
        %v10117 = vmul.f32 %v10078, %v10114
        %v10118 = vmul.f32 %v10079, %v10114
        %v10119 = vmul.f32 %v10080, %v10114
        %v10120 = vmul.f32 %v10081, %v10114
        %v10121 = vmul.f32 %v10082, %v10114
        %v10122 = vmul.f32 %v10083, %v10114
        %v10123 = vmul.f32 %v10084, %v10114
        %v10124 = vmul.f32 %v10085, %v10114
        %v10125 = vmul.f32 %v10086, %v10114
        %v10126 = vmul.f32 %v10087, %v10114
        %v10127 = vmul.f32 %v10088, %v10114
        %v10128 = vmul.f32 %v10089, %v10114
        %v10129 = vmul.f32 %v10090, %v10114
        %v10130 = vmul.f32 %v10091, %v10114
        %v10131 = vmul.f32 %v10092, %v10114
        %v10132 = vmul.f32 %v10093, %v10114
        %v10133 = vmul.f32 %v10094, %v10114
        %v10134 = vmul.f32 %v10095, %v10114
        %v10135 = vmul.f32 %v10096, %v10114
        %v10136 = vmul.f32 %v10097, %v10114
        %v10137 = vmul.f32 %v10098, %v10114
        %v10138 = vmul.f32 %v10099, %v10114
        %v10139 = vmul.f32 %v10100, %v10114
        %v10140 = vmul.f32 %v10101, %v10114
        %v10141 = vmul.f32 %v10102, %v10114
        %v10142 = vmul.f32 %v10103, %v10114
        %v10143 = vmul.f32 %v10104, %v10114
        %v10144 = vmul.f32 %v10105, %v10114
        %v10145 = vmul.f32 %v10106, %v10114
        %v10146 = vmul.f32 %v10107, %v10114
        %v10147 = vmul.f32 %v10108, %v10114
        %v10148 = vld [vmem:[%s341] sm:$0xff]
        %v10149 = vld [vmem:[%s341 + $0x8] sm:$0xff]
        %v10150 = vld [vmem:[%s341 + $0x10] sm:$0xff]
        %v10151 = vld [vmem:[%s341 + $0x18] sm:$0xff]
        %v10152 = vld [vmem:[%s341 + $0x20] sm:$0xff]
        %v10153 = vld [vmem:[%s341 + $0x28] sm:$0xff]
        %v10154 = vld [vmem:[%s341 + $0x30] sm:$0xff]
        %v10155 = vld [vmem:[%s341 + $0x38] sm:$0xff]
        %v10156 = vld [vmem:[%s341 + $0x40] sm:$0xff]
        %v10157 = vld [vmem:[%s341 + $0x48] sm:$0xff]
        %v10158 = vld [vmem:[%s341 + $0x50] sm:$0xff]
        %v10159 = vld [vmem:[%s341 + $0x58] sm:$0xff]
        %v10160 = vld [vmem:[%s341 + $0x60] sm:$0xff]
        %v10161 = vld [vmem:[%s341 + $0x68] sm:$0xff]
        %v10162 = vld [vmem:[%s341 + $0x70] sm:$0xff]
        %v10163 = vld [vmem:[%s341 + $0x78] sm:$0xff]
        %v10164 = vld [vmem:[%s341 + $0x80] sm:$0xff]
        %v10165 = vld [vmem:[%s341 + $0x88] sm:$0xff]
        %v10166 = vld [vmem:[%s341 + $0x90] sm:$0xff]
        %v10167 = vld [vmem:[%s341 + $0x98] sm:$0xff]
        %v10168 = vld [vmem:[%s341 + $0xa0] sm:$0xff]
        %v10169 = vld [vmem:[%s341 + $0xa8] sm:$0xff]
        %v10170 = vld [vmem:[%s341 + $0xb0] sm:$0xff]
        %v10171 = vld [vmem:[%s341 + $0xb8] sm:$0xff]
        %v10172 = vld [vmem:[%s341 + $0xc0] sm:$0xff]
        %v10173 = vld [vmem:[%s341 + $0xc8] sm:$0xff]
        %v10174 = vld [vmem:[%s341 + $0xd0] sm:$0xff]
        %v10175 = vld [vmem:[%s341 + $0xd8] sm:$0xff]
        %v10176 = vld [vmem:[%s341 + $0xe0] sm:$0xff]
        %v10177 = vld [vmem:[%s341 + $0xe8] sm:$0xff]
        %v10178 = vld [vmem:[%s341 + $0xf0] sm:$0xff]
        %v10179 = vld [vmem:[%s341 + $0xf8] sm:$0xff]
        %v10180 = vadd.f32 %v10116, %v10148
        %v10181 = vadd.f32 %v10117, %v10149
        %v10182 = vadd.f32 %v10118, %v10150
        %v10183 = vadd.f32 %v10119, %v10151
        %v10184 = vadd.f32 %v10120, %v10152
        %v10185 = vadd.f32 %v10121, %v10153
        %v10186 = vadd.f32 %v10122, %v10154
        %v10187 = vadd.f32 %v10123, %v10155
        %v10188 = vadd.f32 %v10124, %v10156
        %v10189 = vadd.f32 %v10125, %v10157
        %v10190 = vadd.f32 %v10126, %v10158
        %v10191 = vadd.f32 %v10127, %v10159
        %v10192 = vadd.f32 %v10128, %v10160
        %v10193 = vadd.f32 %v10129, %v10161
        %v10194 = vadd.f32 %v10130, %v10162
        %v10195 = vadd.f32 %v10131, %v10163
        %v10196 = vadd.f32 %v10132, %v10164
        %v10197 = vadd.f32 %v10133, %v10165
        %v10198 = vadd.f32 %v10134, %v10166
        %v10199 = vadd.f32 %v10135, %v10167
        %v10200 = vadd.f32 %v10136, %v10168
        %v10201 = vadd.f32 %v10137, %v10169
        %v10202 = vadd.f32 %v10138, %v10170
        %v10203 = vadd.f32 %v10139, %v10171
        %v10204 = vadd.f32 %v10140, %v10172
        %v10205 = vadd.f32 %v10141, %v10173
        %v10206 = vadd.f32 %v10142, %v10174
        %v10207 = vadd.f32 %v10143, %v10175
        %v10208 = vadd.f32 %v10144, %v10176
        %v10209 = vadd.f32 %v10145, %v10177
        %v10210 = vadd.f32 %v10146, %v10178
        %v10211 = vadd.f32 %v10147, %v10179
        %10212 = vst.msk [vmem:[%s377] sm:$0xff] %vm379, %v10180
        %10213 = vst.msk [vmem:[%s377 + $0x8] sm:$0xff] %vm379, %v10181
        %10214 = vst.msk [vmem:[%s377 + $0x10] sm:$0xff] %vm379, %v10182
        %10215 = vst.msk [vmem:[%s377 + $0x18] sm:$0xff] %vm379, %v10183
        %10216 = vst.msk [vmem:[%s377 + $0x20] sm:$0xff] %vm379, %v10184
        %10217 = vst.msk [vmem:[%s377 + $0x28] sm:$0xff] %vm379, %v10185
        %10218 = vst.msk [vmem:[%s377 + $0x30] sm:$0xff] %vm379, %v10186
        %10219 = vst.msk [vmem:[%s377 + $0x38] sm:$0xff] %vm379, %v10187
        %10220 = vst.msk [vmem:[%s377 + $0x40] sm:$0xff] %vm379, %v10188
        %10221 = vst.msk [vmem:[%s377 + $0x48] sm:$0xff] %vm379, %v10189
        %10222 = vst.msk [vmem:[%s377 + $0x50] sm:$0xff] %vm379, %v10190
        %10223 = vst.msk [vmem:[%s377 + $0x58] sm:$0xff] %vm379, %v10191
        %10224 = vst.msk [vmem:[%s377 + $0x60] sm:$0xff] %vm379, %v10192
        %10225 = vst.msk [vmem:[%s377 + $0x68] sm:$0xff] %vm379, %v10193
        %10226 = vst.msk [vmem:[%s377 + $0x70] sm:$0xff] %vm379, %v10194
        %10227 = vst.msk [vmem:[%s377 + $0x78] sm:$0xff] %vm379, %v10195
        %10228 = vst.msk [vmem:[%s377 + $0x80] sm:$0xff] %vm379, %v10196
        %10229 = vst.msk [vmem:[%s377 + $0x88] sm:$0xff] %vm379, %v10197
        %10230 = vst.msk [vmem:[%s377 + $0x90] sm:$0xff] %vm379, %v10198
        %10231 = vst.msk [vmem:[%s377 + $0x98] sm:$0xff] %vm379, %v10199
        %10232 = vst.msk [vmem:[%s377 + $0xa0] sm:$0xff] %vm379, %v10200
        %10233 = vst.msk [vmem:[%s377 + $0xa8] sm:$0xff] %vm379, %v10201
        %10234 = vst.msk [vmem:[%s377 + $0xb0] sm:$0xff] %vm379, %v10202
        %10235 = vst.msk [vmem:[%s377 + $0xb8] sm:$0xff] %vm379, %v10203
        %10236 = vst.msk [vmem:[%s377 + $0xc0] sm:$0xff] %vm379, %v10204
        %10237 = vst.msk [vmem:[%s377 + $0xc8] sm:$0xff] %vm379, %v10205
        %10238 = vst.msk [vmem:[%s377 + $0xd0] sm:$0xff] %vm379, %v10206
        %10239 = vst.msk [vmem:[%s377 + $0xd8] sm:$0xff] %vm379, %v10207
        %10240 = vst.msk [vmem:[%s377 + $0xe0] sm:$0xff] %vm379, %v10208
        %10241 = vst.msk [vmem:[%s377 + $0xe8] sm:$0xff] %vm379, %v10209
        %10242 = vst.msk [vmem:[%s377 + $0xf0] sm:$0xff] %vm379, %v10210
        %10243 = vst.msk [vmem:[%s377 + $0xf8] sm:$0xff] %vm379, %v10211
        %s10244 = sand.u32 %s250, 1
        %s10245 = scalar_lea.sflag [#allocation7], %s10244
        %s10246 = sand.u32 %s250, 1
        %s10247 = smul.addr %s10246, 256
        %s10248 = scalar_lea.vmem [#allocation8], %s10247
        // Predicated region
        $region65: #{tpu_custom_call.1} parent=59 // pred_check
          %p10249 = pneg %p260
        $region66: #{tpu_custom_call.1} parent=59 // pred_check_branch
          %10251 = sbr.rel (%p10249) target = $region68
        $region67: #{tpu_custom_call.1} parent=59 // pred_region
          %s10253 = ssub.s32 4096, 4096
          %10254 = vsyncadd %s10245, %s10253
          %s10255 = smul.addr %s27, 32
          %s10256 = smul.addr %s10255, 128
          %s10257 = scalar_lea.hbm %s10, %s10256
          %s10258 = sshll.u32 %s10248, 4
          %s10259 = int_to_ptr.vmem [resolvable:$true] %s10258
          %10264 = dma.vmem_to_hbm [thread:$0]  %s10259, 4096, %s10257, %s10245, 128, 128, 8
        $region68: #{tpu_custom_call.1} parent=59 // pred_fallthru
          _
      $region60: #{tpu_custom_call.1} parent=5 // pred_fallthru
        _
      %p10265 = scmp.le.s32.totalorder 2, %s22
      // Predicated region
      $region69: #{tpu_custom_call.1} parent=5 // pred_check
        %p10266 = pneg %p10265
      $region70: #{tpu_custom_call.1} parent=5 // pred_check_branch
        %10268 = sbr.rel (%p10266) target = $region72
      $region71: #{tpu_custom_call.1} parent=5 // pred_region
        %s10269 = ssub.s32 %s22, 2
        // Predicated region
        $region73: #{tpu_custom_call.1} parent=71 // pred_check
          %p10270 = pneg %p266
        $region74: #{tpu_custom_call.1} parent=71 // pred_check_branch
          %10272 = sbr.rel (%p10270) target = $region76
        $region75: #{tpu_custom_call.1} parent=71 // pred_region
          %s10273 = sand.u32 %s251, 1
          %s10274 = scalar_lea.sflag [#allocation7], %s10273
          %s10275 = sand.u32 %s251, 1
          %s10276 = smul.addr %s10275, 256
          %s10277 = scalar_lea.vmem [#allocation8], %s10276
          %10278 = dma.done %s10274, 4096
        $region76: #{tpu_custom_call.1} parent=71 // pred_fallthru
          _
      $region72: #{tpu_custom_call.1} parent=5 // pred_fallthru
        _
    $region6: #{tpu_custom_call.1} parent=1 // loop_footer
      %s26 = sadd.s32 1, %s22
    $region7: #{tpu_custom_call.1} parent=1 // loop_footer_branch
      %21 = sbr.rel target = $region3
    $region8: #{tpu_custom_call.1} parent=1 // loop_exit
      _
    %10279 = vsyncpa [#allocation6], 1
    %s10280 = scalar_lea.sflag [#allocation6], 1
    %10281 = vsyncpa %s10280, 1
    %10282 = vsyncpa [#allocation7], 1
    %s10283 = scalar_lea.sflag [#allocation7], 1
    %10284 = vsyncpa %s10283, 1

</llo_original>
